<compile_context>
chip_gen: v7x
topology: tpu7x:2x2x1
jax: 0.10.0
libtpu: 0.0.40
codegen_flags: <defaults>
</compile_context>

<pallas_src>
import functools
import math

import jax
import jax.numpy as jnp
from jax.experimental import pallas as pl
from jax.experimental.pallas import tpu as pltpu

COMPUTE_DTYPE = jnp.bfloat16   # MXU input dtype (accumulation stays f32)
LN_EPS = 1e-5

_WEIGHT_ORDER = ("sa_wq", "sa_wk", "sa_wv", "sa_wo", "sa_bq", "sa_bk", "sa_bv", "sa_bo",
                 "ca_wq", "ca_wk", "ca_wv", "ca_wo", "ca_bq", "ca_bk", "ca_bv", "ca_bo",
                 "ffn_w1", "ffn_w2", "ffn_b1", "ffn_b2",
                 "ln1_w", "ln1_b", "ln2_w", "ln2_b", "ln3_w", "ln3_b",
                 "norm_w", "norm_b")
_MATMUL_WEIGHTS = ("sa_wq", "sa_wk", "sa_wv", "sa_wo",
                   "ca_wq", "ca_wk", "ca_wv", "ca_wo", "ffn_w1", "ffn_w2")


# ---------------------------------------------------------------------------
# in-kernel helpers (values resident in vregs, f32 math unless noted)
# ---------------------------------------------------------------------------
def _layer_norm(x, w, b):
    mu = jnp.mean(x, axis=-1, keepdims=True)
    xc = x - mu
    var = jnp.mean(xc * xc, axis=-1, keepdims=True)
    return xc * jax.lax.rsqrt(var + LN_EPS) * w + b


def _mha(q_in, k_in, v_in, wq, bq, wk, bk, wv, bv, wo, bo, *, bsz, nhead, cd):
    """Multi-head attention.

    q_in:(bsz*Lq,D) k_in/v_in:(bsz*Lk,D) in compute dtype; weights (D,D) in compute dtype
    (1/sqrt(head_dim) already folded into wq/bq), biases (1,D) f32. Returns (bsz*Lq,D) f32.
    """
    Mq, D = q_in.shape
    Mk = k_in.shape[0]
    Lq = Mq // bsz
    Lk = Mk // bsz
    hd = D // nhead

    # projections with batch folded into M (f32 accumulation on the MXU)
    q = jnp.dot(q_in, wq.astype(cd), preferred_element_type=jnp.float32) + bq
    k = jnp.dot(k_in, wk.astype(cd), preferred_element_type=jnp.float32) + bk
    v = jnp.dot(v_in, wv.astype(cd), preferred_element_type=jnp.float32) + bv

    q3 = q.astype(cd).reshape(bsz, Lq, D)
    k3 = k.astype(cd).reshape(bsz, Lk, D)
    v3 = v.astype(cd).reshape(bsz, Lk, D)
    wo_c = wo.astype(cd)

    # per-head: batched (over batch) score/context einsums; context goes straight into the
    # out-projection accumulator (no per-head concat).
    acc = jnp.zeros((Mq, D), jnp.float32)
    for h in range(nhead):                               # static unroll over heads
        sl = slice(h * hd, (h + 1) * hd)
        s = jnp.einsum("bqd,bkd->bqk", q3[..., sl], k3[..., sl],
                       preferred_element_type=jnp.float32)      # scale folded into wq/bq
        s = s - jnp.max(s, axis=-1, keepdims=True)
        p = jnp.exp(s)
        p = p * pl.reciprocal(jnp.sum(p, axis=-1, keepdims=True), approx=True)
        ctx = jnp.einsum("bqk,bkd->bqd", p.astype(cd), v3[..., sl],
                         preferred_element_type=jnp.float32)    # (bsz, Lq, hd)
        acc = acc + jnp.dot(ctx.reshape(Mq, hd).astype(cd), wo_c[sl, :],
                            preferred_element_type=jnp.float32)
    return acc + bo


# ---------------------------------------------------------------------------
# fused kernel: grid = (batch_chunks, layers); one grid step == one layer of one chunk.
# Per-layer weights stream through VMEM (pipelined along the layer axis); the running
# activations and the bf16 memory/(memory+pos) stay in VMEM scratch across layers.
# ---------------------------------------------------------------------------
def _decoder_layer_kernel(
    tgt_ref, mem_ref, qpos_ref, pos_ref,
    sa_wq_ref, sa_wk_ref, sa_wv_ref, sa_wo_ref,
    sa_bq_ref, sa_bk_ref, sa_bv_ref, sa_bo_ref,
    ca_wq_ref, ca_wk_ref, ca_wv_ref, ca_wo_ref,
    ca_bq_ref, ca_bk_ref, ca_bv_ref, ca_bo_ref,
    ffn_w1_ref, ffn_w2_ref, ffn_b1_ref, ffn_b2_ref,
    ln1_w_ref, ln1_b_ref, ln2_w_ref, ln2_b_ref, ln3_w_ref, ln3_b_ref,
    norm_w_ref, norm_b_ref,
    out_ref,
    x_sc, memk_sc, memv_sc,
    *, nhead, cd):
    layer = pl.program_id(1)
    n_layers = pl.num_programs(1)
    Bc, Lq, D = tgt_ref.shape
    Lk = mem_ref.shape[1]
    M = Bc * Lq

    # one-time (per batch chunk) setup: running activations + bf16 cross-attn K/V inputs
    @pl.when(layer == 0)
    def _():
        x_sc[...] = tgt_ref[...].reshape(M, D).astype(jnp.float32)
        memv_sc[...] = mem_ref[...].reshape(Bc * Lk, D).astype(cd)
        memk_sc[...] = (mem_ref[...] + pos_ref[...]).reshape(Bc * Lk, D).astype(cd)

    x = x_sc[...]                                                    # (M, D) f32
    qpos = qpos_ref[...].reshape(M, D).astype(jnp.float32)

    # --- self attention (q = k = x + query_pos, v = x) + residual + LN1 ---
    xq = (x + qpos).astype(cd)
    sa = _mha(xq, xq, x.astype(cd),
              sa_wq_ref[0], sa_bq_ref[0], sa_wk_ref[0], sa_bk_ref[0],
              sa_wv_ref[0], sa_bv_ref[0], sa_wo_ref[0], sa_bo_ref[0],
              bsz=Bc, nhead=nhead, cd=cd)
    x = _layer_norm(x + sa, ln1_w_ref[0], ln1_b_ref[0])

    # --- cross attention (q = x + query_pos, k = memory + pos, v = memory) + LN2 ---
    ca = _mha((x + qpos).astype(cd), memk_sc[...], memv_sc[...],
              ca_wq_ref[0], ca_bq_ref[0], ca_wk_ref[0], ca_bk_ref[0],
              ca_wv_ref[0], ca_bv_ref[0], ca_wo_ref[0], ca_bo_ref[0],
              bsz=Bc, nhead=nhead, cd=cd)
    x = _layer_norm(x + ca, ln2_w_ref[0], ln2_b_ref[0])

    # --- FFN: linear1 -> ReLU -> linear2 + residual + LN3 (dropout = identity, eval) ---
    h = jnp.dot(x.astype(cd), ffn_w1_ref[0], preferred_element_type=jnp.float32) + ffn_b1_ref[0]
    h = jnp.maximum(h, 0.0)
    ff = jnp.dot(h.astype(cd), ffn_w2_ref[0], preferred_element_type=jnp.float32) + ffn_b2_ref[0]
    x = _layer_norm(x + ff, ln3_w_ref[0], ln3_b_ref[0])

    x_sc[...] = x

    # final TransformerDecoder.norm, written once on the last layer step
    @pl.when(layer == n_layers - 1)
    def _():
        y = _layer_norm(x, norm_w_ref[...], norm_b_ref[...])
        out_ref[...] = y.reshape(Bc, Lq, D).astype(out_ref.dtype)


# ---------------------------------------------------------------------------
# wrapper
# ---------------------------------------------------------------------------
def transformer_decoder_forward(tgt, memory, kparams, *, nhead, query_pos=None, pos=None,
                                tgt_mask=None, memory_mask=None,
                                tgt_key_padding_mask=None, memory_key_padding_mask=None,
                                num_batch_chunks=1):
    """tgt: (Lq, B, D), memory: (Lk, B, D) -> (1, Lq, B, D)  (return_intermediate=False)."""
    if any(m is not None for m in
           (tgt_mask, memory_mask, tgt_key_padding_mask, memory_key_padding_mask)):
        # TODO(synk): attention / key-padding masks not implemented (callers here pass None).
        raise NotImplementedError("attention masks not supported in this Pallas port")
    # TODO(synk): return_intermediate=True (stacked per-layer outputs) not implemented.

    Lq, B, D = tgt.shape
    Lk = memory.shape[0]
    if query_pos is None:
        query_pos = jnp.zeros_like(tgt)
    if pos is None:
        pos = jnp.zeros_like(memory)
    assert B % num_batch_chunks == 0
    Bc = B // num_batch_chunks
    L = kparams["sa_wq"].shape[0]
    Dff = kparams["ffn_w1"].shape[-1]

    # batch-first so the kernel sees lane-dense (seq, d_model) tiles.
    # TODO(synk): keep activations batch-first upstream to drop these HBM round-trips.
    tgt_b = jnp.transpose(tgt, (1, 0, 2))
    mem_b = jnp.transpose(memory, (1, 0, 2))
    qpos_b = jnp.transpose(query_pos, (1, 0, 2))
    pos_b = jnp.transpose(pos, (1, 0, 2))

    def act_spec(seq):
        return pl.BlockSpec((Bc, seq, D), lambda b, l: (b, 0, 0))

    def weight_spec(arr):
        if arr.ndim == 2:                                   # final-norm params (1, D)
            return pl.BlockSpec(arr.shape, lambda b, l: (0, 0))
        return pl.BlockSpec((1,) + arr.shape[1:], lambda b, l: (l, 0, 0))

    in_specs = ([act_spec(Lq), act_spec(Lk), act_spec(Lq), act_spec(Lk)]
                + [weight_spec(kparams[n]) for n in _WEIGHT_ORDER])

    # advisory cost estimate so XLA can schedule surrounding ops around the fused call
    flops_layer = (
        2 * B * Lq * D * (4 * D)            # self-attn q/k/v/out projections
        + 4 * B * Lq * Lq * D               # self-attn scores + context
        + 2 * B * Lq * D * (2 * D)          # cross-attn q + out projections
        + 2 * B * Lk * D * (2 * D)          # cross-attn k/v projections
        + 4 * B * Lq * Lk * D               # cross-attn scores + context
        + 4 * B * Lq * D * Dff              # FFN
    )
    transcendentals = L * B * nhead * (Lq * Lq + Lq * Lk)
    bytes_accessed = (sum(int(a.size) * a.dtype.itemsize for a in (tgt_b, mem_b, qpos_b, pos_b))
                      + sum(int(kparams[n].size) * kparams[n].dtype.itemsize
                            for n in _WEIGHT_ORDER)
                      + B * Lq * D * tgt.dtype.itemsize)

    kernel = functools.partial(_decoder_layer_kernel, nhead=nhead, cd=COMPUTE_DTYPE)

    out_b = pl.pallas_call(
        kernel,
        out_shape=jax.ShapeDtypeStruct((B, Lq, D), tgt.dtype),
        grid=(num_batch_chunks, L),
        in_specs=in_specs,
        out_specs=pl.BlockSpec((Bc, Lq, D), lambda b, l: (b, 0, 0)),
        scratch_shapes=[pltpu.VMEM((Bc * Lq, D), jnp.float32),    # running activations
                        pltpu.VMEM((Bc * Lk, D), COMPUTE_DTYPE),  # memory + pos  (cross K input)
                        pltpu.VMEM((Bc * Lk, D), COMPUTE_DTYPE)], # memory        (cross V input)
        compiler_params=pltpu.CompilerParams(
            dimension_semantics=("parallel", "arbitrary"),  # batch chunks shard v7x's 2 TCs
            vmem_limit_bytes=32 * 1024 * 1024),
        cost_estimate=pl.CostEstimate(flops=L * flops_layer,
                                      transcendentals=transcendentals,
                                      bytes_accessed=bytes_accessed),
    )(tgt_b, mem_b, qpos_b, pos_b, *(kparams[n] for n in _WEIGHT_ORDER))

    out = jnp.transpose(out_b, (1, 0, 2))      # back to (Lq, B, D)
    return out[None]                           # == output.unsqueeze(0)


# ---------------------------------------------------------------------------
# params: f32, PyTorch-equivalent; linear weights pre-transposed (in, out), biases (1, out)
# so y = x @ W + b matches torch's y = x @ W_t.T + b.
# ---------------------------------------------------------------------------
def init_decoder_params(key, d_model, dim_feedforward, num_layers):
    def lin(k, fan_in, fan_out):
        kw, kb = jax.random.split(k)
        bound = 1.0 / math.sqrt(fan_in)
        w = jax.random.uniform(kw, (fan_in, fan_out), jnp.float32, -bound, bound)
        b = jax.random.uniform(kb, (1, fan_out), jnp.float32, -bound, bound)
        return w, b

    names = [n for n in _WEIGHT_ORDER if n not in ("norm_w", "norm_b")]
    acc = {n: [] for n in names}
    for _ in range(num_layers):
        key, *ks = jax.random.split(key, 11)
        for pre, kq, kk, kv, ko in (("sa", ks[0], ks[1], ks[2], ks[3]),
                                    ("ca", ks[4], ks[5], ks[6], ks[7])):
            w, b = lin(kq, d_model, d_model); acc[pre + "_wq"].append(w); acc[pre + "_bq"].append(b)
            w, b = lin(kk, d_model, d_model); acc[pre + "_wk"].append(w); acc[pre + "_bk"].append(b)
            w, b = lin(kv, d_model, d_model); acc[pre + "_wv"].append(w); acc[pre + "_bv"].append(b)
            w, b = lin(ko, d_model, d_model); acc[pre + "_wo"].append(w); acc[pre + "_bo"].append(b)
        w, b = lin(ks[8], d_model, dim_feedforward); acc["ffn_w1"].append(w); acc["ffn_b1"].append(b)
        w, b = lin(ks[9], dim_feedforward, d_model); acc["ffn_w2"].append(w); acc["ffn_b2"].append(b)
        for n in ("ln1", "ln2", "ln3"):
            acc[n + "_w"].append(jnp.ones((1, d_model), jnp.float32))
            acc[n + "_b"].append(jnp.zeros((1, d_model), jnp.float32))
    params = {n: jnp.stack(v) for n, v in acc.items()}
    params["norm_w"] = jnp.ones((1, d_model), jnp.float32)
    params["norm_b"] = jnp.zeros((1, d_model), jnp.float32)
    return params


def prepare_kernel_params(params, nhead):
    """Fold 1/sqrt(head_dim) into the q projection and cast matmul weights to bf16."""
    d_model = params["sa_wq"].shape[-1]
    scale = 1.0 / math.sqrt(d_model // nhead)
    kp = dict(params)
    for pre in ("sa", "ca"):
        kp[pre + "_wq"] = kp[pre + "_wq"] * scale
        kp[pre + "_bq"] = kp[pre + "_bq"] * scale
    for n in _MATMUL_WEIGHTS:     # bf16 weights: native MXU rate + half the weight DMA bytes
        kp[n] = kp[n].astype(COMPUTE_DTYPE)
    return kp


# ---------------------------------------------------------------------------
# pure-JAX f32 reference (batch-first) for numerical verification
# ---------------------------------------------------------------------------
def decoder_reference(tgt_b, mem_b, qpos_b, pos_b, params, nhead):
    def ln(x, w, b):
        mu = x.mean(-1, keepdims=True)
        xc = x - mu
        var = (xc * xc).mean(-1, keepdims=True)
        return xc * jax.lax.rsqrt(var + LN_EPS) * w + b

    def mha(q_in, k_in, v_in, wq, bq, wk, bk, wv, bv, wo, bo):
        Bz, Lq, d = q_in.shape
        Lk = k_in.shape[1]
        hd = d // nhead
        q = q_in @ wq + bq
        k = k_in @ wk + bk
        v = v_in @ wv + bv
        qh = q.reshape(Bz, Lq, nhead, hd)
        kh = k.reshape(Bz, Lk, nhead, hd)
        vh = v.reshape(Bz, Lk, nhead, hd)
        s = jnp.einsum("bqhd,bkhd->bhqk", qh, kh) / math.sqrt(hd)
        p = jax.nn.softmax(s, axis=-1)
        o = jnp.einsum("bhqk,bkhd->bqhd", p, vh).reshape(Bz, Lq, d)
        return o @ wo + bo

    x = tgt_b
    mem_k = mem_b + pos_b
    L = params["sa_wq"].shape[0]
    for l in range(L):
        qk = x + qpos_b
        sa = mha(qk, qk, x,
                 params["sa_wq"][l], params["sa_bq"][l], params["sa_wk"][l], params["sa_bk"][l],
                 params["sa_wv"][l], params["sa_bv"][l], params["sa_wo"][l], params["sa_bo"][l])
        x = ln(x + sa, params["ln1_w"][l], params["ln1_b"][l])
        ca = mha(x + qpos_b, mem_k, mem_b,
                 params["ca_wq"][l], params["ca_bq"][l], params["ca_wk"][l], params["ca_bk"][l],
                 params["ca_wv"][l], params["ca_bv"][l], params["ca_wo"][l], params["ca_bo"][l])
        x = ln(x + ca, params["ln2_w"][l], params["ln2_b"][l])
        h = jnp.maximum(x @ params["ffn_w1"][l] + params["ffn_b1"][l], 0.0)
        x = ln(x + h @ params["ffn_w2"][l] + params["ffn_b2"][l],
               params["ln3_w"][l], params["ln3_b"][l])
    return ln(x, params["norm_w"], params["norm_b"])


if __name__ == "__main__":
    key = jax.random.PRNGKey(0)
    k_tgt, k_mem, k_qp, k_pos, k_par = jax.random.split(key, 5)

    # small but lane-friendly: d_model=128 (full lane tile), ff=256, seq lens multiples of 8
    num_queries, mem_len, batch = 16, 32, 2
    d_model, nhead, dim_feedforward, num_layers = 128, 4, 256, 2

    tgt = jax.random.normal(k_tgt, (num_queries, batch, d_model), jnp.float32)
    memory = jax.random.normal(k_mem, (mem_len, batch, d_model), jnp.float32)
    query_pos = jax.random.normal(k_qp, (num_queries, batch, d_model), jnp.float32)
    pos = jax.random.normal(k_pos, (mem_len, batch, d_model), jnp.float32)

    params = init_decoder_params(k_par, d_model, dim_feedforward, num_layers)
    kparams = prepare_kernel_params(params, nhead)

    out = transformer_decoder_forward(tgt, memory, kparams, nhead=nhead,
                                      query_pos=query_pos, pos=pos)
    out = jax.block_until_ready(out)
    assert out.shape == (1, num_queries, batch, d_model), out.shape

    ref_b = decoder_reference(jnp.transpose(tgt, (1, 0, 2)),
                              jnp.transpose(memory, (1, 0, 2)),
                              jnp.transpose(query_pos, (1, 0, 2)),
                              jnp.transpose(pos, (1, 0, 2)),
                              params, nhead)
    ref = jnp.transpose(ref_b, (1, 0, 2))[None]
    err = float(jnp.max(jnp.abs(out - ref)))
    # bf16 MXU inputs / bf16-stored weights -> loosened tolerance vs the f32 reference
    assert jnp.allclose(out, ref, atol=7.5e-2, rtol=7.5e-2), f"mismatch vs reference: {err}"

    print("KERNEL_OK")
</pallas_src>

<mosaic_0001>
module attributes {stable_mosaic.version = 11 : i64} {
  func.func @_decoder_layer_kernel(%arg0: i32, %arg1: i32, %arg2: memref<2x16x128xf32, #tpu.memory_space<vmem>>, %arg3: memref<2x32x128xf32, #tpu.memory_space<vmem>>, %arg4: memref<2x16x128xf32, #tpu.memory_space<vmem>>, %arg5: memref<2x32x128xf32, #tpu.memory_space<vmem>>, %arg6: memref<1x128x128xbf16, #tpu.memory_space<vmem>>, %arg7: memref<1x128x128xbf16, #tpu.memory_space<vmem>>, %arg8: memref<1x128x128xbf16, #tpu.memory_space<vmem>>, %arg9: memref<1x128x128xbf16, #tpu.memory_space<vmem>>, %arg10: memref<1x1x128xf32, #tpu.memory_space<vmem>>, %arg11: memref<1x1x128xf32, #tpu.memory_space<vmem>>, %arg12: memref<1x1x128xf32, #tpu.memory_space<vmem>>, %arg13: memref<1x1x128xf32, #tpu.memory_space<vmem>>, %arg14: memref<1x128x128xbf16, #tpu.memory_space<vmem>>, %arg15: memref<1x128x128xbf16, #tpu.memory_space<vmem>>, %arg16: memref<1x128x128xbf16, #tpu.memory_space<vmem>>, %arg17: memref<1x128x128xbf16, #tpu.memory_space<vmem>>, %arg18: memref<1x1x128xf32, #tpu.memory_space<vmem>>, %arg19: memref<1x1x128xf32, #tpu.memory_space<vmem>>, %arg20: memref<1x1x128xf32, #tpu.memory_space<vmem>>, %arg21: memref<1x1x128xf32, #tpu.memory_space<vmem>>, %arg22: memref<1x128x256xbf16, #tpu.memory_space<vmem>>, %arg23: memref<1x256x128xbf16, #tpu.memory_space<vmem>>, %arg24: memref<1x1x256xf32, #tpu.memory_space<vmem>>, %arg25: memref<1x1x128xf32, #tpu.memory_space<vmem>>, %arg26: memref<1x1x128xf32, #tpu.memory_space<vmem>>, %arg27: memref<1x1x128xf32, #tpu.memory_space<vmem>>, %arg28: memref<1x1x128xf32, #tpu.memory_space<vmem>>, %arg29: memref<1x1x128xf32, #tpu.memory_space<vmem>>, %arg30: memref<1x1x128xf32, #tpu.memory_space<vmem>>, %arg31: memref<1x1x128xf32, #tpu.memory_space<vmem>>, %arg32: memref<1x128xf32, #tpu.memory_space<vmem>>, %arg33: memref<1x128xf32, #tpu.memory_space<vmem>>, %arg34: memref<2x16x128xf32, #tpu.memory_space<vmem>>, %arg35: memref<32x128xf32, #tpu.memory_space<vmem>>, %arg36: memref<64x128xbf16, #tpu.memory_space<vmem>>, %arg37: memref<64x128xbf16, #tpu.memory_space<vmem>>) attributes {dimension_semantics = [#tpu.dimension_semantics<parallel>, #tpu.dimension_semantics<arbitrary>], iteration_bounds = array<i64: 1, 2>, scalar_prefetch = 0 : i64, scratch_operands = 3 : i64, tpu.core_type = #tpu.core_type<tc>, window_params = [{transform_indices = @transform_0, window_bounds = array<i64: 2, 16, 128>}, {transform_indices = @transform_1, window_bounds = array<i64: 2, 32, 128>}, {transform_indices = @transform_2, window_bounds = array<i64: 2, 16, 128>}, {transform_indices = @transform_3, window_bounds = array<i64: 2, 32, 128>}, {transform_indices = @transform_4, window_bounds = array<i64: 1, 128, 128>}, {transform_indices = @transform_5, window_bounds = array<i64: 1, 128, 128>}, {transform_indices = @transform_6, window_bounds = array<i64: 1, 128, 128>}, {transform_indices = @transform_7, window_bounds = array<i64: 1, 128, 128>}, {transform_indices = @transform_8, window_bounds = array<i64: 1, 1, 128>}, {transform_indices = @transform_9, window_bounds = array<i64: 1, 1, 128>}, {transform_indices = @transform_10, window_bounds = array<i64: 1, 1, 128>}, {transform_indices = @transform_11, window_bounds = array<i64: 1, 1, 128>}, {transform_indices = @transform_12, window_bounds = array<i64: 1, 128, 128>}, {transform_indices = @transform_13, window_bounds = array<i64: 1, 128, 128>}, {transform_indices = @transform_14, window_bounds = array<i64: 1, 128, 128>}, {transform_indices = @transform_15, window_bounds = array<i64: 1, 128, 128>}, {transform_indices = @transform_16, window_bounds = array<i64: 1, 1, 128>}, {transform_indices = @transform_17, window_bounds = array<i64: 1, 1, 128>}, {transform_indices = @transform_18, window_bounds = array<i64: 1, 1, 128>}, {transform_indices = @transform_19, window_bounds = array<i64: 1, 1, 128>}, {transform_indices = @transform_20, window_bounds = array<i64: 1, 128, 256>}, {transform_indices = @transform_21, window_bounds = array<i64: 1, 256, 128>}, {transform_indices = @transform_22, window_bounds = array<i64: 1, 1, 256>}, {transform_indices = @transform_23, window_bounds = array<i64: 1, 1, 128>}, {transform_indices = @transform_24, window_bounds = array<i64: 1, 1, 128>}, {transform_indices = @transform_25, window_bounds = array<i64: 1, 1, 128>}, {transform_indices = @transform_26, window_bounds = array<i64: 1, 1, 128>}, {transform_indices = @transform_27, window_bounds = array<i64: 1, 1, 128>}, {transform_indices = @transform_28, window_bounds = array<i64: 1, 1, 128>}, {transform_indices = @transform_29, window_bounds = array<i64: 1, 1, 128>}, {pipeline_mode = #tpu.pipeline_mode<synchronous>, transform_indices = @transform_30, window_bounds = array<i64: 1, 128>}, {pipeline_mode = #tpu.pipeline_mode<synchronous>, transform_indices = @transform_31, window_bounds = array<i64: 1, 128>}, {transform_indices = @transform_32, window_bounds = array<i64: 2, 16, 128>}]} {
    %c0_i32 = arith.constant 0 : i32
    %0 = arith.cmpi eq, %arg1, %c0_i32 : i32
    %1 = arith.extui %0 : i1 to i32
    %c0_i32_0 = arith.constant 0 : i32
    %2 = arith.cmpi ne, %1, %c0_i32_0 : i32
    scf.if %2 {
      %c0_155 = arith.constant 0 : index
      %c0_156 = arith.constant 0 : index
      %c0_157 = arith.constant 0 : index
      %346 = vector.load %arg2[%c0_155, %c0_156, %c0_157] : memref<2x16x128xf32, #tpu.memory_space<vmem>>, vector<2x16x128xf32>
      %347 = vector.shape_cast %346 : vector<2x16x128xf32> to vector<32x128xf32>
      %c0_158 = arith.constant 0 : index
      %c0_159 = arith.constant 0 : index
      %348 = vector.load %arg35[%c0_158, %c0_159] : memref<32x128xf32, #tpu.memory_space<vmem>>, vector<32x128xf32>
      tpu.vector_store %arg35[%c0_158, %c0_159], %347 {strides = array<i32>} : memref<32x128xf32, #tpu.memory_space<vmem>>, vector<32x128xf32>,
      %c0_160 = arith.constant 0 : index
      %c0_161 = arith.constant 0 : index
      %c0_162 = arith.constant 0 : index
      %349 = vector.load %arg3[%c0_160, %c0_161, %c0_162] : memref<2x32x128xf32, #tpu.memory_space<vmem>>, vector<2x32x128xf32>
      %350 = vector.shape_cast %349 : vector<2x32x128xf32> to vector<64x128xf32>
      %351 = arith.truncf %350 : vector<64x128xf32> to vector<64x128xbf16>
      %c0_163 = arith.constant 0 : index
      %c0_164 = arith.constant 0 : index
      %352 = vector.load %arg37[%c0_163, %c0_164] : memref<64x128xbf16, #tpu.memory_space<vmem>>, vector<64x128xbf16>
      tpu.vector_store %arg37[%c0_163, %c0_164], %351 {strides = array<i32>} : memref<64x128xbf16, #tpu.memory_space<vmem>>, vector<64x128xbf16>,
      %c0_165 = arith.constant 0 : index
      %c0_166 = arith.constant 0 : index
      %c0_167 = arith.constant 0 : index
      %353 = vector.load %arg3[%c0_165, %c0_166, %c0_167] : memref<2x32x128xf32, #tpu.memory_space<vmem>>, vector<2x32x128xf32>
      %c0_168 = arith.constant 0 : index
      %c0_169 = arith.constant 0 : index
      %c0_170 = arith.constant 0 : index
      %354 = vector.load %arg5[%c0_168, %c0_169, %c0_170] : memref<2x32x128xf32, #tpu.memory_space<vmem>>, vector<2x32x128xf32>
      %355 = arith.addf %353, %354 : vector<2x32x128xf32>
      %356 = vector.shape_cast %355 : vector<2x32x128xf32> to vector<64x128xf32>
      %357 = arith.truncf %356 : vector<64x128xf32> to vector<64x128xbf16>
      %c0_171 = arith.constant 0 : index
      %c0_172 = arith.constant 0 : index
      %358 = vector.load %arg36[%c0_171, %c0_172] : memref<64x128xbf16, #tpu.memory_space<vmem>>, vector<64x128xbf16>
      tpu.vector_store %arg36[%c0_171, %c0_172], %357 {strides = array<i32>} : memref<64x128xbf16, #tpu.memory_space<vmem>>, vector<64x128xbf16>,
    } else {
    }
    %c0 = arith.constant 0 : index
    %c0_1 = arith.constant 0 : index
    %3 = vector.load %arg35[%c0, %c0_1] : memref<32x128xf32, #tpu.memory_space<vmem>>, vector<32x128xf32>
    %c0_2 = arith.constant 0 : index
    %c0_3 = arith.constant 0 : index
    %c0_4 = arith.constant 0 : index
    %4 = vector.load %arg4[%c0_2, %c0_3, %c0_4] : memref<2x16x128xf32, #tpu.memory_space<vmem>>, vector<2x16x128xf32>
    %5 = vector.shape_cast %4 : vector<2x16x128xf32> to vector<32x128xf32>
    %6 = arith.addf %3, %5 : vector<32x128xf32>
    %7 = arith.truncf %6 : vector<32x128xf32> to vector<32x128xbf16>
    %8 = arith.truncf %3 : vector<32x128xf32> to vector<32x128xbf16>
    %c0_5 = arith.constant 0 : index
    %c0_6 = arith.constant 0 : index
    %c0_7 = arith.constant 0 : index
    %9 = vector.load %arg6[%c0_5, %c0_6, %c0_7] : memref<1x128x128xbf16, #tpu.memory_space<vmem>>, vector<1x128x128xbf16>
    %10 = vector.shape_cast %9 : vector<1x128x128xbf16> to vector<128x128xbf16>
    %c0_8 = arith.constant 0 : index
    %c0_9 = arith.constant 0 : index
    %c0_10 = arith.constant 0 : index
    %11 = vector.load %arg10[%c0_8, %c0_9, %c0_10] : memref<1x1x128xf32, #tpu.memory_space<vmem>>, vector<1x1x128xf32>
    %12 = vector.shape_cast %11 : vector<1x1x128xf32> to vector<1x128xf32>
    %c0_11 = arith.constant 0 : index
    %c0_12 = arith.constant 0 : index
    %c0_13 = arith.constant 0 : index
    %13 = vector.load %arg7[%c0_11, %c0_12, %c0_13] : memref<1x128x128xbf16, #tpu.memory_space<vmem>>, vector<1x128x128xbf16>
    %14 = vector.shape_cast %13 : vector<1x128x128xbf16> to vector<128x128xbf16>
    %c0_14 = arith.constant 0 : index
    %c0_15 = arith.constant 0 : index
    %c0_16 = arith.constant 0 : index
    %15 = vector.load %arg11[%c0_14, %c0_15, %c0_16] : memref<1x1x128xf32, #tpu.memory_space<vmem>>, vector<1x1x128xf32>
    %16 = vector.shape_cast %15 : vector<1x1x128xf32> to vector<1x128xf32>
    %c0_17 = arith.constant 0 : index
    %c0_18 = arith.constant 0 : index
    %c0_19 = arith.constant 0 : index
    %17 = vector.load %arg8[%c0_17, %c0_18, %c0_19] : memref<1x128x128xbf16, #tpu.memory_space<vmem>>, vector<1x128x128xbf16>
    %18 = vector.shape_cast %17 : vector<1x128x128xbf16> to vector<128x128xbf16>
    %c0_20 = arith.constant 0 : index
    %c0_21 = arith.constant 0 : index
    %c0_22 = arith.constant 0 : index
    %19 = vector.load %arg12[%c0_20, %c0_21, %c0_22] : memref<1x1x128xf32, #tpu.memory_space<vmem>>, vector<1x1x128xf32>
    %20 = vector.shape_cast %19 : vector<1x1x128xf32> to vector<1x128xf32>
    %c0_23 = arith.constant 0 : index
    %c0_24 = arith.constant 0 : index
    %c0_25 = arith.constant 0 : index
    %21 = vector.load %arg9[%c0_23, %c0_24, %c0_25] : memref<1x128x128xbf16, #tpu.memory_space<vmem>>, vector<1x128x128xbf16>
    %22 = vector.shape_cast %21 : vector<1x128x128xbf16> to vector<128x128xbf16>
    %c0_26 = arith.constant 0 : index
    %c0_27 = arith.constant 0 : index
    %c0_28 = arith.constant 0 : index
    %23 = vector.load %arg13[%c0_26, %c0_27, %c0_28] : memref<1x1x128xf32, #tpu.memory_space<vmem>>, vector<1x1x128xf32>
    %24 = vector.shape_cast %23 : vector<1x1x128xf32> to vector<1x128xf32>
    %cst = arith.constant dense<0.000000e+00> : vector<32x128xf32>
    %25 = tpu.matmul %7, %10, %cst {dimension_numbers = #tpu.dot_dimension_numbers<[1], [0], [0], [1], [0, 0, 1, 1], [], []>} : vector<32x128xbf16>, vector<128x128xbf16>, vector<32x128xf32> -> vector<32x128xf32>
    %26 = vector.broadcast %12 : vector<1x128xf32> to vector<32x128xf32>
    %27 = arith.addf %25, %26 : vector<32x128xf32>
    %cst_29 = arith.constant dense<0.000000e+00> : vector<32x128xf32>
    %28 = tpu.matmul %7, %14, %cst_29 {dimension_numbers = #tpu.dot_dimension_numbers<[1], [0], [0], [1], [0, 0, 1, 1], [], []>} : vector<32x128xbf16>, vector<128x128xbf16>, vector<32x128xf32> -> vector<32x128xf32>
    %29 = vector.broadcast %16 : vector<1x128xf32> to vector<32x128xf32>
    %30 = arith.addf %28, %29 : vector<32x128xf32>
    %cst_30 = arith.constant dense<0.000000e+00> : vector<32x128xf32>
    %31 = tpu.matmul %8, %18, %cst_30 {dimension_numbers = #tpu.dot_dimension_numbers<[1], [0], [0], [1], [0, 0, 1, 1], [], []>} : vector<32x128xbf16>, vector<128x128xbf16>, vector<32x128xf32> -> vector<32x128xf32>
    %32 = vector.broadcast %20 : vector<1x128xf32> to vector<32x128xf32>
    %33 = arith.addf %31, %32 : vector<32x128xf32>
    %34 = arith.truncf %27 : vector<32x128xf32> to vector<32x128xbf16>
    %35 = vector.shape_cast %34 : vector<32x128xbf16> to vector<2x16x128xbf16>
    %36 = arith.truncf %30 : vector<32x128xf32> to vector<32x128xbf16>
    %37 = vector.shape_cast %36 : vector<32x128xbf16> to vector<2x16x128xbf16>
    %38 = arith.truncf %33 : vector<32x128xf32> to vector<32x128xbf16>
    %39 = vector.shape_cast %38 : vector<32x128xbf16> to vector<2x16x128xbf16>
    %cst_31 = arith.constant 0.000000e+00 : f32
    %40 = vector.broadcast %cst_31 : f32 to vector<32x128xf32>
    %41 = vector.extract_strided_slice %35 {offsets = [0, 0, 0], sizes = [2, 16, 32], strides = [1, 1, 1]} : vector<2x16x128xbf16> to vector<2x16x32xbf16>
    %42 = vector.extract_strided_slice %37 {offsets = [0, 0, 0], sizes = [2, 16, 32], strides = [1, 1, 1]} : vector<2x16x128xbf16> to vector<2x16x32xbf16>
    "tpu.trace_start"() <{level = 10 : i32, message = "bqd,bkd->bqk"}> : () -> ()
    %cst_32 = arith.constant dense<0.000000e+00> : vector<2x16x16xf32>
    %43 = tpu.matmul %41, %42, %cst_32 {dimension_numbers = #tpu.dot_dimension_numbers<[2], [2], [1], [1], [0, 0, 0, 1, 1, 1], [0], [0]>} : vector<2x16x32xbf16>, vector<2x16x32xbf16>, vector<2x16x16xf32> -> vector<2x16x16xf32>
    "tpu.trace_stop"() : () -> ()
    %cst_33 = arith.constant dense<0xFF800000> : vector<2x16xf32>
    %44 = vector.multi_reduction <maximumf>, %43, %cst_33 [2] : vector<2x16x16xf32> to vector<2x16xf32>
    %45 = vector.shape_cast %44 : vector<2x16xf32> to vector<2x16x1xf32>
    %46 = vector.broadcast %45 : vector<2x16x1xf32> to vector<2x16x16xf32>
    %47 = arith.subf %43, %46 : vector<2x16x16xf32>
    %48 = math.exp %47 : vector<2x16x16xf32>
    %cst_34 = arith.constant dense<0.000000e+00> : vector<2x16xf32>
    %49 = vector.multi_reduction <add>, %48, %cst_34 [2] : vector<2x16x16xf32> to vector<2x16xf32>
    %50 = vector.shape_cast %49 : vector<2x16xf32> to vector<2x16x1xf32>
    %51 = tpu.reciprocal %50 {approx = true} : vector<2x16x1xf32> -> vector<2x16x1xf32>
    %52 = vector.broadcast %51 : vector<2x16x1xf32> to vector<2x16x16xf32>
    %53 = arith.mulf %48, %52 : vector<2x16x16xf32>
    %54 = arith.truncf %53 : vector<2x16x16xf32> to vector<2x16x16xbf16>
    %55 = vector.extract_strided_slice %39 {offsets = [0, 0, 0], sizes = [2, 16, 32], strides = [1, 1, 1]} : vector<2x16x128xbf16> to vector<2x16x32xbf16>
    "tpu.trace_start"() <{level = 10 : i32, message = "bqk,bkd->bqd"}> : () -> ()
    %cst_35 = arith.constant dense<0.000000e+00> : vector<2x16x32xf32>
    %56 = tpu.matmul %54, %55, %cst_35 {dimension_numbers = #tpu.dot_dimension_numbers<[2], [1], [1], [2], [0, 0, 0, 1, 1, 2], [0], [0]>} : vector<2x16x16xbf16>, vector<2x16x32xbf16>, vector<2x16x32xf32> -> vector<2x16x32xf32>
    "tpu.trace_stop"() : () -> ()
    %57 = vector.shape_cast %56 : vector<2x16x32xf32> to vector<32x32xf32>
    %58 = arith.truncf %57 : vector<32x32xf32> to vector<32x32xbf16>
    %59 = vector.extract_strided_slice %22 {offsets = [0, 0], sizes = [32, 128], strides = [1, 1]} : vector<128x128xbf16> to vector<32x128xbf16>
    %cst_36 = arith.constant dense<0.000000e+00> : vector<32x128xf32>
    %60 = tpu.matmul %58, %59, %cst_36 {dimension_numbers = #tpu.dot_dimension_numbers<[1], [0], [0], [1], [0, 0, 1, 1], [], []>} : vector<32x32xbf16>, vector<32x128xbf16>, vector<32x128xf32> -> vector<32x128xf32>
    %61 = arith.addf %40, %60 : vector<32x128xf32>
    %62 = vector.extract_strided_slice %35 {offsets = [0, 0, 32], sizes = [2, 16, 32], strides = [1, 1, 1]} : vector<2x16x128xbf16> to vector<2x16x32xbf16>
    %63 = vector.extract_strided_slice %37 {offsets = [0, 0, 32], sizes = [2, 16, 32], strides = [1, 1, 1]} : vector<2x16x128xbf16> to vector<2x16x32xbf16>
    "tpu.trace_start"() <{level = 10 : i32, message = "bqd,bkd->bqk"}> : () -> ()
    %cst_37 = arith.constant dense<0.000000e+00> : vector<2x16x16xf32>
    %64 = tpu.matmul %62, %63, %cst_37 {dimension_numbers = #tpu.dot_dimension_numbers<[2], [2], [1], [1], [0, 0, 0, 1, 1, 1], [0], [0]>} : vector<2x16x32xbf16>, vector<2x16x32xbf16>, vector<2x16x16xf32> -> vector<2x16x16xf32>
    "tpu.trace_stop"() : () -> ()
    %cst_38 = arith.constant dense<0xFF800000> : vector<2x16xf32>
    %65 = vector.multi_reduction <maximumf>, %64, %cst_38 [2] : vector<2x16x16xf32> to vector<2x16xf32>
    %66 = vector.shape_cast %65 : vector<2x16xf32> to vector<2x16x1xf32>
    %67 = vector.broadcast %66 : vector<2x16x1xf32> to vector<2x16x16xf32>
    %68 = arith.subf %64, %67 : vector<2x16x16xf32>
    %69 = math.exp %68 : vector<2x16x16xf32>
    %cst_39 = arith.constant dense<0.000000e+00> : vector<2x16xf32>
    %70 = vector.multi_reduction <add>, %69, %cst_39 [2] : vector<2x16x16xf32> to vector<2x16xf32>
    %71 = vector.shape_cast %70 : vector<2x16xf32> to vector<2x16x1xf32>
    %72 = tpu.reciprocal %71 {approx = true} : vector<2x16x1xf32> -> vector<2x16x1xf32>
    %73 = vector.broadcast %72 : vector<2x16x1xf32> to vector<2x16x16xf32>
    %74 = arith.mulf %69, %73 : vector<2x16x16xf32>
    %75 = arith.truncf %74 : vector<2x16x16xf32> to vector<2x16x16xbf16>
    %76 = vector.extract_strided_slice %39 {offsets = [0, 0, 32], sizes = [2, 16, 32], strides = [1, 1, 1]} : vector<2x16x128xbf16> to vector<2x16x32xbf16>
    "tpu.trace_start"() <{level = 10 : i32, message = "bqk,bkd->bqd"}> : () -> ()
    %cst_40 = arith.constant dense<0.000000e+00> : vector<2x16x32xf32>
    %77 = tpu.matmul %75, %76, %cst_40 {dimension_numbers = #tpu.dot_dimension_numbers<[2], [1], [1], [2], [0, 0, 0, 1, 1, 2], [0], [0]>} : vector<2x16x16xbf16>, vector<2x16x32xbf16>, vector<2x16x32xf32> -> vector<2x16x32xf32>
    "tpu.trace_stop"() : () -> ()
    %78 = vector.shape_cast %77 : vector<2x16x32xf32> to vector<32x32xf32>
    %79 = arith.truncf %78 : vector<32x32xf32> to vector<32x32xbf16>
    %80 = vector.extract_strided_slice %22 {offsets = [32, 0], sizes = [32, 128], strides = [1, 1]} : vector<128x128xbf16> to vector<32x128xbf16>
    %cst_41 = arith.constant dense<0.000000e+00> : vector<32x128xf32>
    %81 = tpu.matmul %79, %80, %cst_41 {dimension_numbers = #tpu.dot_dimension_numbers<[1], [0], [0], [1], [0, 0, 1, 1], [], []>} : vector<32x32xbf16>, vector<32x128xbf16>, vector<32x128xf32> -> vector<32x128xf32>
    %82 = arith.addf %61, %81 : vector<32x128xf32>
    %83 = vector.extract_strided_slice %35 {offsets = [0, 0, 64], sizes = [2, 16, 32], strides = [1, 1, 1]} : vector<2x16x128xbf16> to vector<2x16x32xbf16>
    %84 = vector.extract_strided_slice %37 {offsets = [0, 0, 64], sizes = [2, 16, 32], strides = [1, 1, 1]} : vector<2x16x128xbf16> to vector<2x16x32xbf16>
    "tpu.trace_start"() <{level = 10 : i32, message = "bqd,bkd->bqk"}> : () -> ()
    %cst_42 = arith.constant dense<0.000000e+00> : vector<2x16x16xf32>
    %85 = tpu.matmul %83, %84, %cst_42 {dimension_numbers = #tpu.dot_dimension_numbers<[2], [2], [1], [1], [0, 0, 0, 1, 1, 1], [0], [0]>} : vector<2x16x32xbf16>, vector<2x16x32xbf16>, vector<2x16x16xf32> -> vector<2x16x16xf32>
    "tpu.trace_stop"() : () -> ()
    %cst_43 = arith.constant dense<0xFF800000> : vector<2x16xf32>
    %86 = vector.multi_reduction <maximumf>, %85, %cst_43 [2] : vector<2x16x16xf32> to vector<2x16xf32>
    %87 = vector.shape_cast %86 : vector<2x16xf32> to vector<2x16x1xf32>
    %88 = vector.broadcast %87 : vector<2x16x1xf32> to vector<2x16x16xf32>
    %89 = arith.subf %85, %88 : vector<2x16x16xf32>
    %90 = math.exp %89 : vector<2x16x16xf32>
    %cst_44 = arith.constant dense<0.000000e+00> : vector<2x16xf32>
    %91 = vector.multi_reduction <add>, %90, %cst_44 [2] : vector<2x16x16xf32> to vector<2x16xf32>
    %92 = vector.shape_cast %91 : vector<2x16xf32> to vector<2x16x1xf32>
    %93 = tpu.reciprocal %92 {approx = true} : vector<2x16x1xf32> -> vector<2x16x1xf32>
    %94 = vector.broadcast %93 : vector<2x16x1xf32> to vector<2x16x16xf32>
    %95 = arith.mulf %90, %94 : vector<2x16x16xf32>
    %96 = arith.truncf %95 : vector<2x16x16xf32> to vector<2x16x16xbf16>
    %97 = vector.extract_strided_slice %39 {offsets = [0, 0, 64], sizes = [2, 16, 32], strides = [1, 1, 1]} : vector<2x16x128xbf16> to vector<2x16x32xbf16>
    "tpu.trace_start"() <{level = 10 : i32, message = "bqk,bkd->bqd"}> : () -> ()
    %cst_45 = arith.constant dense<0.000000e+00> : vector<2x16x32xf32>
    %98 = tpu.matmul %96, %97, %cst_45 {dimension_numbers = #tpu.dot_dimension_numbers<[2], [1], [1], [2], [0, 0, 0, 1, 1, 2], [0], [0]>} : vector<2x16x16xbf16>, vector<2x16x32xbf16>, vector<2x16x32xf32> -> vector<2x16x32xf32>
    "tpu.trace_stop"() : () -> ()
    %99 = vector.shape_cast %98 : vector<2x16x32xf32> to vector<32x32xf32>
    %100 = arith.truncf %99 : vector<32x32xf32> to vector<32x32xbf16>
    %101 = vector.extract_strided_slice %22 {offsets = [64, 0], sizes = [32, 128], strides = [1, 1]} : vector<128x128xbf16> to vector<32x128xbf16>
    %cst_46 = arith.constant dense<0.000000e+00> : vector<32x128xf32>
    %102 = tpu.matmul %100, %101, %cst_46 {dimension_numbers = #tpu.dot_dimension_numbers<[1], [0], [0], [1], [0, 0, 1, 1], [], []>} : vector<32x32xbf16>, vector<32x128xbf16>, vector<32x128xf32> -> vector<32x128xf32>
    %103 = arith.addf %82, %102 : vector<32x128xf32>
    %104 = vector.extract_strided_slice %35 {offsets = [0, 0, 96], sizes = [2, 16, 32], strides = [1, 1, 1]} : vector<2x16x128xbf16> to vector<2x16x32xbf16>
    %105 = vector.extract_strided_slice %37 {offsets = [0, 0, 96], sizes = [2, 16, 32], strides = [1, 1, 1]} : vector<2x16x128xbf16> to vector<2x16x32xbf16>
    "tpu.trace_start"() <{level = 10 : i32, message = "bqd,bkd->bqk"}> : () -> ()
    %cst_47 = arith.constant dense<0.000000e+00> : vector<2x16x16xf32>
    %106 = tpu.matmul %104, %105, %cst_47 {dimension_numbers = #tpu.dot_dimension_numbers<[2], [2], [1], [1], [0, 0, 0, 1, 1, 1], [0], [0]>} : vector<2x16x32xbf16>, vector<2x16x32xbf16>, vector<2x16x16xf32> -> vector<2x16x16xf32>
    "tpu.trace_stop"() : () -> ()
    %cst_48 = arith.constant dense<0xFF800000> : vector<2x16xf32>
    %107 = vector.multi_reduction <maximumf>, %106, %cst_48 [2] : vector<2x16x16xf32> to vector<2x16xf32>
    %108 = vector.shape_cast %107 : vector<2x16xf32> to vector<2x16x1xf32>
    %109 = vector.broadcast %108 : vector<2x16x1xf32> to vector<2x16x16xf32>
    %110 = arith.subf %106, %109 : vector<2x16x16xf32>
    %111 = math.exp %110 : vector<2x16x16xf32>
    %cst_49 = arith.constant dense<0.000000e+00> : vector<2x16xf32>
    %112 = vector.multi_reduction <add>, %111, %cst_49 [2] : vector<2x16x16xf32> to vector<2x16xf32>
    %113 = vector.shape_cast %112 : vector<2x16xf32> to vector<2x16x1xf32>
    %114 = tpu.reciprocal %113 {approx = true} : vector<2x16x1xf32> -> vector<2x16x1xf32>
    %115 = vector.broadcast %114 : vector<2x16x1xf32> to vector<2x16x16xf32>
    %116 = arith.mulf %111, %115 : vector<2x16x16xf32>
    %117 = arith.truncf %116 : vector<2x16x16xf32> to vector<2x16x16xbf16>
    %118 = vector.extract_strided_slice %39 {offsets = [0, 0, 96], sizes = [2, 16, 32], strides = [1, 1, 1]} : vector<2x16x128xbf16> to vector<2x16x32xbf16>
    "tpu.trace_start"() <{level = 10 : i32, message = "bqk,bkd->bqd"}> : () -> ()
    %cst_50 = arith.constant dense<0.000000e+00> : vector<2x16x32xf32>
    %119 = tpu.matmul %117, %118, %cst_50 {dimension_numbers = #tpu.dot_dimension_numbers<[2], [1], [1], [2], [0, 0, 0, 1, 1, 2], [0], [0]>} : vector<2x16x16xbf16>, vector<2x16x32xbf16>, vector<2x16x32xf32> -> vector<2x16x32xf32>
    "tpu.trace_stop"() : () -> ()
    %120 = vector.shape_cast %119 : vector<2x16x32xf32> to vector<32x32xf32>
    %121 = arith.truncf %120 : vector<32x32xf32> to vector<32x32xbf16>
    %122 = vector.extract_strided_slice %22 {offsets = [96, 0], sizes = [32, 128], strides = [1, 1]} : vector<128x128xbf16> to vector<32x128xbf16>
    %cst_51 = arith.constant dense<0.000000e+00> : vector<32x128xf32>
    %123 = tpu.matmul %121, %122, %cst_51 {dimension_numbers = #tpu.dot_dimension_numbers<[1], [0], [0], [1], [0, 0, 1, 1], [], []>} : vector<32x32xbf16>, vector<32x128xbf16>, vector<32x128xf32> -> vector<32x128xf32>
    %124 = arith.addf %103, %123 : vector<32x128xf32>
    %125 = vector.broadcast %24 : vector<1x128xf32> to vector<32x128xf32>
    %126 = arith.addf %124, %125 : vector<32x128xf32>
    %127 = arith.addf %3, %126 : vector<32x128xf32>
    %c0_52 = arith.constant 0 : index
    %c0_53 = arith.constant 0 : index
    %c0_54 = arith.constant 0 : index
    %128 = vector.load %arg26[%c0_52, %c0_53, %c0_54] : memref<1x1x128xf32, #tpu.memory_space<vmem>>, vector<1x1x128xf32>
    %129 = vector.shape_cast %128 : vector<1x1x128xf32> to vector<1x128xf32>
    %c0_55 = arith.constant 0 : index
    %c0_56 = arith.constant 0 : index
    %c0_57 = arith.constant 0 : index
    %130 = vector.load %arg27[%c0_55, %c0_56, %c0_57] : memref<1x1x128xf32, #tpu.memory_space<vmem>>, vector<1x1x128xf32>
    %131 = vector.shape_cast %130 : vector<1x1x128xf32> to vector<1x128xf32>
    %cst_58 = arith.constant dense<0.000000e+00> : vector<32xf32>
    %132 = vector.multi_reduction <add>, %127, %cst_58 [1] : vector<32x128xf32> to vector<32xf32>
    %133 = vector.shape_cast %132 : vector<32xf32> to vector<32x1xf32>
    %cst_59 = arith.constant 1.280000e+02 : f32
    %134 = vector.broadcast %cst_59 : f32 to vector<32x1xf32>
    %135 = arith.divf %133, %134 : vector<32x1xf32>
    %136 = vector.broadcast %135 : vector<32x1xf32> to vector<32x128xf32>
    %137 = arith.subf %127, %136 : vector<32x128xf32>
    %138 = arith.mulf %137, %137 : vector<32x128xf32>
    %cst_60 = arith.constant dense<0.000000e+00> : vector<32xf32>
    %139 = vector.multi_reduction <add>, %138, %cst_60 [1] : vector<32x128xf32> to vector<32xf32>
    %140 = vector.shape_cast %139 : vector<32xf32> to vector<32x1xf32>
    %cst_61 = arith.constant 1.280000e+02 : f32
    %141 = vector.broadcast %cst_61 : f32 to vector<32x1xf32>
    %142 = arith.divf %140, %141 : vector<32x1xf32>
    %cst_62 = arith.constant 9.99999974E-6 : f32
    %143 = vector.broadcast %cst_62 : f32 to vector<32x1xf32>
    %144 = arith.addf %142, %143 : vector<32x1xf32>
    %145 = math.rsqrt %144 : vector<32x1xf32>
    %146 = vector.broadcast %145 : vector<32x1xf32> to vector<32x128xf32>
    %147 = arith.mulf %137, %146 : vector<32x128xf32>
    %148 = vector.broadcast %129 : vector<1x128xf32> to vector<32x128xf32>
    %149 = arith.mulf %147, %148 : vector<32x128xf32>
    %150 = vector.broadcast %131 : vector<1x128xf32> to vector<32x128xf32>
    %151 = arith.addf %149, %150 : vector<32x128xf32>
    %152 = arith.addf %151, %5 : vector<32x128xf32>
    %153 = arith.truncf %152 : vector<32x128xf32> to vector<32x128xbf16>
    %c0_63 = arith.constant 0 : index
    %c0_64 = arith.constant 0 : index
    %154 = vector.load %arg36[%c0_63, %c0_64] : memref<64x128xbf16, #tpu.memory_space<vmem>>, vector<64x128xbf16>
    %c0_65 = arith.constant 0 : index
    %c0_66 = arith.constant 0 : index
    %155 = vector.load %arg37[%c0_65, %c0_66] : memref<64x128xbf16, #tpu.memory_space<vmem>>, vector<64x128xbf16>
    %c0_67 = arith.constant 0 : index
    %c0_68 = arith.constant 0 : index
    %c0_69 = arith.constant 0 : index
    %156 = vector.load %arg14[%c0_67, %c0_68, %c0_69] : memref<1x128x128xbf16, #tpu.memory_space<vmem>>, vector<1x128x128xbf16>
    %157 = vector.shape_cast %156 : vector<1x128x128xbf16> to vector<128x128xbf16>
    %c0_70 = arith.constant 0 : index
    %c0_71 = arith.constant 0 : index
    %c0_72 = arith.constant 0 : index
    %158 = vector.load %arg18[%c0_70, %c0_71, %c0_72] : memref<1x1x128xf32, #tpu.memory_space<vmem>>, vector<1x1x128xf32>
    %159 = vector.shape_cast %158 : vector<1x1x128xf32> to vector<1x128xf32>
    %c0_73 = arith.constant 0 : index
    %c0_74 = arith.constant 0 : index
    %c0_75 = arith.constant 0 : index
    %160 = vector.load %arg15[%c0_73, %c0_74, %c0_75] : memref<1x128x128xbf16, #tpu.memory_space<vmem>>, vector<1x128x128xbf16>
    %161 = vector.shape_cast %160 : vector<1x128x128xbf16> to vector<128x128xbf16>
    %c0_76 = arith.constant 0 : index
    %c0_77 = arith.constant 0 : index
    %c0_78 = arith.constant 0 : index
    %162 = vector.load %arg19[%c0_76, %c0_77, %c0_78] : memref<1x1x128xf32, #tpu.memory_space<vmem>>, vector<1x1x128xf32>
    %163 = vector.shape_cast %162 : vector<1x1x128xf32> to vector<1x128xf32>
    %c0_79 = arith.constant 0 : index
    %c0_80 = arith.constant 0 : index
    %c0_81 = arith.constant 0 : index
    %164 = vector.load %arg16[%c0_79, %c0_80, %c0_81] : memref<1x128x128xbf16, #tpu.memory_space<vmem>>, vector<1x128x128xbf16>
    %165 = vector.shape_cast %164 : vector<1x128x128xbf16> to vector<128x128xbf16>
    %c0_82 = arith.constant 0 : index
    %c0_83 = arith.constant 0 : index
    %c0_84 = arith.constant 0 : index
    %166 = vector.load %arg20[%c0_82, %c0_83, %c0_84] : memref<1x1x128xf32, #tpu.memory_space<vmem>>, vector<1x1x128xf32>
    %167 = vector.shape_cast %166 : vector<1x1x128xf32> to vector<1x128xf32>
    %c0_85 = arith.constant 0 : index
    %c0_86 = arith.constant 0 : index
    %c0_87 = arith.constant 0 : index
    %168 = vector.load %arg17[%c0_85, %c0_86, %c0_87] : memref<1x128x128xbf16, #tpu.memory_space<vmem>>, vector<1x128x128xbf16>
    %169 = vector.shape_cast %168 : vector<1x128x128xbf16> to vector<128x128xbf16>
    %c0_88 = arith.constant 0 : index
    %c0_89 = arith.constant 0 : index
    %c0_90 = arith.constant 0 : index
    %170 = vector.load %arg21[%c0_88, %c0_89, %c0_90] : memref<1x1x128xf32, #tpu.memory_space<vmem>>, vector<1x1x128xf32>
    %171 = vector.shape_cast %170 : vector<1x1x128xf32> to vector<1x128xf32>
    %cst_91 = arith.constant dense<0.000000e+00> : vector<32x128xf32>
    %172 = tpu.matmul %153, %157, %cst_91 {dimension_numbers = #tpu.dot_dimension_numbers<[1], [0], [0], [1], [0, 0, 1, 1], [], []>} : vector<32x128xbf16>, vector<128x128xbf16>, vector<32x128xf32> -> vector<32x128xf32>
    %173 = vector.broadcast %159 : vector<1x128xf32> to vector<32x128xf32>
    %174 = arith.addf %172, %173 : vector<32x128xf32>
    %cst_92 = arith.constant dense<0.000000e+00> : vector<64x128xf32>
    %175 = tpu.matmul %154, %161, %cst_92 {dimension_numbers = #tpu.dot_dimension_numbers<[1], [0], [0], [1], [0, 0, 1, 1], [], []>} : vector<64x128xbf16>, vector<128x128xbf16>, vector<64x128xf32> -> vector<64x128xf32>
    %176 = vector.broadcast %163 : vector<1x128xf32> to vector<64x128xf32>
    %177 = arith.addf %175, %176 : vector<64x128xf32>
    %cst_93 = arith.constant dense<0.000000e+00> : vector<64x128xf32>
    %178 = tpu.matmul %155, %165, %cst_93 {dimension_numbers = #tpu.dot_dimension_numbers<[1], [0], [0], [1], [0, 0, 1, 1], [], []>} : vector<64x128xbf16>, vector<128x128xbf16>, vector<64x128xf32> -> vector<64x128xf32>
    %179 = vector.broadcast %167 : vector<1x128xf32> to vector<64x128xf32>
    %180 = arith.addf %178, %179 : vector<64x128xf32>
    %181 = arith.truncf %174 : vector<32x128xf32> to vector<32x128xbf16>
    %182 = vector.shape_cast %181 : vector<32x128xbf16> to vector<2x16x128xbf16>
    %183 = arith.truncf %177 : vector<64x128xf32> to vector<64x128xbf16>
    %184 = vector.shape_cast %183 : vector<64x128xbf16> to vector<2x32x128xbf16>
    %185 = arith.truncf %180 : vector<64x128xf32> to vector<64x128xbf16>
    %186 = vector.shape_cast %185 : vector<64x128xbf16> to vector<2x32x128xbf16>
    %cst_94 = arith.constant 0.000000e+00 : f32
    %187 = vector.broadcast %cst_94 : f32 to vector<32x128xf32>
    %188 = vector.extract_strided_slice %182 {offsets = [0, 0, 0], sizes = [2, 16, 32], strides = [1, 1, 1]} : vector<2x16x128xbf16> to vector<2x16x32xbf16>
    %189 = vector.extract_strided_slice %184 {offsets = [0, 0, 0], sizes = [2, 32, 32], strides = [1, 1, 1]} : vector<2x32x128xbf16> to vector<2x32x32xbf16>
    "tpu.trace_start"() <{level = 10 : i32, message = "bqd,bkd->bqk"}> : () -> ()
    %cst_95 = arith.constant dense<0.000000e+00> : vector<2x16x32xf32>
    %190 = tpu.matmul %188, %189, %cst_95 {dimension_numbers = #tpu.dot_dimension_numbers<[2], [2], [1], [1], [0, 0, 0, 1, 1, 1], [0], [0]>} : vector<2x16x32xbf16>, vector<2x32x32xbf16>, vector<2x16x32xf32> -> vector<2x16x32xf32>
    "tpu.trace_stop"() : () -> ()
    %cst_96 = arith.constant dense<0xFF800000> : vector<2x16xf32>
    %191 = vector.multi_reduction <maximumf>, %190, %cst_96 [2] : vector<2x16x32xf32> to vector<2x16xf32>
    %192 = vector.shape_cast %191 : vector<2x16xf32> to vector<2x16x1xf32>
    %193 = vector.broadcast %192 : vector<2x16x1xf32> to vector<2x16x32xf32>
    %194 = arith.subf %190, %193 : vector<2x16x32xf32>
    %195 = math.exp %194 : vector<2x16x32xf32>
    %cst_97 = arith.constant dense<0.000000e+00> : vector<2x16xf32>
    %196 = vector.multi_reduction <add>, %195, %cst_97 [2] : vector<2x16x32xf32> to vector<2x16xf32>
    %197 = vector.shape_cast %196 : vector<2x16xf32> to vector<2x16x1xf32>
    %198 = tpu.reciprocal %197 {approx = true} : vector<2x16x1xf32> -> vector<2x16x1xf32>
    %199 = vector.broadcast %198 : vector<2x16x1xf32> to vector<2x16x32xf32>
    %200 = arith.mulf %195, %199 : vector<2x16x32xf32>
    %201 = arith.truncf %200 : vector<2x16x32xf32> to vector<2x16x32xbf16>
    %202 = vector.extract_strided_slice %186 {offsets = [0, 0, 0], sizes = [2, 32, 32], strides = [1, 1, 1]} : vector<2x32x128xbf16> to vector<2x32x32xbf16>
    "tpu.trace_start"() <{level = 10 : i32, message = "bqk,bkd->bqd"}> : () -> ()
    %cst_98 = arith.constant dense<0.000000e+00> : vector<2x16x32xf32>
    %203 = tpu.matmul %201, %202, %cst_98 {dimension_numbers = #tpu.dot_dimension_numbers<[2], [1], [1], [2], [0, 0, 0, 1, 1, 2], [0], [0]>} : vector<2x16x32xbf16>, vector<2x32x32xbf16>, vector<2x16x32xf32> -> vector<2x16x32xf32>
    "tpu.trace_stop"() : () -> ()
    %204 = vector.shape_cast %203 : vector<2x16x32xf32> to vector<32x32xf32>
    %205 = arith.truncf %204 : vector<32x32xf32> to vector<32x32xbf16>
    %206 = vector.extract_strided_slice %169 {offsets = [0, 0], sizes = [32, 128], strides = [1, 1]} : vector<128x128xbf16> to vector<32x128xbf16>
    %cst_99 = arith.constant dense<0.000000e+00> : vector<32x128xf32>
    %207 = tpu.matmul %205, %206, %cst_99 {dimension_numbers = #tpu.dot_dimension_numbers<[1], [0], [0], [1], [0, 0, 1, 1], [], []>} : vector<32x32xbf16>, vector<32x128xbf16>, vector<32x128xf32> -> vector<32x128xf32>
    %208 = arith.addf %187, %207 : vector<32x128xf32>
    %209 = vector.extract_strided_slice %182 {offsets = [0, 0, 32], sizes = [2, 16, 32], strides = [1, 1, 1]} : vector<2x16x128xbf16> to vector<2x16x32xbf16>
    %210 = vector.extract_strided_slice %184 {offsets = [0, 0, 32], sizes = [2, 32, 32], strides = [1, 1, 1]} : vector<2x32x128xbf16> to vector<2x32x32xbf16>
    "tpu.trace_start"() <{level = 10 : i32, message = "bqd,bkd->bqk"}> : () -> ()
    %cst_100 = arith.constant dense<0.000000e+00> : vector<2x16x32xf32>
    %211 = tpu.matmul %209, %210, %cst_100 {dimension_numbers = #tpu.dot_dimension_numbers<[2], [2], [1], [1], [0, 0, 0, 1, 1, 1], [0], [0]>} : vector<2x16x32xbf16>, vector<2x32x32xbf16>, vector<2x16x32xf32> -> vector<2x16x32xf32>
    "tpu.trace_stop"() : () -> ()
    %cst_101 = arith.constant dense<0xFF800000> : vector<2x16xf32>
    %212 = vector.multi_reduction <maximumf>, %211, %cst_101 [2] : vector<2x16x32xf32> to vector<2x16xf32>
    %213 = vector.shape_cast %212 : vector<2x16xf32> to vector<2x16x1xf32>
    %214 = vector.broadcast %213 : vector<2x16x1xf32> to vector<2x16x32xf32>
    %215 = arith.subf %211, %214 : vector<2x16x32xf32>
    %216 = math.exp %215 : vector<2x16x32xf32>
    %cst_102 = arith.constant dense<0.000000e+00> : vector<2x16xf32>
    %217 = vector.multi_reduction <add>, %216, %cst_102 [2] : vector<2x16x32xf32> to vector<2x16xf32>
    %218 = vector.shape_cast %217 : vector<2x16xf32> to vector<2x16x1xf32>
    %219 = tpu.reciprocal %218 {approx = true} : vector<2x16x1xf32> -> vector<2x16x1xf32>
    %220 = vector.broadcast %219 : vector<2x16x1xf32> to vector<2x16x32xf32>
    %221 = arith.mulf %216, %220 : vector<2x16x32xf32>
    %222 = arith.truncf %221 : vector<2x16x32xf32> to vector<2x16x32xbf16>
    %223 = vector.extract_strided_slice %186 {offsets = [0, 0, 32], sizes = [2, 32, 32], strides = [1, 1, 1]} : vector<2x32x128xbf16> to vector<2x32x32xbf16>
    "tpu.trace_start"() <{level = 10 : i32, message = "bqk,bkd->bqd"}> : () -> ()
    %cst_103 = arith.constant dense<0.000000e+00> : vector<2x16x32xf32>
    %224 = tpu.matmul %222, %223, %cst_103 {dimension_numbers = #tpu.dot_dimension_numbers<[2], [1], [1], [2], [0, 0, 0, 1, 1, 2], [0], [0]>} : vector<2x16x32xbf16>, vector<2x32x32xbf16>, vector<2x16x32xf32> -> vector<2x16x32xf32>
    "tpu.trace_stop"() : () -> ()
    %225 = vector.shape_cast %224 : vector<2x16x32xf32> to vector<32x32xf32>
    %226 = arith.truncf %225 : vector<32x32xf32> to vector<32x32xbf16>
    %227 = vector.extract_strided_slice %169 {offsets = [32, 0], sizes = [32, 128], strides = [1, 1]} : vector<128x128xbf16> to vector<32x128xbf16>
    %cst_104 = arith.constant dense<0.000000e+00> : vector<32x128xf32>
    %228 = tpu.matmul %226, %227, %cst_104 {dimension_numbers = #tpu.dot_dimension_numbers<[1], [0], [0], [1], [0, 0, 1, 1], [], []>} : vector<32x32xbf16>, vector<32x128xbf16>, vector<32x128xf32> -> vector<32x128xf32>
    %229 = arith.addf %208, %228 : vector<32x128xf32>
    %230 = vector.extract_strided_slice %182 {offsets = [0, 0, 64], sizes = [2, 16, 32], strides = [1, 1, 1]} : vector<2x16x128xbf16> to vector<2x16x32xbf16>
    %231 = vector.extract_strided_slice %184 {offsets = [0, 0, 64], sizes = [2, 32, 32], strides = [1, 1, 1]} : vector<2x32x128xbf16> to vector<2x32x32xbf16>
    "tpu.trace_start"() <{level = 10 : i32, message = "bqd,bkd->bqk"}> : () -> ()
    %cst_105 = arith.constant dense<0.000000e+00> : vector<2x16x32xf32>
    %232 = tpu.matmul %230, %231, %cst_105 {dimension_numbers = #tpu.dot_dimension_numbers<[2], [2], [1], [1], [0, 0, 0, 1, 1, 1], [0], [0]>} : vector<2x16x32xbf16>, vector<2x32x32xbf16>, vector<2x16x32xf32> -> vector<2x16x32xf32>
    "tpu.trace_stop"() : () -> ()
    %cst_106 = arith.constant dense<0xFF800000> : vector<2x16xf32>
    %233 = vector.multi_reduction <maximumf>, %232, %cst_106 [2] : vector<2x16x32xf32> to vector<2x16xf32>
    %234 = vector.shape_cast %233 : vector<2x16xf32> to vector<2x16x1xf32>
    %235 = vector.broadcast %234 : vector<2x16x1xf32> to vector<2x16x32xf32>
    %236 = arith.subf %232, %235 : vector<2x16x32xf32>
    %237 = math.exp %236 : vector<2x16x32xf32>
    %cst_107 = arith.constant dense<0.000000e+00> : vector<2x16xf32>
    %238 = vector.multi_reduction <add>, %237, %cst_107 [2] : vector<2x16x32xf32> to vector<2x16xf32>
    %239 = vector.shape_cast %238 : vector<2x16xf32> to vector<2x16x1xf32>
    %240 = tpu.reciprocal %239 {approx = true} : vector<2x16x1xf32> -> vector<2x16x1xf32>
    %241 = vector.broadcast %240 : vector<2x16x1xf32> to vector<2x16x32xf32>
    %242 = arith.mulf %237, %241 : vector<2x16x32xf32>
    %243 = arith.truncf %242 : vector<2x16x32xf32> to vector<2x16x32xbf16>
    %244 = vector.extract_strided_slice %186 {offsets = [0, 0, 64], sizes = [2, 32, 32], strides = [1, 1, 1]} : vector<2x32x128xbf16> to vector<2x32x32xbf16>
    "tpu.trace_start"() <{level = 10 : i32, message = "bqk,bkd->bqd"}> : () -> ()
    %cst_108 = arith.constant dense<0.000000e+00> : vector<2x16x32xf32>
    %245 = tpu.matmul %243, %244, %cst_108 {dimension_numbers = #tpu.dot_dimension_numbers<[2], [1], [1], [2], [0, 0, 0, 1, 1, 2], [0], [0]>} : vector<2x16x32xbf16>, vector<2x32x32xbf16>, vector<2x16x32xf32> -> vector<2x16x32xf32>
    "tpu.trace_stop"() : () -> ()
    %246 = vector.shape_cast %245 : vector<2x16x32xf32> to vector<32x32xf32>
    %247 = arith.truncf %246 : vector<32x32xf32> to vector<32x32xbf16>
    %248 = vector.extract_strided_slice %169 {offsets = [64, 0], sizes = [32, 128], strides = [1, 1]} : vector<128x128xbf16> to vector<32x128xbf16>
    %cst_109 = arith.constant dense<0.000000e+00> : vector<32x128xf32>
    %249 = tpu.matmul %247, %248, %cst_109 {dimension_numbers = #tpu.dot_dimension_numbers<[1], [0], [0], [1], [0, 0, 1, 1], [], []>} : vector<32x32xbf16>, vector<32x128xbf16>, vector<32x128xf32> -> vector<32x128xf32>
    %250 = arith.addf %229, %249 : vector<32x128xf32>
    %251 = vector.extract_strided_slice %182 {offsets = [0, 0, 96], sizes = [2, 16, 32], strides = [1, 1, 1]} : vector<2x16x128xbf16> to vector<2x16x32xbf16>
    %252 = vector.extract_strided_slice %184 {offsets = [0, 0, 96], sizes = [2, 32, 32], strides = [1, 1, 1]} : vector<2x32x128xbf16> to vector<2x32x32xbf16>
    "tpu.trace_start"() <{level = 10 : i32, message = "bqd,bkd->bqk"}> : () -> ()
    %cst_110 = arith.constant dense<0.000000e+00> : vector<2x16x32xf32>
    %253 = tpu.matmul %251, %252, %cst_110 {dimension_numbers = #tpu.dot_dimension_numbers<[2], [2], [1], [1], [0, 0, 0, 1, 1, 1], [0], [0]>} : vector<2x16x32xbf16>, vector<2x32x32xbf16>, vector<2x16x32xf32> -> vector<2x16x32xf32>
    "tpu.trace_stop"() : () -> ()
    %cst_111 = arith.constant dense<0xFF800000> : vector<2x16xf32>
    %254 = vector.multi_reduction <maximumf>, %253, %cst_111 [2] : vector<2x16x32xf32> to vector<2x16xf32>
    %255 = vector.shape_cast %254 : vector<2x16xf32> to vector<2x16x1xf32>
    %256 = vector.broadcast %255 : vector<2x16x1xf32> to vector<2x16x32xf32>
    %257 = arith.subf %253, %256 : vector<2x16x32xf32>
    %258 = math.exp %257 : vector<2x16x32xf32>
    %cst_112 = arith.constant dense<0.000000e+00> : vector<2x16xf32>
    %259 = vector.multi_reduction <add>, %258, %cst_112 [2] : vector<2x16x32xf32> to vector<2x16xf32>
    %260 = vector.shape_cast %259 : vector<2x16xf32> to vector<2x16x1xf32>
    %261 = tpu.reciprocal %260 {approx = true} : vector<2x16x1xf32> -> vector<2x16x1xf32>
    %262 = vector.broadcast %261 : vector<2x16x1xf32> to vector<2x16x32xf32>
    %263 = arith.mulf %258, %262 : vector<2x16x32xf32>
    %264 = arith.truncf %263 : vector<2x16x32xf32> to vector<2x16x32xbf16>
    %265 = vector.extract_strided_slice %186 {offsets = [0, 0, 96], sizes = [2, 32, 32], strides = [1, 1, 1]} : vector<2x32x128xbf16> to vector<2x32x32xbf16>
    "tpu.trace_start"() <{level = 10 : i32, message = "bqk,bkd->bqd"}> : () -> ()
    %cst_113 = arith.constant dense<0.000000e+00> : vector<2x16x32xf32>
    %266 = tpu.matmul %264, %265, %cst_113 {dimension_numbers = #tpu.dot_dimension_numbers<[2], [1], [1], [2], [0, 0, 0, 1, 1, 2], [0], [0]>} : vector<2x16x32xbf16>, vector<2x32x32xbf16>, vector<2x16x32xf32> -> vector<2x16x32xf32>
    "tpu.trace_stop"() : () -> ()
    %267 = vector.shape_cast %266 : vector<2x16x32xf32> to vector<32x32xf32>
    %268 = arith.truncf %267 : vector<32x32xf32> to vector<32x32xbf16>
    %269 = vector.extract_strided_slice %169 {offsets = [96, 0], sizes = [32, 128], strides = [1, 1]} : vector<128x128xbf16> to vector<32x128xbf16>
    %cst_114 = arith.constant dense<0.000000e+00> : vector<32x128xf32>
    %270 = tpu.matmul %268, %269, %cst_114 {dimension_numbers = #tpu.dot_dimension_numbers<[1], [0], [0], [1], [0, 0, 1, 1], [], []>} : vector<32x32xbf16>, vector<32x128xbf16>, vector<32x128xf32> -> vector<32x128xf32>
    %271 = arith.addf %250, %270 : vector<32x128xf32>
    %272 = vector.broadcast %171 : vector<1x128xf32> to vector<32x128xf32>
    %273 = arith.addf %271, %272 : vector<32x128xf32>
    %274 = arith.addf %151, %273 : vector<32x128xf32>
    %c0_115 = arith.constant 0 : index
    %c0_116 = arith.constant 0 : index
    %c0_117 = arith.constant 0 : index
    %275 = vector.load %arg28[%c0_115, %c0_116, %c0_117] : memref<1x1x128xf32, #tpu.memory_space<vmem>>, vector<1x1x128xf32>
    %276 = vector.shape_cast %275 : vector<1x1x128xf32> to vector<1x128xf32>
    %c0_118 = arith.constant 0 : index
    %c0_119 = arith.constant 0 : index
    %c0_120 = arith.constant 0 : index
    %277 = vector.load %arg29[%c0_118, %c0_119, %c0_120] : memref<1x1x128xf32, #tpu.memory_space<vmem>>, vector<1x1x128xf32>
    %278 = vector.shape_cast %277 : vector<1x1x128xf32> to vector<1x128xf32>
    %cst_121 = arith.constant dense<0.000000e+00> : vector<32xf32>
    %279 = vector.multi_reduction <add>, %274, %cst_121 [1] : vector<32x128xf32> to vector<32xf32>
    %280 = vector.shape_cast %279 : vector<32xf32> to vector<32x1xf32>
    %cst_122 = arith.constant 1.280000e+02 : f32
    %281 = vector.broadcast %cst_122 : f32 to vector<32x1xf32>
    %282 = arith.divf %280, %281 : vector<32x1xf32>
    %283 = vector.broadcast %282 : vector<32x1xf32> to vector<32x128xf32>
    %284 = arith.subf %274, %283 : vector<32x128xf32>
    %285 = arith.mulf %284, %284 : vector<32x128xf32>
    %cst_123 = arith.constant dense<0.000000e+00> : vector<32xf32>
    %286 = vector.multi_reduction <add>, %285, %cst_123 [1] : vector<32x128xf32> to vector<32xf32>
    %287 = vector.shape_cast %286 : vector<32xf32> to vector<32x1xf32>
    %cst_124 = arith.constant 1.280000e+02 : f32
    %288 = vector.broadcast %cst_124 : f32 to vector<32x1xf32>
    %289 = arith.divf %287, %288 : vector<32x1xf32>
    %cst_125 = arith.constant 9.99999974E-6 : f32
    %290 = vector.broadcast %cst_125 : f32 to vector<32x1xf32>
    %291 = arith.addf %289, %290 : vector<32x1xf32>
    %292 = math.rsqrt %291 : vector<32x1xf32>
    %293 = vector.broadcast %292 : vector<32x1xf32> to vector<32x128xf32>
    %294 = arith.mulf %284, %293 : vector<32x128xf32>
    %295 = vector.broadcast %276 : vector<1x128xf32> to vector<32x128xf32>
    %296 = arith.mulf %294, %295 : vector<32x128xf32>
    %297 = vector.broadcast %278 : vector<1x128xf32> to vector<32x128xf32>
    %298 = arith.addf %296, %297 : vector<32x128xf32>
    %299 = arith.truncf %298 : vector<32x128xf32> to vector<32x128xbf16>
    %c0_126 = arith.constant 0 : index
    %c0_127 = arith.constant 0 : index
    %c0_128 = arith.constant 0 : index
    %300 = vector.load %arg22[%c0_126, %c0_127, %c0_128] : memref<1x128x256xbf16, #tpu.memory_space<vmem>>, vector<1x128x256xbf16>
    %301 = vector.shape_cast %300 : vector<1x128x256xbf16> to vector<128x256xbf16>
    %cst_129 = arith.constant dense<0.000000e+00> : vector<32x256xf32>
    %302 = tpu.matmul %299, %301, %cst_129 {dimension_numbers = #tpu.dot_dimension_numbers<[1], [0], [0], [1], [0, 0, 1, 1], [], []>} : vector<32x128xbf16>, vector<128x256xbf16>, vector<32x256xf32> -> vector<32x256xf32>
    %c0_130 = arith.constant 0 : index
    %c0_131 = arith.constant 0 : index
    %c0_132 = arith.constant 0 : index
    %303 = vector.load %arg24[%c0_130, %c0_131, %c0_132] : memref<1x1x256xf32, #tpu.memory_space<vmem>>, vector<1x1x256xf32>
    %304 = vector.shape_cast %303 : vector<1x1x256xf32> to vector<1x256xf32>
    %305 = vector.broadcast %304 : vector<1x256xf32> to vector<32x256xf32>
    %306 = arith.addf %302, %305 : vector<32x256xf32>
    %cst_133 = arith.constant 0.000000e+00 : f32
    %307 = vector.broadcast %cst_133 : f32 to vector<32x256xf32>
    %308 = arith.maximumf %306, %307 : vector<32x256xf32>
    %309 = arith.truncf %308 : vector<32x256xf32> to vector<32x256xbf16>
    %c0_134 = arith.constant 0 : index
    %c0_135 = arith.constant 0 : index
    %c0_136 = arith.constant 0 : index
    %310 = vector.load %arg23[%c0_134, %c0_135, %c0_136] : memref<1x256x128xbf16, #tpu.memory_space<vmem>>, vector<1x256x128xbf16>
    %311 = vector.shape_cast %310 : vector<1x256x128xbf16> to vector<256x128xbf16>
    %cst_137 = arith.constant dense<0.000000e+00> : vector<32x128xf32>
    %312 = tpu.matmul %309, %311, %cst_137 {dimension_numbers = #tpu.dot_dimension_numbers<[1], [0], [0], [1], [0, 0, 1, 1], [], []>} : vector<32x256xbf16>, vector<256x128xbf16>, vector<32x128xf32> -> vector<32x128xf32>
    %c0_138 = arith.constant 0 : index
    %c0_139 = arith.constant 0 : index
    %c0_140 = arith.constant 0 : index
    %313 = vector.load %arg25[%c0_138, %c0_139, %c0_140] : memref<1x1x128xf32, #tpu.memory_space<vmem>>, vector<1x1x128xf32>
    %314 = vector.shape_cast %313 : vector<1x1x128xf32> to vector<1x128xf32>
    %315 = vector.broadcast %314 : vector<1x128xf32> to vector<32x128xf32>
    %316 = arith.addf %312, %315 : vector<32x128xf32>
    %317 = arith.addf %298, %316 : vector<32x128xf32>
    %c0_141 = arith.constant 0 : index
    %c0_142 = arith.constant 0 : index
    %c0_143 = arith.constant 0 : index
    %318 = vector.load %arg30[%c0_141, %c0_142, %c0_143] : memref<1x1x128xf32, #tpu.memory_space<vmem>>, vector<1x1x128xf32>
    %319 = vector.shape_cast %318 : vector<1x1x128xf32> to vector<1x128xf32>
    %c0_144 = arith.constant 0 : index
    %c0_145 = arith.constant 0 : index
    %c0_146 = arith.constant 0 : index
    %320 = vector.load %arg31[%c0_144, %c0_145, %c0_146] : memref<1x1x128xf32, #tpu.memory_space<vmem>>, vector<1x1x128xf32>
    %321 = vector.shape_cast %320 : vector<1x1x128xf32> to vector<1x128xf32>
    %cst_147 = arith.constant dense<0.000000e+00> : vector<32xf32>
    %322 = vector.multi_reduction <add>, %317, %cst_147 [1] : vector<32x128xf32> to vector<32xf32>
    %323 = vector.shape_cast %322 : vector<32xf32> to vector<32x1xf32>
    %cst_148 = arith.constant 1.280000e+02 : f32
    %324 = vector.broadcast %cst_148 : f32 to vector<32x1xf32>
    %325 = arith.divf %323, %324 : vector<32x1xf32>
    %326 = vector.broadcast %325 : vector<32x1xf32> to vector<32x128xf32>
    %327 = arith.subf %317, %326 : vector<32x128xf32>
    %328 = arith.mulf %327, %327 : vector<32x128xf32>
    %cst_149 = arith.constant dense<0.000000e+00> : vector<32xf32>
    %329 = vector.multi_reduction <add>, %328, %cst_149 [1] : vector<32x128xf32> to vector<32xf32>
    %330 = vector.shape_cast %329 : vector<32xf32> to vector<32x1xf32>
    %cst_150 = arith.constant 1.280000e+02 : f32
    %331 = vector.broadcast %cst_150 : f32 to vector<32x1xf32>
    %332 = arith.divf %330, %331 : vector<32x1xf32>
    %cst_151 = arith.constant 9.99999974E-6 : f32
    %333 = vector.broadcast %cst_151 : f32 to vector<32x1xf32>
    %334 = arith.addf %332, %333 : vector<32x1xf32>
    %335 = math.rsqrt %334 : vector<32x1xf32>
    %336 = vector.broadcast %335 : vector<32x1xf32> to vector<32x128xf32>
    %337 = arith.mulf %327, %336 : vector<32x128xf32>
    %338 = vector.broadcast %319 : vector<1x128xf32> to vector<32x128xf32>
    %339 = arith.mulf %337, %338 : vector<32x128xf32>
    %340 = vector.broadcast %321 : vector<1x128xf32> to vector<32x128xf32>
    %341 = arith.addf %339, %340 : vector<32x128xf32>
    %c0_152 = arith.constant 0 : index
    %c0_153 = arith.constant 0 : index
    %342 = vector.load %arg35[%c0_152, %c0_153] : memref<32x128xf32, #tpu.memory_space<vmem>>, vector<32x128xf32>
    tpu.vector_store %arg35[%c0_152, %c0_153], %341 {strides = array<i32>} : memref<32x128xf32, #tpu.memory_space<vmem>>, vector<32x128xf32>,
    %c1_i32 = arith.constant 1 : i32
    %343 = arith.cmpi eq, %arg1, %c1_i32 : i32
    %344 = arith.extui %343 : i1 to i32
    %c0_i32_154 = arith.constant 0 : i32
    %345 = arith.cmpi ne, %344, %c0_i32_154 : i32
    scf.if %345 {
      %c0_155 = arith.constant 0 : index
      %c0_156 = arith.constant 0 : index
      %346 = vector.load %arg32[%c0_155, %c0_156] : memref<1x128xf32, #tpu.memory_space<vmem>>, vector<1x128xf32>
      %c0_157 = arith.constant 0 : index
      %c0_158 = arith.constant 0 : index
      %347 = vector.load %arg33[%c0_157, %c0_158] : memref<1x128xf32, #tpu.memory_space<vmem>>, vector<1x128xf32>
      %cst_159 = arith.constant dense<0.000000e+00> : vector<32xf32>
      %348 = vector.multi_reduction <add>, %341, %cst_159 [1] : vector<32x128xf32> to vector<32xf32>
      %349 = vector.shape_cast %348 : vector<32xf32> to vector<32x1xf32>
      %cst_160 = arith.constant 1.280000e+02 : f32
      %350 = vector.broadcast %cst_160 : f32 to vector<32x1xf32>
      %351 = arith.divf %349, %350 : vector<32x1xf32>
      %352 = vector.broadcast %351 : vector<32x1xf32> to vector<32x128xf32>
      %353 = arith.subf %341, %352 : vector<32x128xf32>
      %354 = arith.mulf %353, %353 : vector<32x128xf32>
      %cst_161 = arith.constant dense<0.000000e+00> : vector<32xf32>
      %355 = vector.multi_reduction <add>, %354, %cst_161 [1] : vector<32x128xf32> to vector<32xf32>
      %356 = vector.shape_cast %355 : vector<32xf32> to vector<32x1xf32>
      %cst_162 = arith.constant 1.280000e+02 : f32
      %357 = vector.broadcast %cst_162 : f32 to vector<32x1xf32>
      %358 = arith.divf %356, %357 : vector<32x1xf32>
      %cst_163 = arith.constant 9.99999974E-6 : f32
      %359 = vector.broadcast %cst_163 : f32 to vector<32x1xf32>
      %360 = arith.addf %358, %359 : vector<32x1xf32>
      %361 = math.rsqrt %360 : vector<32x1xf32>
      %362 = vector.broadcast %361 : vector<32x1xf32> to vector<32x128xf32>
      %363 = arith.mulf %353, %362 : vector<32x128xf32>
      %364 = vector.broadcast %346 : vector<1x128xf32> to vector<32x128xf32>
      %365 = arith.mulf %363, %364 : vector<32x128xf32>
      %366 = vector.broadcast %347 : vector<1x128xf32> to vector<32x128xf32>
      %367 = arith.addf %365, %366 : vector<32x128xf32>
      %368 = vector.shape_cast %367 : vector<32x128xf32> to vector<2x16x128xf32>
      %c0_164 = arith.constant 0 : index
      %c0_165 = arith.constant 0 : index
      %c0_166 = arith.constant 0 : index
      %369 = vector.load %arg34[%c0_164, %c0_165, %c0_166] : memref<2x16x128xf32, #tpu.memory_space<vmem>>, vector<2x16x128xf32>
      tpu.vector_store %arg34[%c0_164, %c0_165, %c0_166], %368 {strides = array<i32>} : memref<2x16x128xf32, #tpu.memory_space<vmem>>, vector<2x16x128xf32>,
    } else {
    }
    return
  }
  func.func @transform_0(%arg0: i32, %arg1: i32) -> (i32, i32, i32) {
    %c0_i32 = arith.constant 0 : i32
    %c0_i32_0 = arith.constant 0 : i32
    %c0_i32_1 = arith.constant 0 : i32
    return %arg0, %c0_i32, %c0_i32_0 : i32, i32, i32
  }
  func.func @transform_1(%arg0: i32, %arg1: i32) -> (i32, i32, i32) {
    %c0_i32 = arith.constant 0 : i32
    %c0_i32_0 = arith.constant 0 : i32
    %c0_i32_1 = arith.constant 0 : i32
    return %arg0, %c0_i32, %c0_i32_0 : i32, i32, i32
  }
  func.func @transform_2(%arg0: i32, %arg1: i32) -> (i32, i32, i32) {
    %c0_i32 = arith.constant 0 : i32
    %c0_i32_0 = arith.constant 0 : i32
    %c0_i32_1 = arith.constant 0 : i32
    return %arg0, %c0_i32, %c0_i32_0 : i32, i32, i32
  }
  func.func @transform_3(%arg0: i32, %arg1: i32) -> (i32, i32, i32) {
    %c0_i32 = arith.constant 0 : i32
    %c0_i32_0 = arith.constant 0 : i32
    %c0_i32_1 = arith.constant 0 : i32
    return %arg0, %c0_i32, %c0_i32_0 : i32, i32, i32
  }
  func.func @transform_4(%arg0: i32, %arg1: i32) -> (i32, i32, i32) {
    %c0_i32 = arith.constant 0 : i32
    %c0_i32_0 = arith.constant 0 : i32
    %c0_i32_1 = arith.constant 0 : i32
    return %arg1, %c0_i32, %c0_i32_0 : i32, i32, i32
  }
  func.func @transform_5(%arg0: i32, %arg1: i32) -> (i32, i32, i32) {
    %c0_i32 = arith.constant 0 : i32
    %c0_i32_0 = arith.constant 0 : i32
    %c0_i32_1 = arith.constant 0 : i32
    return %arg1, %c0_i32, %c0_i32_0 : i32, i32, i32
  }
  func.func @transform_6(%arg0: i32, %arg1: i32) -> (i32, i32, i32) {
    %c0_i32 = arith.constant 0 : i32
    %c0_i32_0 = arith.constant 0 : i32
    %c0_i32_1 = arith.constant 0 : i32
    return %arg1, %c0_i32, %c0_i32_0 : i32, i32, i32
  }
  func.func @transform_7(%arg0: i32, %arg1: i32) -> (i32, i32, i32) {
    %c0_i32 = arith.constant 0 : i32
    %c0_i32_0 = arith.constant 0 : i32
    %c0_i32_1 = arith.constant 0 : i32
    return %arg1, %c0_i32, %c0_i32_0 : i32, i32, i32
  }
  func.func @transform_8(%arg0: i32, %arg1: i32) -> (i32, i32, i32) {
    %c0_i32 = arith.constant 0 : i32
    %c0_i32_0 = arith.constant 0 : i32
    %c0_i32_1 = arith.constant 0 : i32
    return %arg1, %c0_i32, %c0_i32_0 : i32, i32, i32
  }
  func.func @transform_9(%arg0: i32, %arg1: i32) -> (i32, i32, i32) {
    %c0_i32 = arith.constant 0 : i32
    %c0_i32_0 = arith.constant 0 : i32
    %c0_i32_1 = arith.constant 0 : i32
    return %arg1, %c0_i32, %c0_i32_0 : i32, i32, i32
  }
  func.func @transform_10(%arg0: i32, %arg1: i32) -> (i32, i32, i32) {
    %c0_i32 = arith.constant 0 : i32
    %c0_i32_0 = arith.constant 0 : i32
    %c0_i32_1 = arith.constant 0 : i32
    return %arg1, %c0_i32, %c0_i32_0 : i32, i32, i32
  }
  func.func @transform_11(%arg0: i32, %arg1: i32) -> (i32, i32, i32) {
    %c0_i32 = arith.constant 0 : i32
    %c0_i32_0 = arith.constant 0 : i32
    %c0_i32_1 = arith.constant 0 : i32
    return %arg1, %c0_i32, %c0_i32_0 : i32, i32, i32
  }
  func.func @transform_12(%arg0: i32, %arg1: i32) -> (i32, i32, i32) {
    %c0_i32 = arith.constant 0 : i32
    %c0_i32_0 = arith.constant 0 : i32
    %c0_i32_1 = arith.constant 0 : i32
    return %arg1, %c0_i32, %c0_i32_0 : i32, i32, i32
  }
  func.func @transform_13(%arg0: i32, %arg1: i32) -> (i32, i32, i32) {
    %c0_i32 = arith.constant 0 : i32
    %c0_i32_0 = arith.constant 0 : i32
    %c0_i32_1 = arith.constant 0 : i32
    return %arg1, %c0_i32, %c0_i32_0 : i32, i32, i32
  }
  func.func @transform_14(%arg0: i32, %arg1: i32) -> (i32, i32, i32) {
    %c0_i32 = arith.constant 0 : i32
    %c0_i32_0 = arith.constant 0 : i32
    %c0_i32_1 = arith.constant 0 : i32
    return %arg1, %c0_i32, %c0_i32_0 : i32, i32, i32
  }
  func.func @transform_15(%arg0: i32, %arg1: i32) -> (i32, i32, i32) {
    %c0_i32 = arith.constant 0 : i32
    %c0_i32_0 = arith.constant 0 : i32
    %c0_i32_1 = arith.constant 0 : i32
    return %arg1, %c0_i32, %c0_i32_0 : i32, i32, i32
  }
  func.func @transform_16(%arg0: i32, %arg1: i32) -> (i32, i32, i32) {
    %c0_i32 = arith.constant 0 : i32
    %c0_i32_0 = arith.constant 0 : i32
    %c0_i32_1 = arith.constant 0 : i32
    return %arg1, %c0_i32, %c0_i32_0 : i32, i32, i32
  }
  func.func @transform_17(%arg0: i32, %arg1: i32) -> (i32, i32, i32) {
    %c0_i32 = arith.constant 0 : i32
    %c0_i32_0 = arith.constant 0 : i32
    %c0_i32_1 = arith.constant 0 : i32
    return %arg1, %c0_i32, %c0_i32_0 : i32, i32, i32
  }
  func.func @transform_18(%arg0: i32, %arg1: i32) -> (i32, i32, i32) {
    %c0_i32 = arith.constant 0 : i32
    %c0_i32_0 = arith.constant 0 : i32
    %c0_i32_1 = arith.constant 0 : i32
    return %arg1, %c0_i32, %c0_i32_0 : i32, i32, i32
  }
  func.func @transform_19(%arg0: i32, %arg1: i32) -> (i32, i32, i32) {
    %c0_i32 = arith.constant 0 : i32
    %c0_i32_0 = arith.constant 0 : i32
    %c0_i32_1 = arith.constant 0 : i32
    return %arg1, %c0_i32, %c0_i32_0 : i32, i32, i32
  }
  func.func @transform_20(%arg0: i32, %arg1: i32) -> (i32, i32, i32) {
    %c0_i32 = arith.constant 0 : i32
    %c0_i32_0 = arith.constant 0 : i32
    %c0_i32_1 = arith.constant 0 : i32
    return %arg1, %c0_i32, %c0_i32_0 : i32, i32, i32
  }
  func.func @transform_21(%arg0: i32, %arg1: i32) -> (i32, i32, i32) {
    %c0_i32 = arith.constant 0 : i32
    %c0_i32_0 = arith.constant 0 : i32
    %c0_i32_1 = arith.constant 0 : i32
    return %arg1, %c0_i32, %c0_i32_0 : i32, i32, i32
  }
  func.func @transform_22(%arg0: i32, %arg1: i32) -> (i32, i32, i32) {
    %c0_i32 = arith.constant 0 : i32
    %c0_i32_0 = arith.constant 0 : i32
    %c0_i32_1 = arith.constant 0 : i32
    return %arg1, %c0_i32, %c0_i32_0 : i32, i32, i32
  }
  func.func @transform_23(%arg0: i32, %arg1: i32) -> (i32, i32, i32) {
    %c0_i32 = arith.constant 0 : i32
    %c0_i32_0 = arith.constant 0 : i32
    %c0_i32_1 = arith.constant 0 : i32
    return %arg1, %c0_i32, %c0_i32_0 : i32, i32, i32
  }
  func.func @transform_24(%arg0: i32, %arg1: i32) -> (i32, i32, i32) {
    %c0_i32 = arith.constant 0 : i32
    %c0_i32_0 = arith.constant 0 : i32
    %c0_i32_1 = arith.constant 0 : i32
    return %arg1, %c0_i32, %c0_i32_0 : i32, i32, i32
  }
  func.func @transform_25(%arg0: i32, %arg1: i32) -> (i32, i32, i32) {
    %c0_i32 = arith.constant 0 : i32
    %c0_i32_0 = arith.constant 0 : i32
    %c0_i32_1 = arith.constant 0 : i32
    return %arg1, %c0_i32, %c0_i32_0 : i32, i32, i32
  }
  func.func @transform_26(%arg0: i32, %arg1: i32) -> (i32, i32, i32) {
    %c0_i32 = arith.constant 0 : i32
    %c0_i32_0 = arith.constant 0 : i32
    %c0_i32_1 = arith.constant 0 : i32
    return %arg1, %c0_i32, %c0_i32_0 : i32, i32, i32
  }
  func.func @transform_27(%arg0: i32, %arg1: i32) -> (i32, i32, i32) {
    %c0_i32 = arith.constant 0 : i32
    %c0_i32_0 = arith.constant 0 : i32
    %c0_i32_1 = arith.constant 0 : i32
    return %arg1, %c0_i32, %c0_i32_0 : i32, i32, i32
  }
  func.func @transform_28(%arg0: i32, %arg1: i32) -> (i32, i32, i32) {
    %c0_i32 = arith.constant 0 : i32
    %c0_i32_0 = arith.constant 0 : i32
    %c0_i32_1 = arith.constant 0 : i32
    return %arg1, %c0_i32, %c0_i32_0 : i32, i32, i32
  }
  func.func @transform_29(%arg0: i32, %arg1: i32) -> (i32, i32, i32) {
    %c0_i32 = arith.constant 0 : i32
    %c0_i32_0 = arith.constant 0 : i32
    %c0_i32_1 = arith.constant 0 : i32
    return %arg1, %c0_i32, %c0_i32_0 : i32, i32, i32
  }
  func.func @transform_30(%arg0: i32, %arg1: i32) -> (i32, i32) {
    %c0_i32 = arith.constant 0 : i32
    %c0_i32_0 = arith.constant 0 : i32
    %c0_i32_1 = arith.constant 0 : i32
    return %c0_i32, %c0_i32_0 : i32, i32
  }
  func.func @transform_31(%arg0: i32, %arg1: i32) -> (i32, i32) {
    %c0_i32 = arith.constant 0 : i32
    %c0_i32_0 = arith.constant 0 : i32
    %c0_i32_1 = arith.constant 0 : i32
    return %c0_i32, %c0_i32_0 : i32, i32
  }
  func.func @transform_32(%arg0: i32, %arg1: i32) -> (i32, i32, i32) {
    %c0_i32 = arith.constant 0 : i32
    %c0_i32_0 = arith.constant 0 : i32
    %c0_i32_1 = arith.constant 0 : i32
    return %arg0, %c0_i32, %c0_i32_0 : i32, i32, i32
  }
}

</mosaic_0001>

<llo_original>
// kernel: tpu_custom_call.1
$region0: #{tpu_custom_call.1}
  #allocation0 [shape = 'u32[]', space=smem, size = 0x4, offset = 0x4, fixed_abs, tag = 'smem constant byte address 0x4 - core index']
  #allocation1 [shape = 'u32[144,128]{1,0:T(1,128)}', space=vmem, size = 0x12000, scoped, tag = 'internal scratch']
  #allocation2 [shape = 'f32[32,128]{1,0:T(8,128)}', space=vmem, size = 0x4000, scoped, tag = 'scratch operand']
  #allocation3 [shape = 'bf16[64,128]{1,0:T(16,128)(2,1)}', space=vmem, size = 0x4000, scoped, tag = 'scratch operand']
  #allocation4 [shape = 'bf16[64,128]{1,0:T(16,128)(2,1)}', space=vmem, size = 0x4000, scoped, tag = 'scratch operand']
  %s0 = inlined_call_operand.smem [shape: u32[33], index: -1, kind: input, shape index: {}]
  %s1 = sld [smem:[%s0]]
  %s2 = scalar_lea.smem %s0, 1
  %s3 = sld [smem:[%s2]]
  %s4 = scalar_lea.smem %s0, 2
  %s5 = sld [smem:[%s4]]
  %s6 = scalar_lea.smem %s0, 3
  %s7 = sld [smem:[%s6]]
  %s8 = scalar_lea.smem %s0, 4
  %s9 = sld [smem:[%s8]]
  %s10 = scalar_lea.smem %s0, 5
  %s11 = sld [smem:[%s10]]
  %s12 = scalar_lea.smem %s0, 6
  %s13 = sld [smem:[%s12]]
  %s14 = scalar_lea.smem %s0, 7
  %s15 = sld [smem:[%s14]]
  %s16 = scalar_lea.smem %s0, 8
  %s17 = sld [smem:[%s16]]
  %s18 = scalar_lea.smem %s0, 9
  %s19 = sld [smem:[%s18]]
  %s20 = scalar_lea.smem %s0, 10
  %s21 = sld [smem:[%s20]]
  %s22 = scalar_lea.smem %s0, 11
  %s23 = sld [smem:[%s22]]
  %s24 = scalar_lea.smem %s0, 12
  %s25 = sld [smem:[%s24]]
  %s26 = scalar_lea.smem %s0, 13
  %s27 = sld [smem:[%s26]]
  %s28 = scalar_lea.smem %s0, 14
  %s29 = sld [smem:[%s28]]
  %s30 = scalar_lea.smem %s0, 15
  %s31 = sld [smem:[%s30]]
  %s32 = scalar_lea.smem %s0, 16
  %s33 = sld [smem:[%s32]]
  %s34 = scalar_lea.smem %s0, 17
  %s35 = sld [smem:[%s34]]
  %s36 = scalar_lea.smem %s0, 18
  %s37 = sld [smem:[%s36]]
  %s38 = scalar_lea.smem %s0, 19
  %s39 = sld [smem:[%s38]]
  %s40 = scalar_lea.smem %s0, 20
  %s41 = sld [smem:[%s40]]
  %s42 = scalar_lea.smem %s0, 21
  %s43 = sld [smem:[%s42]]
  %s44 = scalar_lea.smem %s0, 22
  %s45 = sld [smem:[%s44]]
  %s46 = scalar_lea.smem %s0, 23
  %s47 = sld [smem:[%s46]]
  %s48 = scalar_lea.smem %s0, 24
  %s49 = sld [smem:[%s48]]
  %s50 = scalar_lea.smem %s0, 25
  %s51 = sld [smem:[%s50]]
  %s52 = scalar_lea.smem %s0, 26
  %s53 = sld [smem:[%s52]]
  %s54 = scalar_lea.smem %s0, 27
  %s55 = sld [smem:[%s54]]
  %s56 = scalar_lea.smem %s0, 28
  %s57 = sld [smem:[%s56]]
  %s58 = scalar_lea.smem %s0, 29
  %s59 = sld [smem:[%s58]]
  %s60 = scalar_lea.smem %s0, 30
  %s61 = sld [smem:[%s60]]
  %s62 = scalar_lea.smem %s0, 31
  %s63 = sld [smem:[%s62]]
  %s64 = scalar_lea.smem %s0, 32
  %s65 = sld [smem:[%s64]]
  %s66 = sld [smem:[#allocation0]]
  $region225: #{tpu_custom_call.1} parent=0
    _
  %s68 = ssub.s32 1, %s66
  %s69 = scalar_select 0, %s68, %s66
  $region1: #{tpu_custom_call.1} parent=0
    #allocation5 [shape = 'u8[16384]{0}', space=vmem, size = 0x4000, scoped, tag = 'input window, operand 0, single buffered']
    #allocation6 [shape = 's32[2]{0}', space=sflag, size = 0x8, scoped, tag = 'scoped memory for tpu_custom_call.1']
    #allocation7 [shape = 's32[2]{0}', space=sflag, size = 0x8, scoped, tag = 'scoped memory for tpu_custom_call.1']
    #allocation8 [shape = 'u8[32768]{0}', space=vmem, size = 0x8000, scoped, tag = 'input window, operand 1, single buffered']
    #allocation9 [shape = 's32[1]{0}', space=sflag, size = 0x4, scoped, tag = 'scoped memory for tpu_custom_call.1']
    #allocation10 [shape = 'u8[16384]{0}', space=vmem, size = 0x4000, scoped, tag = 'input window, operand 2, single buffered']
    #allocation11 [shape = 'u8[32768]{0}', space=vmem, size = 0x8000, scoped, tag = 'input window, operand 3, single buffered']
    #allocation12 [shape = 's32[1]{0}', space=sflag, size = 0x4, scoped, tag = 'scoped memory for tpu_custom_call.1']
    #allocation13 [shape = 'u8[65536]{0}', space=vmem, size = 0x10000, scoped, tag = 'input window, operand 4']
    #allocation14 [shape = 'u8[65536]{0}', space=vmem, size = 0x10000, scoped, tag = 'input window, operand 5']
    #allocation15 [shape = 'u8[65536]{0}', space=vmem, size = 0x10000, scoped, tag = 'input window, operand 6']
    #allocation16 [shape = 'u8[65536]{0}', space=vmem, size = 0x10000, scoped, tag = 'input window, operand 7']
    #allocation17 [shape = 'u8[65536]{0}', space=vmem, size = 0x10000, scoped, tag = 'input window, operand 12']
    #allocation18 [shape = 'u8[65536]{0}', space=vmem, size = 0x10000, scoped, tag = 'input window, operand 13']
    #allocation19 [shape = 'u8[65536]{0}', space=vmem, size = 0x10000, scoped, tag = 'input window, operand 14']
    #allocation20 [shape = 'u8[65536]{0}', space=vmem, size = 0x10000, scoped, tag = 'input window, operand 15']
    #allocation21 [shape = 'u8[131072]{0}', space=vmem, size = 0x20000, scoped, tag = 'input window, operand 20']
    #allocation22 [shape = 'u8[131072]{0}', space=vmem, size = 0x20000, scoped, tag = 'input window, operand 21']
    #allocation23 [shape = 'u8[16384]{0}', space=vmem, size = 0x4000, scoped, tag = 'output window, operand 0, single buffered']
    %70 = vsyncpa [#allocation6], 0
    %71 = vsyncpa [#allocation9], 0
    %72 = vsyncpa [#allocation12], 0
    %73 = vsyncpa [#allocation7], 0
    loop: start=0, step=1, limit=4
    $region2: #{tpu_custom_call.1} parent=1 // loop_pre_header
      _
    $region3: #{tpu_custom_call.1} parent=1 // loop_header
      %s75 = sphi 0, %s79
      %p76 = scmp.ge.s32.totalorder %s75, 4
      %s82 = sphi 0, %s94
      %s83 = sphi 0, %s90
      %s84 = sphi 0, %s82
      %s85 = sphi 0, %s83
      %s86 = sphi 0, %s84
      %s87 = sphi 0, %s85
      %s97 = sphi 0, %s99
      %s100 = sphi 0, %s97
      %s101 = sphi 0, %s100
      %s117 = sphi 0, %s101
      %s123 = sphi 0, %s125
      %s126 = sphi 0, %s123
      %s127 = sphi 0, %s126
      %s143 = sphi 0, %s127
      %s149 = sphi 0, %s151
      %s152 = sphi 0, %s149
      %s153 = sphi 0, %s152
      %s169 = sphi 0, %s153
      %s175 = sphi 0, %s177
      %s178 = sphi 0, %s175
      %s179 = sphi 0, %s178
      %s195 = sphi 0, %s179
      %s201 = sphi 0, %s203
      %s204 = sphi 0, %s201
      %s205 = sphi 0, %s204
      %s221 = sphi 0, %s205
      %s227 = sphi 0, %s229
      %s230 = sphi 0, %s227
      %s231 = sphi 0, %s230
      %s247 = sphi 0, %s231
      %s253 = sphi 0, %s255
      %s256 = sphi 0, %s253
      %s257 = sphi 0, %s256
      %s273 = sphi 0, %s257
      %s279 = sphi 0, %s281
      %s282 = sphi 0, %s279
      %s283 = sphi 0, %s282
      %s299 = sphi 0, %s283
      %s305 = sphi 0, %s307
      %s308 = sphi 0, %s305
      %s309 = sphi 0, %s308
      %s325 = sphi 0, %s309
      %s331 = sphi 0, %s333
      %s334 = sphi 0, %s331
      %s335 = sphi 0, %s334
      %s351 = sphi 0, %s335
      %s357 = sphi 0, %s359
      %s360 = sphi 0, %s357
      %s361 = sphi 0, %s360
      %s377 = sphi 0, %s361
      %s383 = sphi 0, %s385
      %s386 = sphi 0, %s383
      %s387 = sphi 0, %s386
      %s403 = sphi 0, %s387
      %s409 = sphi 0, %s411
      %s412 = sphi 0, %s409
      %s413 = sphi 0, %s412
      %s429 = sphi 0, %s413
      %s435 = sphi 0, %s437
      %s438 = sphi 0, %s435
      %s439 = sphi 0, %s438
      %s455 = sphi 0, %s439
      %s461 = sphi 0, %s463
      %s464 = sphi 0, %s461
      %s465 = sphi 0, %s464
      %s481 = sphi 0, %s465
      %s487 = sphi 0, %s489
      %s490 = sphi 0, %s487
      %s491 = sphi 0, %s490
      %s507 = sphi 0, %s491
      %s513 = sphi 0, %s515
      %s516 = sphi 0, %s513
      %s517 = sphi 0, %s516
      %s533 = sphi 0, %s517
      %s539 = sphi 0, %s541
      %s542 = sphi 0, %s539
      %s543 = sphi 0, %s542
      %s559 = sphi 0, %s543
      %s565 = sphi 0, %s567
      %s568 = sphi 0, %s565
      %s569 = sphi 0, %s568
      %s585 = sphi 0, %s569
      %s591 = sphi 0, %s593
      %s594 = sphi 0, %s591
      %s595 = sphi 0, %s594
      %s611 = sphi 0, %s595
      %s617 = sphi 0, %s619
      %s620 = sphi 0, %s617
      %s621 = sphi 0, %s620
      %s637 = sphi 0, %s621
      %s643 = sphi 0, %s645
      %s646 = sphi 0, %s643
      %s647 = sphi 0, %s646
      %s663 = sphi 0, %s647
      %s669 = sphi 0, %s671
      %s672 = sphi 0, %s669
      %s673 = sphi 0, %s672
      %s689 = sphi 0, %s673
      %s695 = sphi 0, %s697
      %s698 = sphi 0, %s695
      %s699 = sphi 0, %s698
      %s715 = sphi 0, %s699
      %s721 = sphi 0, %s723
      %s724 = sphi 0, %s721
      %s725 = sphi 0, %s724
      %s741 = sphi 0, %s725
      %s747 = sphi 0, %s749
      %s750 = sphi 0, %s747
      %s751 = sphi 0, %s750
      %s767 = sphi 0, %s751
      %s773 = sphi 0, %s775
      %s776 = sphi 0, %s773
      %s777 = sphi 0, %s776
      %s793 = sphi 0, %s777
      %s799 = sphi 0, %s801
      %s802 = sphi 0, %s799
      %s803 = sphi 0, %s802
      %s819 = sphi 0, %s803
      %s825 = sphi 0, %s827
      %s828 = sphi 0, %s825
      %s829 = sphi 0, %s828
      %s845 = sphi 0, %s829
      %s851 = sphi 0, %s853
      %s854 = sphi 0, %s851
      %s855 = sphi 0, %s854
      %s871 = sphi 0, %s855
      %s875 = sphi 0, %s875
      %s877 = sphi 0, %s875
      %s878 = sphi 0, %s877
      %s892 = sphi 0, %s878
      %s896 = sphi 0, %s896
      %s898 = sphi 0, %s896
      %s899 = sphi 0, %s898
      %s913 = sphi 0, %s899
      %s919 = sphi 0, %s921
      %s922 = sphi 0, %s919
      %s923 = sphi 0, %s922
      %s939 = sphi 0, %s923
    $region4: #{tpu_custom_call.1} parent=1 // loop_header_branch
      %78 = sbr.rel (%p76) target = $region8
    $region5: #{tpu_custom_call.1} parent=1 // loop_body
      %s80 = ssub.s32 %s75, 1
      %s81 = ssub.s32 %s75, 2
      %s88 = sadd.s32 1, %s83
      %p89 = scmp.ge.s32.totalorder %s88, 2
      %s90 = scalar_select %p89, 0, %s88
      %s91 = sadd.s32 1, %s82
      %s92 = scalar_select %p89, %s91, %s82
      %p93 = scmp.ge.s32.totalorder %s92, 1
      %s94 = scalar_select %p93, 0, %s92
      %s95 = ssub.s32 %s82, %s94
      %p96 = scmp.eq.s32.totalorder %s95, 0
      %s98 = sadd.s32 %s97, 1
      %s99 = scalar_select %p96, %s97, %s98
      %p102 = pneg %p96
      %p103 = scmp.eq.s32.totalorder %s75, 1
      %p104 = por %p102, %p103
      %p105 = scmp.ne.s32.totalorder %s97, %s100
      %p106 = scmp.eq.s32.totalorder %s75, 0
      %p107 = por %p105, %p106
      %p108 = scmp.ne.s32.totalorder %s97, %s100
      %p109 = scmp.eq.s32.totalorder %s80, 1
      %p110 = por %p108, %p109
      %p111 = scmp.ne.s32.totalorder %s100, %s101
      %p112 = scmp.eq.s32.totalorder %s80, 0
      %p113 = por %p111, %p112
      %p114 = scmp.ne.s32.totalorder %s100, %s101
      %p115 = scmp.eq.s32.totalorder %s81, 1
      %p116 = por %p114, %p115
      %p118 = scmp.ne.s32.totalorder %s101, %s117
      %p119 = scmp.eq.s32.totalorder %s81, 0
      %p120 = por %p118, %p119
      %s121 = ssub.s32 %s82, %s94
      %p122 = scmp.eq.s32.totalorder %s121, 0
      %s124 = sadd.s32 %s123, 1
      %s125 = scalar_select %p122, %s123, %s124
      %p128 = pneg %p122
      %p129 = scmp.eq.s32.totalorder %s75, 1
      %p130 = por %p128, %p129
      %p131 = scmp.ne.s32.totalorder %s123, %s126
      %p132 = scmp.eq.s32.totalorder %s75, 0
      %p133 = por %p131, %p132
      %p134 = scmp.ne.s32.totalorder %s123, %s126
      %p135 = scmp.eq.s32.totalorder %s80, 1
      %p136 = por %p134, %p135
      %p137 = scmp.ne.s32.totalorder %s126, %s127
      %p138 = scmp.eq.s32.totalorder %s80, 0
      %p139 = por %p137, %p138
      %p140 = scmp.ne.s32.totalorder %s126, %s127
      %p141 = scmp.eq.s32.totalorder %s81, 1
      %p142 = por %p140, %p141
      %p144 = scmp.ne.s32.totalorder %s127, %s143
      %p145 = scmp.eq.s32.totalorder %s81, 0
      %p146 = por %p144, %p145
      %s147 = ssub.s32 %s82, %s94
      %p148 = scmp.eq.s32.totalorder %s147, 0
      %s150 = sadd.s32 %s149, 1
      %s151 = scalar_select %p148, %s149, %s150
      %p154 = pneg %p148
      %p155 = scmp.eq.s32.totalorder %s75, 1
      %p156 = por %p154, %p155
      %p157 = scmp.ne.s32.totalorder %s149, %s152
      %p158 = scmp.eq.s32.totalorder %s75, 0
      %p159 = por %p157, %p158
      %p160 = scmp.ne.s32.totalorder %s149, %s152
      %p161 = scmp.eq.s32.totalorder %s80, 1
      %p162 = por %p160, %p161
      %p163 = scmp.ne.s32.totalorder %s152, %s153
      %p164 = scmp.eq.s32.totalorder %s80, 0
      %p165 = por %p163, %p164
      %p166 = scmp.ne.s32.totalorder %s152, %s153
      %p167 = scmp.eq.s32.totalorder %s81, 1
      %p168 = por %p166, %p167
      %p170 = scmp.ne.s32.totalorder %s153, %s169
      %p171 = scmp.eq.s32.totalorder %s81, 0
      %p172 = por %p170, %p171
      %s173 = ssub.s32 %s82, %s94
      %p174 = scmp.eq.s32.totalorder %s173, 0
      %s176 = sadd.s32 %s175, 1
      %s177 = scalar_select %p174, %s175, %s176
      %p180 = pneg %p174
      %p181 = scmp.eq.s32.totalorder %s75, 1
      %p182 = por %p180, %p181
      %p183 = scmp.ne.s32.totalorder %s175, %s178
      %p184 = scmp.eq.s32.totalorder %s75, 0
      %p185 = por %p183, %p184
      %p186 = scmp.ne.s32.totalorder %s175, %s178
      %p187 = scmp.eq.s32.totalorder %s80, 1
      %p188 = por %p186, %p187
      %p189 = scmp.ne.s32.totalorder %s178, %s179
      %p190 = scmp.eq.s32.totalorder %s80, 0
      %p191 = por %p189, %p190
      %p192 = scmp.ne.s32.totalorder %s178, %s179
      %p193 = scmp.eq.s32.totalorder %s81, 1
      %p194 = por %p192, %p193
      %p196 = scmp.ne.s32.totalorder %s179, %s195
      %p197 = scmp.eq.s32.totalorder %s81, 0
      %p198 = por %p196, %p197
      %s199 = ssub.s32 %s83, %s90
      %p200 = scmp.eq.s32.totalorder %s199, 0
      %s202 = sadd.s32 %s201, 1
      %s203 = scalar_select %p200, %s201, %s202
      %p206 = pneg %p200
      %p207 = scmp.eq.s32.totalorder %s75, 1
      %p208 = por %p206, %p207
      %p209 = scmp.ne.s32.totalorder %s201, %s204
      %p210 = scmp.eq.s32.totalorder %s75, 0
      %p211 = por %p209, %p210
      %p212 = scmp.ne.s32.totalorder %s201, %s204
      %p213 = scmp.eq.s32.totalorder %s80, 1
      %p214 = por %p212, %p213
      %p215 = scmp.ne.s32.totalorder %s204, %s205
      %p216 = scmp.eq.s32.totalorder %s80, 0
      %p217 = por %p215, %p216
      %p218 = scmp.ne.s32.totalorder %s204, %s205
      %p219 = scmp.eq.s32.totalorder %s81, 1
      %p220 = por %p218, %p219
      %p222 = scmp.ne.s32.totalorder %s205, %s221
      %p223 = scmp.eq.s32.totalorder %s81, 0
      %p224 = por %p222, %p223
      %s225 = ssub.s32 %s83, %s90
      %p226 = scmp.eq.s32.totalorder %s225, 0
      %s228 = sadd.s32 %s227, 1
      %s229 = scalar_select %p226, %s227, %s228
      %p232 = pneg %p226
      %p233 = scmp.eq.s32.totalorder %s75, 1
      %p234 = por %p232, %p233
      %p235 = scmp.ne.s32.totalorder %s227, %s230
      %p236 = scmp.eq.s32.totalorder %s75, 0
      %p237 = por %p235, %p236
      %p238 = scmp.ne.s32.totalorder %s227, %s230
      %p239 = scmp.eq.s32.totalorder %s80, 1
      %p240 = por %p238, %p239
      %p241 = scmp.ne.s32.totalorder %s230, %s231
      %p242 = scmp.eq.s32.totalorder %s80, 0
      %p243 = por %p241, %p242
      %p244 = scmp.ne.s32.totalorder %s230, %s231
      %p245 = scmp.eq.s32.totalorder %s81, 1
      %p246 = por %p244, %p245
      %p248 = scmp.ne.s32.totalorder %s231, %s247
      %p249 = scmp.eq.s32.totalorder %s81, 0
      %p250 = por %p248, %p249
      %s251 = ssub.s32 %s83, %s90
      %p252 = scmp.eq.s32.totalorder %s251, 0
      %s254 = sadd.s32 %s253, 1
      %s255 = scalar_select %p252, %s253, %s254
      %p258 = pneg %p252
      %p259 = scmp.eq.s32.totalorder %s75, 1
      %p260 = por %p258, %p259
      %p261 = scmp.ne.s32.totalorder %s253, %s256
      %p262 = scmp.eq.s32.totalorder %s75, 0
      %p263 = por %p261, %p262
      %p264 = scmp.ne.s32.totalorder %s253, %s256
      %p265 = scmp.eq.s32.totalorder %s80, 1
      %p266 = por %p264, %p265
      %p267 = scmp.ne.s32.totalorder %s256, %s257
      %p268 = scmp.eq.s32.totalorder %s80, 0
      %p269 = por %p267, %p268
      %p270 = scmp.ne.s32.totalorder %s256, %s257
      %p271 = scmp.eq.s32.totalorder %s81, 1
      %p272 = por %p270, %p271
      %p274 = scmp.ne.s32.totalorder %s257, %s273
      %p275 = scmp.eq.s32.totalorder %s81, 0
      %p276 = por %p274, %p275
      %s277 = ssub.s32 %s83, %s90
      %p278 = scmp.eq.s32.totalorder %s277, 0
      %s280 = sadd.s32 %s279, 1
      %s281 = scalar_select %p278, %s279, %s280
      %p284 = pneg %p278
      %p285 = scmp.eq.s32.totalorder %s75, 1
      %p286 = por %p284, %p285
      %p287 = scmp.ne.s32.totalorder %s279, %s282
      %p288 = scmp.eq.s32.totalorder %s75, 0
      %p289 = por %p287, %p288
      %p290 = scmp.ne.s32.totalorder %s279, %s282
      %p291 = scmp.eq.s32.totalorder %s80, 1
      %p292 = por %p290, %p291
      %p293 = scmp.ne.s32.totalorder %s282, %s283
      %p294 = scmp.eq.s32.totalorder %s80, 0
      %p295 = por %p293, %p294
      %p296 = scmp.ne.s32.totalorder %s282, %s283
      %p297 = scmp.eq.s32.totalorder %s81, 1
      %p298 = por %p296, %p297
      %p300 = scmp.ne.s32.totalorder %s283, %s299
      %p301 = scmp.eq.s32.totalorder %s81, 0
      %p302 = por %p300, %p301
      %s303 = ssub.s32 %s83, %s90
      %p304 = scmp.eq.s32.totalorder %s303, 0
      %s306 = sadd.s32 %s305, 1
      %s307 = scalar_select %p304, %s305, %s306
      %p310 = pneg %p304
      %p311 = scmp.eq.s32.totalorder %s75, 1
      %p312 = por %p310, %p311
      %p313 = scmp.ne.s32.totalorder %s305, %s308
      %p314 = scmp.eq.s32.totalorder %s75, 0
      %p315 = por %p313, %p314
      %p316 = scmp.ne.s32.totalorder %s305, %s308
      %p317 = scmp.eq.s32.totalorder %s80, 1
      %p318 = por %p316, %p317
      %p319 = scmp.ne.s32.totalorder %s308, %s309
      %p320 = scmp.eq.s32.totalorder %s80, 0
      %p321 = por %p319, %p320
      %p322 = scmp.ne.s32.totalorder %s308, %s309
      %p323 = scmp.eq.s32.totalorder %s81, 1
      %p324 = por %p322, %p323
      %p326 = scmp.ne.s32.totalorder %s309, %s325
      %p327 = scmp.eq.s32.totalorder %s81, 0
      %p328 = por %p326, %p327
      %s329 = ssub.s32 %s83, %s90
      %p330 = scmp.eq.s32.totalorder %s329, 0
      %s332 = sadd.s32 %s331, 1
      %s333 = scalar_select %p330, %s331, %s332
      %p336 = pneg %p330
      %p337 = scmp.eq.s32.totalorder %s75, 1
      %p338 = por %p336, %p337
      %p339 = scmp.ne.s32.totalorder %s331, %s334
      %p340 = scmp.eq.s32.totalorder %s75, 0
      %p341 = por %p339, %p340
      %p342 = scmp.ne.s32.totalorder %s331, %s334
      %p343 = scmp.eq.s32.totalorder %s80, 1
      %p344 = por %p342, %p343
      %p345 = scmp.ne.s32.totalorder %s334, %s335
      %p346 = scmp.eq.s32.totalorder %s80, 0
      %p347 = por %p345, %p346
      %p348 = scmp.ne.s32.totalorder %s334, %s335
      %p349 = scmp.eq.s32.totalorder %s81, 1
      %p350 = por %p348, %p349
      %p352 = scmp.ne.s32.totalorder %s335, %s351
      %p353 = scmp.eq.s32.totalorder %s81, 0
      %p354 = por %p352, %p353
      %s355 = ssub.s32 %s83, %s90
      %p356 = scmp.eq.s32.totalorder %s355, 0
      %s358 = sadd.s32 %s357, 1
      %s359 = scalar_select %p356, %s357, %s358
      %p362 = pneg %p356
      %p363 = scmp.eq.s32.totalorder %s75, 1
      %p364 = por %p362, %p363
      %p365 = scmp.ne.s32.totalorder %s357, %s360
      %p366 = scmp.eq.s32.totalorder %s75, 0
      %p367 = por %p365, %p366
      %p368 = scmp.ne.s32.totalorder %s357, %s360
      %p369 = scmp.eq.s32.totalorder %s80, 1
      %p370 = por %p368, %p369
      %p371 = scmp.ne.s32.totalorder %s360, %s361
      %p372 = scmp.eq.s32.totalorder %s80, 0
      %p373 = por %p371, %p372
      %p374 = scmp.ne.s32.totalorder %s360, %s361
      %p375 = scmp.eq.s32.totalorder %s81, 1
      %p376 = por %p374, %p375
      %p378 = scmp.ne.s32.totalorder %s361, %s377
      %p379 = scmp.eq.s32.totalorder %s81, 0
      %p380 = por %p378, %p379
      %s381 = ssub.s32 %s83, %s90
      %p382 = scmp.eq.s32.totalorder %s381, 0
      %s384 = sadd.s32 %s383, 1
      %s385 = scalar_select %p382, %s383, %s384
      %p388 = pneg %p382
      %p389 = scmp.eq.s32.totalorder %s75, 1
      %p390 = por %p388, %p389
      %p391 = scmp.ne.s32.totalorder %s383, %s386
      %p392 = scmp.eq.s32.totalorder %s75, 0
      %p393 = por %p391, %p392
      %p394 = scmp.ne.s32.totalorder %s383, %s386
      %p395 = scmp.eq.s32.totalorder %s80, 1
      %p396 = por %p394, %p395
      %p397 = scmp.ne.s32.totalorder %s386, %s387
      %p398 = scmp.eq.s32.totalorder %s80, 0
      %p399 = por %p397, %p398
      %p400 = scmp.ne.s32.totalorder %s386, %s387
      %p401 = scmp.eq.s32.totalorder %s81, 1
      %p402 = por %p400, %p401
      %p404 = scmp.ne.s32.totalorder %s387, %s403
      %p405 = scmp.eq.s32.totalorder %s81, 0
      %p406 = por %p404, %p405
      %s407 = ssub.s32 %s83, %s90
      %p408 = scmp.eq.s32.totalorder %s407, 0
      %s410 = sadd.s32 %s409, 1
      %s411 = scalar_select %p408, %s409, %s410
      %p414 = pneg %p408
      %p415 = scmp.eq.s32.totalorder %s75, 1
      %p416 = por %p414, %p415
      %p417 = scmp.ne.s32.totalorder %s409, %s412
      %p418 = scmp.eq.s32.totalorder %s75, 0
      %p419 = por %p417, %p418
      %p420 = scmp.ne.s32.totalorder %s409, %s412
      %p421 = scmp.eq.s32.totalorder %s80, 1
      %p422 = por %p420, %p421
      %p423 = scmp.ne.s32.totalorder %s412, %s413
      %p424 = scmp.eq.s32.totalorder %s80, 0
      %p425 = por %p423, %p424
      %p426 = scmp.ne.s32.totalorder %s412, %s413
      %p427 = scmp.eq.s32.totalorder %s81, 1
      %p428 = por %p426, %p427
      %p430 = scmp.ne.s32.totalorder %s413, %s429
      %p431 = scmp.eq.s32.totalorder %s81, 0
      %p432 = por %p430, %p431
      %s433 = ssub.s32 %s83, %s90
      %p434 = scmp.eq.s32.totalorder %s433, 0
      %s436 = sadd.s32 %s435, 1
      %s437 = scalar_select %p434, %s435, %s436
      %p440 = pneg %p434
      %p441 = scmp.eq.s32.totalorder %s75, 1
      %p442 = por %p440, %p441
      %p443 = scmp.ne.s32.totalorder %s435, %s438
      %p444 = scmp.eq.s32.totalorder %s75, 0
      %p445 = por %p443, %p444
      %p446 = scmp.ne.s32.totalorder %s435, %s438
      %p447 = scmp.eq.s32.totalorder %s80, 1
      %p448 = por %p446, %p447
      %p449 = scmp.ne.s32.totalorder %s438, %s439
      %p450 = scmp.eq.s32.totalorder %s80, 0
      %p451 = por %p449, %p450
      %p452 = scmp.ne.s32.totalorder %s438, %s439
      %p453 = scmp.eq.s32.totalorder %s81, 1
      %p454 = por %p452, %p453
      %p456 = scmp.ne.s32.totalorder %s439, %s455
      %p457 = scmp.eq.s32.totalorder %s81, 0
      %p458 = por %p456, %p457
      %s459 = ssub.s32 %s83, %s90
      %p460 = scmp.eq.s32.totalorder %s459, 0
      %s462 = sadd.s32 %s461, 1
      %s463 = scalar_select %p460, %s461, %s462
      %p466 = pneg %p460
      %p467 = scmp.eq.s32.totalorder %s75, 1
      %p468 = por %p466, %p467
      %p469 = scmp.ne.s32.totalorder %s461, %s464
      %p470 = scmp.eq.s32.totalorder %s75, 0
      %p471 = por %p469, %p470
      %p472 = scmp.ne.s32.totalorder %s461, %s464
      %p473 = scmp.eq.s32.totalorder %s80, 1
      %p474 = por %p472, %p473
      %p475 = scmp.ne.s32.totalorder %s464, %s465
      %p476 = scmp.eq.s32.totalorder %s80, 0
      %p477 = por %p475, %p476
      %p478 = scmp.ne.s32.totalorder %s464, %s465
      %p479 = scmp.eq.s32.totalorder %s81, 1
      %p480 = por %p478, %p479
      %p482 = scmp.ne.s32.totalorder %s465, %s481
      %p483 = scmp.eq.s32.totalorder %s81, 0
      %p484 = por %p482, %p483
      %s485 = ssub.s32 %s83, %s90
      %p486 = scmp.eq.s32.totalorder %s485, 0
      %s488 = sadd.s32 %s487, 1
      %s489 = scalar_select %p486, %s487, %s488
      %p492 = pneg %p486
      %p493 = scmp.eq.s32.totalorder %s75, 1
      %p494 = por %p492, %p493
      %p495 = scmp.ne.s32.totalorder %s487, %s490
      %p496 = scmp.eq.s32.totalorder %s75, 0
      %p497 = por %p495, %p496
      %p498 = scmp.ne.s32.totalorder %s487, %s490
      %p499 = scmp.eq.s32.totalorder %s80, 1
      %p500 = por %p498, %p499
      %p501 = scmp.ne.s32.totalorder %s490, %s491
      %p502 = scmp.eq.s32.totalorder %s80, 0
      %p503 = por %p501, %p502
      %p504 = scmp.ne.s32.totalorder %s490, %s491
      %p505 = scmp.eq.s32.totalorder %s81, 1
      %p506 = por %p504, %p505
      %p508 = scmp.ne.s32.totalorder %s491, %s507
      %p509 = scmp.eq.s32.totalorder %s81, 0
      %p510 = por %p508, %p509
      %s511 = ssub.s32 %s83, %s90
      %p512 = scmp.eq.s32.totalorder %s511, 0
      %s514 = sadd.s32 %s513, 1
      %s515 = scalar_select %p512, %s513, %s514
      %p518 = pneg %p512
      %p519 = scmp.eq.s32.totalorder %s75, 1
      %p520 = por %p518, %p519
      %p521 = scmp.ne.s32.totalorder %s513, %s516
      %p522 = scmp.eq.s32.totalorder %s75, 0
      %p523 = por %p521, %p522
      %p524 = scmp.ne.s32.totalorder %s513, %s516
      %p525 = scmp.eq.s32.totalorder %s80, 1
      %p526 = por %p524, %p525
      %p527 = scmp.ne.s32.totalorder %s516, %s517
      %p528 = scmp.eq.s32.totalorder %s80, 0
      %p529 = por %p527, %p528
      %p530 = scmp.ne.s32.totalorder %s516, %s517
      %p531 = scmp.eq.s32.totalorder %s81, 1
      %p532 = por %p530, %p531
      %p534 = scmp.ne.s32.totalorder %s517, %s533
      %p535 = scmp.eq.s32.totalorder %s81, 0
      %p536 = por %p534, %p535
      %s537 = ssub.s32 %s83, %s90
      %p538 = scmp.eq.s32.totalorder %s537, 0
      %s540 = sadd.s32 %s539, 1
      %s541 = scalar_select %p538, %s539, %s540
      %p544 = pneg %p538
      %p545 = scmp.eq.s32.totalorder %s75, 1
      %p546 = por %p544, %p545
      %p547 = scmp.ne.s32.totalorder %s539, %s542
      %p548 = scmp.eq.s32.totalorder %s75, 0
      %p549 = por %p547, %p548
      %p550 = scmp.ne.s32.totalorder %s539, %s542
      %p551 = scmp.eq.s32.totalorder %s80, 1
      %p552 = por %p550, %p551
      %p553 = scmp.ne.s32.totalorder %s542, %s543
      %p554 = scmp.eq.s32.totalorder %s80, 0
      %p555 = por %p553, %p554
      %p556 = scmp.ne.s32.totalorder %s542, %s543
      %p557 = scmp.eq.s32.totalorder %s81, 1
      %p558 = por %p556, %p557
      %p560 = scmp.ne.s32.totalorder %s543, %s559
      %p561 = scmp.eq.s32.totalorder %s81, 0
      %p562 = por %p560, %p561
      %s563 = ssub.s32 %s83, %s90
      %p564 = scmp.eq.s32.totalorder %s563, 0
      %s566 = sadd.s32 %s565, 1
      %s567 = scalar_select %p564, %s565, %s566
      %p570 = pneg %p564
      %p571 = scmp.eq.s32.totalorder %s75, 1
      %p572 = por %p570, %p571
      %p573 = scmp.ne.s32.totalorder %s565, %s568
      %p574 = scmp.eq.s32.totalorder %s75, 0
      %p575 = por %p573, %p574
      %p576 = scmp.ne.s32.totalorder %s565, %s568
      %p577 = scmp.eq.s32.totalorder %s80, 1
      %p578 = por %p576, %p577
      %p579 = scmp.ne.s32.totalorder %s568, %s569
      %p580 = scmp.eq.s32.totalorder %s80, 0
      %p581 = por %p579, %p580
      %p582 = scmp.ne.s32.totalorder %s568, %s569
      %p583 = scmp.eq.s32.totalorder %s81, 1
      %p584 = por %p582, %p583
      %p586 = scmp.ne.s32.totalorder %s569, %s585
      %p587 = scmp.eq.s32.totalorder %s81, 0
      %p588 = por %p586, %p587
      %s589 = ssub.s32 %s83, %s90
      %p590 = scmp.eq.s32.totalorder %s589, 0
      %s592 = sadd.s32 %s591, 1
      %s593 = scalar_select %p590, %s591, %s592
      %p596 = pneg %p590
      %p597 = scmp.eq.s32.totalorder %s75, 1
      %p598 = por %p596, %p597
      %p599 = scmp.ne.s32.totalorder %s591, %s594
      %p600 = scmp.eq.s32.totalorder %s75, 0
      %p601 = por %p599, %p600
      %p602 = scmp.ne.s32.totalorder %s591, %s594
      %p603 = scmp.eq.s32.totalorder %s80, 1
      %p604 = por %p602, %p603
      %p605 = scmp.ne.s32.totalorder %s594, %s595
      %p606 = scmp.eq.s32.totalorder %s80, 0
      %p607 = por %p605, %p606
      %p608 = scmp.ne.s32.totalorder %s594, %s595
      %p609 = scmp.eq.s32.totalorder %s81, 1
      %p610 = por %p608, %p609
      %p612 = scmp.ne.s32.totalorder %s595, %s611
      %p613 = scmp.eq.s32.totalorder %s81, 0
      %p614 = por %p612, %p613
      %s615 = ssub.s32 %s83, %s90
      %p616 = scmp.eq.s32.totalorder %s615, 0
      %s618 = sadd.s32 %s617, 1
      %s619 = scalar_select %p616, %s617, %s618
      %p622 = pneg %p616
      %p623 = scmp.eq.s32.totalorder %s75, 1
      %p624 = por %p622, %p623
      %p625 = scmp.ne.s32.totalorder %s617, %s620
      %p626 = scmp.eq.s32.totalorder %s75, 0
      %p627 = por %p625, %p626
      %p628 = scmp.ne.s32.totalorder %s617, %s620
      %p629 = scmp.eq.s32.totalorder %s80, 1
      %p630 = por %p628, %p629
      %p631 = scmp.ne.s32.totalorder %s620, %s621
      %p632 = scmp.eq.s32.totalorder %s80, 0
      %p633 = por %p631, %p632
      %p634 = scmp.ne.s32.totalorder %s620, %s621
      %p635 = scmp.eq.s32.totalorder %s81, 1
      %p636 = por %p634, %p635
      %p638 = scmp.ne.s32.totalorder %s621, %s637
      %p639 = scmp.eq.s32.totalorder %s81, 0
      %p640 = por %p638, %p639
      %s641 = ssub.s32 %s83, %s90
      %p642 = scmp.eq.s32.totalorder %s641, 0
      %s644 = sadd.s32 %s643, 1
      %s645 = scalar_select %p642, %s643, %s644
      %p648 = pneg %p642
      %p649 = scmp.eq.s32.totalorder %s75, 1
      %p650 = por %p648, %p649
      %p651 = scmp.ne.s32.totalorder %s643, %s646
      %p652 = scmp.eq.s32.totalorder %s75, 0
      %p653 = por %p651, %p652
      %p654 = scmp.ne.s32.totalorder %s643, %s646
      %p655 = scmp.eq.s32.totalorder %s80, 1
      %p656 = por %p654, %p655
      %p657 = scmp.ne.s32.totalorder %s646, %s647
      %p658 = scmp.eq.s32.totalorder %s80, 0
      %p659 = por %p657, %p658
      %p660 = scmp.ne.s32.totalorder %s646, %s647
      %p661 = scmp.eq.s32.totalorder %s81, 1
      %p662 = por %p660, %p661
      %p664 = scmp.ne.s32.totalorder %s647, %s663
      %p665 = scmp.eq.s32.totalorder %s81, 0
      %p666 = por %p664, %p665
      %s667 = ssub.s32 %s83, %s90
      %p668 = scmp.eq.s32.totalorder %s667, 0
      %s670 = sadd.s32 %s669, 1
      %s671 = scalar_select %p668, %s669, %s670
      %p674 = pneg %p668
      %p675 = scmp.eq.s32.totalorder %s75, 1
      %p676 = por %p674, %p675
      %p677 = scmp.ne.s32.totalorder %s669, %s672
      %p678 = scmp.eq.s32.totalorder %s75, 0
      %p679 = por %p677, %p678
      %p680 = scmp.ne.s32.totalorder %s669, %s672
      %p681 = scmp.eq.s32.totalorder %s80, 1
      %p682 = por %p680, %p681
      %p683 = scmp.ne.s32.totalorder %s672, %s673
      %p684 = scmp.eq.s32.totalorder %s80, 0
      %p685 = por %p683, %p684
      %p686 = scmp.ne.s32.totalorder %s672, %s673
      %p687 = scmp.eq.s32.totalorder %s81, 1
      %p688 = por %p686, %p687
      %p690 = scmp.ne.s32.totalorder %s673, %s689
      %p691 = scmp.eq.s32.totalorder %s81, 0
      %p692 = por %p690, %p691
      %s693 = ssub.s32 %s83, %s90
      %p694 = scmp.eq.s32.totalorder %s693, 0
      %s696 = sadd.s32 %s695, 1
      %s697 = scalar_select %p694, %s695, %s696
      %p700 = pneg %p694
      %p701 = scmp.eq.s32.totalorder %s75, 1
      %p702 = por %p700, %p701
      %p703 = scmp.ne.s32.totalorder %s695, %s698
      %p704 = scmp.eq.s32.totalorder %s75, 0
      %p705 = por %p703, %p704
      %p706 = scmp.ne.s32.totalorder %s695, %s698
      %p707 = scmp.eq.s32.totalorder %s80, 1
      %p708 = por %p706, %p707
      %p709 = scmp.ne.s32.totalorder %s698, %s699
      %p710 = scmp.eq.s32.totalorder %s80, 0
      %p711 = por %p709, %p710
      %p712 = scmp.ne.s32.totalorder %s698, %s699
      %p713 = scmp.eq.s32.totalorder %s81, 1
      %p714 = por %p712, %p713
      %p716 = scmp.ne.s32.totalorder %s699, %s715
      %p717 = scmp.eq.s32.totalorder %s81, 0
      %p718 = por %p716, %p717
      %s719 = ssub.s32 %s83, %s90
      %p720 = scmp.eq.s32.totalorder %s719, 0
      %s722 = sadd.s32 %s721, 1
      %s723 = scalar_select %p720, %s721, %s722
      %p726 = pneg %p720
      %p727 = scmp.eq.s32.totalorder %s75, 1
      %p728 = por %p726, %p727
      %p729 = scmp.ne.s32.totalorder %s721, %s724
      %p730 = scmp.eq.s32.totalorder %s75, 0
      %p731 = por %p729, %p730
      %p732 = scmp.ne.s32.totalorder %s721, %s724
      %p733 = scmp.eq.s32.totalorder %s80, 1
      %p734 = por %p732, %p733
      %p735 = scmp.ne.s32.totalorder %s724, %s725
      %p736 = scmp.eq.s32.totalorder %s80, 0
      %p737 = por %p735, %p736
      %p738 = scmp.ne.s32.totalorder %s724, %s725
      %p739 = scmp.eq.s32.totalorder %s81, 1
      %p740 = por %p738, %p739
      %p742 = scmp.ne.s32.totalorder %s725, %s741
      %p743 = scmp.eq.s32.totalorder %s81, 0
      %p744 = por %p742, %p743
      %s745 = ssub.s32 %s83, %s90
      %p746 = scmp.eq.s32.totalorder %s745, 0
      %s748 = sadd.s32 %s747, 1
      %s749 = scalar_select %p746, %s747, %s748
      %p752 = pneg %p746
      %p753 = scmp.eq.s32.totalorder %s75, 1
      %p754 = por %p752, %p753
      %p755 = scmp.ne.s32.totalorder %s747, %s750
      %p756 = scmp.eq.s32.totalorder %s75, 0
      %p757 = por %p755, %p756
      %p758 = scmp.ne.s32.totalorder %s747, %s750
      %p759 = scmp.eq.s32.totalorder %s80, 1
      %p760 = por %p758, %p759
      %p761 = scmp.ne.s32.totalorder %s750, %s751
      %p762 = scmp.eq.s32.totalorder %s80, 0
      %p763 = por %p761, %p762
      %p764 = scmp.ne.s32.totalorder %s750, %s751
      %p765 = scmp.eq.s32.totalorder %s81, 1
      %p766 = por %p764, %p765
      %p768 = scmp.ne.s32.totalorder %s751, %s767
      %p769 = scmp.eq.s32.totalorder %s81, 0
      %p770 = por %p768, %p769
      %s771 = ssub.s32 %s83, %s90
      %p772 = scmp.eq.s32.totalorder %s771, 0
      %s774 = sadd.s32 %s773, 1
      %s775 = scalar_select %p772, %s773, %s774
      %p778 = pneg %p772
      %p779 = scmp.eq.s32.totalorder %s75, 1
      %p780 = por %p778, %p779
      %p781 = scmp.ne.s32.totalorder %s773, %s776
      %p782 = scmp.eq.s32.totalorder %s75, 0
      %p783 = por %p781, %p782
      %p784 = scmp.ne.s32.totalorder %s773, %s776
      %p785 = scmp.eq.s32.totalorder %s80, 1
      %p786 = por %p784, %p785
      %p787 = scmp.ne.s32.totalorder %s776, %s777
      %p788 = scmp.eq.s32.totalorder %s80, 0
      %p789 = por %p787, %p788
      %p790 = scmp.ne.s32.totalorder %s776, %s777
      %p791 = scmp.eq.s32.totalorder %s81, 1
      %p792 = por %p790, %p791
      %p794 = scmp.ne.s32.totalorder %s777, %s793
      %p795 = scmp.eq.s32.totalorder %s81, 0
      %p796 = por %p794, %p795
      %s797 = ssub.s32 %s83, %s90
      %p798 = scmp.eq.s32.totalorder %s797, 0
      %s800 = sadd.s32 %s799, 1
      %s801 = scalar_select %p798, %s799, %s800
      %p804 = pneg %p798
      %p805 = scmp.eq.s32.totalorder %s75, 1
      %p806 = por %p804, %p805
      %p807 = scmp.ne.s32.totalorder %s799, %s802
      %p808 = scmp.eq.s32.totalorder %s75, 0
      %p809 = por %p807, %p808
      %p810 = scmp.ne.s32.totalorder %s799, %s802
      %p811 = scmp.eq.s32.totalorder %s80, 1
      %p812 = por %p810, %p811
      %p813 = scmp.ne.s32.totalorder %s802, %s803
      %p814 = scmp.eq.s32.totalorder %s80, 0
      %p815 = por %p813, %p814
      %p816 = scmp.ne.s32.totalorder %s802, %s803
      %p817 = scmp.eq.s32.totalorder %s81, 1
      %p818 = por %p816, %p817
      %p820 = scmp.ne.s32.totalorder %s803, %s819
      %p821 = scmp.eq.s32.totalorder %s81, 0
      %p822 = por %p820, %p821
      %s823 = ssub.s32 %s83, %s90
      %p824 = scmp.eq.s32.totalorder %s823, 0
      %s826 = sadd.s32 %s825, 1
      %s827 = scalar_select %p824, %s825, %s826
      %p830 = pneg %p824
      %p831 = scmp.eq.s32.totalorder %s75, 1
      %p832 = por %p830, %p831
      %p833 = scmp.ne.s32.totalorder %s825, %s828
      %p834 = scmp.eq.s32.totalorder %s75, 0
      %p835 = por %p833, %p834
      %p836 = scmp.ne.s32.totalorder %s825, %s828
      %p837 = scmp.eq.s32.totalorder %s80, 1
      %p838 = por %p836, %p837
      %p839 = scmp.ne.s32.totalorder %s828, %s829
      %p840 = scmp.eq.s32.totalorder %s80, 0
      %p841 = por %p839, %p840
      %p842 = scmp.ne.s32.totalorder %s828, %s829
      %p843 = scmp.eq.s32.totalorder %s81, 1
      %p844 = por %p842, %p843
      %p846 = scmp.ne.s32.totalorder %s829, %s845
      %p847 = scmp.eq.s32.totalorder %s81, 0
      %p848 = por %p846, %p847
      %s849 = ssub.s32 %s83, %s90
      %p850 = scmp.eq.s32.totalorder %s849, 0
      %s852 = sadd.s32 %s851, 1
      %s853 = scalar_select %p850, %s851, %s852
      %p856 = pneg %p850
      %p857 = scmp.eq.s32.totalorder %s75, 1
      %p858 = por %p856, %p857
      %p859 = scmp.ne.s32.totalorder %s851, %s854
      %p860 = scmp.eq.s32.totalorder %s75, 0
      %p861 = por %p859, %p860
      %p862 = scmp.ne.s32.totalorder %s851, %s854
      %p863 = scmp.eq.s32.totalorder %s80, 1
      %p864 = por %p862, %p863
      %p865 = scmp.ne.s32.totalorder %s854, %s855
      %p866 = scmp.eq.s32.totalorder %s80, 0
      %p867 = por %p865, %p866
      %p868 = scmp.ne.s32.totalorder %s854, %s855
      %p869 = scmp.eq.s32.totalorder %s81, 1
      %p870 = por %p868, %p869
      %p872 = scmp.ne.s32.totalorder %s855, %s871
      %p873 = scmp.eq.s32.totalorder %s81, 0
      %p874 = por %p872, %p873
      %s876 = sadd.s32 %s875, 1
      %p879 = scmp.eq.s32.totalorder %s75, 1
      %p880 = scmp.ne.s32.totalorder %s875, %s877
      %p881 = scmp.eq.s32.totalorder %s75, 0
      %p882 = por %p880, %p881
      %p883 = scmp.ne.s32.totalorder %s875, %s877
      %p884 = scmp.eq.s32.totalorder %s80, 1
      %p885 = por %p883, %p884
      %p886 = scmp.ne.s32.totalorder %s877, %s878
      %p887 = scmp.eq.s32.totalorder %s80, 0
      %p888 = por %p886, %p887
      %p889 = scmp.ne.s32.totalorder %s877, %s878
      %p890 = scmp.eq.s32.totalorder %s81, 1
      %p891 = por %p889, %p890
      %p893 = scmp.ne.s32.totalorder %s878, %s892
      %p894 = scmp.eq.s32.totalorder %s81, 0
      %p895 = por %p893, %p894
      %s897 = sadd.s32 %s896, 1
      %p900 = scmp.eq.s32.totalorder %s75, 1
      %p901 = scmp.ne.s32.totalorder %s896, %s898
      %p902 = scmp.eq.s32.totalorder %s75, 0
      %p903 = por %p901, %p902
      %p904 = scmp.ne.s32.totalorder %s896, %s898
      %p905 = scmp.eq.s32.totalorder %s80, 1
      %p906 = por %p904, %p905
      %p907 = scmp.ne.s32.totalorder %s898, %s899
      %p908 = scmp.eq.s32.totalorder %s80, 0
      %p909 = por %p907, %p908
      %p910 = scmp.ne.s32.totalorder %s898, %s899
      %p911 = scmp.eq.s32.totalorder %s81, 1
      %p912 = por %p910, %p911
      %p914 = scmp.ne.s32.totalorder %s899, %s913
      %p915 = scmp.eq.s32.totalorder %s81, 0
      %p916 = por %p914, %p915
      %s917 = ssub.s32 %s82, %s94
      %p918 = scmp.eq.s32.totalorder %s917, 0
      %s920 = sadd.s32 %s919, 1
      %s921 = scalar_select %p918, %s919, %s920
      %p924 = pneg %p918
      %p925 = scmp.eq.s32.totalorder %s75, 1
      %p926 = por %p924, %p925
      %p927 = scmp.ne.s32.totalorder %s919, %s922
      %p928 = scmp.eq.s32.totalorder %s75, 0
      %p929 = por %p927, %p928
      %p930 = scmp.ne.s32.totalorder %s919, %s922
      %p931 = scmp.eq.s32.totalorder %s80, 1
      %p932 = por %p930, %p931
      %p933 = scmp.ne.s32.totalorder %s922, %s923
      %p934 = scmp.eq.s32.totalorder %s80, 0
      %p935 = por %p933, %p934
      %p936 = scmp.ne.s32.totalorder %s922, %s923
      %p937 = scmp.eq.s32.totalorder %s81, 1
      %p938 = por %p936, %p937
      %p940 = scmp.ne.s32.totalorder %s923, %s939
      %p941 = scmp.eq.s32.totalorder %s81, 0
      %p942 = por %p940, %p941
      %p943 = scmp.le.s32.totalorder 1, %s75
      %p944 = scmp.lt.s32.totalorder %s75, 3
      %p945 = pnand %p943, %p944
      %p946 = pneg %p945
      // Predicated region
      $region9: #{tpu_custom_call.1} parent=5 // pred_check
        _
      $region10: #{tpu_custom_call.1} parent=5 // pred_check_branch
        %948 = sbr.rel (%p945) target = $region12
      $region11: #{tpu_custom_call.1} parent=5 // pred_region
        %s949 = ssub.s32 %s75, 1
        // Predicated region
        $region13: #{tpu_custom_call.1} parent=11 // pred_check
          %p950 = pneg %p113
        $region14: #{tpu_custom_call.1} parent=11 // pred_check_branch
          %952 = sbr.rel (%p950) target = $region16
        $region15: #{tpu_custom_call.1} parent=11 // pred_region
          %s953 = smul.u32 2, %s84
          %s955 = ssub.s32 512, 512
          %956 = vsyncadd [#allocation6], %s955
          %s957 = smul.addr %s953, 2
          %s958 = smul.addr %s957, 128
          %s959 = scalar_lea.hbm %s1, %s958
          %s960 = sshll.u32 [#allocation5], 4
          %s961 = int_to_ptr.vmem [resolvable:$true] %s960
          %966 = dma.hbm_to_vmem [thread:$0]  %s959, 512, %s961, [#allocation6], 128, 128, 8
        $region16: #{tpu_custom_call.1} parent=11 // pred_fallthru
          _
        // Predicated region
        $region17: #{tpu_custom_call.1} parent=11 // pred_check
          %p967 = pneg %p139
        $region18: #{tpu_custom_call.1} parent=11 // pred_check_branch
          %969 = sbr.rel (%p967) target = $region20
        $region19: #{tpu_custom_call.1} parent=11 // pred_region
          %s970 = smul.u32 2, %s84
          %s972 = ssub.s32 1024, 1024
          %973 = vsyncadd [#allocation9], %s972
          %s974 = smul.addr %s970, 4
          %s975 = smul.addr %s974, 128
          %s976 = scalar_lea.hbm %s3, %s975
          %s977 = sshll.u32 [#allocation8], 4
          %s978 = int_to_ptr.vmem [resolvable:$true] %s977
          %983 = dma.hbm_to_vmem [thread:$0]  %s976, 1024, %s978, [#allocation9], 128, 128, 8
        $region20: #{tpu_custom_call.1} parent=11 // pred_fallthru
          _
        // Predicated region
        $region21: #{tpu_custom_call.1} parent=11 // pred_check
          %p984 = pneg %p165
        $region22: #{tpu_custom_call.1} parent=11 // pred_check_branch
          %986 = sbr.rel (%p984) target = $region24
        $region23: #{tpu_custom_call.1} parent=11 // pred_region
          %s987 = smul.u32 2, %s84
          %s989 = ssub.s32 512, 512
          %990 = vsyncadd [#allocation9], %s989
          %s991 = smul.addr %s987, 2
          %s992 = smul.addr %s991, 128
          %s993 = scalar_lea.hbm %s5, %s992
          %s994 = sshll.u32 [#allocation10], 4
          %s995 = int_to_ptr.vmem [resolvable:$true] %s994
          %1000 = dma.hbm_to_vmem [thread:$0]  %s993, 512, %s995, [#allocation9], 128, 128, 8
        $region24: #{tpu_custom_call.1} parent=11 // pred_fallthru
          _
        // Predicated region
        $region25: #{tpu_custom_call.1} parent=11 // pred_check
          %p1001 = pneg %p191
        $region26: #{tpu_custom_call.1} parent=11 // pred_check_branch
          %1003 = sbr.rel (%p1001) target = $region28
        $region27: #{tpu_custom_call.1} parent=11 // pred_region
          %s1004 = smul.u32 2, %s84
          %s1006 = ssub.s32 1024, 1024
          %1007 = vsyncadd [#allocation12], %s1006
          %s1008 = smul.addr %s1004, 4
          %s1009 = smul.addr %s1008, 128
          %s1010 = scalar_lea.hbm %s7, %s1009
          %s1011 = sshll.u32 [#allocation11], 4
          %s1012 = int_to_ptr.vmem [resolvable:$true] %s1011
          %1017 = dma.hbm_to_vmem [thread:$0]  %s1010, 1024, %s1012, [#allocation12], 128, 128, 8
        $region28: #{tpu_custom_call.1} parent=11 // pred_fallthru
          _
        // Predicated region
        $region29: #{tpu_custom_call.1} parent=11 // pred_check
          %p1018 = pneg %p888
        $region30: #{tpu_custom_call.1} parent=11 // pred_check_branch
          %1020 = sbr.rel (%p1018) target = $region32
        $region31: #{tpu_custom_call.1} parent=11 // pred_region
          _
        $region32: #{tpu_custom_call.1} parent=11 // pred_fallthru
          _
        // Predicated region
        $region33: #{tpu_custom_call.1} parent=11 // pred_check
          %p1021 = pneg %p909
        $region34: #{tpu_custom_call.1} parent=11 // pred_check_branch
          %1023 = sbr.rel (%p1021) target = $region36
        $region35: #{tpu_custom_call.1} parent=11 // pred_region
          _
        $region36: #{tpu_custom_call.1} parent=11 // pred_fallthru
          _
      $region12: #{tpu_custom_call.1} parent=5 // pred_fallthru
        _
      %p1024 = scmp.lt.s32.totalorder %s75, 2
      // Predicated region
      $region37: #{tpu_custom_call.1} parent=5 // pred_check
        %p1025 = pneg %p1024
      $region38: #{tpu_custom_call.1} parent=5 // pred_check_branch
        %1027 = sbr.rel (%p1025) target = $region40
      $region39: #{tpu_custom_call.1} parent=5 // pred_region
        // Predicated region
        $region41: #{tpu_custom_call.1} parent=39 // pred_check
          %p1028 = pneg %p211
        $region42: #{tpu_custom_call.1} parent=39 // pred_check_branch
          %1030 = sbr.rel (%p1028) target = $region44
        $region43: #{tpu_custom_call.1} parent=39 // pred_region
          %s1031 = sand.u32 %s75, 1
          %s1032 = scalar_lea.sflag [#allocation6], %s1031
          %s1033 = sand.u32 %s201, 1
          %s1034 = smul.addr %s1033, 64
          %s1035 = scalar_lea.vmem [#allocation13], %s1034
          %s1037 = ssub.s32 1024, 1024
          %1038 = vsyncadd %s1032, %s1037
          %s1039 = smul.addr %s83, 16
          %s1040 = smul.addr %s1039, 64
          %s1041 = scalar_lea.hbm %s9, %s1040
          %s1042 = sshll.u32 %s1035, 4
          %s1043 = int_to_ptr.vmem [resolvable:$true] %s1042
          %1048 = dma.hbm_to_vmem [thread:$0]  %s1041, 1024, %s1043, %s1032, 64, 64, 4
        $region44: #{tpu_custom_call.1} parent=39 // pred_fallthru
          _
        // Predicated region
        $region45: #{tpu_custom_call.1} parent=39 // pred_check
          %p1049 = pneg %p237
        $region46: #{tpu_custom_call.1} parent=39 // pred_check_branch
          %1051 = sbr.rel (%p1049) target = $region48
        $region47: #{tpu_custom_call.1} parent=39 // pred_region
          %s1052 = sand.u32 %s75, 1
          %s1053 = scalar_lea.sflag [#allocation6], %s1052
          %s1054 = sand.u32 %s227, 1
          %s1055 = smul.addr %s1054, 64
          %s1056 = scalar_lea.vmem [#allocation14], %s1055
          %s1058 = ssub.s32 1024, 1024
          %1059 = vsyncadd %s1053, %s1058
          %s1060 = smul.addr %s83, 16
          %s1061 = smul.addr %s1060, 64
          %s1062 = scalar_lea.hbm %s11, %s1061
          %s1063 = sshll.u32 %s1056, 4
          %s1064 = int_to_ptr.vmem [resolvable:$true] %s1063
          %1069 = dma.hbm_to_vmem [thread:$0]  %s1062, 1024, %s1064, %s1053, 64, 64, 4
        $region48: #{tpu_custom_call.1} parent=39 // pred_fallthru
          _
        // Predicated region
        $region49: #{tpu_custom_call.1} parent=39 // pred_check
          %p1070 = pneg %p263
        $region50: #{tpu_custom_call.1} parent=39 // pred_check_branch
          %1072 = sbr.rel (%p1070) target = $region52
        $region51: #{tpu_custom_call.1} parent=39 // pred_region
          %s1073 = sand.u32 %s75, 1
          %s1074 = scalar_lea.sflag [#allocation6], %s1073
          %s1075 = sand.u32 %s253, 1
          %s1076 = smul.addr %s1075, 64
          %s1077 = scalar_lea.vmem [#allocation15], %s1076
          %s1079 = ssub.s32 1024, 1024
          %1080 = vsyncadd %s1074, %s1079
          %s1081 = smul.addr %s83, 16
          %s1082 = smul.addr %s1081, 64
          %s1083 = scalar_lea.hbm %s13, %s1082
          %s1084 = sshll.u32 %s1077, 4
          %s1085 = int_to_ptr.vmem [resolvable:$true] %s1084
          %1090 = dma.hbm_to_vmem [thread:$0]  %s1083, 1024, %s1085, %s1074, 64, 64, 4
        $region52: #{tpu_custom_call.1} parent=39 // pred_fallthru
          _
        // Predicated region
        $region53: #{tpu_custom_call.1} parent=39 // pred_check
          %p1091 = pneg %p289
        $region54: #{tpu_custom_call.1} parent=39 // pred_check_branch
          %1093 = sbr.rel (%p1091) target = $region56
        $region55: #{tpu_custom_call.1} parent=39 // pred_region
          %s1094 = sand.u32 %s75, 1
          %s1095 = scalar_lea.sflag [#allocation6], %s1094
          %s1096 = sand.u32 %s279, 1
          %s1097 = smul.addr %s1096, 64
          %s1098 = scalar_lea.vmem [#allocation16], %s1097
          %s1100 = ssub.s32 1024, 1024
          %1101 = vsyncadd %s1095, %s1100
          %s1102 = smul.addr %s83, 16
          %s1103 = smul.addr %s1102, 64
          %s1104 = scalar_lea.hbm %s15, %s1103
          %s1105 = sshll.u32 %s1098, 4
          %s1106 = int_to_ptr.vmem [resolvable:$true] %s1105
          %1111 = dma.hbm_to_vmem [thread:$0]  %s1104, 1024, %s1106, %s1095, 64, 64, 4
        $region56: #{tpu_custom_call.1} parent=39 // pred_fallthru
          _
        // Predicated region
        $region57: #{tpu_custom_call.1} parent=39 // pred_check
          %p1112 = pneg %p315
        $region58: #{tpu_custom_call.1} parent=39 // pred_check_branch
          %1114 = sbr.rel (%p1112) target = $region60
        $region59: #{tpu_custom_call.1} parent=39 // pred_region
          %p1115 = scmp.lt.s32.totalorder %s83, 1
          %s1116 = scalar_select %p1115, %s83, 1
          %s1117 = scalar_lea.vmem %s17, %s1116
        $region60: #{tpu_custom_call.1} parent=39 // pred_fallthru
          _
        // Predicated region
        $region61: #{tpu_custom_call.1} parent=39 // pred_check
          %p1118 = pneg %p341
        $region62: #{tpu_custom_call.1} parent=39 // pred_check_branch
          %1120 = sbr.rel (%p1118) target = $region64
        $region63: #{tpu_custom_call.1} parent=39 // pred_region
          %p1121 = scmp.lt.s32.totalorder %s83, 1
          %s1122 = scalar_select %p1121, %s83, 1
          %s1123 = scalar_lea.vmem %s19, %s1122
        $region64: #{tpu_custom_call.1} parent=39 // pred_fallthru
          _
        // Predicated region
        $region65: #{tpu_custom_call.1} parent=39 // pred_check
          %p1124 = pneg %p367
        $region66: #{tpu_custom_call.1} parent=39 // pred_check_branch
          %1126 = sbr.rel (%p1124) target = $region68
        $region67: #{tpu_custom_call.1} parent=39 // pred_region
          %p1127 = scmp.lt.s32.totalorder %s83, 1
          %s1128 = scalar_select %p1127, %s83, 1
          %s1129 = scalar_lea.vmem %s21, %s1128
        $region68: #{tpu_custom_call.1} parent=39 // pred_fallthru
          _
        // Predicated region
        $region69: #{tpu_custom_call.1} parent=39 // pred_check
          %p1130 = pneg %p393
        $region70: #{tpu_custom_call.1} parent=39 // pred_check_branch
          %1132 = sbr.rel (%p1130) target = $region72
        $region71: #{tpu_custom_call.1} parent=39 // pred_region
          %p1133 = scmp.lt.s32.totalorder %s83, 1
          %s1134 = scalar_select %p1133, %s83, 1
          %s1135 = scalar_lea.vmem %s23, %s1134
        $region72: #{tpu_custom_call.1} parent=39 // pred_fallthru
          _
        // Predicated region
        $region73: #{tpu_custom_call.1} parent=39 // pred_check
          %p1136 = pneg %p419
        $region74: #{tpu_custom_call.1} parent=39 // pred_check_branch
          %1138 = sbr.rel (%p1136) target = $region76
        $region75: #{tpu_custom_call.1} parent=39 // pred_region
          %s1139 = sand.u32 %s75, 1
          %s1140 = scalar_lea.sflag [#allocation6], %s1139
          %s1141 = sand.u32 %s409, 1
          %s1142 = smul.addr %s1141, 64
          %s1143 = scalar_lea.vmem [#allocation17], %s1142
          %s1145 = ssub.s32 1024, 1024
          %1146 = vsyncadd %s1140, %s1145
          %s1147 = smul.addr %s83, 16
          %s1148 = smul.addr %s1147, 64
          %s1149 = scalar_lea.hbm %s25, %s1148
          %s1150 = sshll.u32 %s1143, 4
          %s1151 = int_to_ptr.vmem [resolvable:$true] %s1150
          %1156 = dma.hbm_to_vmem [thread:$0]  %s1149, 1024, %s1151, %s1140, 64, 64, 4
        $region76: #{tpu_custom_call.1} parent=39 // pred_fallthru
          _
        // Predicated region
        $region77: #{tpu_custom_call.1} parent=39 // pred_check
          %p1157 = pneg %p445
        $region78: #{tpu_custom_call.1} parent=39 // pred_check_branch
          %1159 = sbr.rel (%p1157) target = $region80
        $region79: #{tpu_custom_call.1} parent=39 // pred_region
          %s1160 = sand.u32 %s75, 1
          %s1161 = scalar_lea.sflag [#allocation6], %s1160
          %s1162 = sand.u32 %s435, 1
          %s1163 = smul.addr %s1162, 64
          %s1164 = scalar_lea.vmem [#allocation18], %s1163
          %s1166 = ssub.s32 1024, 1024
          %1167 = vsyncadd %s1161, %s1166
          %s1168 = smul.addr %s83, 16
          %s1169 = smul.addr %s1168, 64
          %s1170 = scalar_lea.hbm %s27, %s1169
          %s1171 = sshll.u32 %s1164, 4
          %s1172 = int_to_ptr.vmem [resolvable:$true] %s1171
          %1177 = dma.hbm_to_vmem [thread:$0]  %s1170, 1024, %s1172, %s1161, 64, 64, 4
        $region80: #{tpu_custom_call.1} parent=39 // pred_fallthru
          _
        // Predicated region
        $region81: #{tpu_custom_call.1} parent=39 // pred_check
          %p1178 = pneg %p471
        $region82: #{tpu_custom_call.1} parent=39 // pred_check_branch
          %1180 = sbr.rel (%p1178) target = $region84
        $region83: #{tpu_custom_call.1} parent=39 // pred_region
          %s1181 = sand.u32 %s75, 1
          %s1182 = scalar_lea.sflag [#allocation6], %s1181
          %s1183 = sand.u32 %s461, 1
          %s1184 = smul.addr %s1183, 64
          %s1185 = scalar_lea.vmem [#allocation19], %s1184
          %s1187 = ssub.s32 1024, 1024
          %1188 = vsyncadd %s1182, %s1187
          %s1189 = smul.addr %s83, 16
          %s1190 = smul.addr %s1189, 64
          %s1191 = scalar_lea.hbm %s29, %s1190
          %s1192 = sshll.u32 %s1185, 4
          %s1193 = int_to_ptr.vmem [resolvable:$true] %s1192
          %1198 = dma.hbm_to_vmem [thread:$0]  %s1191, 1024, %s1193, %s1182, 64, 64, 4
        $region84: #{tpu_custom_call.1} parent=39 // pred_fallthru
          _
        // Predicated region
        $region85: #{tpu_custom_call.1} parent=39 // pred_check
          %p1199 = pneg %p497
        $region86: #{tpu_custom_call.1} parent=39 // pred_check_branch
          %1201 = sbr.rel (%p1199) target = $region88
        $region87: #{tpu_custom_call.1} parent=39 // pred_region
          %s1202 = sand.u32 %s75, 1
          %s1203 = scalar_lea.sflag [#allocation6], %s1202
          %s1204 = sand.u32 %s487, 1
          %s1205 = smul.addr %s1204, 64
          %s1206 = scalar_lea.vmem [#allocation20], %s1205
          %s1208 = ssub.s32 1024, 1024
          %1209 = vsyncadd %s1203, %s1208
          %s1210 = smul.addr %s83, 16
          %s1211 = smul.addr %s1210, 64
          %s1212 = scalar_lea.hbm %s31, %s1211
          %s1213 = sshll.u32 %s1206, 4
          %s1214 = int_to_ptr.vmem [resolvable:$true] %s1213
          %1219 = dma.hbm_to_vmem [thread:$0]  %s1212, 1024, %s1214, %s1203, 64, 64, 4
        $region88: #{tpu_custom_call.1} parent=39 // pred_fallthru
          _
        // Predicated region
        $region89: #{tpu_custom_call.1} parent=39 // pred_check
          %p1220 = pneg %p523
        $region90: #{tpu_custom_call.1} parent=39 // pred_check_branch
          %1222 = sbr.rel (%p1220) target = $region92
        $region91: #{tpu_custom_call.1} parent=39 // pred_region
          %p1223 = scmp.lt.s32.totalorder %s83, 1
          %s1224 = scalar_select %p1223, %s83, 1
          %s1225 = scalar_lea.vmem %s33, %s1224
        $region92: #{tpu_custom_call.1} parent=39 // pred_fallthru
          _
        // Predicated region
        $region93: #{tpu_custom_call.1} parent=39 // pred_check
          %p1226 = pneg %p549
        $region94: #{tpu_custom_call.1} parent=39 // pred_check_branch
          %1228 = sbr.rel (%p1226) target = $region96
        $region95: #{tpu_custom_call.1} parent=39 // pred_region
          %p1229 = scmp.lt.s32.totalorder %s83, 1
          %s1230 = scalar_select %p1229, %s83, 1
          %s1231 = scalar_lea.vmem %s35, %s1230
        $region96: #{tpu_custom_call.1} parent=39 // pred_fallthru
          _
        // Predicated region
        $region97: #{tpu_custom_call.1} parent=39 // pred_check
          %p1232 = pneg %p575
        $region98: #{tpu_custom_call.1} parent=39 // pred_check_branch
          %1234 = sbr.rel (%p1232) target = $region100
        $region99: #{tpu_custom_call.1} parent=39 // pred_region
          %p1235 = scmp.lt.s32.totalorder %s83, 1
          %s1236 = scalar_select %p1235, %s83, 1
          %s1237 = scalar_lea.vmem %s37, %s1236
        $region100: #{tpu_custom_call.1} parent=39 // pred_fallthru
          _
        // Predicated region
        $region101: #{tpu_custom_call.1} parent=39 // pred_check
          %p1238 = pneg %p601
        $region102: #{tpu_custom_call.1} parent=39 // pred_check_branch
          %1240 = sbr.rel (%p1238) target = $region104
        $region103: #{tpu_custom_call.1} parent=39 // pred_region
          %p1241 = scmp.lt.s32.totalorder %s83, 1
          %s1242 = scalar_select %p1241, %s83, 1
          %s1243 = scalar_lea.vmem %s39, %s1242
        $region104: #{tpu_custom_call.1} parent=39 // pred_fallthru
          _
        // Predicated region
        $region105: #{tpu_custom_call.1} parent=39 // pred_check
          %p1244 = pneg %p627
        $region106: #{tpu_custom_call.1} parent=39 // pred_check_branch
          %1246 = sbr.rel (%p1244) target = $region108
        $region107: #{tpu_custom_call.1} parent=39 // pred_region
          %s1247 = sand.u32 %s75, 1
          %s1248 = scalar_lea.sflag [#allocation6], %s1247
          %s1249 = sand.u32 %s617, 1
          %s1250 = smul.addr %s1249, 128
          %s1251 = scalar_lea.vmem [#allocation21], %s1250
          %s1253 = ssub.s32 2048, 2048
          %1254 = vsyncadd %s1248, %s1253
          %s1255 = smul.addr %s83, 32
          %s1256 = smul.addr %s1255, 64
          %s1257 = scalar_lea.hbm %s41, %s1256
          %s1258 = sshll.u32 %s1251, 4
          %s1259 = int_to_ptr.vmem [resolvable:$true] %s1258
          %1264 = dma.hbm_to_vmem [thread:$0]  %s1257, 2048, %s1259, %s1248, 128, 128, 8
        $region108: #{tpu_custom_call.1} parent=39 // pred_fallthru
          _
        // Predicated region
        $region109: #{tpu_custom_call.1} parent=39 // pred_check
          %p1265 = pneg %p653
        $region110: #{tpu_custom_call.1} parent=39 // pred_check_branch
          %1267 = sbr.rel (%p1265) target = $region112
        $region111: #{tpu_custom_call.1} parent=39 // pred_region
          %s1268 = sand.u32 %s75, 1
          %s1269 = scalar_lea.sflag [#allocation6], %s1268
          %s1270 = sand.u32 %s643, 1
          %s1271 = smul.addr %s1270, 128
          %s1272 = scalar_lea.vmem [#allocation22], %s1271
          %s1274 = ssub.s32 2048, 2048
          %1275 = vsyncadd %s1269, %s1274
          %s1276 = smul.addr %s83, 32
          %s1277 = smul.addr %s1276, 64
          %s1278 = scalar_lea.hbm %s43, %s1277
          %s1279 = sshll.u32 %s1272, 4
          %s1280 = int_to_ptr.vmem [resolvable:$true] %s1279
          %1285 = dma.hbm_to_vmem [thread:$0]  %s1278, 2048, %s1280, %s1269, 64, 64, 4
        $region112: #{tpu_custom_call.1} parent=39 // pred_fallthru
          _
        // Predicated region
        $region113: #{tpu_custom_call.1} parent=39 // pred_check
          %p1286 = pneg %p679
        $region114: #{tpu_custom_call.1} parent=39 // pred_check_branch
          %1288 = sbr.rel (%p1286) target = $region116
        $region115: #{tpu_custom_call.1} parent=39 // pred_region
          %p1289 = scmp.lt.s32.totalorder %s83, 1
          %s1290 = scalar_select %p1289, %s83, 1
          %s1291 = smul.addr %s1290, 2
          %s1292 = scalar_lea.vmem %s45, %s1291
        $region116: #{tpu_custom_call.1} parent=39 // pred_fallthru
          _
        // Predicated region
        $region117: #{tpu_custom_call.1} parent=39 // pred_check
          %p1293 = pneg %p705
        $region118: #{tpu_custom_call.1} parent=39 // pred_check_branch
          %1295 = sbr.rel (%p1293) target = $region120
        $region119: #{tpu_custom_call.1} parent=39 // pred_region
          %p1296 = scmp.lt.s32.totalorder %s83, 1
          %s1297 = scalar_select %p1296, %s83, 1
          %s1298 = scalar_lea.vmem %s47, %s1297
        $region120: #{tpu_custom_call.1} parent=39 // pred_fallthru
          _
        // Predicated region
        $region121: #{tpu_custom_call.1} parent=39 // pred_check
          %p1299 = pneg %p731
        $region122: #{tpu_custom_call.1} parent=39 // pred_check_branch
          %1301 = sbr.rel (%p1299) target = $region124
        $region123: #{tpu_custom_call.1} parent=39 // pred_region
          %p1302 = scmp.lt.s32.totalorder %s83, 1
          %s1303 = scalar_select %p1302, %s83, 1
          %s1304 = scalar_lea.vmem %s49, %s1303
        $region124: #{tpu_custom_call.1} parent=39 // pred_fallthru
          _
        // Predicated region
        $region125: #{tpu_custom_call.1} parent=39 // pred_check
          %p1305 = pneg %p757
        $region126: #{tpu_custom_call.1} parent=39 // pred_check_branch
          %1307 = sbr.rel (%p1305) target = $region128
        $region127: #{tpu_custom_call.1} parent=39 // pred_region
          %p1308 = scmp.lt.s32.totalorder %s83, 1
          %s1309 = scalar_select %p1308, %s83, 1
          %s1310 = scalar_lea.vmem %s51, %s1309
        $region128: #{tpu_custom_call.1} parent=39 // pred_fallthru
          _
        // Predicated region
        $region129: #{tpu_custom_call.1} parent=39 // pred_check
          %p1311 = pneg %p783
        $region130: #{tpu_custom_call.1} parent=39 // pred_check_branch
          %1313 = sbr.rel (%p1311) target = $region132
        $region131: #{tpu_custom_call.1} parent=39 // pred_region
          %p1314 = scmp.lt.s32.totalorder %s83, 1
          %s1315 = scalar_select %p1314, %s83, 1
          %s1316 = scalar_lea.vmem %s53, %s1315
        $region132: #{tpu_custom_call.1} parent=39 // pred_fallthru
          _
        // Predicated region
        $region133: #{tpu_custom_call.1} parent=39 // pred_check
          %p1317 = pneg %p809
        $region134: #{tpu_custom_call.1} parent=39 // pred_check_branch
          %1319 = sbr.rel (%p1317) target = $region136
        $region135: #{tpu_custom_call.1} parent=39 // pred_region
          %p1320 = scmp.lt.s32.totalorder %s83, 1
          %s1321 = scalar_select %p1320, %s83, 1
          %s1322 = scalar_lea.vmem %s55, %s1321
        $region136: #{tpu_custom_call.1} parent=39 // pred_fallthru
          _
        // Predicated region
        $region137: #{tpu_custom_call.1} parent=39 // pred_check
          %p1323 = pneg %p835
        $region138: #{tpu_custom_call.1} parent=39 // pred_check_branch
          %1325 = sbr.rel (%p1323) target = $region140
        $region139: #{tpu_custom_call.1} parent=39 // pred_region
          %p1326 = scmp.lt.s32.totalorder %s83, 1
          %s1327 = scalar_select %p1326, %s83, 1
          %s1328 = scalar_lea.vmem %s57, %s1327
        $region140: #{tpu_custom_call.1} parent=39 // pred_fallthru
          _
        // Predicated region
        $region141: #{tpu_custom_call.1} parent=39 // pred_check
          %p1329 = pneg %p861
        $region142: #{tpu_custom_call.1} parent=39 // pred_check_branch
          %1331 = sbr.rel (%p1329) target = $region144
        $region143: #{tpu_custom_call.1} parent=39 // pred_region
          %p1332 = scmp.lt.s32.totalorder %s83, 1
          %s1333 = scalar_select %p1332, %s83, 1
          %s1334 = scalar_lea.vmem %s59, %s1333
        $region144: #{tpu_custom_call.1} parent=39 // pred_fallthru
          _
      $region40: #{tpu_custom_call.1} parent=5 // pred_fallthru
        _
      %p1335 = scmp.le.s32.totalorder 1, %s75
      %p1336 = scmp.lt.s32.totalorder %s75, 3
      %p1337 = pnand %p1335, %p1336
      %p1338 = pneg %p1337
      // Predicated region
      $region145: #{tpu_custom_call.1} parent=5 // pred_check
        _
      $region146: #{tpu_custom_call.1} parent=5 // pred_check_branch
        %1340 = sbr.rel (%p1337) target = $region148
      $region147: #{tpu_custom_call.1} parent=5 // pred_region
        %s1341 = ssub.s32 %s75, 1
        // Predicated region
        $region149: #{tpu_custom_call.1} parent=147 // pred_check
          %p1342 = pneg %p113
        $region150: #{tpu_custom_call.1} parent=147 // pred_check_branch
          %1344 = sbr.rel (%p1342) target = $region152
        $region151: #{tpu_custom_call.1} parent=147 // pred_region
          %1345 = dma.done [#allocation6], 512
        $region152: #{tpu_custom_call.1} parent=147 // pred_fallthru
          _
        // Predicated region
        $region153: #{tpu_custom_call.1} parent=147 // pred_check
          %p1346 = pneg %p139
        $region154: #{tpu_custom_call.1} parent=147 // pred_check_branch
          %1348 = sbr.rel (%p1346) target = $region156
        $region155: #{tpu_custom_call.1} parent=147 // pred_region
          %1349 = dma.done [#allocation9], 1024
        $region156: #{tpu_custom_call.1} parent=147 // pred_fallthru
          _
        // Predicated region
        $region157: #{tpu_custom_call.1} parent=147 // pred_check
          %p1350 = pneg %p165
        $region158: #{tpu_custom_call.1} parent=147 // pred_check_branch
          %1352 = sbr.rel (%p1350) target = $region160
        $region159: #{tpu_custom_call.1} parent=147 // pred_region
          %1353 = dma.done [#allocation9], 512
        $region160: #{tpu_custom_call.1} parent=147 // pred_fallthru
          _
        // Predicated region
        $region161: #{tpu_custom_call.1} parent=147 // pred_check
          %p1354 = pneg %p191
        $region162: #{tpu_custom_call.1} parent=147 // pred_check_branch
          %1356 = sbr.rel (%p1354) target = $region164
        $region163: #{tpu_custom_call.1} parent=147 // pred_region
          %1357 = dma.done [#allocation12], 1024
        $region164: #{tpu_custom_call.1} parent=147 // pred_fallthru
          _
        %s1358 = sand.u32 %s80, 1
        %s1359 = scalar_lea.sflag [#allocation6], %s1358
        %s1360 = sand.u32 %s204, 1
        %s1361 = smul.addr %s1360, 64
        %s1362 = scalar_lea.vmem [#allocation13], %s1361
        // Predicated region
        $region165: #{tpu_custom_call.1} parent=147 // pred_check
          %p1363 = pneg %p217
        $region166: #{tpu_custom_call.1} parent=147 // pred_check_branch
          %1365 = sbr.rel (%p1363) target = $region168
        $region167: #{tpu_custom_call.1} parent=147 // pred_region
          %1366 = dma.done %s1359, 1024
        $region168: #{tpu_custom_call.1} parent=147 // pred_fallthru
          _
        %s1367 = sand.u32 %s80, 1
        %s1368 = scalar_lea.sflag [#allocation6], %s1367
        %s1369 = sand.u32 %s230, 1
        %s1370 = smul.addr %s1369, 64
        %s1371 = scalar_lea.vmem [#allocation14], %s1370
        // Predicated region
        $region169: #{tpu_custom_call.1} parent=147 // pred_check
          %p1372 = pneg %p243
        $region170: #{tpu_custom_call.1} parent=147 // pred_check_branch
          %1374 = sbr.rel (%p1372) target = $region172
        $region171: #{tpu_custom_call.1} parent=147 // pred_region
          %1375 = dma.done %s1368, 1024
        $region172: #{tpu_custom_call.1} parent=147 // pred_fallthru
          _
        %s1376 = sand.u32 %s80, 1
        %s1377 = scalar_lea.sflag [#allocation6], %s1376
        %s1378 = sand.u32 %s256, 1
        %s1379 = smul.addr %s1378, 64
        %s1380 = scalar_lea.vmem [#allocation15], %s1379
        // Predicated region
        $region173: #{tpu_custom_call.1} parent=147 // pred_check
          %p1381 = pneg %p269
        $region174: #{tpu_custom_call.1} parent=147 // pred_check_branch
          %1383 = sbr.rel (%p1381) target = $region176
        $region175: #{tpu_custom_call.1} parent=147 // pred_region
          %1384 = dma.done %s1377, 1024
        $region176: #{tpu_custom_call.1} parent=147 // pred_fallthru
          _
        %s1385 = sand.u32 %s80, 1
        %s1386 = scalar_lea.sflag [#allocation6], %s1385
        %s1387 = sand.u32 %s282, 1
        %s1388 = smul.addr %s1387, 64
        %s1389 = scalar_lea.vmem [#allocation16], %s1388
        // Predicated region
        $region177: #{tpu_custom_call.1} parent=147 // pred_check
          %p1390 = pneg %p295
        $region178: #{tpu_custom_call.1} parent=147 // pred_check_branch
          %1392 = sbr.rel (%p1390) target = $region180
        $region179: #{tpu_custom_call.1} parent=147 // pred_region
          %1393 = dma.done %s1386, 1024
        $region180: #{tpu_custom_call.1} parent=147 // pred_fallthru
          _
        %s1394 = sand.u32 %s80, 1
        %s1395 = scalar_lea.sflag [#allocation6], %s1394
        %s1396 = sand.u32 %s412, 1
        %s1397 = smul.addr %s1396, 64
        %s1398 = scalar_lea.vmem [#allocation17], %s1397
        // Predicated region
        $region181: #{tpu_custom_call.1} parent=147 // pred_check
          %p1399 = pneg %p425
        $region182: #{tpu_custom_call.1} parent=147 // pred_check_branch
          %1401 = sbr.rel (%p1399) target = $region184
        $region183: #{tpu_custom_call.1} parent=147 // pred_region
          %1402 = dma.done %s1395, 1024
        $region184: #{tpu_custom_call.1} parent=147 // pred_fallthru
          _
        %s1403 = sand.u32 %s80, 1
        %s1404 = scalar_lea.sflag [#allocation6], %s1403
        %s1405 = sand.u32 %s438, 1
        %s1406 = smul.addr %s1405, 64
        %s1407 = scalar_lea.vmem [#allocation18], %s1406
        // Predicated region
        $region185: #{tpu_custom_call.1} parent=147 // pred_check
          %p1408 = pneg %p451
        $region186: #{tpu_custom_call.1} parent=147 // pred_check_branch
          %1410 = sbr.rel (%p1408) target = $region188
        $region187: #{tpu_custom_call.1} parent=147 // pred_region
          %1411 = dma.done %s1404, 1024
        $region188: #{tpu_custom_call.1} parent=147 // pred_fallthru
          _
        %s1412 = sand.u32 %s80, 1
        %s1413 = scalar_lea.sflag [#allocation6], %s1412
        %s1414 = sand.u32 %s464, 1
        %s1415 = smul.addr %s1414, 64
        %s1416 = scalar_lea.vmem [#allocation19], %s1415
        // Predicated region
        $region189: #{tpu_custom_call.1} parent=147 // pred_check
          %p1417 = pneg %p477
        $region190: #{tpu_custom_call.1} parent=147 // pred_check_branch
          %1419 = sbr.rel (%p1417) target = $region192
        $region191: #{tpu_custom_call.1} parent=147 // pred_region
          %1420 = dma.done %s1413, 1024
        $region192: #{tpu_custom_call.1} parent=147 // pred_fallthru
          _
        %s1421 = sand.u32 %s80, 1
        %s1422 = scalar_lea.sflag [#allocation6], %s1421
        %s1423 = sand.u32 %s490, 1
        %s1424 = smul.addr %s1423, 64
        %s1425 = scalar_lea.vmem [#allocation20], %s1424
        // Predicated region
        $region193: #{tpu_custom_call.1} parent=147 // pred_check
          %p1426 = pneg %p503
        $region194: #{tpu_custom_call.1} parent=147 // pred_check_branch
          %1428 = sbr.rel (%p1426) target = $region196
        $region195: #{tpu_custom_call.1} parent=147 // pred_region
          %1429 = dma.done %s1422, 1024
        $region196: #{tpu_custom_call.1} parent=147 // pred_fallthru
          _
        %s1430 = sand.u32 %s80, 1
        %s1431 = scalar_lea.sflag [#allocation6], %s1430
        %s1432 = sand.u32 %s620, 1
        %s1433 = smul.addr %s1432, 128
        %s1434 = scalar_lea.vmem [#allocation21], %s1433
        // Predicated region
        $region197: #{tpu_custom_call.1} parent=147 // pred_check
          %p1435 = pneg %p633
        $region198: #{tpu_custom_call.1} parent=147 // pred_check_branch
          %1437 = sbr.rel (%p1435) target = $region200
        $region199: #{tpu_custom_call.1} parent=147 // pred_region
          %1438 = dma.done %s1431, 2048
        $region200: #{tpu_custom_call.1} parent=147 // pred_fallthru
          _
        %s1439 = sand.u32 %s80, 1
        %s1440 = scalar_lea.sflag [#allocation6], %s1439
        %s1441 = sand.u32 %s646, 1
        %s1442 = smul.addr %s1441, 128
        %s1443 = scalar_lea.vmem [#allocation22], %s1442
        // Predicated region
        $region201: #{tpu_custom_call.1} parent=147 // pred_check
          %p1444 = pneg %p659
        $region202: #{tpu_custom_call.1} parent=147 // pred_check_branch
          %1446 = sbr.rel (%p1444) target = $region204
        $region203: #{tpu_custom_call.1} parent=147 // pred_region
          %1447 = dma.done %s1440, 2048
        $region204: #{tpu_custom_call.1} parent=147 // pred_fallthru
          _
        %p1448 = pneg %p113
        %p1449 = pneg %p110
        %p1450 = pneg %p139
        %p1451 = pneg %p136
        %p1452 = pneg %p165
        %p1453 = pneg %p162
        %p1454 = pneg %p191
        %p1455 = pneg %p188
        %s1456 = sand.u32 %s80, 1
        %s1457 = scalar_lea.sflag [#allocation6], %s1456
        %s1458 = sand.u32 %s204, 1
        %s1459 = smul.addr %s1458, 64
        %s1460 = scalar_lea.vmem [#allocation13], %s1459
        %p1461 = pneg %p217
        %p1462 = pneg %p214
        %s1463 = sand.u32 %s80, 1
        %s1464 = scalar_lea.sflag [#allocation6], %s1463
        %s1465 = sand.u32 %s230, 1
        %s1466 = smul.addr %s1465, 64
        %s1467 = scalar_lea.vmem [#allocation14], %s1466
        %p1468 = pneg %p243
        %p1469 = pneg %p240
        %s1470 = sand.u32 %s80, 1
        %s1471 = scalar_lea.sflag [#allocation6], %s1470
        %s1472 = sand.u32 %s256, 1
        %s1473 = smul.addr %s1472, 64
        %s1474 = scalar_lea.vmem [#allocation15], %s1473
        %p1475 = pneg %p269
        %p1476 = pneg %p266
        %s1477 = sand.u32 %s80, 1
        %s1478 = scalar_lea.sflag [#allocation6], %s1477
        %s1479 = sand.u32 %s282, 1
        %s1480 = smul.addr %s1479, 64
        %s1481 = scalar_lea.vmem [#allocation16], %s1480
        %p1482 = pneg %p295
        %p1483 = pneg %p292
        %p1484 = scmp.lt.s32.totalorder %s85, 1
        %s1485 = scalar_select %p1484, %s85, 1
        %s1486 = scalar_lea.vmem %s17, %s1485
        %p1487 = pneg %p321
        %p1488 = pneg %p318
        %p1489 = scmp.lt.s32.totalorder %s85, 1
        %s1490 = scalar_select %p1489, %s85, 1
        %s1491 = scalar_lea.vmem %s19, %s1490
        %p1492 = pneg %p347
        %p1493 = pneg %p344
        %p1494 = scmp.lt.s32.totalorder %s85, 1
        %s1495 = scalar_select %p1494, %s85, 1
        %s1496 = scalar_lea.vmem %s21, %s1495
        %p1497 = pneg %p373
        %p1498 = pneg %p370
        %p1499 = scmp.lt.s32.totalorder %s85, 1
        %s1500 = scalar_select %p1499, %s85, 1
        %s1501 = scalar_lea.vmem %s23, %s1500
        %p1502 = pneg %p399
        %p1503 = pneg %p396
        %s1504 = sand.u32 %s80, 1
        %s1505 = scalar_lea.sflag [#allocation6], %s1504
        %s1506 = sand.u32 %s412, 1
        %s1507 = smul.addr %s1506, 64
        %s1508 = scalar_lea.vmem [#allocation17], %s1507
        %p1509 = pneg %p425
        %p1510 = pneg %p422
        %s1511 = sand.u32 %s80, 1
        %s1512 = scalar_lea.sflag [#allocation6], %s1511
        %s1513 = sand.u32 %s438, 1
        %s1514 = smul.addr %s1513, 64
        %s1515 = scalar_lea.vmem [#allocation18], %s1514
        %p1516 = pneg %p451
        %p1517 = pneg %p448
        %s1518 = sand.u32 %s80, 1
        %s1519 = scalar_lea.sflag [#allocation6], %s1518
        %s1520 = sand.u32 %s464, 1
        %s1521 = smul.addr %s1520, 64
        %s1522 = scalar_lea.vmem [#allocation19], %s1521
        %p1523 = pneg %p477
        %p1524 = pneg %p474
        %s1525 = sand.u32 %s80, 1
        %s1526 = scalar_lea.sflag [#allocation6], %s1525
        %s1527 = sand.u32 %s490, 1
        %s1528 = smul.addr %s1527, 64
        %s1529 = scalar_lea.vmem [#allocation20], %s1528
        %p1530 = pneg %p503
        %p1531 = pneg %p500
        %p1532 = scmp.lt.s32.totalorder %s85, 1
        %s1533 = scalar_select %p1532, %s85, 1
        %s1534 = scalar_lea.vmem %s33, %s1533
        %p1535 = pneg %p529
        %p1536 = pneg %p526
        %p1537 = scmp.lt.s32.totalorder %s85, 1
        %s1538 = scalar_select %p1537, %s85, 1
        %s1539 = scalar_lea.vmem %s35, %s1538
        %p1540 = pneg %p555
        %p1541 = pneg %p552
        %p1542 = scmp.lt.s32.totalorder %s85, 1
        %s1543 = scalar_select %p1542, %s85, 1
        %s1544 = scalar_lea.vmem %s37, %s1543
        %p1545 = pneg %p581
        %p1546 = pneg %p578
        %p1547 = scmp.lt.s32.totalorder %s85, 1
        %s1548 = scalar_select %p1547, %s85, 1
        %s1549 = scalar_lea.vmem %s39, %s1548
        %p1550 = pneg %p607
        %p1551 = pneg %p604
        %s1552 = sand.u32 %s80, 1
        %s1553 = scalar_lea.sflag [#allocation6], %s1552
        %s1554 = sand.u32 %s620, 1
        %s1555 = smul.addr %s1554, 128
        %s1556 = scalar_lea.vmem [#allocation21], %s1555
        %p1557 = pneg %p633
        %p1558 = pneg %p630
        %s1559 = sand.u32 %s80, 1
        %s1560 = scalar_lea.sflag [#allocation6], %s1559
        %s1561 = sand.u32 %s646, 1
        %s1562 = smul.addr %s1561, 128
        %s1563 = scalar_lea.vmem [#allocation22], %s1562
        %p1564 = pneg %p659
        %p1565 = pneg %p656
        %p1566 = scmp.lt.s32.totalorder %s85, 1
        %s1567 = scalar_select %p1566, %s85, 1
        %s1568 = smul.addr %s1567, 2
        %s1569 = scalar_lea.vmem %s45, %s1568
        %p1570 = pneg %p685
        %p1571 = pneg %p682
        %p1572 = scmp.lt.s32.totalorder %s85, 1
        %s1573 = scalar_select %p1572, %s85, 1
        %s1574 = scalar_lea.vmem %s47, %s1573
        %p1575 = pneg %p711
        %p1576 = pneg %p708
        %p1577 = scmp.lt.s32.totalorder %s85, 1
        %s1578 = scalar_select %p1577, %s85, 1
        %s1579 = scalar_lea.vmem %s49, %s1578
        %p1580 = pneg %p737
        %p1581 = pneg %p734
        %p1582 = scmp.lt.s32.totalorder %s85, 1
        %s1583 = scalar_select %p1582, %s85, 1
        %s1584 = scalar_lea.vmem %s51, %s1583
        %p1585 = pneg %p763
        %p1586 = pneg %p760
        %p1587 = scmp.lt.s32.totalorder %s85, 1
        %s1588 = scalar_select %p1587, %s85, 1
        %s1589 = scalar_lea.vmem %s53, %s1588
        %p1590 = pneg %p789
        %p1591 = pneg %p786
        %p1592 = scmp.lt.s32.totalorder %s85, 1
        %s1593 = scalar_select %p1592, %s85, 1
        %s1594 = scalar_lea.vmem %s55, %s1593
        %p1595 = pneg %p815
        %p1596 = pneg %p812
        %p1597 = scmp.lt.s32.totalorder %s85, 1
        %s1598 = scalar_select %p1597, %s85, 1
        %s1599 = scalar_lea.vmem %s57, %s1598
        %p1600 = pneg %p841
        %p1601 = pneg %p838
        %p1602 = scmp.lt.s32.totalorder %s85, 1
        %s1603 = scalar_select %p1602, %s85, 1
        %s1604 = scalar_lea.vmem %s59, %s1603
        %p1605 = pneg %p867
        %p1606 = pneg %p864
        %p1607 = pneg %p888
        %p1608 = pneg %p885
        %p1609 = pneg %p909
        %p1610 = pneg %p906
        %p1611 = pneg %p935
        %p1612 = pneg %p932
        %s1613 = smul.u32 2, %s84
        %s1614 = smul.u32 2, %s84
        %s1615 = smul.u32 2, %s84
        %s1616 = smul.u32 2, %s84
        %p1617 = scmp.lt.s32.totalorder %s85, 1
        %s1618 = scalar_select %p1617, %s85, 1
        %s1619 = scalar_lea.vmem %s17, %s1618
        %p1620 = scmp.lt.s32.totalorder %s85, 1
        %s1621 = scalar_select %p1620, %s85, 1
        %s1622 = scalar_lea.vmem %s19, %s1621
        %p1623 = scmp.lt.s32.totalorder %s85, 1
        %s1624 = scalar_select %p1623, %s85, 1
        %s1625 = scalar_lea.vmem %s21, %s1624
        %p1626 = scmp.lt.s32.totalorder %s85, 1
        %s1627 = scalar_select %p1626, %s85, 1
        %s1628 = scalar_lea.vmem %s23, %s1627
        %p1629 = scmp.lt.s32.totalorder %s85, 1
        %s1630 = scalar_select %p1629, %s85, 1
        %s1631 = scalar_lea.vmem %s33, %s1630
        %p1632 = scmp.lt.s32.totalorder %s85, 1
        %s1633 = scalar_select %p1632, %s85, 1
        %s1634 = scalar_lea.vmem %s35, %s1633
        %p1635 = scmp.lt.s32.totalorder %s85, 1
        %s1636 = scalar_select %p1635, %s85, 1
        %s1637 = scalar_lea.vmem %s37, %s1636
        %p1638 = scmp.lt.s32.totalorder %s85, 1
        %s1639 = scalar_select %p1638, %s85, 1
        %s1640 = scalar_lea.vmem %s39, %s1639
        %p1641 = scmp.lt.s32.totalorder %s85, 1
        %s1642 = scalar_select %p1641, %s85, 1
        %s1643 = smul.addr %s1642, 2
        %s1644 = scalar_lea.vmem %s45, %s1643
        %p1645 = scmp.lt.s32.totalorder %s85, 1
        %s1646 = scalar_select %p1645, %s85, 1
        %s1647 = scalar_lea.vmem %s47, %s1646
        %p1648 = scmp.lt.s32.totalorder %s85, 1
        %s1649 = scalar_select %p1648, %s85, 1
        %s1650 = scalar_lea.vmem %s49, %s1649
        %p1651 = scmp.lt.s32.totalorder %s85, 1
        %s1652 = scalar_select %p1651, %s85, 1
        %s1653 = scalar_lea.vmem %s51, %s1652
        %p1654 = scmp.lt.s32.totalorder %s85, 1
        %s1655 = scalar_select %p1654, %s85, 1
        %s1656 = scalar_lea.vmem %s53, %s1655
        %p1657 = scmp.lt.s32.totalorder %s85, 1
        %s1658 = scalar_select %p1657, %s85, 1
        %s1659 = scalar_lea.vmem %s55, %s1658
        %p1660 = scmp.lt.s32.totalorder %s85, 1
        %s1661 = scalar_select %p1660, %s85, 1
        %s1662 = scalar_lea.vmem %s57, %s1661
        %p1663 = scmp.lt.s32.totalorder %s85, 1
        %s1664 = scalar_select %p1663, %s85, 1
        %s1665 = scalar_lea.vmem %s59, %s1664
        %s1666 = smul.u32 2, %s84
        %p1668 = scmp.eq.s32.totalorder %s85, 0
        // Predicated region
        $region205: #{tpu_custom_call.1} parent=147 // pred_check
          %p1669 = pneg %p1668
        $region206: #{tpu_custom_call.1} parent=147 // pred_check_branch
          %1671 = sbr.rel (%p1669) target = $region208
        $region207: #{tpu_custom_call.1} parent=147 // pred_region
          %v1672 = vld [vmem:[#allocation5] sm:$0xff]
          %v1673 = vld [vmem:[#allocation5 + $0x8] sm:$0xff]
          %v1674 = vld [vmem:[#allocation5 + $0x10] sm:$0xff]
          %v1675 = vld [vmem:[#allocation5 + $0x18] sm:$0xff]
          %1676 = vst [vmem:[#allocation2] sm:$0xff] %v1672
          %1677 = vst [vmem:[#allocation2 + $0x8] sm:$0xff] %v1673
          %1678 = vst [vmem:[#allocation2 + $0x10] sm:$0xff] %v1674
          %1679 = vst [vmem:[#allocation2 + $0x18] sm:$0xff] %v1675
          %v1680 = vld [vmem:[#allocation8] sm:$0xff]
          %v1681 = vld [vmem:[#allocation8 + $0x8] sm:$0xff]
          %v1682 = vld [vmem:[#allocation8 + $0x10] sm:$0xff]
          %v1683 = vld [vmem:[#allocation8 + $0x18] sm:$0xff]
          %v1684 = vld [vmem:[#allocation8 + $0x20] sm:$0xff]
          %v1685 = vld [vmem:[#allocation8 + $0x28] sm:$0xff]
          %v1686 = vld [vmem:[#allocation8 + $0x30] sm:$0xff]
          %v1687 = vld [vmem:[#allocation8 + $0x38] sm:$0xff]
          %v1688 = vpack.c.bf16 %v1681, %v1680
          %v1689 = vpack.c.bf16 %v1683, %v1682
          %v1690 = vpack.c.bf16 %v1685, %v1684
          %v1691 = vpack.c.bf16 %v1687, %v1686
          %1692 = vst [vmem:[#allocation4] sm:$0xff] %v1688
          %1693 = vst [vmem:[#allocation4 + $0x8] sm:$0xff] %v1689
          %1694 = vst [vmem:[#allocation4 + $0x10] sm:$0xff] %v1690
          %1695 = vst [vmem:[#allocation4 + $0x18] sm:$0xff] %v1691
          %v1696 = vld [vmem:[#allocation8] sm:$0xff]
          %v1697 = vld [vmem:[#allocation8 + $0x8] sm:$0xff]
          %v1698 = vld [vmem:[#allocation8 + $0x10] sm:$0xff]
          %v1699 = vld [vmem:[#allocation8 + $0x18] sm:$0xff]
          %v1700 = vld [vmem:[#allocation8 + $0x20] sm:$0xff]
          %v1701 = vld [vmem:[#allocation8 + $0x28] sm:$0xff]
          %v1702 = vld [vmem:[#allocation8 + $0x30] sm:$0xff]
          %v1703 = vld [vmem:[#allocation8 + $0x38] sm:$0xff]
          %v1704 = vld [vmem:[#allocation11] sm:$0xff]
          %v1705 = vld [vmem:[#allocation11 + $0x8] sm:$0xff]
          %v1706 = vld [vmem:[#allocation11 + $0x10] sm:$0xff]
          %v1707 = vld [vmem:[#allocation11 + $0x18] sm:$0xff]
          %v1708 = vld [vmem:[#allocation11 + $0x20] sm:$0xff]
          %v1709 = vld [vmem:[#allocation11 + $0x28] sm:$0xff]
          %v1710 = vld [vmem:[#allocation11 + $0x30] sm:$0xff]
          %v1711 = vld [vmem:[#allocation11 + $0x38] sm:$0xff]
          %v1712 = vadd.f32 %v1696, %v1704
          %v1713 = vadd.f32 %v1697, %v1705
          %v1714 = vadd.f32 %v1698, %v1706
          %v1715 = vadd.f32 %v1699, %v1707
          %v1716 = vadd.f32 %v1700, %v1708
          %v1717 = vadd.f32 %v1701, %v1709
          %v1718 = vadd.f32 %v1702, %v1710
          %v1719 = vadd.f32 %v1703, %v1711
          %v1720 = vpack.c.bf16 %v1713, %v1712
          %v1721 = vpack.c.bf16 %v1715, %v1714
          %v1722 = vpack.c.bf16 %v1717, %v1716
          %v1723 = vpack.c.bf16 %v1719, %v1718
          %1724 = vst [vmem:[#allocation3] sm:$0xff] %v1720
          %1725 = vst [vmem:[#allocation3 + $0x8] sm:$0xff] %v1721
          %1726 = vst [vmem:[#allocation3 + $0x10] sm:$0xff] %v1722
          %1727 = vst [vmem:[#allocation3 + $0x18] sm:$0xff] %v1723
        $region208: #{tpu_custom_call.1} parent=147 // pred_fallthru
          _
        %v1728 = vld [vmem:[#allocation2] sm:$0xff]
        %v1729 = vld [vmem:[#allocation2 + $0x8] sm:$0xff]
        %v1730 = vld [vmem:[#allocation2 + $0x10] sm:$0xff]
        %v1731 = vld [vmem:[#allocation2 + $0x18] sm:$0xff]
        %v1732 = vld [vmem:[#allocation10] sm:$0xff]
        %v1733 = vld [vmem:[#allocation10 + $0x8] sm:$0xff]
        %v1734 = vld [vmem:[#allocation10 + $0x10] sm:$0xff]
        %v1735 = vld [vmem:[#allocation10 + $0x18] sm:$0xff]
        %v1736 = vadd.f32 %v1728, %v1732
        %v1737 = vadd.f32 %v1729, %v1733
        %v1738 = vadd.f32 %v1730, %v1734
        %v1739 = vadd.f32 %v1731, %v1735
        %v1740 = vpack.c.bf16 %v1737, %v1736
        %v1741 = vpack.c.bf16 %v1739, %v1738
        %v1742 = vpack.c.bf16 %v1729, %v1728
        %v1743 = vpack.c.bf16 %v1731, %v1730
        %v1744 = vld [vmem:[%s1362] sm:$0xf]
        %v1745 = vld [vmem:[%s1362 + $0x4] sm:$0xf]
        %v1746 = vld [vmem:[%s1362 + $0x8] sm:$0xf]
        %v1747 = vld [vmem:[%s1362 + $0xc] sm:$0xf]
        %v1748 = vld [vmem:[%s1362 + $0x10] sm:$0xf]
        %v1749 = vld [vmem:[%s1362 + $0x14] sm:$0xf]
        %v1750 = vld [vmem:[%s1362 + $0x18] sm:$0xf]
        %v1751 = vld [vmem:[%s1362 + $0x1c] sm:$0xf]
        %v1752 = vld [vmem:[%s1362 + $0x20] sm:$0xf]
        %v1753 = vld [vmem:[%s1362 + $0x24] sm:$0xf]
        %v1754 = vld [vmem:[%s1362 + $0x28] sm:$0xf]
        %v1755 = vld [vmem:[%s1362 + $0x2c] sm:$0xf]
        %v1756 = vld [vmem:[%s1362 + $0x30] sm:$0xf]
        %v1757 = vld [vmem:[%s1362 + $0x34] sm:$0xf]
        %v1758 = vld [vmem:[%s1362 + $0x38] sm:$0xf]
        %v1759 = vld [vmem:[%s1362 + $0x3c] sm:$0xf]
        %v1760 = vld [vmem:[%s1619] sm:$0x1]
        %v1761 = vld [vmem:[%s1371] sm:$0xf]
        %v1762 = vld [vmem:[%s1371 + $0x4] sm:$0xf]
        %v1763 = vld [vmem:[%s1371 + $0x8] sm:$0xf]
        %v1764 = vld [vmem:[%s1371 + $0xc] sm:$0xf]
        %v1765 = vld [vmem:[%s1371 + $0x10] sm:$0xf]
        %v1766 = vld [vmem:[%s1371 + $0x14] sm:$0xf]
        %v1767 = vld [vmem:[%s1371 + $0x18] sm:$0xf]
        %v1768 = vld [vmem:[%s1371 + $0x1c] sm:$0xf]
        %v1769 = vld [vmem:[%s1371 + $0x20] sm:$0xf]
        %v1770 = vld [vmem:[%s1371 + $0x24] sm:$0xf]
        %v1771 = vld [vmem:[%s1371 + $0x28] sm:$0xf]
        %v1772 = vld [vmem:[%s1371 + $0x2c] sm:$0xf]
        %v1773 = vld [vmem:[%s1371 + $0x30] sm:$0xf]
        %v1774 = vld [vmem:[%s1371 + $0x34] sm:$0xf]
        %v1775 = vld [vmem:[%s1371 + $0x38] sm:$0xf]
        %v1776 = vld [vmem:[%s1371 + $0x3c] sm:$0xf]
        %v1777 = vld [vmem:[%s1622] sm:$0x1]
        %v1778 = vld [vmem:[%s1380] sm:$0xf]
        %v1779 = vld [vmem:[%s1380 + $0x4] sm:$0xf]
        %v1780 = vld [vmem:[%s1380 + $0x8] sm:$0xf]
        %v1781 = vld [vmem:[%s1380 + $0xc] sm:$0xf]
        %v1782 = vld [vmem:[%s1380 + $0x10] sm:$0xf]
        %v1783 = vld [vmem:[%s1380 + $0x14] sm:$0xf]
        %v1784 = vld [vmem:[%s1380 + $0x18] sm:$0xf]
        %v1785 = vld [vmem:[%s1380 + $0x1c] sm:$0xf]
        %v1786 = vld [vmem:[%s1380 + $0x20] sm:$0xf]
        %v1787 = vld [vmem:[%s1380 + $0x24] sm:$0xf]
        %v1788 = vld [vmem:[%s1380 + $0x28] sm:$0xf]
        %v1789 = vld [vmem:[%s1380 + $0x2c] sm:$0xf]
        %v1790 = vld [vmem:[%s1380 + $0x30] sm:$0xf]
        %v1791 = vld [vmem:[%s1380 + $0x34] sm:$0xf]
        %v1792 = vld [vmem:[%s1380 + $0x38] sm:$0xf]
        %v1793 = vld [vmem:[%s1380 + $0x3c] sm:$0xf]
        %v1794 = vld [vmem:[%s1625] sm:$0x1]
        %v1795 = vld [vmem:[%s1389] sm:$0xf]
        %v1796 = vld [vmem:[%s1389 + $0x4] sm:$0xf]
        %v1797 = vld [vmem:[%s1389 + $0x8] sm:$0xf]
        %v1798 = vld [vmem:[%s1389 + $0xc] sm:$0xf]
        %v1799 = vld [vmem:[%s1389 + $0x10] sm:$0xf]
        %v1800 = vld [vmem:[%s1389 + $0x14] sm:$0xf]
        %v1801 = vld [vmem:[%s1389 + $0x18] sm:$0xf]
        %v1802 = vld [vmem:[%s1389 + $0x1c] sm:$0xf]
        %v1803 = vld [vmem:[%s1389 + $0x20] sm:$0xf]
        %v1804 = vld [vmem:[%s1389 + $0x24] sm:$0xf]
        %v1805 = vld [vmem:[%s1389 + $0x28] sm:$0xf]
        %v1806 = vld [vmem:[%s1389 + $0x2c] sm:$0xf]
        %v1807 = vld [vmem:[%s1389 + $0x30] sm:$0xf]
        %v1808 = vld [vmem:[%s1389 + $0x34] sm:$0xf]
        %v1809 = vld [vmem:[%s1389 + $0x38] sm:$0xf]
        %v1810 = vld [vmem:[%s1389 + $0x3c] sm:$0xf]
        %v1811 = vld [vmem:[%s1628] sm:$0x1]
        %v1813 = vlaneseq
        %v1814 = vshrl.u32 %v1813, 7
        %v1815 = vsub.s32 0, %v1814
        %v1816 = vrot.slane %v1760, %v1815
        %v1834 = vunpack.c.l.b16 %v1744
        %v1835 = vunpack.c.l.b16 %v1745
        %v1836 = vunpack.c.l.b16 %v1746
        %v1837 = vunpack.c.l.b16 %v1747
        %v1838 = vunpack.c.l.b16 %v1748
        %v1839 = vunpack.c.l.b16 %v1749
        %v1840 = vunpack.c.l.b16 %v1750
        %v1841 = vunpack.c.l.b16 %v1751
        %v1842 = vunpack.c.l.b16 %v1752
        %v1843 = vunpack.c.l.b16 %v1753
        %v1844 = vunpack.c.l.b16 %v1754
        %v1845 = vunpack.c.l.b16 %v1755
        %v1846 = vunpack.c.l.b16 %v1756
        %v1847 = vunpack.c.l.b16 %v1757
        %v1848 = vunpack.c.l.b16 %v1758
        %v1849 = vunpack.c.l.b16 %v1759
        %v1850 = vpack.c.b16 %v1835, %v1834
        %v1851 = vpack.c.b16 %v1837, %v1836
        %v1852 = vpack.c.b16 %v1839, %v1838
        %v1853 = vpack.c.b16 %v1841, %v1840
        %v1854 = vpack.c.b16 %v1843, %v1842
        %v1855 = vpack.c.b16 %v1845, %v1844
        %v1856 = vpack.c.b16 %v1847, %v1846
        %v1857 = vpack.c.b16 %v1849, %v1848
        %1866 = vmatprep.subr.bf16.mxu0 0
        %1867 = vmatpush1.bf16.msra.mxu0 %v1850
        %1868 = vmatprep.subr.bf16.mxu0 0
        %1869 = vmatpush1.bf16.msra.mxu0 %v1851
        %1870 = vmatprep.subr.bf16.mxu0 0
        %1871 = vmatpush1.bf16.msra.mxu0 %v1852
        %1872 = vmatprep.subr.bf16.mxu0 0
        %1873 = vmatpush1.bf16.msra.mxu0 %v1853
        %1874 = vmatprep.subr.bf16.mxu0 0
        %1875 = vmatpush1.bf16.msra.mxu0 %v1854
        %1876 = vmatprep.subr.bf16.mxu0 0
        %1877 = vmatpush1.bf16.msra.mxu0 %v1855
        %1878 = vmatprep.subr.bf16.mxu0 0
        %1879 = vmatpush1.bf16.msra.mxu0 %v1856
        %1880 = vmatprep.subr.bf16.mxu0 0
        %1881 = vmatpush1.bf16.msra.mxu0 %v1857
        %1882 = vmatprep.subr.bf16.mxu0 0
        %1883 = vmatpush1.bf16.msra.mxu0 0
        %1884 = vmatprep.subr.bf16.mxu0 0
        %1885 = vmatpush1.bf16.msra.mxu0 0
        %1886 = vmatprep.subr.bf16.mxu0 0
        %1887 = vmatpush1.bf16.msra.mxu0 0
        %1888 = vmatprep.subr.bf16.mxu0 0
        %1889 = vmatpush1.bf16.msra.mxu0 0
        %1890 = vmatprep.subr.bf16.mxu0 0
        %1891 = vmatpush1.bf16.msra.mxu0 0
        %1892 = vmatprep.subr.bf16.mxu0 0
        %1893 = vmatpush1.bf16.msra.mxu0 0
        %1894 = vmatprep.subr.bf16.mxu0 0
        %1895 = vmatpush1.bf16.msra.mxu0 0
        %1896 = vmatprep.subr.bf16.mxu0 0
        %1897 = vmatpush1.bf16.msra.mxu0 0
        %1898 = vmatprep.mubr.bf16.mxu0 0
        %1899 = vmatmul.mubr.bf16.gmra.mrb[0].mxu0 %v1740
        %v1900 = vpop.f32.mrb[0].mxu0
        %v1901 = vadd.f32 %v1816, %v1900
        %v1902 = vpop.f32.mrb[0].mxu0
        %v1903 = vpop.f32.mrb[0].mxu0
        %v1904 = vadd.f32 %v1816, %v1903
        %v1905 = vpop.f32.mrb[0].mxu0
        %1906 = vmatprep.mubr.bf16.mxu0 0
        %1907 = vmatmul.mubr.bf16.gmra.mrb[0].mxu0 %v1741
        %v1908 = vpop.f32.mrb[0].mxu0
        %v1909 = vadd.f32 %v1816, %v1908
        %v1910 = vpop.f32.mrb[0].mxu0
        %v1911 = vpop.f32.mrb[0].mxu0
        %v1912 = vadd.f32 %v1816, %v1911
        %v1913 = vpop.f32.mrb[0].mxu0
        %1914 = vdwg.mxu0
        %v1916 = vlaneseq
        %v1917 = vshrl.u32 %v1916, 7
        %v1918 = vsub.s32 0, %v1917
        %v1919 = vrot.slane %v1777, %v1918
        %v1937 = vunpack.c.l.b16 %v1761
        %v1938 = vunpack.c.l.b16 %v1762
        %v1939 = vunpack.c.l.b16 %v1763
        %v1940 = vunpack.c.l.b16 %v1764
        %v1941 = vunpack.c.l.b16 %v1765
        %v1942 = vunpack.c.l.b16 %v1766
        %v1943 = vunpack.c.l.b16 %v1767
        %v1944 = vunpack.c.l.b16 %v1768
        %v1945 = vunpack.c.l.b16 %v1769
        %v1946 = vunpack.c.l.b16 %v1770
        %v1947 = vunpack.c.l.b16 %v1771
        %v1948 = vunpack.c.l.b16 %v1772
        %v1949 = vunpack.c.l.b16 %v1773
        %v1950 = vunpack.c.l.b16 %v1774
        %v1951 = vunpack.c.l.b16 %v1775
        %v1952 = vunpack.c.l.b16 %v1776
        %v1953 = vpack.c.b16 %v1938, %v1937
        %v1954 = vpack.c.b16 %v1940, %v1939
        %v1955 = vpack.c.b16 %v1942, %v1941
        %v1956 = vpack.c.b16 %v1944, %v1943
        %v1957 = vpack.c.b16 %v1946, %v1945
        %v1958 = vpack.c.b16 %v1948, %v1947
        %v1959 = vpack.c.b16 %v1950, %v1949
        %v1960 = vpack.c.b16 %v1952, %v1951
        %1969 = vmatprep.subr.bf16.mxu0 0
        %1970 = vmatpush1.bf16.msra.mxu0 %v1953
        %1971 = vmatprep.subr.bf16.mxu0 0
        %1972 = vmatpush1.bf16.msra.mxu0 %v1954
        %1973 = vmatprep.subr.bf16.mxu0 0
        %1974 = vmatpush1.bf16.msra.mxu0 %v1955
        %1975 = vmatprep.subr.bf16.mxu0 0
        %1976 = vmatpush1.bf16.msra.mxu0 %v1956
        %1977 = vmatprep.subr.bf16.mxu0 0
        %1978 = vmatpush1.bf16.msra.mxu0 %v1957
        %1979 = vmatprep.subr.bf16.mxu0 0
        %1980 = vmatpush1.bf16.msra.mxu0 %v1958
        %1981 = vmatprep.subr.bf16.mxu0 0
        %1982 = vmatpush1.bf16.msra.mxu0 %v1959
        %1983 = vmatprep.subr.bf16.mxu0 0
        %1984 = vmatpush1.bf16.msra.mxu0 %v1960
        %1985 = vmatprep.subr.bf16.mxu0 0
        %1986 = vmatpush1.bf16.msra.mxu0 0
        %1987 = vmatprep.subr.bf16.mxu0 0
        %1988 = vmatpush1.bf16.msra.mxu0 0
        %1989 = vmatprep.subr.bf16.mxu0 0
        %1990 = vmatpush1.bf16.msra.mxu0 0
        %1991 = vmatprep.subr.bf16.mxu0 0
        %1992 = vmatpush1.bf16.msra.mxu0 0
        %1993 = vmatprep.subr.bf16.mxu0 0
        %1994 = vmatpush1.bf16.msra.mxu0 0
        %1995 = vmatprep.subr.bf16.mxu0 0
        %1996 = vmatpush1.bf16.msra.mxu0 0
        %1997 = vmatprep.subr.bf16.mxu0 0
        %1998 = vmatpush1.bf16.msra.mxu0 0
        %1999 = vmatprep.subr.bf16.mxu0 0
        %2000 = vmatpush1.bf16.msra.mxu0 0
        %2001 = vmatprep.mubr.bf16.mxu0 0
        %2002 = vmatmul.mubr.bf16.gmra.mrb[0].mxu0 %v1740
        %v2003 = vpop.f32.mrb[0].mxu0
        %v2004 = vadd.f32 %v1919, %v2003
        %v2005 = vpop.f32.mrb[0].mxu0
        %v2006 = vpop.f32.mrb[0].mxu0
        %v2007 = vadd.f32 %v1919, %v2006
        %v2008 = vpop.f32.mrb[0].mxu0
        %2009 = vmatprep.mubr.bf16.mxu0 0
        %2010 = vmatmul.mubr.bf16.gmra.mrb[0].mxu0 %v1741
        %v2011 = vpop.f32.mrb[0].mxu0
        %v2012 = vadd.f32 %v1919, %v2011
        %v2013 = vpop.f32.mrb[0].mxu0
        %v2014 = vpop.f32.mrb[0].mxu0
        %v2015 = vadd.f32 %v1919, %v2014
        %v2016 = vpop.f32.mrb[0].mxu0
        %2017 = vdwg.mxu0
        %v2019 = vlaneseq
        %v2020 = vshrl.u32 %v2019, 7
        %v2021 = vsub.s32 0, %v2020
        %v2022 = vrot.slane %v1794, %v2021
        %v2040 = vunpack.c.l.b16 %v1778
        %v2041 = vunpack.c.l.b16 %v1779
        %v2042 = vunpack.c.l.b16 %v1780
        %v2043 = vunpack.c.l.b16 %v1781
        %v2044 = vunpack.c.l.b16 %v1782
        %v2045 = vunpack.c.l.b16 %v1783
        %v2046 = vunpack.c.l.b16 %v1784
        %v2047 = vunpack.c.l.b16 %v1785
        %v2048 = vunpack.c.l.b16 %v1786
        %v2049 = vunpack.c.l.b16 %v1787
        %v2050 = vunpack.c.l.b16 %v1788
        %v2051 = vunpack.c.l.b16 %v1789
        %v2052 = vunpack.c.l.b16 %v1790
        %v2053 = vunpack.c.l.b16 %v1791
        %v2054 = vunpack.c.l.b16 %v1792
        %v2055 = vunpack.c.l.b16 %v1793
        %v2056 = vpack.c.b16 %v2041, %v2040
        %v2057 = vpack.c.b16 %v2043, %v2042
        %v2058 = vpack.c.b16 %v2045, %v2044
        %v2059 = vpack.c.b16 %v2047, %v2046
        %v2060 = vpack.c.b16 %v2049, %v2048
        %v2061 = vpack.c.b16 %v2051, %v2050
        %v2062 = vpack.c.b16 %v2053, %v2052
        %v2063 = vpack.c.b16 %v2055, %v2054
        %2072 = vmatprep.subr.bf16.mxu0 0
        %2073 = vmatpush1.bf16.msra.mxu0 %v2056
        %2074 = vmatprep.subr.bf16.mxu0 0
        %2075 = vmatpush1.bf16.msra.mxu0 %v2057
        %2076 = vmatprep.subr.bf16.mxu0 0
        %2077 = vmatpush1.bf16.msra.mxu0 %v2058
        %2078 = vmatprep.subr.bf16.mxu0 0
        %2079 = vmatpush1.bf16.msra.mxu0 %v2059
        %2080 = vmatprep.subr.bf16.mxu0 0
        %2081 = vmatpush1.bf16.msra.mxu0 %v2060
        %2082 = vmatprep.subr.bf16.mxu0 0
        %2083 = vmatpush1.bf16.msra.mxu0 %v2061
        %2084 = vmatprep.subr.bf16.mxu0 0
        %2085 = vmatpush1.bf16.msra.mxu0 %v2062
        %2086 = vmatprep.subr.bf16.mxu0 0
        %2087 = vmatpush1.bf16.msra.mxu0 %v2063
        %2088 = vmatprep.subr.bf16.mxu0 0
        %2089 = vmatpush1.bf16.msra.mxu0 0
        %2090 = vmatprep.subr.bf16.mxu0 0
        %2091 = vmatpush1.bf16.msra.mxu0 0
        %2092 = vmatprep.subr.bf16.mxu0 0
        %2093 = vmatpush1.bf16.msra.mxu0 0
        %2094 = vmatprep.subr.bf16.mxu0 0
        %2095 = vmatpush1.bf16.msra.mxu0 0
        %2096 = vmatprep.subr.bf16.mxu0 0
        %2097 = vmatpush1.bf16.msra.mxu0 0
        %2098 = vmatprep.subr.bf16.mxu0 0
        %2099 = vmatpush1.bf16.msra.mxu0 0
        %2100 = vmatprep.subr.bf16.mxu0 0
        %2101 = vmatpush1.bf16.msra.mxu0 0
        %2102 = vmatprep.subr.bf16.mxu0 0
        %2103 = vmatpush1.bf16.msra.mxu0 0
        %2104 = vmatprep.mubr.bf16.mxu0 0
        %2105 = vmatmul.mubr.bf16.gmra.mrb[0].mxu0 %v1742
        %v2106 = vpop.f32.mrb[0].mxu0
        %v2107 = vadd.f32 %v2022, %v2106
        %v2108 = vpop.f32.mrb[0].mxu0
        %v2109 = vpop.f32.mrb[0].mxu0
        %v2110 = vadd.f32 %v2022, %v2109
        %v2111 = vpop.f32.mrb[0].mxu0
        %2112 = vmatprep.mubr.bf16.mxu0 0
        %2113 = vmatmul.mubr.bf16.gmra.mrb[0].mxu0 %v1743
        %v2114 = vpop.f32.mrb[0].mxu0
        %v2115 = vadd.f32 %v2022, %v2114
        %v2116 = vpop.f32.mrb[0].mxu0
        %v2117 = vpop.f32.mrb[0].mxu0
        %v2118 = vadd.f32 %v2022, %v2117
        %v2119 = vpop.f32.mrb[0].mxu0
        %2120 = vdwg.mxu0
        %v2121 = vpack.c.bf16 %v1904, %v1901
        %v2122 = vpack.c.bf16 %v1912, %v1909
        %v2123 = vpack.c.bf16 %v2007, %v2004
        %v2124 = vpack.c.bf16 %v2015, %v2012
        %v2125 = vpack.c.bf16 %v2110, %v2107
        %v2126 = vpack.c.bf16 %v2118, %v2115
        %vm2127 = vcmask 261120
        %v2129 = vsel %vm2127, %v2121, 0
        %v2132 = vsel %vm2127, %v2123, 0
        %2134 = vmatprep.subr.bf16.mxu0 0
        %2135 = vmatpush1.bf16.xpose.msra.mxu0 %v2132
        %2136 = vmatprep.subr.bf16.mxu0 0
        %2137 = vmatpush1.bf16.xpose.msra.mxu0 0
        %2138 = vmatprep.subr.bf16.mxu0 0
        %2139 = vmatpush1.bf16.xpose.msra.mxu0 0
        %2140 = vmatprep.subr.bf16.mxu0 0
        %2141 = vmatpush1.bf16.xpose.msra.mxu0 0
        %2142 = vmatprep.subr.bf16.mxu0 0
        %2143 = vmatpush1.bf16.xpose.msra.mxu0 0
        %2144 = vmatprep.subr.bf16.mxu0 0
        %2145 = vmatpush1.bf16.xpose.msra.mxu0 0
        %2146 = vmatprep.subr.bf16.mxu0 0
        %2147 = vmatpush1.bf16.xpose.msra.mxu0 0
        %2148 = vmatprep.subr.bf16.mxu0 0
        %2149 = vmatpush1.bf16.xpose.msra.mxu0 0
        %2150 = vmatprep.subr.bf16.mxu0 0
        %2151 = vmatpush1.bf16.xpose.msra.mxu0 0
        %2152 = vmatprep.subr.bf16.mxu0 0
        %2153 = vmatpush1.bf16.xpose.msra.mxu0 0
        %2154 = vmatprep.subr.bf16.mxu0 0
        %2155 = vmatpush1.bf16.xpose.msra.mxu0 0
        %2156 = vmatprep.subr.bf16.mxu0 0
        %2157 = vmatpush1.bf16.xpose.msra.mxu0 0
        %2158 = vmatprep.subr.bf16.mxu0 0
        %2159 = vmatpush1.bf16.xpose.msra.mxu0 0
        %2160 = vmatprep.subr.bf16.mxu0 0
        %2161 = vmatpush1.bf16.xpose.msra.mxu0 0
        %2162 = vmatprep.subr.bf16.mxu0 0
        %2163 = vmatpush1.bf16.xpose.msra.mxu0 0
        %2164 = vmatprep.subr.bf16.mxu0 0
        %2165 = vmatpush1.bf16.xpose.msra.mxu0 0
        %2166 = vmatprep.mubr.bf16.mxu0 0
        %2167 = vmatmul.mubr.bf16.gmra.mrb[0].mxu0 %v2129
        %v2168 = vpop.f32.mrb[0].mxu0
        %v2169 = vadd.f32 0.0, %v2168
        %v2170 = vpop.f32.mrb[0].mxu0
        %v2171 = vpop.f32.mrb[0].mxu0
        %v2172 = vadd.f32 0.0, %v2171
        %v2173 = vpop.f32.mrb[0].mxu0
        %2174 = vdwg.mxu0
        %v2176 = vsel %vm2127, %v2122, 0
        %v2179 = vsel %vm2127, %v2124, 0
        %2181 = vmatprep.subr.bf16.mxu0 0
        %2182 = vmatpush1.bf16.xpose.msra.mxu0 %v2179
        %2183 = vmatprep.subr.bf16.mxu0 0
        %2184 = vmatpush1.bf16.xpose.msra.mxu0 0
        %2185 = vmatprep.subr.bf16.mxu0 0
        %2186 = vmatpush1.bf16.xpose.msra.mxu0 0
        %2187 = vmatprep.subr.bf16.mxu0 0
        %2188 = vmatpush1.bf16.xpose.msra.mxu0 0
        %2189 = vmatprep.subr.bf16.mxu0 0
        %2190 = vmatpush1.bf16.xpose.msra.mxu0 0
        %2191 = vmatprep.subr.bf16.mxu0 0
        %2192 = vmatpush1.bf16.xpose.msra.mxu0 0
        %2193 = vmatprep.subr.bf16.mxu0 0
        %2194 = vmatpush1.bf16.xpose.msra.mxu0 0
        %2195 = vmatprep.subr.bf16.mxu0 0
        %2196 = vmatpush1.bf16.xpose.msra.mxu0 0
        %2197 = vmatprep.subr.bf16.mxu0 0
        %2198 = vmatpush1.bf16.xpose.msra.mxu0 0
        %2199 = vmatprep.subr.bf16.mxu0 0
        %2200 = vmatpush1.bf16.xpose.msra.mxu0 0
        %2201 = vmatprep.subr.bf16.mxu0 0
        %2202 = vmatpush1.bf16.xpose.msra.mxu0 0
        %2203 = vmatprep.subr.bf16.mxu0 0
        %2204 = vmatpush1.bf16.xpose.msra.mxu0 0
        %2205 = vmatprep.subr.bf16.mxu0 0
        %2206 = vmatpush1.bf16.xpose.msra.mxu0 0
        %2207 = vmatprep.subr.bf16.mxu0 0
        %2208 = vmatpush1.bf16.xpose.msra.mxu0 0
        %2209 = vmatprep.subr.bf16.mxu0 0
        %2210 = vmatpush1.bf16.xpose.msra.mxu0 0
        %2211 = vmatprep.subr.bf16.mxu0 0
        %2212 = vmatpush1.bf16.xpose.msra.mxu0 0
        %2213 = vmatprep.mubr.bf16.mxu0 0
        %2214 = vmatmul.mubr.bf16.gmra.mrb[0].mxu0 %v2176
        %v2215 = vpop.f32.mrb[0].mxu0
        %v2216 = vadd.f32 0.0, %v2215
        %v2217 = vpop.f32.mrb[0].mxu0
        %v2218 = vpop.f32.mrb[0].mxu0
        %v2219 = vadd.f32 0.0, %v2218
        %v2220 = vpop.f32.mrb[0].mxu0
        %2221 = vdwg.mxu0
        %vm2222 = vcmask 130048
        %v2223 = vsel %vm2222, %v2169, -inf
        %2224 = vmax.xlane.f32.xlu0 %v2223
        %v2225 = vpop.xlane.xlu0 %2224
        %v2226 = vsel %vm2222, %v2172, -inf
        %2227 = vmax.xlane.f32.xlu0 %v2226
        %v2228 = vpop.xlane.xlu0 %2227
        %v2229 = vsel %vm2222, %v2216, -inf
        %2230 = vmax.xlane.f32.xlu0 %v2229
        %v2231 = vpop.xlane.xlu0 %2230
        %v2232 = vsel %vm2222, %v2219, -inf
        %2233 = vmax.xlane.f32.xlu0 %v2232
        %v2234 = vpop.xlane.xlu0 %2233
        %v2235 = vsub.f32 %v2169, %v2225
        %v2236 = vsub.f32 %v2172, %v2228
        %v2237 = vsub.f32 %v2216, %v2231
        %v2238 = vsub.f32 %v2219, %v2234
        %v2239 = vmul.f32 %v2235, 1.442695
        %v2240 = vpow.pop %v2239
        %v2241 = vmul.f32 %v2236, 1.442695
        %v2242 = vpow.pop %v2241
        %v2243 = vmul.f32 %v2237, 1.442695
        %v2244 = vpow.pop %v2243
        %v2245 = vmul.f32 %v2238, 1.442695
        %v2246 = vpow.pop %v2245
        %v2247 = vsel %vm2222, %v2240, 0.0
        %2248 = vadd.xlane.f32.xlu0 %v2247
        %v2249 = vpop.xlane.xlu0 %2248
        %v2250 = vsel %vm2222, %v2242, 0.0
        %2251 = vadd.xlane.f32.xlu0 %v2250
        %v2252 = vpop.xlane.xlu0 %2251
        %v2253 = vsel %vm2222, %v2244, 0.0
        %2254 = vadd.xlane.f32.xlu0 %v2253
        %v2255 = vpop.xlane.xlu0 %2254
        %v2256 = vsel %vm2222, %v2246, 0.0
        %2257 = vadd.xlane.f32.xlu0 %v2256
        %v2258 = vpop.xlane.xlu0 %2257
        %v2259 = vrcp.pop %v2249
        %v2260 = vrcp.pop %v2252
        %v2261 = vrcp.pop %v2255
        %v2262 = vrcp.pop %v2258
        %v2263 = vmul.f32 %v2240, %v2259
        %v2264 = vmul.f32 %v2242, %v2260
        %v2265 = vmul.f32 %v2244, %v2261
        %v2266 = vmul.f32 %v2246, %v2262
        %v2267 = vpack.c.bf16 %v2264, %v2263
        %v2268 = vpack.c.bf16 %v2266, %v2265
        %v2270 = vsel %vm2222, %v2267, 0
        %2272 = vmatprep.subr.bf16.mxu0 0
        %2273 = vmatpush1.bf16.msra.mxu0 %v2125
        %2274 = vmatprep.subr.bf16.mxu0 0
        %2275 = vmatpush1.bf16.msra.mxu0 0
        %2276 = vmatprep.subr.bf16.mxu0 0
        %2277 = vmatpush1.bf16.msra.mxu0 0
        %2278 = vmatprep.subr.bf16.mxu0 0
        %2279 = vmatpush1.bf16.msra.mxu0 0
        %2280 = vmatprep.subr.bf16.mxu0 0
        %2281 = vmatpush1.bf16.msra.mxu0 0
        %2282 = vmatprep.subr.bf16.mxu0 0
        %2283 = vmatpush1.bf16.msra.mxu0 0
        %2284 = vmatprep.subr.bf16.mxu0 0
        %2285 = vmatpush1.bf16.msra.mxu0 0
        %2286 = vmatprep.subr.bf16.mxu0 0
        %2287 = vmatpush1.bf16.msra.mxu0 0
        %2288 = vmatprep.subr.bf16.mxu0 0
        %2289 = vmatpush1.bf16.msra.mxu0 0
        %2290 = vmatprep.subr.bf16.mxu0 0
        %2291 = vmatpush1.bf16.msra.mxu0 0
        %2292 = vmatprep.subr.bf16.mxu0 0
        %2293 = vmatpush1.bf16.msra.mxu0 0
        %2294 = vmatprep.subr.bf16.mxu0 0
        %2295 = vmatpush1.bf16.msra.mxu0 0
        %2296 = vmatprep.subr.bf16.mxu0 0
        %2297 = vmatpush1.bf16.msra.mxu0 0
        %2298 = vmatprep.subr.bf16.mxu0 0
        %2299 = vmatpush1.bf16.msra.mxu0 0
        %2300 = vmatprep.subr.bf16.mxu0 0
        %2301 = vmatpush1.bf16.msra.mxu0 0
        %2302 = vmatprep.subr.bf16.mxu0 0
        %2303 = vmatpush1.bf16.msra.mxu0 0
        %2304 = vmatprep.mubr.bf16.mxu0 0
        %2305 = vmatmul.mubr.bf16.gmra.mrb[0].mxu0 %v2270
        %v2306 = vpop.f32.mrb[0].mxu0
        %v2307 = vadd.f32 0.0, %v2306
        %v2308 = vpop.f32.mrb[0].mxu0
        %v2309 = vpop.f32.mrb[0].mxu0
        %v2310 = vadd.f32 0.0, %v2309
        %v2311 = vpop.f32.mrb[0].mxu0
        %2312 = vdwg.mxu0
        %v2314 = vsel %vm2222, %v2268, 0
        %2316 = vmatprep.subr.bf16.mxu0 0
        %2317 = vmatpush1.bf16.msra.mxu0 %v2126
        %2318 = vmatprep.subr.bf16.mxu0 0
        %2319 = vmatpush1.bf16.msra.mxu0 0
        %2320 = vmatprep.subr.bf16.mxu0 0
        %2321 = vmatpush1.bf16.msra.mxu0 0
        %2322 = vmatprep.subr.bf16.mxu0 0
        %2323 = vmatpush1.bf16.msra.mxu0 0
        %2324 = vmatprep.subr.bf16.mxu0 0
        %2325 = vmatpush1.bf16.msra.mxu0 0
        %2326 = vmatprep.subr.bf16.mxu0 0
        %2327 = vmatpush1.bf16.msra.mxu0 0
        %2328 = vmatprep.subr.bf16.mxu0 0
        %2329 = vmatpush1.bf16.msra.mxu0 0
        %2330 = vmatprep.subr.bf16.mxu0 0
        %2331 = vmatpush1.bf16.msra.mxu0 0
        %2332 = vmatprep.subr.bf16.mxu0 0
        %2333 = vmatpush1.bf16.msra.mxu0 0
        %2334 = vmatprep.subr.bf16.mxu0 0
        %2335 = vmatpush1.bf16.msra.mxu0 0
        %2336 = vmatprep.subr.bf16.mxu0 0
        %2337 = vmatpush1.bf16.msra.mxu0 0
        %2338 = vmatprep.subr.bf16.mxu0 0
        %2339 = vmatpush1.bf16.msra.mxu0 0
        %2340 = vmatprep.subr.bf16.mxu0 0
        %2341 = vmatpush1.bf16.msra.mxu0 0
        %2342 = vmatprep.subr.bf16.mxu0 0
        %2343 = vmatpush1.bf16.msra.mxu0 0
        %2344 = vmatprep.subr.bf16.mxu0 0
        %2345 = vmatpush1.bf16.msra.mxu0 0
        %2346 = vmatprep.subr.bf16.mxu0 0
        %2347 = vmatpush1.bf16.msra.mxu0 0
        %2348 = vmatprep.mubr.bf16.mxu0 0
        %2349 = vmatmul.mubr.bf16.gmra.mrb[0].mxu0 %v2314
        %v2350 = vpop.f32.mrb[0].mxu0
        %v2351 = vadd.f32 0.0, %v2350
        %v2352 = vpop.f32.mrb[0].mxu0
        %v2353 = vpop.f32.mrb[0].mxu0
        %v2354 = vadd.f32 0.0, %v2353
        %v2355 = vpop.f32.mrb[0].mxu0
        %2356 = vdwg.mxu0
        %v2357 = vpack.c.bf16 %v2310, %v2307
        %v2358 = vpack.c.bf16 %v2354, %v2351
        %2360 = vrot.lane.b32.xlu0 %v2121, 96
        %v2361 = vpop.permute.xlu0 %2360
        %2363 = vrot.lane.b32.xlu0 %v2123, 96
        %v2364 = vpop.permute.xlu0 %2363
        %v2366 = vsel %vm2127, %v2361, 0
        %v2369 = vsel %vm2127, %v2364, 0
        %2371 = vmatprep.subr.bf16.mxu0 0
        %2372 = vmatpush1.bf16.xpose.msra.mxu0 %v2369
        %2373 = vmatprep.subr.bf16.mxu0 0
        %2374 = vmatpush1.bf16.xpose.msra.mxu0 0
        %2375 = vmatprep.subr.bf16.mxu0 0
        %2376 = vmatpush1.bf16.xpose.msra.mxu0 0
        %2377 = vmatprep.subr.bf16.mxu0 0
        %2378 = vmatpush1.bf16.xpose.msra.mxu0 0
        %2379 = vmatprep.subr.bf16.mxu0 0
        %2380 = vmatpush1.bf16.xpose.msra.mxu0 0
        %2381 = vmatprep.subr.bf16.mxu0 0
        %2382 = vmatpush1.bf16.xpose.msra.mxu0 0
        %2383 = vmatprep.subr.bf16.mxu0 0
        %2384 = vmatpush1.bf16.xpose.msra.mxu0 0
        %2385 = vmatprep.subr.bf16.mxu0 0
        %2386 = vmatpush1.bf16.xpose.msra.mxu0 0
        %2387 = vmatprep.subr.bf16.mxu0 0
        %2388 = vmatpush1.bf16.xpose.msra.mxu0 0
        %2389 = vmatprep.subr.bf16.mxu0 0
        %2390 = vmatpush1.bf16.xpose.msra.mxu0 0
        %2391 = vmatprep.subr.bf16.mxu0 0
        %2392 = vmatpush1.bf16.xpose.msra.mxu0 0
        %2393 = vmatprep.subr.bf16.mxu0 0
        %2394 = vmatpush1.bf16.xpose.msra.mxu0 0
        %2395 = vmatprep.subr.bf16.mxu0 0
        %2396 = vmatpush1.bf16.xpose.msra.mxu0 0
        %2397 = vmatprep.subr.bf16.mxu0 0
        %2398 = vmatpush1.bf16.xpose.msra.mxu0 0
        %2399 = vmatprep.subr.bf16.mxu0 0
        %2400 = vmatpush1.bf16.xpose.msra.mxu0 0
        %2401 = vmatprep.subr.bf16.mxu0 0
        %2402 = vmatpush1.bf16.xpose.msra.mxu0 0
        %2403 = vmatprep.mubr.bf16.mxu0 0
        %2404 = vmatmul.mubr.bf16.gmra.mrb[0].mxu0 %v2366
        %v2405 = vpop.f32.mrb[0].mxu0
        %v2406 = vadd.f32 0.0, %v2405
        %v2407 = vpop.f32.mrb[0].mxu0
        %v2408 = vpop.f32.mrb[0].mxu0
        %v2409 = vadd.f32 0.0, %v2408
        %v2410 = vpop.f32.mrb[0].mxu0
        %2411 = vdwg.mxu0
        %2413 = vrot.lane.b32.xlu0 %v2122, 96
        %v2414 = vpop.permute.xlu0 %2413
        %2416 = vrot.lane.b32.xlu0 %v2124, 96
        %v2417 = vpop.permute.xlu0 %2416
        %v2419 = vsel %vm2127, %v2414, 0
        %v2422 = vsel %vm2127, %v2417, 0
        %2424 = vmatprep.subr.bf16.mxu0 0
        %2425 = vmatpush1.bf16.xpose.msra.mxu0 %v2422
        %2426 = vmatprep.subr.bf16.mxu0 0
        %2427 = vmatpush1.bf16.xpose.msra.mxu0 0
        %2428 = vmatprep.subr.bf16.mxu0 0
        %2429 = vmatpush1.bf16.xpose.msra.mxu0 0
        %2430 = vmatprep.subr.bf16.mxu0 0
        %2431 = vmatpush1.bf16.xpose.msra.mxu0 0
        %2432 = vmatprep.subr.bf16.mxu0 0
        %2433 = vmatpush1.bf16.xpose.msra.mxu0 0
        %2434 = vmatprep.subr.bf16.mxu0 0
        %2435 = vmatpush1.bf16.xpose.msra.mxu0 0
        %2436 = vmatprep.subr.bf16.mxu0 0
        %2437 = vmatpush1.bf16.xpose.msra.mxu0 0
        %2438 = vmatprep.subr.bf16.mxu0 0
        %2439 = vmatpush1.bf16.xpose.msra.mxu0 0
        %2440 = vmatprep.subr.bf16.mxu0 0
        %2441 = vmatpush1.bf16.xpose.msra.mxu0 0
        %2442 = vmatprep.subr.bf16.mxu0 0
        %2443 = vmatpush1.bf16.xpose.msra.mxu0 0
        %2444 = vmatprep.subr.bf16.mxu0 0
        %2445 = vmatpush1.bf16.xpose.msra.mxu0 0
        %2446 = vmatprep.subr.bf16.mxu0 0
        %2447 = vmatpush1.bf16.xpose.msra.mxu0 0
        %2448 = vmatprep.subr.bf16.mxu0 0
        %2449 = vmatpush1.bf16.xpose.msra.mxu0 0
        %2450 = vmatprep.subr.bf16.mxu0 0
        %2451 = vmatpush1.bf16.xpose.msra.mxu0 0
        %2452 = vmatprep.subr.bf16.mxu0 0
        %2453 = vmatpush1.bf16.xpose.msra.mxu0 0
        %2454 = vmatprep.subr.bf16.mxu0 0
        %2455 = vmatpush1.bf16.xpose.msra.mxu0 0
        %2456 = vmatprep.mubr.bf16.mxu0 0
        %2457 = vmatmul.mubr.bf16.gmra.mrb[0].mxu0 %v2419
        %v2458 = vpop.f32.mrb[0].mxu0
        %v2459 = vadd.f32 0.0, %v2458
        %v2460 = vpop.f32.mrb[0].mxu0
        %v2461 = vpop.f32.mrb[0].mxu0
        %v2462 = vadd.f32 0.0, %v2461
        %v2463 = vpop.f32.mrb[0].mxu0
        %2464 = vdwg.mxu0
        %v2465 = vsel %vm2222, %v2406, -inf
        %2466 = vmax.xlane.f32.xlu0 %v2465
        %v2467 = vpop.xlane.xlu0 %2466
        %v2468 = vsel %vm2222, %v2409, -inf
        %2469 = vmax.xlane.f32.xlu0 %v2468
        %v2470 = vpop.xlane.xlu0 %2469
        %v2471 = vsel %vm2222, %v2459, -inf
        %2472 = vmax.xlane.f32.xlu0 %v2471
        %v2473 = vpop.xlane.xlu0 %2472
        %v2474 = vsel %vm2222, %v2462, -inf
        %2475 = vmax.xlane.f32.xlu0 %v2474
        %v2476 = vpop.xlane.xlu0 %2475
        %v2477 = vsub.f32 %v2406, %v2467
        %v2478 = vsub.f32 %v2409, %v2470
        %v2479 = vsub.f32 %v2459, %v2473
        %v2480 = vsub.f32 %v2462, %v2476
        %v2481 = vmul.f32 %v2477, 1.442695
        %v2482 = vpow.pop %v2481
        %v2483 = vmul.f32 %v2478, 1.442695
        %v2484 = vpow.pop %v2483
        %v2485 = vmul.f32 %v2479, 1.442695
        %v2486 = vpow.pop %v2485
        %v2487 = vmul.f32 %v2480, 1.442695
        %v2488 = vpow.pop %v2487
        %v2489 = vsel %vm2222, %v2482, 0.0
        %2490 = vadd.xlane.f32.xlu0 %v2489
        %v2491 = vpop.xlane.xlu0 %2490
        %v2492 = vsel %vm2222, %v2484, 0.0
        %2493 = vadd.xlane.f32.xlu0 %v2492
        %v2494 = vpop.xlane.xlu0 %2493
        %v2495 = vsel %vm2222, %v2486, 0.0
        %2496 = vadd.xlane.f32.xlu0 %v2495
        %v2497 = vpop.xlane.xlu0 %2496
        %v2498 = vsel %vm2222, %v2488, 0.0
        %2499 = vadd.xlane.f32.xlu0 %v2498
        %v2500 = vpop.xlane.xlu0 %2499
        %v2501 = vrcp.pop %v2491
        %v2502 = vrcp.pop %v2494
        %v2503 = vrcp.pop %v2497
        %v2504 = vrcp.pop %v2500
        %v2505 = vmul.f32 %v2482, %v2501
        %v2506 = vmul.f32 %v2484, %v2502
        %v2507 = vmul.f32 %v2486, %v2503
        %v2508 = vmul.f32 %v2488, %v2504
        %v2509 = vpack.c.bf16 %v2506, %v2505
        %v2510 = vpack.c.bf16 %v2508, %v2507
        %2512 = vrot.lane.b32.xlu0 %v2125, 96
        %v2513 = vpop.permute.xlu0 %2512
        %v2516 = vsel %vm2222, %v2509, 0
        %2518 = vmatprep.subr.bf16.mxu0 0
        %2519 = vmatpush1.bf16.msra.mxu0 %v2513
        %2520 = vmatprep.subr.bf16.mxu0 0
        %2521 = vmatpush1.bf16.msra.mxu0 0
        %2522 = vmatprep.subr.bf16.mxu0 0
        %2523 = vmatpush1.bf16.msra.mxu0 0
        %2524 = vmatprep.subr.bf16.mxu0 0
        %2525 = vmatpush1.bf16.msra.mxu0 0
        %2526 = vmatprep.subr.bf16.mxu0 0
        %2527 = vmatpush1.bf16.msra.mxu0 0
        %2528 = vmatprep.subr.bf16.mxu0 0
        %2529 = vmatpush1.bf16.msra.mxu0 0
        %2530 = vmatprep.subr.bf16.mxu0 0
        %2531 = vmatpush1.bf16.msra.mxu0 0
        %2532 = vmatprep.subr.bf16.mxu0 0
        %2533 = vmatpush1.bf16.msra.mxu0 0
        %2534 = vmatprep.subr.bf16.mxu0 0
        %2535 = vmatpush1.bf16.msra.mxu0 0
        %2536 = vmatprep.subr.bf16.mxu0 0
        %2537 = vmatpush1.bf16.msra.mxu0 0
        %2538 = vmatprep.subr.bf16.mxu0 0
        %2539 = vmatpush1.bf16.msra.mxu0 0
        %2540 = vmatprep.subr.bf16.mxu0 0
        %2541 = vmatpush1.bf16.msra.mxu0 0
        %2542 = vmatprep.subr.bf16.mxu0 0
        %2543 = vmatpush1.bf16.msra.mxu0 0
        %2544 = vmatprep.subr.bf16.mxu0 0
        %2545 = vmatpush1.bf16.msra.mxu0 0
        %2546 = vmatprep.subr.bf16.mxu0 0
        %2547 = vmatpush1.bf16.msra.mxu0 0
        %2548 = vmatprep.subr.bf16.mxu0 0
        %2549 = vmatpush1.bf16.msra.mxu0 0
        %2550 = vmatprep.mubr.bf16.mxu0 0
        %2551 = vmatmul.mubr.bf16.gmra.mrb[0].mxu0 %v2516
        %v2552 = vpop.f32.mrb[0].mxu0
        %v2553 = vadd.f32 0.0, %v2552
        %v2554 = vpop.f32.mrb[0].mxu0
        %v2555 = vpop.f32.mrb[0].mxu0
        %v2556 = vadd.f32 0.0, %v2555
        %v2557 = vpop.f32.mrb[0].mxu0
        %2558 = vdwg.mxu0
        %2560 = vrot.lane.b32.xlu0 %v2126, 96
        %v2561 = vpop.permute.xlu0 %2560
        %v2564 = vsel %vm2222, %v2510, 0
        %2566 = vmatprep.subr.bf16.mxu0 0
        %2567 = vmatpush1.bf16.msra.mxu0 %v2561
        %2568 = vmatprep.subr.bf16.mxu0 0
        %2569 = vmatpush1.bf16.msra.mxu0 0
        %2570 = vmatprep.subr.bf16.mxu0 0
        %2571 = vmatpush1.bf16.msra.mxu0 0
        %2572 = vmatprep.subr.bf16.mxu0 0
        %2573 = vmatpush1.bf16.msra.mxu0 0
        %2574 = vmatprep.subr.bf16.mxu0 0
        %2575 = vmatpush1.bf16.msra.mxu0 0
        %2576 = vmatprep.subr.bf16.mxu0 0
        %2577 = vmatpush1.bf16.msra.mxu0 0
        %2578 = vmatprep.subr.bf16.mxu0 0
        %2579 = vmatpush1.bf16.msra.mxu0 0
        %2580 = vmatprep.subr.bf16.mxu0 0
        %2581 = vmatpush1.bf16.msra.mxu0 0
        %2582 = vmatprep.subr.bf16.mxu0 0
        %2583 = vmatpush1.bf16.msra.mxu0 0
        %2584 = vmatprep.subr.bf16.mxu0 0
        %2585 = vmatpush1.bf16.msra.mxu0 0
        %2586 = vmatprep.subr.bf16.mxu0 0
        %2587 = vmatpush1.bf16.msra.mxu0 0
        %2588 = vmatprep.subr.bf16.mxu0 0
        %2589 = vmatpush1.bf16.msra.mxu0 0
        %2590 = vmatprep.subr.bf16.mxu0 0
        %2591 = vmatpush1.bf16.msra.mxu0 0
        %2592 = vmatprep.subr.bf16.mxu0 0
        %2593 = vmatpush1.bf16.msra.mxu0 0
        %2594 = vmatprep.subr.bf16.mxu0 0
        %2595 = vmatpush1.bf16.msra.mxu0 0
        %2596 = vmatprep.subr.bf16.mxu0 0
        %2597 = vmatpush1.bf16.msra.mxu0 0
        %2598 = vmatprep.mubr.bf16.mxu0 0
        %2599 = vmatmul.mubr.bf16.gmra.mrb[0].mxu0 %v2564
        %v2600 = vpop.f32.mrb[0].mxu0
        %v2601 = vadd.f32 0.0, %v2600
        %v2602 = vpop.f32.mrb[0].mxu0
        %v2603 = vpop.f32.mrb[0].mxu0
        %v2604 = vadd.f32 0.0, %v2603
        %v2605 = vpop.f32.mrb[0].mxu0
        %2606 = vdwg.mxu0
        %v2607 = vpack.c.bf16 %v2556, %v2553
        %v2608 = vpack.c.bf16 %v2604, %v2601
        %v2613 = vunpack.c.l.b16 %v1799
        %v2614 = vunpack.c.l.b16 %v1800
        %v2615 = vunpack.c.l.b16 %v1801
        %v2616 = vunpack.c.l.b16 %v1802
        %v2617 = vpack.c.b16 %v2614, %v2613
        %v2618 = vpack.c.b16 %v2616, %v2615
        %v2622 = vsel %vm2127, %v2607, 0
        %v2625 = vsel %vm2127, %v2608, 0
        %2627 = vmatprep.subr.bf16.mxu0 0
        %2628 = vmatpush1.bf16.msra.mxu0 %v2617
        %2629 = vmatprep.subr.bf16.mxu0 0
        %2630 = vmatpush1.bf16.msra.mxu0 %v2618
        %2631 = vmatprep.subr.bf16.mxu0 0
        %2632 = vmatpush1.bf16.msra.mxu0 0
        %2633 = vmatprep.subr.bf16.mxu0 0
        %2634 = vmatpush1.bf16.msra.mxu0 0
        %2635 = vmatprep.subr.bf16.mxu0 0
        %2636 = vmatpush1.bf16.msra.mxu0 0
        %2637 = vmatprep.subr.bf16.mxu0 0
        %2638 = vmatpush1.bf16.msra.mxu0 0
        %2639 = vmatprep.subr.bf16.mxu0 0
        %2640 = vmatpush1.bf16.msra.mxu0 0
        %2641 = vmatprep.subr.bf16.mxu0 0
        %2642 = vmatpush1.bf16.msra.mxu0 0
        %2643 = vmatprep.subr.bf16.mxu0 0
        %2644 = vmatpush1.bf16.msra.mxu0 0
        %2645 = vmatprep.subr.bf16.mxu0 0
        %2646 = vmatpush1.bf16.msra.mxu0 0
        %2647 = vmatprep.subr.bf16.mxu0 0
        %2648 = vmatpush1.bf16.msra.mxu0 0
        %2649 = vmatprep.subr.bf16.mxu0 0
        %2650 = vmatpush1.bf16.msra.mxu0 0
        %2651 = vmatprep.subr.bf16.mxu0 0
        %2652 = vmatpush1.bf16.msra.mxu0 0
        %2653 = vmatprep.subr.bf16.mxu0 0
        %2654 = vmatpush1.bf16.msra.mxu0 0
        %2655 = vmatprep.subr.bf16.mxu0 0
        %2656 = vmatpush1.bf16.msra.mxu0 0
        %2657 = vmatprep.subr.bf16.mxu0 0
        %2658 = vmatpush1.bf16.msra.mxu0 0
        %2659 = vmatprep.mubr.bf16.mxu0 0
        %2660 = vmatmul.mubr.bf16.gmra.mrb[0].mxu0 %v2622
        %v2661 = vpop.f32.mrb[0].mxu0
        %v2662 = vadd.f32 0.0, %v2661
        %v2663 = vpop.f32.mrb[0].mxu0
        %v2664 = vpop.f32.mrb[0].mxu0
        %v2665 = vadd.f32 0.0, %v2664
        %v2666 = vpop.f32.mrb[0].mxu0
        %2667 = vmatprep.mubr.bf16.mxu0 0
        %2668 = vmatmul.mubr.bf16.gmra.mrb[0].mxu0 %v2625
        %v2669 = vpop.f32.mrb[0].mxu0
        %v2670 = vadd.f32 0.0, %v2669
        %v2671 = vpop.f32.mrb[0].mxu0
        %v2672 = vpop.f32.mrb[0].mxu0
        %v2673 = vadd.f32 0.0, %v2672
        %v2674 = vpop.f32.mrb[0].mxu0
        %2675 = vdwg.mxu0
        %v2680 = vunpack.c.l.b16 %v1795
        %v2681 = vunpack.c.l.b16 %v1796
        %v2682 = vunpack.c.l.b16 %v1797
        %v2683 = vunpack.c.l.b16 %v1798
        %v2684 = vpack.c.b16 %v2681, %v2680
        %v2685 = vpack.c.b16 %v2683, %v2682
        %v2689 = vsel %vm2127, %v2357, 0
        %v2692 = vsel %vm2127, %v2358, 0
        %2694 = vmatprep.subr.bf16.mxu0 0
        %2695 = vmatpush1.bf16.msra.mxu0 %v2684
        %2696 = vmatprep.subr.bf16.mxu0 0
        %2697 = vmatpush1.bf16.msra.mxu0 %v2685
        %2698 = vmatprep.subr.bf16.mxu0 0
        %2699 = vmatpush1.bf16.msra.mxu0 0
        %2700 = vmatprep.subr.bf16.mxu0 0
        %2701 = vmatpush1.bf16.msra.mxu0 0
        %2702 = vmatprep.subr.bf16.mxu0 0
        %2703 = vmatpush1.bf16.msra.mxu0 0
        %2704 = vmatprep.subr.bf16.mxu0 0
        %2705 = vmatpush1.bf16.msra.mxu0 0
        %2706 = vmatprep.subr.bf16.mxu0 0
        %2707 = vmatpush1.bf16.msra.mxu0 0
        %2708 = vmatprep.subr.bf16.mxu0 0
        %2709 = vmatpush1.bf16.msra.mxu0 0
        %2710 = vmatprep.subr.bf16.mxu0 0
        %2711 = vmatpush1.bf16.msra.mxu0 0
        %2712 = vmatprep.subr.bf16.mxu0 0
        %2713 = vmatpush1.bf16.msra.mxu0 0
        %2714 = vmatprep.subr.bf16.mxu0 0
        %2715 = vmatpush1.bf16.msra.mxu0 0
        %2716 = vmatprep.subr.bf16.mxu0 0
        %2717 = vmatpush1.bf16.msra.mxu0 0
        %2718 = vmatprep.subr.bf16.mxu0 0
        %2719 = vmatpush1.bf16.msra.mxu0 0
        %2720 = vmatprep.subr.bf16.mxu0 0
        %2721 = vmatpush1.bf16.msra.mxu0 0
        %2722 = vmatprep.subr.bf16.mxu0 0
        %2723 = vmatpush1.bf16.msra.mxu0 0
        %2724 = vmatprep.subr.bf16.mxu0 0
        %2725 = vmatpush1.bf16.msra.mxu0 0
        %2726 = vmatprep.mubr.bf16.mxu0 0
        %2727 = vmatmul.mubr.bf16.gmra.mrb[0].mxu0 %v2689
        %v2728 = vpop.f32.mrb[0].mxu0
        %v2729 = vadd.f32 %v2662, %v2728
        %v2730 = vpop.f32.mrb[0].mxu0
        %v2731 = vpop.f32.mrb[0].mxu0
        %v2732 = vadd.f32 %v2665, %v2731
        %v2733 = vpop.f32.mrb[0].mxu0
        %2734 = vmatprep.mubr.bf16.mxu0 0
        %2735 = vmatmul.mubr.bf16.gmra.mrb[0].mxu0 %v2692
        %v2736 = vpop.f32.mrb[0].mxu0
        %v2737 = vadd.f32 %v2670, %v2736
        %v2738 = vpop.f32.mrb[0].mxu0
        %v2739 = vpop.f32.mrb[0].mxu0
        %v2740 = vadd.f32 %v2673, %v2739
        %v2741 = vpop.f32.mrb[0].mxu0
        %2742 = vdwg.mxu0
        %2743 = vrot.lane.b32.xlu0 %v2121, 64
        %v2744 = vpop.permute.xlu0 %2743
        %2745 = vrot.lane.b32.xlu0 %v2123, 64
        %v2746 = vpop.permute.xlu0 %2745
        %v2748 = vsel %vm2127, %v2744, 0
        %v2751 = vsel %vm2127, %v2746, 0
        %2753 = vmatprep.subr.bf16.mxu0 0
        %2754 = vmatpush1.bf16.xpose.msra.mxu0 %v2751
        %2755 = vmatprep.subr.bf16.mxu0 0
        %2756 = vmatpush1.bf16.xpose.msra.mxu0 0
        %2757 = vmatprep.subr.bf16.mxu0 0
        %2758 = vmatpush1.bf16.xpose.msra.mxu0 0
        %2759 = vmatprep.subr.bf16.mxu0 0
        %2760 = vmatpush1.bf16.xpose.msra.mxu0 0
        %2761 = vmatprep.subr.bf16.mxu0 0
        %2762 = vmatpush1.bf16.xpose.msra.mxu0 0
        %2763 = vmatprep.subr.bf16.mxu0 0
        %2764 = vmatpush1.bf16.xpose.msra.mxu0 0
        %2765 = vmatprep.subr.bf16.mxu0 0
        %2766 = vmatpush1.bf16.xpose.msra.mxu0 0
        %2767 = vmatprep.subr.bf16.mxu0 0
        %2768 = vmatpush1.bf16.xpose.msra.mxu0 0
        %2769 = vmatprep.subr.bf16.mxu0 0
        %2770 = vmatpush1.bf16.xpose.msra.mxu0 0
        %2771 = vmatprep.subr.bf16.mxu0 0
        %2772 = vmatpush1.bf16.xpose.msra.mxu0 0
        %2773 = vmatprep.subr.bf16.mxu0 0
        %2774 = vmatpush1.bf16.xpose.msra.mxu0 0
        %2775 = vmatprep.subr.bf16.mxu0 0
        %2776 = vmatpush1.bf16.xpose.msra.mxu0 0
        %2777 = vmatprep.subr.bf16.mxu0 0
        %2778 = vmatpush1.bf16.xpose.msra.mxu0 0
        %2779 = vmatprep.subr.bf16.mxu0 0
        %2780 = vmatpush1.bf16.xpose.msra.mxu0 0
        %2781 = vmatprep.subr.bf16.mxu0 0
        %2782 = vmatpush1.bf16.xpose.msra.mxu0 0
        %2783 = vmatprep.subr.bf16.mxu0 0
        %2784 = vmatpush1.bf16.xpose.msra.mxu0 0
        %2785 = vmatprep.mubr.bf16.mxu0 0
        %2786 = vmatmul.mubr.bf16.gmra.mrb[0].mxu0 %v2748
        %v2787 = vpop.f32.mrb[0].mxu0
        %v2788 = vadd.f32 0.0, %v2787
        %v2789 = vpop.f32.mrb[0].mxu0
        %v2790 = vpop.f32.mrb[0].mxu0
        %v2791 = vadd.f32 0.0, %v2790
        %v2792 = vpop.f32.mrb[0].mxu0
        %2793 = vdwg.mxu0
        %2794 = vrot.lane.b32.xlu0 %v2122, 64
        %v2795 = vpop.permute.xlu0 %2794
        %2796 = vrot.lane.b32.xlu0 %v2124, 64
        %v2797 = vpop.permute.xlu0 %2796
        %v2799 = vsel %vm2127, %v2795, 0
        %v2802 = vsel %vm2127, %v2797, 0
        %2804 = vmatprep.subr.bf16.mxu0 0
        %2805 = vmatpush1.bf16.xpose.msra.mxu0 %v2802
        %2806 = vmatprep.subr.bf16.mxu0 0
        %2807 = vmatpush1.bf16.xpose.msra.mxu0 0
        %2808 = vmatprep.subr.bf16.mxu0 0
        %2809 = vmatpush1.bf16.xpose.msra.mxu0 0
        %2810 = vmatprep.subr.bf16.mxu0 0
        %2811 = vmatpush1.bf16.xpose.msra.mxu0 0
        %2812 = vmatprep.subr.bf16.mxu0 0
        %2813 = vmatpush1.bf16.xpose.msra.mxu0 0
        %2814 = vmatprep.subr.bf16.mxu0 0
        %2815 = vmatpush1.bf16.xpose.msra.mxu0 0
        %2816 = vmatprep.subr.bf16.mxu0 0
        %2817 = vmatpush1.bf16.xpose.msra.mxu0 0
        %2818 = vmatprep.subr.bf16.mxu0 0
        %2819 = vmatpush1.bf16.xpose.msra.mxu0 0
        %2820 = vmatprep.subr.bf16.mxu0 0
        %2821 = vmatpush1.bf16.xpose.msra.mxu0 0
        %2822 = vmatprep.subr.bf16.mxu0 0
        %2823 = vmatpush1.bf16.xpose.msra.mxu0 0
        %2824 = vmatprep.subr.bf16.mxu0 0
        %2825 = vmatpush1.bf16.xpose.msra.mxu0 0
        %2826 = vmatprep.subr.bf16.mxu0 0
        %2827 = vmatpush1.bf16.xpose.msra.mxu0 0
        %2828 = vmatprep.subr.bf16.mxu0 0
        %2829 = vmatpush1.bf16.xpose.msra.mxu0 0
        %2830 = vmatprep.subr.bf16.mxu0 0
        %2831 = vmatpush1.bf16.xpose.msra.mxu0 0
        %2832 = vmatprep.subr.bf16.mxu0 0
        %2833 = vmatpush1.bf16.xpose.msra.mxu0 0
        %2834 = vmatprep.subr.bf16.mxu0 0
        %2835 = vmatpush1.bf16.xpose.msra.mxu0 0
        %2836 = vmatprep.mubr.bf16.mxu0 0
        %2837 = vmatmul.mubr.bf16.gmra.mrb[0].mxu0 %v2799
        %v2838 = vpop.f32.mrb[0].mxu0
        %v2839 = vadd.f32 0.0, %v2838
        %v2840 = vpop.f32.mrb[0].mxu0
        %v2841 = vpop.f32.mrb[0].mxu0
        %v2842 = vadd.f32 0.0, %v2841
        %v2843 = vpop.f32.mrb[0].mxu0
        %2844 = vdwg.mxu0
        %v2845 = vsel %vm2222, %v2788, -inf
        %2846 = vmax.xlane.f32.xlu0 %v2845
        %v2847 = vpop.xlane.xlu0 %2846
        %v2848 = vsel %vm2222, %v2791, -inf
        %2849 = vmax.xlane.f32.xlu0 %v2848
        %v2850 = vpop.xlane.xlu0 %2849
        %v2851 = vsel %vm2222, %v2839, -inf
        %2852 = vmax.xlane.f32.xlu0 %v2851
        %v2853 = vpop.xlane.xlu0 %2852
        %v2854 = vsel %vm2222, %v2842, -inf
        %2855 = vmax.xlane.f32.xlu0 %v2854
        %v2856 = vpop.xlane.xlu0 %2855
        %v2857 = vsub.f32 %v2788, %v2847
        %v2858 = vsub.f32 %v2791, %v2850
        %v2859 = vsub.f32 %v2839, %v2853
        %v2860 = vsub.f32 %v2842, %v2856
        %v2861 = vmul.f32 %v2857, 1.442695
        %v2862 = vpow.pop %v2861
        %v2863 = vmul.f32 %v2858, 1.442695
        %v2864 = vpow.pop %v2863
        %v2865 = vmul.f32 %v2859, 1.442695
        %v2866 = vpow.pop %v2865
        %v2867 = vmul.f32 %v2860, 1.442695
        %v2868 = vpow.pop %v2867
        %v2869 = vsel %vm2222, %v2862, 0.0
        %2870 = vadd.xlane.f32.xlu0 %v2869
        %v2871 = vpop.xlane.xlu0 %2870
        %v2872 = vsel %vm2222, %v2864, 0.0
        %2873 = vadd.xlane.f32.xlu0 %v2872
        %v2874 = vpop.xlane.xlu0 %2873
        %v2875 = vsel %vm2222, %v2866, 0.0
        %2876 = vadd.xlane.f32.xlu0 %v2875
        %v2877 = vpop.xlane.xlu0 %2876
        %v2878 = vsel %vm2222, %v2868, 0.0
        %2879 = vadd.xlane.f32.xlu0 %v2878
        %v2880 = vpop.xlane.xlu0 %2879
        %v2881 = vrcp.pop %v2871
        %v2882 = vrcp.pop %v2874
        %v2883 = vrcp.pop %v2877
        %v2884 = vrcp.pop %v2880
        %v2885 = vmul.f32 %v2862, %v2881
        %v2886 = vmul.f32 %v2864, %v2882
        %v2887 = vmul.f32 %v2866, %v2883
        %v2888 = vmul.f32 %v2868, %v2884
        %v2889 = vpack.c.bf16 %v2886, %v2885
        %v2890 = vpack.c.bf16 %v2888, %v2887
        %2891 = vrot.lane.b32.xlu0 %v2125, 64
        %v2892 = vpop.permute.xlu0 %2891
        %v2895 = vsel %vm2222, %v2889, 0
        %2897 = vmatprep.subr.bf16.mxu0 0
        %2898 = vmatpush1.bf16.msra.mxu0 %v2892
        %2899 = vmatprep.subr.bf16.mxu0 0
        %2900 = vmatpush1.bf16.msra.mxu0 0
        %2901 = vmatprep.subr.bf16.mxu0 0
        %2902 = vmatpush1.bf16.msra.mxu0 0
        %2903 = vmatprep.subr.bf16.mxu0 0
        %2904 = vmatpush1.bf16.msra.mxu0 0
        %2905 = vmatprep.subr.bf16.mxu0 0
        %2906 = vmatpush1.bf16.msra.mxu0 0
        %2907 = vmatprep.subr.bf16.mxu0 0
        %2908 = vmatpush1.bf16.msra.mxu0 0
        %2909 = vmatprep.subr.bf16.mxu0 0
        %2910 = vmatpush1.bf16.msra.mxu0 0
        %2911 = vmatprep.subr.bf16.mxu0 0
        %2912 = vmatpush1.bf16.msra.mxu0 0
        %2913 = vmatprep.subr.bf16.mxu0 0
        %2914 = vmatpush1.bf16.msra.mxu0 0
        %2915 = vmatprep.subr.bf16.mxu0 0
        %2916 = vmatpush1.bf16.msra.mxu0 0
        %2917 = vmatprep.subr.bf16.mxu0 0
        %2918 = vmatpush1.bf16.msra.mxu0 0
        %2919 = vmatprep.subr.bf16.mxu0 0
        %2920 = vmatpush1.bf16.msra.mxu0 0
        %2921 = vmatprep.subr.bf16.mxu0 0
        %2922 = vmatpush1.bf16.msra.mxu0 0
        %2923 = vmatprep.subr.bf16.mxu0 0
        %2924 = vmatpush1.bf16.msra.mxu0 0
        %2925 = vmatprep.subr.bf16.mxu0 0
        %2926 = vmatpush1.bf16.msra.mxu0 0
        %2927 = vmatprep.subr.bf16.mxu0 0
        %2928 = vmatpush1.bf16.msra.mxu0 0
        %2929 = vmatprep.mubr.bf16.mxu0 0
        %2930 = vmatmul.mubr.bf16.gmra.mrb[0].mxu0 %v2895
        %v2931 = vpop.f32.mrb[0].mxu0
        %v2932 = vadd.f32 0.0, %v2931
        %v2933 = vpop.f32.mrb[0].mxu0
        %v2934 = vpop.f32.mrb[0].mxu0
        %v2935 = vadd.f32 0.0, %v2934
        %v2936 = vpop.f32.mrb[0].mxu0
        %2937 = vdwg.mxu0
        %2938 = vrot.lane.b32.xlu0 %v2126, 64
        %v2939 = vpop.permute.xlu0 %2938
        %v2942 = vsel %vm2222, %v2890, 0
        %2944 = vmatprep.subr.bf16.mxu0 0
        %2945 = vmatpush1.bf16.msra.mxu0 %v2939
        %2946 = vmatprep.subr.bf16.mxu0 0
        %2947 = vmatpush1.bf16.msra.mxu0 0
        %2948 = vmatprep.subr.bf16.mxu0 0
        %2949 = vmatpush1.bf16.msra.mxu0 0
        %2950 = vmatprep.subr.bf16.mxu0 0
        %2951 = vmatpush1.bf16.msra.mxu0 0
        %2952 = vmatprep.subr.bf16.mxu0 0
        %2953 = vmatpush1.bf16.msra.mxu0 0
        %2954 = vmatprep.subr.bf16.mxu0 0
        %2955 = vmatpush1.bf16.msra.mxu0 0
        %2956 = vmatprep.subr.bf16.mxu0 0
        %2957 = vmatpush1.bf16.msra.mxu0 0
        %2958 = vmatprep.subr.bf16.mxu0 0
        %2959 = vmatpush1.bf16.msra.mxu0 0
        %2960 = vmatprep.subr.bf16.mxu0 0
        %2961 = vmatpush1.bf16.msra.mxu0 0
        %2962 = vmatprep.subr.bf16.mxu0 0
        %2963 = vmatpush1.bf16.msra.mxu0 0
        %2964 = vmatprep.subr.bf16.mxu0 0
        %2965 = vmatpush1.bf16.msra.mxu0 0
        %2966 = vmatprep.subr.bf16.mxu0 0
        %2967 = vmatpush1.bf16.msra.mxu0 0
        %2968 = vmatprep.subr.bf16.mxu0 0
        %2969 = vmatpush1.bf16.msra.mxu0 0
        %2970 = vmatprep.subr.bf16.mxu0 0
        %2971 = vmatpush1.bf16.msra.mxu0 0
        %2972 = vmatprep.subr.bf16.mxu0 0
        %2973 = vmatpush1.bf16.msra.mxu0 0
        %2974 = vmatprep.subr.bf16.mxu0 0
        %2975 = vmatpush1.bf16.msra.mxu0 0
        %2976 = vmatprep.mubr.bf16.mxu0 0
        %2977 = vmatmul.mubr.bf16.gmra.mrb[0].mxu0 %v2942
        %v2978 = vpop.f32.mrb[0].mxu0
        %v2979 = vadd.f32 0.0, %v2978
        %v2980 = vpop.f32.mrb[0].mxu0
        %v2981 = vpop.f32.mrb[0].mxu0
        %v2982 = vadd.f32 0.0, %v2981
        %v2983 = vpop.f32.mrb[0].mxu0
        %2984 = vdwg.mxu0
        %v2985 = vpack.c.bf16 %v2935, %v2932
        %v2986 = vpack.c.bf16 %v2982, %v2979
        %v2991 = vunpack.c.l.b16 %v1803
        %v2992 = vunpack.c.l.b16 %v1804
        %v2993 = vunpack.c.l.b16 %v1805
        %v2994 = vunpack.c.l.b16 %v1806
        %v2995 = vpack.c.b16 %v2992, %v2991
        %v2996 = vpack.c.b16 %v2994, %v2993
        %v3000 = vsel %vm2127, %v2985, 0
        %v3003 = vsel %vm2127, %v2986, 0
        %3005 = vmatprep.subr.bf16.mxu0 0
        %3006 = vmatpush1.bf16.msra.mxu0 %v2995
        %3007 = vmatprep.subr.bf16.mxu0 0
        %3008 = vmatpush1.bf16.msra.mxu0 %v2996
        %3009 = vmatprep.subr.bf16.mxu0 0
        %3010 = vmatpush1.bf16.msra.mxu0 0
        %3011 = vmatprep.subr.bf16.mxu0 0
        %3012 = vmatpush1.bf16.msra.mxu0 0
        %3013 = vmatprep.subr.bf16.mxu0 0
        %3014 = vmatpush1.bf16.msra.mxu0 0
        %3015 = vmatprep.subr.bf16.mxu0 0
        %3016 = vmatpush1.bf16.msra.mxu0 0
        %3017 = vmatprep.subr.bf16.mxu0 0
        %3018 = vmatpush1.bf16.msra.mxu0 0
        %3019 = vmatprep.subr.bf16.mxu0 0
        %3020 = vmatpush1.bf16.msra.mxu0 0
        %3021 = vmatprep.subr.bf16.mxu0 0
        %3022 = vmatpush1.bf16.msra.mxu0 0
        %3023 = vmatprep.subr.bf16.mxu0 0
        %3024 = vmatpush1.bf16.msra.mxu0 0
        %3025 = vmatprep.subr.bf16.mxu0 0
        %3026 = vmatpush1.bf16.msra.mxu0 0
        %3027 = vmatprep.subr.bf16.mxu0 0
        %3028 = vmatpush1.bf16.msra.mxu0 0
        %3029 = vmatprep.subr.bf16.mxu0 0
        %3030 = vmatpush1.bf16.msra.mxu0 0
        %3031 = vmatprep.subr.bf16.mxu0 0
        %3032 = vmatpush1.bf16.msra.mxu0 0
        %3033 = vmatprep.subr.bf16.mxu0 0
        %3034 = vmatpush1.bf16.msra.mxu0 0
        %3035 = vmatprep.subr.bf16.mxu0 0
        %3036 = vmatpush1.bf16.msra.mxu0 0
        %3037 = vmatprep.mubr.bf16.mxu0 0
        %3038 = vmatmul.mubr.bf16.gmra.mrb[0].mxu0 %v3000
        %v3039 = vpop.f32.mrb[0].mxu0
        %v3040 = vadd.f32 0.0, %v3039
        %v3041 = vpop.f32.mrb[0].mxu0
        %v3042 = vpop.f32.mrb[0].mxu0
        %v3043 = vadd.f32 0.0, %v3042
        %v3044 = vpop.f32.mrb[0].mxu0
        %3045 = vmatprep.mubr.bf16.mxu0 0
        %3046 = vmatmul.mubr.bf16.gmra.mrb[0].mxu0 %v3003
        %v3047 = vpop.f32.mrb[0].mxu0
        %v3048 = vadd.f32 0.0, %v3047
        %v3049 = vpop.f32.mrb[0].mxu0
        %v3050 = vpop.f32.mrb[0].mxu0
        %v3051 = vadd.f32 0.0, %v3050
        %v3052 = vpop.f32.mrb[0].mxu0
        %3053 = vdwg.mxu0
        %v3054 = vadd.f32 %v2729, %v3040
        %v3055 = vadd.f32 %v2732, %v3043
        %v3056 = vadd.f32 %v2737, %v3048
        %v3057 = vadd.f32 %v2740, %v3051
        %3058 = vrot.lane.b32.xlu0 %v2121, 32
        %v3059 = vpop.permute.xlu0 %3058
        %3060 = vrot.lane.b32.xlu0 %v2123, 32
        %v3061 = vpop.permute.xlu0 %3060
        %v3063 = vsel %vm2127, %v3059, 0
        %v3066 = vsel %vm2127, %v3061, 0
        %3068 = vmatprep.subr.bf16.mxu0 0
        %3069 = vmatpush1.bf16.xpose.msra.mxu0 %v3066
        %3070 = vmatprep.subr.bf16.mxu0 0
        %3071 = vmatpush1.bf16.xpose.msra.mxu0 0
        %3072 = vmatprep.subr.bf16.mxu0 0
        %3073 = vmatpush1.bf16.xpose.msra.mxu0 0
        %3074 = vmatprep.subr.bf16.mxu0 0
        %3075 = vmatpush1.bf16.xpose.msra.mxu0 0
        %3076 = vmatprep.subr.bf16.mxu0 0
        %3077 = vmatpush1.bf16.xpose.msra.mxu0 0
        %3078 = vmatprep.subr.bf16.mxu0 0
        %3079 = vmatpush1.bf16.xpose.msra.mxu0 0
        %3080 = vmatprep.subr.bf16.mxu0 0
        %3081 = vmatpush1.bf16.xpose.msra.mxu0 0
        %3082 = vmatprep.subr.bf16.mxu0 0
        %3083 = vmatpush1.bf16.xpose.msra.mxu0 0
        %3084 = vmatprep.subr.bf16.mxu0 0
        %3085 = vmatpush1.bf16.xpose.msra.mxu0 0
        %3086 = vmatprep.subr.bf16.mxu0 0
        %3087 = vmatpush1.bf16.xpose.msra.mxu0 0
        %3088 = vmatprep.subr.bf16.mxu0 0
        %3089 = vmatpush1.bf16.xpose.msra.mxu0 0
        %3090 = vmatprep.subr.bf16.mxu0 0
        %3091 = vmatpush1.bf16.xpose.msra.mxu0 0
        %3092 = vmatprep.subr.bf16.mxu0 0
        %3093 = vmatpush1.bf16.xpose.msra.mxu0 0
        %3094 = vmatprep.subr.bf16.mxu0 0
        %3095 = vmatpush1.bf16.xpose.msra.mxu0 0
        %3096 = vmatprep.subr.bf16.mxu0 0
        %3097 = vmatpush1.bf16.xpose.msra.mxu0 0
        %3098 = vmatprep.subr.bf16.mxu0 0
        %3099 = vmatpush1.bf16.xpose.msra.mxu0 0
        %3100 = vmatprep.mubr.bf16.mxu0 0
        %3101 = vmatmul.mubr.bf16.gmra.mrb[0].mxu0 %v3063
        %v3102 = vpop.f32.mrb[0].mxu0
        %v3103 = vadd.f32 0.0, %v3102
        %v3104 = vpop.f32.mrb[0].mxu0
        %v3105 = vpop.f32.mrb[0].mxu0
        %v3106 = vadd.f32 0.0, %v3105
        %v3107 = vpop.f32.mrb[0].mxu0
        %3108 = vdwg.mxu0
        %3109 = vrot.lane.b32.xlu0 %v2122, 32
        %v3110 = vpop.permute.xlu0 %3109
        %3111 = vrot.lane.b32.xlu0 %v2124, 32
        %v3112 = vpop.permute.xlu0 %3111
        %v3114 = vsel %vm2127, %v3110, 0
        %v3117 = vsel %vm2127, %v3112, 0
        %3119 = vmatprep.subr.bf16.mxu0 0
        %3120 = vmatpush1.bf16.xpose.msra.mxu0 %v3117
        %3121 = vmatprep.subr.bf16.mxu0 0
        %3122 = vmatpush1.bf16.xpose.msra.mxu0 0
        %3123 = vmatprep.subr.bf16.mxu0 0
        %3124 = vmatpush1.bf16.xpose.msra.mxu0 0
        %3125 = vmatprep.subr.bf16.mxu0 0
        %3126 = vmatpush1.bf16.xpose.msra.mxu0 0
        %3127 = vmatprep.subr.bf16.mxu0 0
        %3128 = vmatpush1.bf16.xpose.msra.mxu0 0
        %3129 = vmatprep.subr.bf16.mxu0 0
        %3130 = vmatpush1.bf16.xpose.msra.mxu0 0
        %3131 = vmatprep.subr.bf16.mxu0 0
        %3132 = vmatpush1.bf16.xpose.msra.mxu0 0
        %3133 = vmatprep.subr.bf16.mxu0 0
        %3134 = vmatpush1.bf16.xpose.msra.mxu0 0
        %3135 = vmatprep.subr.bf16.mxu0 0
        %3136 = vmatpush1.bf16.xpose.msra.mxu0 0
        %3137 = vmatprep.subr.bf16.mxu0 0
        %3138 = vmatpush1.bf16.xpose.msra.mxu0 0
        %3139 = vmatprep.subr.bf16.mxu0 0
        %3140 = vmatpush1.bf16.xpose.msra.mxu0 0
        %3141 = vmatprep.subr.bf16.mxu0 0
        %3142 = vmatpush1.bf16.xpose.msra.mxu0 0
        %3143 = vmatprep.subr.bf16.mxu0 0
        %3144 = vmatpush1.bf16.xpose.msra.mxu0 0
        %3145 = vmatprep.subr.bf16.mxu0 0
        %3146 = vmatpush1.bf16.xpose.msra.mxu0 0
        %3147 = vmatprep.subr.bf16.mxu0 0
        %3148 = vmatpush1.bf16.xpose.msra.mxu0 0
        %3149 = vmatprep.subr.bf16.mxu0 0
        %3150 = vmatpush1.bf16.xpose.msra.mxu0 0
        %3151 = vmatprep.mubr.bf16.mxu0 0
        %3152 = vmatmul.mubr.bf16.gmra.mrb[0].mxu0 %v3114
        %v3153 = vpop.f32.mrb[0].mxu0
        %v3154 = vadd.f32 0.0, %v3153
        %v3155 = vpop.f32.mrb[0].mxu0
        %v3156 = vpop.f32.mrb[0].mxu0
        %v3157 = vadd.f32 0.0, %v3156
        %v3158 = vpop.f32.mrb[0].mxu0
        %3159 = vdwg.mxu0
        %v3160 = vsel %vm2222, %v3103, -inf
        %3161 = vmax.xlane.f32.xlu0 %v3160
        %v3162 = vpop.xlane.xlu0 %3161
        %v3163 = vsel %vm2222, %v3106, -inf
        %3164 = vmax.xlane.f32.xlu0 %v3163
        %v3165 = vpop.xlane.xlu0 %3164
        %v3166 = vsel %vm2222, %v3154, -inf
        %3167 = vmax.xlane.f32.xlu0 %v3166
        %v3168 = vpop.xlane.xlu0 %3167
        %v3169 = vsel %vm2222, %v3157, -inf
        %3170 = vmax.xlane.f32.xlu0 %v3169
        %v3171 = vpop.xlane.xlu0 %3170
        %v3172 = vsub.f32 %v3103, %v3162
        %v3173 = vsub.f32 %v3106, %v3165
        %v3174 = vsub.f32 %v3154, %v3168
        %v3175 = vsub.f32 %v3157, %v3171
        %v3176 = vmul.f32 %v3172, 1.442695
        %v3177 = vpow.pop %v3176
        %v3178 = vmul.f32 %v3173, 1.442695
        %v3179 = vpow.pop %v3178
        %v3180 = vmul.f32 %v3174, 1.442695
        %v3181 = vpow.pop %v3180
        %v3182 = vmul.f32 %v3175, 1.442695
        %v3183 = vpow.pop %v3182
        %v3184 = vsel %vm2222, %v3177, 0.0
        %3185 = vadd.xlane.f32.xlu0 %v3184
        %v3186 = vpop.xlane.xlu0 %3185
        %v3187 = vsel %vm2222, %v3179, 0.0
        %3188 = vadd.xlane.f32.xlu0 %v3187
        %v3189 = vpop.xlane.xlu0 %3188
        %v3190 = vsel %vm2222, %v3181, 0.0
        %3191 = vadd.xlane.f32.xlu0 %v3190
        %v3192 = vpop.xlane.xlu0 %3191
        %v3193 = vsel %vm2222, %v3183, 0.0
        %3194 = vadd.xlane.f32.xlu0 %v3193
        %v3195 = vpop.xlane.xlu0 %3194
        %v3196 = vrcp.pop %v3186
        %v3197 = vrcp.pop %v3189
        %v3198 = vrcp.pop %v3192
        %v3199 = vrcp.pop %v3195
        %v3200 = vmul.f32 %v3177, %v3196
        %v3201 = vmul.f32 %v3179, %v3197
        %v3202 = vmul.f32 %v3181, %v3198
        %v3203 = vmul.f32 %v3183, %v3199
        %v3204 = vpack.c.bf16 %v3201, %v3200
        %v3205 = vpack.c.bf16 %v3203, %v3202
        %3206 = vrot.lane.b32.xlu0 %v2125, 32
        %v3207 = vpop.permute.xlu0 %3206
        %v3210 = vsel %vm2222, %v3204, 0
        %3212 = vmatprep.subr.bf16.mxu0 0
        %3213 = vmatpush1.bf16.msra.mxu0 %v3207
        %3214 = vmatprep.subr.bf16.mxu0 0
        %3215 = vmatpush1.bf16.msra.mxu0 0
        %3216 = vmatprep.subr.bf16.mxu0 0
        %3217 = vmatpush1.bf16.msra.mxu0 0
        %3218 = vmatprep.subr.bf16.mxu0 0
        %3219 = vmatpush1.bf16.msra.mxu0 0
        %3220 = vmatprep.subr.bf16.mxu0 0
        %3221 = vmatpush1.bf16.msra.mxu0 0
        %3222 = vmatprep.subr.bf16.mxu0 0
        %3223 = vmatpush1.bf16.msra.mxu0 0
        %3224 = vmatprep.subr.bf16.mxu0 0
        %3225 = vmatpush1.bf16.msra.mxu0 0
        %3226 = vmatprep.subr.bf16.mxu0 0
        %3227 = vmatpush1.bf16.msra.mxu0 0
        %3228 = vmatprep.subr.bf16.mxu0 0
        %3229 = vmatpush1.bf16.msra.mxu0 0
        %3230 = vmatprep.subr.bf16.mxu0 0
        %3231 = vmatpush1.bf16.msra.mxu0 0
        %3232 = vmatprep.subr.bf16.mxu0 0
        %3233 = vmatpush1.bf16.msra.mxu0 0
        %3234 = vmatprep.subr.bf16.mxu0 0
        %3235 = vmatpush1.bf16.msra.mxu0 0
        %3236 = vmatprep.subr.bf16.mxu0 0
        %3237 = vmatpush1.bf16.msra.mxu0 0
        %3238 = vmatprep.subr.bf16.mxu0 0
        %3239 = vmatpush1.bf16.msra.mxu0 0
        %3240 = vmatprep.subr.bf16.mxu0 0
        %3241 = vmatpush1.bf16.msra.mxu0 0
        %3242 = vmatprep.subr.bf16.mxu0 0
        %3243 = vmatpush1.bf16.msra.mxu0 0
        %3244 = vmatprep.mubr.bf16.mxu0 0
        %3245 = vmatmul.mubr.bf16.gmra.mrb[0].mxu0 %v3210
        %v3246 = vpop.f32.mrb[0].mxu0
        %v3247 = vadd.f32 0.0, %v3246
        %v3248 = vpop.f32.mrb[0].mxu0
        %v3249 = vpop.f32.mrb[0].mxu0
        %v3250 = vadd.f32 0.0, %v3249
        %v3251 = vpop.f32.mrb[0].mxu0
        %3252 = vdwg.mxu0
        %3253 = vrot.lane.b32.xlu0 %v2126, 32
        %v3254 = vpop.permute.xlu0 %3253
        %v3257 = vsel %vm2222, %v3205, 0
        %3259 = vmatprep.subr.bf16.mxu0 0
        %3260 = vmatpush1.bf16.msra.mxu0 %v3254
        %3261 = vmatprep.subr.bf16.mxu0 0
        %3262 = vmatpush1.bf16.msra.mxu0 0
        %3263 = vmatprep.subr.bf16.mxu0 0
        %3264 = vmatpush1.bf16.msra.mxu0 0
        %3265 = vmatprep.subr.bf16.mxu0 0
        %3266 = vmatpush1.bf16.msra.mxu0 0
        %3267 = vmatprep.subr.bf16.mxu0 0
        %3268 = vmatpush1.bf16.msra.mxu0 0
        %3269 = vmatprep.subr.bf16.mxu0 0
        %3270 = vmatpush1.bf16.msra.mxu0 0
        %3271 = vmatprep.subr.bf16.mxu0 0
        %3272 = vmatpush1.bf16.msra.mxu0 0
        %3273 = vmatprep.subr.bf16.mxu0 0
        %3274 = vmatpush1.bf16.msra.mxu0 0
        %3275 = vmatprep.subr.bf16.mxu0 0
        %3276 = vmatpush1.bf16.msra.mxu0 0
        %3277 = vmatprep.subr.bf16.mxu0 0
        %3278 = vmatpush1.bf16.msra.mxu0 0
        %3279 = vmatprep.subr.bf16.mxu0 0
        %3280 = vmatpush1.bf16.msra.mxu0 0
        %3281 = vmatprep.subr.bf16.mxu0 0
        %3282 = vmatpush1.bf16.msra.mxu0 0
        %3283 = vmatprep.subr.bf16.mxu0 0
        %3284 = vmatpush1.bf16.msra.mxu0 0
        %3285 = vmatprep.subr.bf16.mxu0 0
        %3286 = vmatpush1.bf16.msra.mxu0 0
        %3287 = vmatprep.subr.bf16.mxu0 0
        %3288 = vmatpush1.bf16.msra.mxu0 0
        %3289 = vmatprep.subr.bf16.mxu0 0
        %3290 = vmatpush1.bf16.msra.mxu0 0
        %3291 = vmatprep.mubr.bf16.mxu0 0
        %3292 = vmatmul.mubr.bf16.gmra.mrb[0].mxu0 %v3257
        %v3293 = vpop.f32.mrb[0].mxu0
        %v3294 = vadd.f32 0.0, %v3293
        %v3295 = vpop.f32.mrb[0].mxu0
        %v3296 = vpop.f32.mrb[0].mxu0
        %v3297 = vadd.f32 0.0, %v3296
        %v3298 = vpop.f32.mrb[0].mxu0
        %3299 = vdwg.mxu0
        %v3300 = vpack.c.bf16 %v3250, %v3247
        %v3301 = vpack.c.bf16 %v3297, %v3294
        %v3306 = vunpack.c.l.b16 %v1807
        %v3307 = vunpack.c.l.b16 %v1808
        %v3308 = vunpack.c.l.b16 %v1809
        %v3309 = vunpack.c.l.b16 %v1810
        %v3310 = vpack.c.b16 %v3307, %v3306
        %v3311 = vpack.c.b16 %v3309, %v3308
        %v3315 = vsel %vm2127, %v3300, 0
        %v3318 = vsel %vm2127, %v3301, 0
        %3320 = vmatprep.subr.bf16.mxu0 0
        %3321 = vmatpush1.bf16.msra.mxu0 %v3310
        %3322 = vmatprep.subr.bf16.mxu0 0
        %3323 = vmatpush1.bf16.msra.mxu0 %v3311
        %3324 = vmatprep.subr.bf16.mxu0 0
        %3325 = vmatpush1.bf16.msra.mxu0 0
        %3326 = vmatprep.subr.bf16.mxu0 0
        %3327 = vmatpush1.bf16.msra.mxu0 0
        %3328 = vmatprep.subr.bf16.mxu0 0
        %3329 = vmatpush1.bf16.msra.mxu0 0
        %3330 = vmatprep.subr.bf16.mxu0 0
        %3331 = vmatpush1.bf16.msra.mxu0 0
        %3332 = vmatprep.subr.bf16.mxu0 0
        %3333 = vmatpush1.bf16.msra.mxu0 0
        %3334 = vmatprep.subr.bf16.mxu0 0
        %3335 = vmatpush1.bf16.msra.mxu0 0
        %3336 = vmatprep.subr.bf16.mxu0 0
        %3337 = vmatpush1.bf16.msra.mxu0 0
        %3338 = vmatprep.subr.bf16.mxu0 0
        %3339 = vmatpush1.bf16.msra.mxu0 0
        %3340 = vmatprep.subr.bf16.mxu0 0
        %3341 = vmatpush1.bf16.msra.mxu0 0
        %3342 = vmatprep.subr.bf16.mxu0 0
        %3343 = vmatpush1.bf16.msra.mxu0 0
        %3344 = vmatprep.subr.bf16.mxu0 0
        %3345 = vmatpush1.bf16.msra.mxu0 0
        %3346 = vmatprep.subr.bf16.mxu0 0
        %3347 = vmatpush1.bf16.msra.mxu0 0
        %3348 = vmatprep.subr.bf16.mxu0 0
        %3349 = vmatpush1.bf16.msra.mxu0 0
        %3350 = vmatprep.subr.bf16.mxu0 0
        %3351 = vmatpush1.bf16.msra.mxu0 0
        %3352 = vmatprep.mubr.bf16.mxu0 0
        %3353 = vmatmul.mubr.bf16.gmra.mrb[0].mxu0 %v3315
        %v3354 = vpop.f32.mrb[0].mxu0
        %v3355 = vadd.f32 0.0, %v3354
        %v3356 = vpop.f32.mrb[0].mxu0
        %v3357 = vpop.f32.mrb[0].mxu0
        %v3358 = vadd.f32 0.0, %v3357
        %v3359 = vpop.f32.mrb[0].mxu0
        %3360 = vmatprep.mubr.bf16.mxu0 0
        %3361 = vmatmul.mubr.bf16.gmra.mrb[0].mxu0 %v3318
        %v3362 = vpop.f32.mrb[0].mxu0
        %v3363 = vadd.f32 0.0, %v3362
        %v3364 = vpop.f32.mrb[0].mxu0
        %v3365 = vpop.f32.mrb[0].mxu0
        %v3366 = vadd.f32 0.0, %v3365
        %v3367 = vpop.f32.mrb[0].mxu0
        %3368 = vdwg.mxu0
        %v3369 = vadd.f32 %v3054, %v3355
        %v3370 = vadd.f32 %v3055, %v3358
        %v3371 = vadd.f32 %v3056, %v3363
        %v3372 = vadd.f32 %v3057, %v3366
        %v3374 = vlaneseq
        %v3375 = vshrl.u32 %v3374, 7
        %v3376 = vsub.s32 0, %v3375
        %v3377 = vrot.slane %v1811, %v3376
        %v3379 = vadd.f32 %v3369, %v3377
        %v3380 = vadd.f32 %v3370, %v3377
        %v3381 = vadd.f32 %v3371, %v3377
        %v3382 = vadd.f32 %v3372, %v3377
        %v3383 = vadd.f32 %v1728, %v3379
        %v3384 = vadd.f32 %v1729, %v3380
        %v3385 = vadd.f32 %v1730, %v3381
        %v3386 = vadd.f32 %v1731, %v3382
        %v3387 = vld [vmem:[%s1650] sm:$0x1]
        %v3388 = vld [vmem:[%s1653] sm:$0x1]
        %3389 = vadd.xlane.f32.xlu0 %v3383
        %v3390 = vpop.xlane.xlu0 %3389
        %3391 = vadd.xlane.f32.xlu0 %v3384
        %v3392 = vpop.xlane.xlu0 %3391
        %3393 = vadd.xlane.f32.xlu0 %v3385
        %v3394 = vpop.xlane.xlu0 %3393
        %3395 = vadd.xlane.f32.xlu0 %v3386
        %v3396 = vpop.xlane.xlu0 %3395
        %v3397 = vrcp.pop 128.0
        %v3398 = vmul.f32 %v3390, %v3397
        %v3399 = vmul.f32 %v3392, %v3397
        %v3400 = vmul.f32 %v3394, %v3397
        %v3401 = vmul.f32 %v3396, %v3397
        %v3402 = vsub.f32 %v3383, %v3398
        %v3403 = vsub.f32 %v3384, %v3399
        %v3404 = vsub.f32 %v3385, %v3400
        %v3405 = vsub.f32 %v3386, %v3401
        %v3406 = vmul.f32 %v3402, %v3402
        %v3407 = vmul.f32 %v3403, %v3403
        %v3408 = vmul.f32 %v3404, %v3404
        %v3409 = vmul.f32 %v3405, %v3405
        %3410 = vadd.xlane.f32.xlu0 %v3406
        %v3411 = vpop.xlane.xlu0 %3410
        %3412 = vadd.xlane.f32.xlu0 %v3407
        %v3413 = vpop.xlane.xlu0 %3412
        %3414 = vadd.xlane.f32.xlu0 %v3408
        %v3415 = vpop.xlane.xlu0 %3414
        %3416 = vadd.xlane.f32.xlu0 %v3409
        %v3417 = vpop.xlane.xlu0 %3416
        %v3418 = vmul.f32 %v3411, %v3397
        %v3419 = vmul.f32 %v3413, %v3397
        %v3420 = vmul.f32 %v3415, %v3397
        %v3421 = vmul.f32 %v3417, %v3397
        %v3422 = vadd.f32 %v3418, 1e-05
        %v3423 = vadd.f32 %v3419, 1e-05
        %v3424 = vadd.f32 %v3420, 1e-05
        %v3425 = vadd.f32 %v3421, 1e-05
        %v3426 = vrsqrt.pop %v3422
        %v3427 = vrsqrt.pop %v3423
        %v3428 = vrsqrt.pop %v3424
        %v3429 = vrsqrt.pop %v3425
        %v3430 = vmul.f32 %v3402, %v3426
        %v3431 = vmul.f32 %v3403, %v3427
        %v3432 = vmul.f32 %v3404, %v3428
        %v3433 = vmul.f32 %v3405, %v3429
        %v3435 = vlaneseq
        %v3436 = vshrl.u32 %v3435, 7
        %v3437 = vsub.s32 0, %v3436
        %v3438 = vrot.slane %v3387, %v3437
        %v3440 = vmul.f32 %v3430, %v3438
        %v3441 = vmul.f32 %v3431, %v3438
        %v3442 = vmul.f32 %v3432, %v3438
        %v3443 = vmul.f32 %v3433, %v3438
        %v3445 = vlaneseq
        %v3446 = vshrl.u32 %v3445, 7
        %v3447 = vsub.s32 0, %v3446
        %v3448 = vrot.slane %v3388, %v3447
        %v3450 = vadd.f32 %v3440, %v3448
        %v3451 = vadd.f32 %v3441, %v3448
        %v3452 = vadd.f32 %v3442, %v3448
        %v3453 = vadd.f32 %v3443, %v3448
        %v3454 = vadd.f32 %v3450, %v1732
        %v3455 = vadd.f32 %v3451, %v1733
        %v3456 = vadd.f32 %v3452, %v1734
        %v3457 = vadd.f32 %v3453, %v1735
        %v3458 = vpack.c.bf16 %v3455, %v3454
        %v3459 = vpack.c.bf16 %v3457, %v3456
        %v3460 = vld [vmem:[#allocation3] sm:$0xff]
        %v3461 = vld [vmem:[#allocation3 + $0x8] sm:$0xff]
        %v3462 = vld [vmem:[#allocation3 + $0x10] sm:$0xff]
        %v3463 = vld [vmem:[#allocation3 + $0x18] sm:$0xff]
        %v3464 = vld [vmem:[#allocation4] sm:$0xff]
        %v3465 = vld [vmem:[#allocation4 + $0x8] sm:$0xff]
        %v3466 = vld [vmem:[#allocation4 + $0x10] sm:$0xff]
        %v3467 = vld [vmem:[#allocation4 + $0x18] sm:$0xff]
        %v3468 = vld [vmem:[%s1398] sm:$0xf]
        %v3469 = vld [vmem:[%s1398 + $0x4] sm:$0xf]
        %v3470 = vld [vmem:[%s1398 + $0x8] sm:$0xf]
        %v3471 = vld [vmem:[%s1398 + $0xc] sm:$0xf]
        %v3472 = vld [vmem:[%s1398 + $0x10] sm:$0xf]
        %v3473 = vld [vmem:[%s1398 + $0x14] sm:$0xf]
        %v3474 = vld [vmem:[%s1398 + $0x18] sm:$0xf]
        %v3475 = vld [vmem:[%s1398 + $0x1c] sm:$0xf]
        %v3476 = vld [vmem:[%s1398 + $0x20] sm:$0xf]
        %v3477 = vld [vmem:[%s1398 + $0x24] sm:$0xf]
        %v3478 = vld [vmem:[%s1398 + $0x28] sm:$0xf]
        %v3479 = vld [vmem:[%s1398 + $0x2c] sm:$0xf]
        %v3480 = vld [vmem:[%s1398 + $0x30] sm:$0xf]
        %v3481 = vld [vmem:[%s1398 + $0x34] sm:$0xf]
        %v3482 = vld [vmem:[%s1398 + $0x38] sm:$0xf]
        %v3483 = vld [vmem:[%s1398 + $0x3c] sm:$0xf]
        %v3484 = vld [vmem:[%s1631] sm:$0x1]
        %v3485 = vld [vmem:[%s1407] sm:$0xf]
        %v3486 = vld [vmem:[%s1407 + $0x4] sm:$0xf]
        %v3487 = vld [vmem:[%s1407 + $0x8] sm:$0xf]
        %v3488 = vld [vmem:[%s1407 + $0xc] sm:$0xf]
        %v3489 = vld [vmem:[%s1407 + $0x10] sm:$0xf]
        %v3490 = vld [vmem:[%s1407 + $0x14] sm:$0xf]
        %v3491 = vld [vmem:[%s1407 + $0x18] sm:$0xf]
        %v3492 = vld [vmem:[%s1407 + $0x1c] sm:$0xf]
        %v3493 = vld [vmem:[%s1407 + $0x20] sm:$0xf]
        %v3494 = vld [vmem:[%s1407 + $0x24] sm:$0xf]
        %v3495 = vld [vmem:[%s1407 + $0x28] sm:$0xf]
        %v3496 = vld [vmem:[%s1407 + $0x2c] sm:$0xf]
        %v3497 = vld [vmem:[%s1407 + $0x30] sm:$0xf]
        %v3498 = vld [vmem:[%s1407 + $0x34] sm:$0xf]
        %v3499 = vld [vmem:[%s1407 + $0x38] sm:$0xf]
        %v3500 = vld [vmem:[%s1407 + $0x3c] sm:$0xf]
        %v3501 = vld [vmem:[%s1634] sm:$0x1]
        %v3502 = vld [vmem:[%s1416] sm:$0xf]
        %v3503 = vld [vmem:[%s1416 + $0x4] sm:$0xf]
        %v3504 = vld [vmem:[%s1416 + $0x8] sm:$0xf]
        %v3505 = vld [vmem:[%s1416 + $0xc] sm:$0xf]
        %v3506 = vld [vmem:[%s1416 + $0x10] sm:$0xf]
        %v3507 = vld [vmem:[%s1416 + $0x14] sm:$0xf]
        %v3508 = vld [vmem:[%s1416 + $0x18] sm:$0xf]
        %v3509 = vld [vmem:[%s1416 + $0x1c] sm:$0xf]
        %v3510 = vld [vmem:[%s1416 + $0x20] sm:$0xf]
        %v3511 = vld [vmem:[%s1416 + $0x24] sm:$0xf]
        %v3512 = vld [vmem:[%s1416 + $0x28] sm:$0xf]
        %v3513 = vld [vmem:[%s1416 + $0x2c] sm:$0xf]
        %v3514 = vld [vmem:[%s1416 + $0x30] sm:$0xf]
        %v3515 = vld [vmem:[%s1416 + $0x34] sm:$0xf]
        %v3516 = vld [vmem:[%s1416 + $0x38] sm:$0xf]
        %v3517 = vld [vmem:[%s1416 + $0x3c] sm:$0xf]
        %v3518 = vld [vmem:[%s1637] sm:$0x1]
        %v3519 = vld [vmem:[%s1425] sm:$0xf]
        %v3520 = vld [vmem:[%s1425 + $0x4] sm:$0xf]
        %v3521 = vld [vmem:[%s1425 + $0x8] sm:$0xf]
        %v3522 = vld [vmem:[%s1425 + $0xc] sm:$0xf]
        %v3523 = vld [vmem:[%s1425 + $0x10] sm:$0xf]
        %v3524 = vld [vmem:[%s1425 + $0x14] sm:$0xf]
        %v3525 = vld [vmem:[%s1425 + $0x18] sm:$0xf]
        %v3526 = vld [vmem:[%s1425 + $0x1c] sm:$0xf]
        %v3527 = vld [vmem:[%s1425 + $0x20] sm:$0xf]
        %v3528 = vld [vmem:[%s1425 + $0x24] sm:$0xf]
        %v3529 = vld [vmem:[%s1425 + $0x28] sm:$0xf]
        %v3530 = vld [vmem:[%s1425 + $0x2c] sm:$0xf]
        %v3531 = vld [vmem:[%s1425 + $0x30] sm:$0xf]
        %v3532 = vld [vmem:[%s1425 + $0x34] sm:$0xf]
        %v3533 = vld [vmem:[%s1425 + $0x38] sm:$0xf]
        %v3534 = vld [vmem:[%s1425 + $0x3c] sm:$0xf]
        %v3535 = vld [vmem:[%s1640] sm:$0x1]
        %v3537 = vlaneseq
        %v3538 = vshrl.u32 %v3537, 7
        %v3539 = vsub.s32 0, %v3538
        %v3540 = vrot.slane %v3484, %v3539
        %v3558 = vunpack.c.l.b16 %v3468
        %v3559 = vunpack.c.l.b16 %v3469
        %v3560 = vunpack.c.l.b16 %v3470
        %v3561 = vunpack.c.l.b16 %v3471
        %v3562 = vunpack.c.l.b16 %v3472
        %v3563 = vunpack.c.l.b16 %v3473
        %v3564 = vunpack.c.l.b16 %v3474
        %v3565 = vunpack.c.l.b16 %v3475
        %v3566 = vunpack.c.l.b16 %v3476
        %v3567 = vunpack.c.l.b16 %v3477
        %v3568 = vunpack.c.l.b16 %v3478
        %v3569 = vunpack.c.l.b16 %v3479
        %v3570 = vunpack.c.l.b16 %v3480
        %v3571 = vunpack.c.l.b16 %v3481
        %v3572 = vunpack.c.l.b16 %v3482
        %v3573 = vunpack.c.l.b16 %v3483
        %v3574 = vpack.c.b16 %v3559, %v3558
        %v3575 = vpack.c.b16 %v3561, %v3560
        %v3576 = vpack.c.b16 %v3563, %v3562
        %v3577 = vpack.c.b16 %v3565, %v3564
        %v3578 = vpack.c.b16 %v3567, %v3566
        %v3579 = vpack.c.b16 %v3569, %v3568
        %v3580 = vpack.c.b16 %v3571, %v3570
        %v3581 = vpack.c.b16 %v3573, %v3572
        %3590 = vmatprep.subr.bf16.mxu0 0
        %3591 = vmatpush1.bf16.msra.mxu0 %v3574
        %3592 = vmatprep.subr.bf16.mxu0 0
        %3593 = vmatpush1.bf16.msra.mxu0 %v3575
        %3594 = vmatprep.subr.bf16.mxu0 0
        %3595 = vmatpush1.bf16.msra.mxu0 %v3576
        %3596 = vmatprep.subr.bf16.mxu0 0
        %3597 = vmatpush1.bf16.msra.mxu0 %v3577
        %3598 = vmatprep.subr.bf16.mxu0 0
        %3599 = vmatpush1.bf16.msra.mxu0 %v3578
        %3600 = vmatprep.subr.bf16.mxu0 0
        %3601 = vmatpush1.bf16.msra.mxu0 %v3579
        %3602 = vmatprep.subr.bf16.mxu0 0
        %3603 = vmatpush1.bf16.msra.mxu0 %v3580
        %3604 = vmatprep.subr.bf16.mxu0 0
        %3605 = vmatpush1.bf16.msra.mxu0 %v3581
        %3606 = vmatprep.subr.bf16.mxu0 0
        %3607 = vmatpush1.bf16.msra.mxu0 0
        %3608 = vmatprep.subr.bf16.mxu0 0
        %3609 = vmatpush1.bf16.msra.mxu0 0
        %3610 = vmatprep.subr.bf16.mxu0 0
        %3611 = vmatpush1.bf16.msra.mxu0 0
        %3612 = vmatprep.subr.bf16.mxu0 0
        %3613 = vmatpush1.bf16.msra.mxu0 0
        %3614 = vmatprep.subr.bf16.mxu0 0
        %3615 = vmatpush1.bf16.msra.mxu0 0
        %3616 = vmatprep.subr.bf16.mxu0 0
        %3617 = vmatpush1.bf16.msra.mxu0 0
        %3618 = vmatprep.subr.bf16.mxu0 0
        %3619 = vmatpush1.bf16.msra.mxu0 0
        %3620 = vmatprep.subr.bf16.mxu0 0
        %3621 = vmatpush1.bf16.msra.mxu0 0
        %3622 = vmatprep.mubr.bf16.mxu0 0
        %3623 = vmatmul.mubr.bf16.gmra.mrb[0].mxu0 %v3458
        %v3624 = vpop.f32.mrb[0].mxu0
        %v3625 = vadd.f32 %v3540, %v3624
        %v3626 = vpop.f32.mrb[0].mxu0
        %v3627 = vpop.f32.mrb[0].mxu0
        %v3628 = vadd.f32 %v3540, %v3627
        %v3629 = vpop.f32.mrb[0].mxu0
        %3630 = vmatprep.mubr.bf16.mxu0 0
        %3631 = vmatmul.mubr.bf16.gmra.mrb[0].mxu0 %v3459
        %v3632 = vpop.f32.mrb[0].mxu0
        %v3633 = vadd.f32 %v3540, %v3632
        %v3634 = vpop.f32.mrb[0].mxu0
        %v3635 = vpop.f32.mrb[0].mxu0
        %v3636 = vadd.f32 %v3540, %v3635
        %v3637 = vpop.f32.mrb[0].mxu0
        %3638 = vdwg.mxu0
        %v3640 = vlaneseq
        %v3641 = vshrl.u32 %v3640, 7
        %v3642 = vsub.s32 0, %v3641
        %v3643 = vrot.slane %v3501, %v3642
        %v3661 = vunpack.c.l.b16 %v3485
        %v3662 = vunpack.c.l.b16 %v3486
        %v3663 = vunpack.c.l.b16 %v3487
        %v3664 = vunpack.c.l.b16 %v3488
        %v3665 = vunpack.c.l.b16 %v3489
        %v3666 = vunpack.c.l.b16 %v3490
        %v3667 = vunpack.c.l.b16 %v3491
        %v3668 = vunpack.c.l.b16 %v3492
        %v3669 = vunpack.c.l.b16 %v3493
        %v3670 = vunpack.c.l.b16 %v3494
        %v3671 = vunpack.c.l.b16 %v3495
        %v3672 = vunpack.c.l.b16 %v3496
        %v3673 = vunpack.c.l.b16 %v3497
        %v3674 = vunpack.c.l.b16 %v3498
        %v3675 = vunpack.c.l.b16 %v3499
        %v3676 = vunpack.c.l.b16 %v3500
        %v3677 = vpack.c.b16 %v3662, %v3661
        %v3678 = vpack.c.b16 %v3664, %v3663
        %v3679 = vpack.c.b16 %v3666, %v3665
        %v3680 = vpack.c.b16 %v3668, %v3667
        %v3681 = vpack.c.b16 %v3670, %v3669
        %v3682 = vpack.c.b16 %v3672, %v3671
        %v3683 = vpack.c.b16 %v3674, %v3673
        %v3684 = vpack.c.b16 %v3676, %v3675
        %3693 = vmatprep.subr.bf16.mxu0 0
        %3694 = vmatpush1.bf16.msra.mxu0 %v3677
        %3695 = vmatprep.subr.bf16.mxu0 0
        %3696 = vmatpush1.bf16.msra.mxu0 %v3678
        %3697 = vmatprep.subr.bf16.mxu0 0
        %3698 = vmatpush1.bf16.msra.mxu0 %v3679
        %3699 = vmatprep.subr.bf16.mxu0 0
        %3700 = vmatpush1.bf16.msra.mxu0 %v3680
        %3701 = vmatprep.subr.bf16.mxu0 0
        %3702 = vmatpush1.bf16.msra.mxu0 %v3681
        %3703 = vmatprep.subr.bf16.mxu0 0
        %3704 = vmatpush1.bf16.msra.mxu0 %v3682
        %3705 = vmatprep.subr.bf16.mxu0 0
        %3706 = vmatpush1.bf16.msra.mxu0 %v3683
        %3707 = vmatprep.subr.bf16.mxu0 0
        %3708 = vmatpush1.bf16.msra.mxu0 %v3684
        %3709 = vmatprep.subr.bf16.mxu0 0
        %3710 = vmatpush1.bf16.msra.mxu0 0
        %3711 = vmatprep.subr.bf16.mxu0 0
        %3712 = vmatpush1.bf16.msra.mxu0 0
        %3713 = vmatprep.subr.bf16.mxu0 0
        %3714 = vmatpush1.bf16.msra.mxu0 0
        %3715 = vmatprep.subr.bf16.mxu0 0
        %3716 = vmatpush1.bf16.msra.mxu0 0
        %3717 = vmatprep.subr.bf16.mxu0 0
        %3718 = vmatpush1.bf16.msra.mxu0 0
        %3719 = vmatprep.subr.bf16.mxu0 0
        %3720 = vmatpush1.bf16.msra.mxu0 0
        %3721 = vmatprep.subr.bf16.mxu0 0
        %3722 = vmatpush1.bf16.msra.mxu0 0
        %3723 = vmatprep.subr.bf16.mxu0 0
        %3724 = vmatpush1.bf16.msra.mxu0 0
        %3725 = vmatprep.mubr.bf16.mxu0 0
        %3726 = vmatmul.mubr.bf16.gmra.mrb[0].mxu0 %v3460
        %v3727 = vpop.f32.mrb[0].mxu0
        %v3728 = vadd.f32 %v3643, %v3727
        %v3729 = vpop.f32.mrb[0].mxu0
        %v3730 = vpop.f32.mrb[0].mxu0
        %v3731 = vadd.f32 %v3643, %v3730
        %v3732 = vpop.f32.mrb[0].mxu0
        %3733 = vmatprep.mubr.bf16.mxu0 0
        %3734 = vmatmul.mubr.bf16.gmra.mrb[0].mxu0 %v3461
        %v3735 = vpop.f32.mrb[0].mxu0
        %v3736 = vadd.f32 %v3643, %v3735
        %v3737 = vpop.f32.mrb[0].mxu0
        %v3738 = vpop.f32.mrb[0].mxu0
        %v3739 = vadd.f32 %v3643, %v3738
        %v3740 = vpop.f32.mrb[0].mxu0
        %3741 = vmatprep.mubr.bf16.mxu0 0
        %3742 = vmatmul.mubr.bf16.gmra.mrb[0].mxu0 %v3462
        %v3743 = vpop.f32.mrb[0].mxu0
        %v3744 = vadd.f32 %v3643, %v3743
        %v3745 = vpop.f32.mrb[0].mxu0
        %v3746 = vpop.f32.mrb[0].mxu0
        %v3747 = vadd.f32 %v3643, %v3746
        %v3748 = vpop.f32.mrb[0].mxu0
        %3749 = vmatprep.mubr.bf16.mxu0 0
        %3750 = vmatmul.mubr.bf16.gmra.mrb[0].mxu0 %v3463
        %v3751 = vpop.f32.mrb[0].mxu0
        %v3752 = vadd.f32 %v3643, %v3751
        %v3753 = vpop.f32.mrb[0].mxu0
        %v3754 = vpop.f32.mrb[0].mxu0
        %v3755 = vadd.f32 %v3643, %v3754
        %v3756 = vpop.f32.mrb[0].mxu0
        %3757 = vdwg.mxu0
        %v3759 = vlaneseq
        %v3760 = vshrl.u32 %v3759, 7
        %v3761 = vsub.s32 0, %v3760
        %v3762 = vrot.slane %v3518, %v3761
        %v3780 = vunpack.c.l.b16 %v3502
        %v3781 = vunpack.c.l.b16 %v3503
        %v3782 = vunpack.c.l.b16 %v3504
        %v3783 = vunpack.c.l.b16 %v3505
        %v3784 = vunpack.c.l.b16 %v3506
        %v3785 = vunpack.c.l.b16 %v3507
        %v3786 = vunpack.c.l.b16 %v3508
        %v3787 = vunpack.c.l.b16 %v3509
        %v3788 = vunpack.c.l.b16 %v3510
        %v3789 = vunpack.c.l.b16 %v3511
        %v3790 = vunpack.c.l.b16 %v3512
        %v3791 = vunpack.c.l.b16 %v3513
        %v3792 = vunpack.c.l.b16 %v3514
        %v3793 = vunpack.c.l.b16 %v3515
        %v3794 = vunpack.c.l.b16 %v3516
        %v3795 = vunpack.c.l.b16 %v3517
        %v3796 = vpack.c.b16 %v3781, %v3780
        %v3797 = vpack.c.b16 %v3783, %v3782
        %v3798 = vpack.c.b16 %v3785, %v3784
        %v3799 = vpack.c.b16 %v3787, %v3786
        %v3800 = vpack.c.b16 %v3789, %v3788
        %v3801 = vpack.c.b16 %v3791, %v3790
        %v3802 = vpack.c.b16 %v3793, %v3792
        %v3803 = vpack.c.b16 %v3795, %v3794
        %3812 = vmatprep.subr.bf16.mxu0 0
        %3813 = vmatpush1.bf16.msra.mxu0 %v3796
        %3814 = vmatprep.subr.bf16.mxu0 0
        %3815 = vmatpush1.bf16.msra.mxu0 %v3797
        %3816 = vmatprep.subr.bf16.mxu0 0
        %3817 = vmatpush1.bf16.msra.mxu0 %v3798
        %3818 = vmatprep.subr.bf16.mxu0 0
        %3819 = vmatpush1.bf16.msra.mxu0 %v3799
        %3820 = vmatprep.subr.bf16.mxu0 0
        %3821 = vmatpush1.bf16.msra.mxu0 %v3800
        %3822 = vmatprep.subr.bf16.mxu0 0
        %3823 = vmatpush1.bf16.msra.mxu0 %v3801
        %3824 = vmatprep.subr.bf16.mxu0 0
        %3825 = vmatpush1.bf16.msra.mxu0 %v3802
        %3826 = vmatprep.subr.bf16.mxu0 0
        %3827 = vmatpush1.bf16.msra.mxu0 %v3803
        %3828 = vmatprep.subr.bf16.mxu0 0
        %3829 = vmatpush1.bf16.msra.mxu0 0
        %3830 = vmatprep.subr.bf16.mxu0 0
        %3831 = vmatpush1.bf16.msra.mxu0 0
        %3832 = vmatprep.subr.bf16.mxu0 0
        %3833 = vmatpush1.bf16.msra.mxu0 0
        %3834 = vmatprep.subr.bf16.mxu0 0
        %3835 = vmatpush1.bf16.msra.mxu0 0
        %3836 = vmatprep.subr.bf16.mxu0 0
        %3837 = vmatpush1.bf16.msra.mxu0 0
        %3838 = vmatprep.subr.bf16.mxu0 0
        %3839 = vmatpush1.bf16.msra.mxu0 0
        %3840 = vmatprep.subr.bf16.mxu0 0
        %3841 = vmatpush1.bf16.msra.mxu0 0
        %3842 = vmatprep.subr.bf16.mxu0 0
        %3843 = vmatpush1.bf16.msra.mxu0 0
        %3844 = vmatprep.mubr.bf16.mxu0 0
        %3845 = vmatmul.mubr.bf16.gmra.mrb[0].mxu0 %v3464
        %v3846 = vpop.f32.mrb[0].mxu0
        %v3847 = vadd.f32 %v3762, %v3846
        %v3848 = vpop.f32.mrb[0].mxu0
        %v3849 = vpop.f32.mrb[0].mxu0
        %v3850 = vadd.f32 %v3762, %v3849
        %v3851 = vpop.f32.mrb[0].mxu0
        %3852 = vmatprep.mubr.bf16.mxu0 0
        %3853 = vmatmul.mubr.bf16.gmra.mrb[0].mxu0 %v3465
        %v3854 = vpop.f32.mrb[0].mxu0
        %v3855 = vadd.f32 %v3762, %v3854
        %v3856 = vpop.f32.mrb[0].mxu0
        %v3857 = vpop.f32.mrb[0].mxu0
        %v3858 = vadd.f32 %v3762, %v3857
        %v3859 = vpop.f32.mrb[0].mxu0
        %3860 = vmatprep.mubr.bf16.mxu0 0
        %3861 = vmatmul.mubr.bf16.gmra.mrb[0].mxu0 %v3466
        %v3862 = vpop.f32.mrb[0].mxu0
        %v3863 = vadd.f32 %v3762, %v3862
        %v3864 = vpop.f32.mrb[0].mxu0
        %v3865 = vpop.f32.mrb[0].mxu0
        %v3866 = vadd.f32 %v3762, %v3865
        %v3867 = vpop.f32.mrb[0].mxu0
        %3868 = vmatprep.mubr.bf16.mxu0 0
        %3869 = vmatmul.mubr.bf16.gmra.mrb[0].mxu0 %v3467
        %v3870 = vpop.f32.mrb[0].mxu0
        %v3871 = vadd.f32 %v3762, %v3870
        %v3872 = vpop.f32.mrb[0].mxu0
        %v3873 = vpop.f32.mrb[0].mxu0
        %v3874 = vadd.f32 %v3762, %v3873
        %v3875 = vpop.f32.mrb[0].mxu0
        %3876 = vdwg.mxu0
        %v3877 = vpack.c.bf16 %v3628, %v3625
        %v3878 = vpack.c.bf16 %v3636, %v3633
        %v3879 = vpack.c.bf16 %v3731, %v3728
        %v3880 = vpack.c.bf16 %v3739, %v3736
        %v3881 = vpack.c.bf16 %v3747, %v3744
        %v3882 = vpack.c.bf16 %v3755, %v3752
        %v3883 = vpack.c.bf16 %v3850, %v3847
        %v3884 = vpack.c.bf16 %v3858, %v3855
        %v3885 = vpack.c.bf16 %v3866, %v3863
        %v3886 = vpack.c.bf16 %v3874, %v3871
        %v3888 = vsel %vm2127, %v3877, 0
        %v3891 = vsel %vm2127, %v3879, 0
        %v3894 = vsel %vm2127, %v3880, 0
        %3896 = vmatprep.subr.bf16.mxu0 0
        %3897 = vmatpush1.bf16.xpose.msra.mxu0 %v3891
        %3898 = vmatprep.subr.bf16.mxu0 0
        %3899 = vmatpush1.bf16.xpose.msra.mxu0 %v3894
        %3900 = vmatprep.subr.bf16.mxu0 0
        %3901 = vmatpush1.bf16.xpose.msra.mxu0 0
        %3902 = vmatprep.subr.bf16.mxu0 0
        %3903 = vmatpush1.bf16.xpose.msra.mxu0 0
        %3904 = vmatprep.subr.bf16.mxu0 0
        %3905 = vmatpush1.bf16.xpose.msra.mxu0 0
        %3906 = vmatprep.subr.bf16.mxu0 0
        %3907 = vmatpush1.bf16.xpose.msra.mxu0 0
        %3908 = vmatprep.subr.bf16.mxu0 0
        %3909 = vmatpush1.bf16.xpose.msra.mxu0 0
        %3910 = vmatprep.subr.bf16.mxu0 0
        %3911 = vmatpush1.bf16.xpose.msra.mxu0 0
        %3912 = vmatprep.subr.bf16.mxu0 0
        %3913 = vmatpush1.bf16.xpose.msra.mxu0 0
        %3914 = vmatprep.subr.bf16.mxu0 0
        %3915 = vmatpush1.bf16.xpose.msra.mxu0 0
        %3916 = vmatprep.subr.bf16.mxu0 0
        %3917 = vmatpush1.bf16.xpose.msra.mxu0 0
        %3918 = vmatprep.subr.bf16.mxu0 0
        %3919 = vmatpush1.bf16.xpose.msra.mxu0 0
        %3920 = vmatprep.subr.bf16.mxu0 0
        %3921 = vmatpush1.bf16.xpose.msra.mxu0 0
        %3922 = vmatprep.subr.bf16.mxu0 0
        %3923 = vmatpush1.bf16.xpose.msra.mxu0 0
        %3924 = vmatprep.subr.bf16.mxu0 0
        %3925 = vmatpush1.bf16.xpose.msra.mxu0 0
        %3926 = vmatprep.subr.bf16.mxu0 0
        %3927 = vmatpush1.bf16.xpose.msra.mxu0 0
        %3928 = vmatprep.mubr.bf16.mxu0 0
        %3929 = vmatmul.mubr.bf16.gmra.mrb[0].mxu0 %v3888
        %v3930 = vpop.f32.mrb[0].mxu0
        %v3931 = vadd.f32 0.0, %v3930
        %v3932 = vpop.f32.mrb[0].mxu0
        %v3933 = vpop.f32.mrb[0].mxu0
        %v3934 = vadd.f32 0.0, %v3933
        %v3935 = vpop.f32.mrb[0].mxu0
        %3936 = vdwg.mxu0
        %v3938 = vsel %vm2127, %v3878, 0
        %v3941 = vsel %vm2127, %v3881, 0
        %v3944 = vsel %vm2127, %v3882, 0
        %3946 = vmatprep.subr.bf16.mxu0 0
        %3947 = vmatpush1.bf16.xpose.msra.mxu0 %v3941
        %3948 = vmatprep.subr.bf16.mxu0 0
        %3949 = vmatpush1.bf16.xpose.msra.mxu0 %v3944
        %3950 = vmatprep.subr.bf16.mxu0 0
        %3951 = vmatpush1.bf16.xpose.msra.mxu0 0
        %3952 = vmatprep.subr.bf16.mxu0 0
        %3953 = vmatpush1.bf16.xpose.msra.mxu0 0
        %3954 = vmatprep.subr.bf16.mxu0 0
        %3955 = vmatpush1.bf16.xpose.msra.mxu0 0
        %3956 = vmatprep.subr.bf16.mxu0 0
        %3957 = vmatpush1.bf16.xpose.msra.mxu0 0
        %3958 = vmatprep.subr.bf16.mxu0 0
        %3959 = vmatpush1.bf16.xpose.msra.mxu0 0
        %3960 = vmatprep.subr.bf16.mxu0 0
        %3961 = vmatpush1.bf16.xpose.msra.mxu0 0
        %3962 = vmatprep.subr.bf16.mxu0 0
        %3963 = vmatpush1.bf16.xpose.msra.mxu0 0
        %3964 = vmatprep.subr.bf16.mxu0 0
        %3965 = vmatpush1.bf16.xpose.msra.mxu0 0
        %3966 = vmatprep.subr.bf16.mxu0 0
        %3967 = vmatpush1.bf16.xpose.msra.mxu0 0
        %3968 = vmatprep.subr.bf16.mxu0 0
        %3969 = vmatpush1.bf16.xpose.msra.mxu0 0
        %3970 = vmatprep.subr.bf16.mxu0 0
        %3971 = vmatpush1.bf16.xpose.msra.mxu0 0
        %3972 = vmatprep.subr.bf16.mxu0 0
        %3973 = vmatpush1.bf16.xpose.msra.mxu0 0
        %3974 = vmatprep.subr.bf16.mxu0 0
        %3975 = vmatpush1.bf16.xpose.msra.mxu0 0
        %3976 = vmatprep.subr.bf16.mxu0 0
        %3977 = vmatpush1.bf16.xpose.msra.mxu0 0
        %3978 = vmatprep.mubr.bf16.mxu0 0
        %3979 = vmatmul.mubr.bf16.gmra.mrb[0].mxu0 %v3938
        %v3980 = vpop.f32.mrb[0].mxu0
        %v3981 = vadd.f32 0.0, %v3980
        %v3982 = vpop.f32.mrb[0].mxu0
        %v3983 = vpop.f32.mrb[0].mxu0
        %v3984 = vadd.f32 0.0, %v3983
        %v3985 = vpop.f32.mrb[0].mxu0
        %3986 = vdwg.mxu0
        %v3987 = vsel %vm2127, %v3931, -inf
        %3988 = vmax.xlane.f32.xlu0 %v3987
        %v3989 = vpop.xlane.xlu0 %3988
        %v3990 = vsel %vm2127, %v3934, -inf
        %3991 = vmax.xlane.f32.xlu0 %v3990
        %v3992 = vpop.xlane.xlu0 %3991
        %v3993 = vsel %vm2127, %v3981, -inf
        %3994 = vmax.xlane.f32.xlu0 %v3993
        %v3995 = vpop.xlane.xlu0 %3994
        %v3996 = vsel %vm2127, %v3984, -inf
        %3997 = vmax.xlane.f32.xlu0 %v3996
        %v3998 = vpop.xlane.xlu0 %3997
        %v3999 = vsub.f32 %v3931, %v3989
        %v4000 = vsub.f32 %v3934, %v3992
        %v4001 = vsub.f32 %v3981, %v3995
        %v4002 = vsub.f32 %v3984, %v3998
        %v4003 = vmul.f32 %v3999, 1.442695
        %v4004 = vpow.pop %v4003
        %v4005 = vmul.f32 %v4000, 1.442695
        %v4006 = vpow.pop %v4005
        %v4007 = vmul.f32 %v4001, 1.442695
        %v4008 = vpow.pop %v4007
        %v4009 = vmul.f32 %v4002, 1.442695
        %v4010 = vpow.pop %v4009
        %v4011 = vsel %vm2127, %v4004, 0.0
        %4012 = vadd.xlane.f32.xlu0 %v4011
        %v4013 = vpop.xlane.xlu0 %4012
        %v4014 = vsel %vm2127, %v4006, 0.0
        %4015 = vadd.xlane.f32.xlu0 %v4014
        %v4016 = vpop.xlane.xlu0 %4015
        %v4017 = vsel %vm2127, %v4008, 0.0
        %4018 = vadd.xlane.f32.xlu0 %v4017
        %v4019 = vpop.xlane.xlu0 %4018
        %v4020 = vsel %vm2127, %v4010, 0.0
        %4021 = vadd.xlane.f32.xlu0 %v4020
        %v4022 = vpop.xlane.xlu0 %4021
        %v4023 = vrcp.pop %v4013
        %v4024 = vrcp.pop %v4016
        %v4025 = vrcp.pop %v4019
        %v4026 = vrcp.pop %v4022
        %v4027 = vmul.f32 %v4004, %v4023
        %v4028 = vmul.f32 %v4006, %v4024
        %v4029 = vmul.f32 %v4008, %v4025
        %v4030 = vmul.f32 %v4010, %v4026
        %v4031 = vpack.c.bf16 %v4028, %v4027
        %v4032 = vpack.c.bf16 %v4030, %v4029
        %v4034 = vsel %vm2127, %v4031, 0
        %4036 = vmatprep.subr.bf16.mxu0 0
        %4037 = vmatpush1.bf16.msra.mxu0 %v3883
        %4038 = vmatprep.subr.bf16.mxu0 0
        %4039 = vmatpush1.bf16.msra.mxu0 %v3884
        %4040 = vmatprep.subr.bf16.mxu0 0
        %4041 = vmatpush1.bf16.msra.mxu0 0
        %4042 = vmatprep.subr.bf16.mxu0 0
        %4043 = vmatpush1.bf16.msra.mxu0 0
        %4044 = vmatprep.subr.bf16.mxu0 0
        %4045 = vmatpush1.bf16.msra.mxu0 0
        %4046 = vmatprep.subr.bf16.mxu0 0
        %4047 = vmatpush1.bf16.msra.mxu0 0
        %4048 = vmatprep.subr.bf16.mxu0 0
        %4049 = vmatpush1.bf16.msra.mxu0 0
        %4050 = vmatprep.subr.bf16.mxu0 0
        %4051 = vmatpush1.bf16.msra.mxu0 0
        %4052 = vmatprep.subr.bf16.mxu0 0
        %4053 = vmatpush1.bf16.msra.mxu0 0
        %4054 = vmatprep.subr.bf16.mxu0 0
        %4055 = vmatpush1.bf16.msra.mxu0 0
        %4056 = vmatprep.subr.bf16.mxu0 0
        %4057 = vmatpush1.bf16.msra.mxu0 0
        %4058 = vmatprep.subr.bf16.mxu0 0
        %4059 = vmatpush1.bf16.msra.mxu0 0
        %4060 = vmatprep.subr.bf16.mxu0 0
        %4061 = vmatpush1.bf16.msra.mxu0 0
        %4062 = vmatprep.subr.bf16.mxu0 0
        %4063 = vmatpush1.bf16.msra.mxu0 0
        %4064 = vmatprep.subr.bf16.mxu0 0
        %4065 = vmatpush1.bf16.msra.mxu0 0
        %4066 = vmatprep.subr.bf16.mxu0 0
        %4067 = vmatpush1.bf16.msra.mxu0 0
        %4068 = vmatprep.mubr.bf16.mxu0 0
        %4069 = vmatmul.mubr.bf16.gmra.mrb[0].mxu0 %v4034
        %v4070 = vpop.f32.mrb[0].mxu0
        %v4071 = vadd.f32 0.0, %v4070
        %v4072 = vpop.f32.mrb[0].mxu0
        %v4073 = vpop.f32.mrb[0].mxu0
        %v4074 = vadd.f32 0.0, %v4073
        %v4075 = vpop.f32.mrb[0].mxu0
        %4076 = vdwg.mxu0
        %v4078 = vsel %vm2127, %v4032, 0
        %4080 = vmatprep.subr.bf16.mxu0 0
        %4081 = vmatpush1.bf16.msra.mxu0 %v3885
        %4082 = vmatprep.subr.bf16.mxu0 0
        %4083 = vmatpush1.bf16.msra.mxu0 %v3886
        %4084 = vmatprep.subr.bf16.mxu0 0
        %4085 = vmatpush1.bf16.msra.mxu0 0
        %4086 = vmatprep.subr.bf16.mxu0 0
        %4087 = vmatpush1.bf16.msra.mxu0 0
        %4088 = vmatprep.subr.bf16.mxu0 0
        %4089 = vmatpush1.bf16.msra.mxu0 0
        %4090 = vmatprep.subr.bf16.mxu0 0
        %4091 = vmatpush1.bf16.msra.mxu0 0
        %4092 = vmatprep.subr.bf16.mxu0 0
        %4093 = vmatpush1.bf16.msra.mxu0 0
        %4094 = vmatprep.subr.bf16.mxu0 0
        %4095 = vmatpush1.bf16.msra.mxu0 0
        %4096 = vmatprep.subr.bf16.mxu0 0
        %4097 = vmatpush1.bf16.msra.mxu0 0
        %4098 = vmatprep.subr.bf16.mxu0 0
        %4099 = vmatpush1.bf16.msra.mxu0 0
        %4100 = vmatprep.subr.bf16.mxu0 0
        %4101 = vmatpush1.bf16.msra.mxu0 0
        %4102 = vmatprep.subr.bf16.mxu0 0
        %4103 = vmatpush1.bf16.msra.mxu0 0
        %4104 = vmatprep.subr.bf16.mxu0 0
        %4105 = vmatpush1.bf16.msra.mxu0 0
        %4106 = vmatprep.subr.bf16.mxu0 0
        %4107 = vmatpush1.bf16.msra.mxu0 0
        %4108 = vmatprep.subr.bf16.mxu0 0
        %4109 = vmatpush1.bf16.msra.mxu0 0
        %4110 = vmatprep.subr.bf16.mxu0 0
        %4111 = vmatpush1.bf16.msra.mxu0 0
        %4112 = vmatprep.mubr.bf16.mxu0 0
        %4113 = vmatmul.mubr.bf16.gmra.mrb[0].mxu0 %v4078
        %v4114 = vpop.f32.mrb[0].mxu0
        %v4115 = vadd.f32 0.0, %v4114
        %v4116 = vpop.f32.mrb[0].mxu0
        %v4117 = vpop.f32.mrb[0].mxu0
        %v4118 = vadd.f32 0.0, %v4117
        %v4119 = vpop.f32.mrb[0].mxu0
        %4120 = vdwg.mxu0
        %v4121 = vpack.c.bf16 %v4074, %v4071
        %v4122 = vpack.c.bf16 %v4118, %v4115
        %4124 = vrot.lane.b32.xlu0 %v3877, 96
        %v4125 = vpop.permute.xlu0 %4124
        %4128 = vrot.lane.b32.xlu0 %v3879, 96
        %v4129 = vpop.permute.xlu0 %4128
        %4130 = vrot.lane.b32.xlu0 %v3880, 96
        %v4131 = vpop.permute.xlu0 %4130
        %v4133 = vsel %vm2127, %v4125, 0
        %v4136 = vsel %vm2127, %v4129, 0
        %v4139 = vsel %vm2127, %v4131, 0
        %4141 = vmatprep.subr.bf16.mxu0 0
        %4142 = vmatpush1.bf16.xpose.msra.mxu0 %v4136
        %4143 = vmatprep.subr.bf16.mxu0 0
        %4144 = vmatpush1.bf16.xpose.msra.mxu0 %v4139
        %4145 = vmatprep.subr.bf16.mxu0 0
        %4146 = vmatpush1.bf16.xpose.msra.mxu0 0
        %4147 = vmatprep.subr.bf16.mxu0 0
        %4148 = vmatpush1.bf16.xpose.msra.mxu0 0
        %4149 = vmatprep.subr.bf16.mxu0 0
        %4150 = vmatpush1.bf16.xpose.msra.mxu0 0
        %4151 = vmatprep.subr.bf16.mxu0 0
        %4152 = vmatpush1.bf16.xpose.msra.mxu0 0
        %4153 = vmatprep.subr.bf16.mxu0 0
        %4154 = vmatpush1.bf16.xpose.msra.mxu0 0
        %4155 = vmatprep.subr.bf16.mxu0 0
        %4156 = vmatpush1.bf16.xpose.msra.mxu0 0
        %4157 = vmatprep.subr.bf16.mxu0 0
        %4158 = vmatpush1.bf16.xpose.msra.mxu0 0
        %4159 = vmatprep.subr.bf16.mxu0 0
        %4160 = vmatpush1.bf16.xpose.msra.mxu0 0
        %4161 = vmatprep.subr.bf16.mxu0 0
        %4162 = vmatpush1.bf16.xpose.msra.mxu0 0
        %4163 = vmatprep.subr.bf16.mxu0 0
        %4164 = vmatpush1.bf16.xpose.msra.mxu0 0
        %4165 = vmatprep.subr.bf16.mxu0 0
        %4166 = vmatpush1.bf16.xpose.msra.mxu0 0
        %4167 = vmatprep.subr.bf16.mxu0 0
        %4168 = vmatpush1.bf16.xpose.msra.mxu0 0
        %4169 = vmatprep.subr.bf16.mxu0 0
        %4170 = vmatpush1.bf16.xpose.msra.mxu0 0
        %4171 = vmatprep.subr.bf16.mxu0 0
        %4172 = vmatpush1.bf16.xpose.msra.mxu0 0
        %4173 = vmatprep.mubr.bf16.mxu0 0
        %4174 = vmatmul.mubr.bf16.gmra.mrb[0].mxu0 %v4133
        %v4175 = vpop.f32.mrb[0].mxu0
        %v4176 = vadd.f32 0.0, %v4175
        %v4177 = vpop.f32.mrb[0].mxu0
        %v4178 = vpop.f32.mrb[0].mxu0
        %v4179 = vadd.f32 0.0, %v4178
        %v4180 = vpop.f32.mrb[0].mxu0
        %4181 = vdwg.mxu0
        %4183 = vrot.lane.b32.xlu0 %v3878, 96
        %v4184 = vpop.permute.xlu0 %4183
        %4187 = vrot.lane.b32.xlu0 %v3881, 96
        %v4188 = vpop.permute.xlu0 %4187
        %4189 = vrot.lane.b32.xlu0 %v3882, 96
        %v4190 = vpop.permute.xlu0 %4189
        %v4192 = vsel %vm2127, %v4184, 0
        %v4195 = vsel %vm2127, %v4188, 0
        %v4198 = vsel %vm2127, %v4190, 0
        %4200 = vmatprep.subr.bf16.mxu0 0
        %4201 = vmatpush1.bf16.xpose.msra.mxu0 %v4195
        %4202 = vmatprep.subr.bf16.mxu0 0
        %4203 = vmatpush1.bf16.xpose.msra.mxu0 %v4198
        %4204 = vmatprep.subr.bf16.mxu0 0
        %4205 = vmatpush1.bf16.xpose.msra.mxu0 0
        %4206 = vmatprep.subr.bf16.mxu0 0
        %4207 = vmatpush1.bf16.xpose.msra.mxu0 0
        %4208 = vmatprep.subr.bf16.mxu0 0
        %4209 = vmatpush1.bf16.xpose.msra.mxu0 0
        %4210 = vmatprep.subr.bf16.mxu0 0
        %4211 = vmatpush1.bf16.xpose.msra.mxu0 0
        %4212 = vmatprep.subr.bf16.mxu0 0
        %4213 = vmatpush1.bf16.xpose.msra.mxu0 0
        %4214 = vmatprep.subr.bf16.mxu0 0
        %4215 = vmatpush1.bf16.xpose.msra.mxu0 0
        %4216 = vmatprep.subr.bf16.mxu0 0
        %4217 = vmatpush1.bf16.xpose.msra.mxu0 0
        %4218 = vmatprep.subr.bf16.mxu0 0
        %4219 = vmatpush1.bf16.xpose.msra.mxu0 0
        %4220 = vmatprep.subr.bf16.mxu0 0
        %4221 = vmatpush1.bf16.xpose.msra.mxu0 0
        %4222 = vmatprep.subr.bf16.mxu0 0
        %4223 = vmatpush1.bf16.xpose.msra.mxu0 0
        %4224 = vmatprep.subr.bf16.mxu0 0
        %4225 = vmatpush1.bf16.xpose.msra.mxu0 0
        %4226 = vmatprep.subr.bf16.mxu0 0
        %4227 = vmatpush1.bf16.xpose.msra.mxu0 0
        %4228 = vmatprep.subr.bf16.mxu0 0
        %4229 = vmatpush1.bf16.xpose.msra.mxu0 0
        %4230 = vmatprep.subr.bf16.mxu0 0
        %4231 = vmatpush1.bf16.xpose.msra.mxu0 0
        %4232 = vmatprep.mubr.bf16.mxu0 0
        %4233 = vmatmul.mubr.bf16.gmra.mrb[0].mxu0 %v4192
        %v4234 = vpop.f32.mrb[0].mxu0
        %v4235 = vadd.f32 0.0, %v4234
        %v4236 = vpop.f32.mrb[0].mxu0
        %v4237 = vpop.f32.mrb[0].mxu0
        %v4238 = vadd.f32 0.0, %v4237
        %v4239 = vpop.f32.mrb[0].mxu0
        %4240 = vdwg.mxu0
        %v4241 = vsel %vm2127, %v4176, -inf
        %4242 = vmax.xlane.f32.xlu0 %v4241
        %v4243 = vpop.xlane.xlu0 %4242
        %v4244 = vsel %vm2127, %v4179, -inf
        %4245 = vmax.xlane.f32.xlu0 %v4244
        %v4246 = vpop.xlane.xlu0 %4245
        %v4247 = vsel %vm2127, %v4235, -inf
        %4248 = vmax.xlane.f32.xlu0 %v4247
        %v4249 = vpop.xlane.xlu0 %4248
        %v4250 = vsel %vm2127, %v4238, -inf
        %4251 = vmax.xlane.f32.xlu0 %v4250
        %v4252 = vpop.xlane.xlu0 %4251
        %v4253 = vsub.f32 %v4176, %v4243
        %v4254 = vsub.f32 %v4179, %v4246
        %v4255 = vsub.f32 %v4235, %v4249
        %v4256 = vsub.f32 %v4238, %v4252
        %v4257 = vmul.f32 %v4253, 1.442695
        %v4258 = vpow.pop %v4257
        %v4259 = vmul.f32 %v4254, 1.442695
        %v4260 = vpow.pop %v4259
        %v4261 = vmul.f32 %v4255, 1.442695
        %v4262 = vpow.pop %v4261
        %v4263 = vmul.f32 %v4256, 1.442695
        %v4264 = vpow.pop %v4263
        %v4265 = vsel %vm2127, %v4258, 0.0
        %4266 = vadd.xlane.f32.xlu0 %v4265
        %v4267 = vpop.xlane.xlu0 %4266
        %v4268 = vsel %vm2127, %v4260, 0.0
        %4269 = vadd.xlane.f32.xlu0 %v4268
        %v4270 = vpop.xlane.xlu0 %4269
        %v4271 = vsel %vm2127, %v4262, 0.0
        %4272 = vadd.xlane.f32.xlu0 %v4271
        %v4273 = vpop.xlane.xlu0 %4272
        %v4274 = vsel %vm2127, %v4264, 0.0
        %4275 = vadd.xlane.f32.xlu0 %v4274
        %v4276 = vpop.xlane.xlu0 %4275
        %v4277 = vrcp.pop %v4267
        %v4278 = vrcp.pop %v4270
        %v4279 = vrcp.pop %v4273
        %v4280 = vrcp.pop %v4276
        %v4281 = vmul.f32 %v4258, %v4277
        %v4282 = vmul.f32 %v4260, %v4278
        %v4283 = vmul.f32 %v4262, %v4279
        %v4284 = vmul.f32 %v4264, %v4280
        %v4285 = vpack.c.bf16 %v4282, %v4281
        %v4286 = vpack.c.bf16 %v4284, %v4283
        %4289 = vrot.lane.b32.xlu0 %v3883, 96
        %v4290 = vpop.permute.xlu0 %4289
        %4291 = vrot.lane.b32.xlu0 %v3884, 96
        %v4292 = vpop.permute.xlu0 %4291
        %v4296 = vsel %vm2127, %v4285, 0
        %4298 = vmatprep.subr.bf16.mxu0 0
        %4299 = vmatpush1.bf16.msra.mxu0 %v4290
        %4300 = vmatprep.subr.bf16.mxu0 0
        %4301 = vmatpush1.bf16.msra.mxu0 %v4292
        %4302 = vmatprep.subr.bf16.mxu0 0
        %4303 = vmatpush1.bf16.msra.mxu0 0
        %4304 = vmatprep.subr.bf16.mxu0 0
        %4305 = vmatpush1.bf16.msra.mxu0 0
        %4306 = vmatprep.subr.bf16.mxu0 0
        %4307 = vmatpush1.bf16.msra.mxu0 0
        %4308 = vmatprep.subr.bf16.mxu0 0
        %4309 = vmatpush1.bf16.msra.mxu0 0
        %4310 = vmatprep.subr.bf16.mxu0 0
        %4311 = vmatpush1.bf16.msra.mxu0 0
        %4312 = vmatprep.subr.bf16.mxu0 0
        %4313 = vmatpush1.bf16.msra.mxu0 0
        %4314 = vmatprep.subr.bf16.mxu0 0
        %4315 = vmatpush1.bf16.msra.mxu0 0
        %4316 = vmatprep.subr.bf16.mxu0 0
        %4317 = vmatpush1.bf16.msra.mxu0 0
        %4318 = vmatprep.subr.bf16.mxu0 0
        %4319 = vmatpush1.bf16.msra.mxu0 0
        %4320 = vmatprep.subr.bf16.mxu0 0
        %4321 = vmatpush1.bf16.msra.mxu0 0
        %4322 = vmatprep.subr.bf16.mxu0 0
        %4323 = vmatpush1.bf16.msra.mxu0 0
        %4324 = vmatprep.subr.bf16.mxu0 0
        %4325 = vmatpush1.bf16.msra.mxu0 0
        %4326 = vmatprep.subr.bf16.mxu0 0
        %4327 = vmatpush1.bf16.msra.mxu0 0
        %4328 = vmatprep.subr.bf16.mxu0 0
        %4329 = vmatpush1.bf16.msra.mxu0 0
        %4330 = vmatprep.mubr.bf16.mxu0 0
        %4331 = vmatmul.mubr.bf16.gmra.mrb[0].mxu0 %v4296
        %v4332 = vpop.f32.mrb[0].mxu0
        %v4333 = vadd.f32 0.0, %v4332
        %v4334 = vpop.f32.mrb[0].mxu0
        %v4335 = vpop.f32.mrb[0].mxu0
        %v4336 = vadd.f32 0.0, %v4335
        %v4337 = vpop.f32.mrb[0].mxu0
        %4338 = vdwg.mxu0
        %4341 = vrot.lane.b32.xlu0 %v3885, 96
        %v4342 = vpop.permute.xlu0 %4341
        %4343 = vrot.lane.b32.xlu0 %v3886, 96
        %v4344 = vpop.permute.xlu0 %4343
        %v4348 = vsel %vm2127, %v4286, 0
        %4350 = vmatprep.subr.bf16.mxu0 0
        %4351 = vmatpush1.bf16.msra.mxu0 %v4342
        %4352 = vmatprep.subr.bf16.mxu0 0
        %4353 = vmatpush1.bf16.msra.mxu0 %v4344
        %4354 = vmatprep.subr.bf16.mxu0 0
        %4355 = vmatpush1.bf16.msra.mxu0 0
        %4356 = vmatprep.subr.bf16.mxu0 0
        %4357 = vmatpush1.bf16.msra.mxu0 0
        %4358 = vmatprep.subr.bf16.mxu0 0
        %4359 = vmatpush1.bf16.msra.mxu0 0
        %4360 = vmatprep.subr.bf16.mxu0 0
        %4361 = vmatpush1.bf16.msra.mxu0 0
        %4362 = vmatprep.subr.bf16.mxu0 0
        %4363 = vmatpush1.bf16.msra.mxu0 0
        %4364 = vmatprep.subr.bf16.mxu0 0
        %4365 = vmatpush1.bf16.msra.mxu0 0
        %4366 = vmatprep.subr.bf16.mxu0 0
        %4367 = vmatpush1.bf16.msra.mxu0 0
        %4368 = vmatprep.subr.bf16.mxu0 0
        %4369 = vmatpush1.bf16.msra.mxu0 0
        %4370 = vmatprep.subr.bf16.mxu0 0
        %4371 = vmatpush1.bf16.msra.mxu0 0
        %4372 = vmatprep.subr.bf16.mxu0 0
        %4373 = vmatpush1.bf16.msra.mxu0 0
        %4374 = vmatprep.subr.bf16.mxu0 0
        %4375 = vmatpush1.bf16.msra.mxu0 0
        %4376 = vmatprep.subr.bf16.mxu0 0
        %4377 = vmatpush1.bf16.msra.mxu0 0
        %4378 = vmatprep.subr.bf16.mxu0 0
        %4379 = vmatpush1.bf16.msra.mxu0 0
        %4380 = vmatprep.subr.bf16.mxu0 0
        %4381 = vmatpush1.bf16.msra.mxu0 0
        %4382 = vmatprep.mubr.bf16.mxu0 0
        %4383 = vmatmul.mubr.bf16.gmra.mrb[0].mxu0 %v4348
        %v4384 = vpop.f32.mrb[0].mxu0
        %v4385 = vadd.f32 0.0, %v4384
        %v4386 = vpop.f32.mrb[0].mxu0
        %v4387 = vpop.f32.mrb[0].mxu0
        %v4388 = vadd.f32 0.0, %v4387
        %v4389 = vpop.f32.mrb[0].mxu0
        %4390 = vdwg.mxu0
        %v4391 = vpack.c.bf16 %v4336, %v4333
        %v4392 = vpack.c.bf16 %v4388, %v4385
        %v4397 = vunpack.c.l.b16 %v3523
        %v4398 = vunpack.c.l.b16 %v3524
        %v4399 = vunpack.c.l.b16 %v3525
        %v4400 = vunpack.c.l.b16 %v3526
        %v4401 = vpack.c.b16 %v4398, %v4397
        %v4402 = vpack.c.b16 %v4400, %v4399
        %v4406 = vsel %vm2127, %v4391, 0
        %v4409 = vsel %vm2127, %v4392, 0
        %4411 = vmatprep.subr.bf16.mxu0 0
        %4412 = vmatpush1.bf16.msra.mxu0 %v4401
        %4413 = vmatprep.subr.bf16.mxu0 0
        %4414 = vmatpush1.bf16.msra.mxu0 %v4402
        %4415 = vmatprep.subr.bf16.mxu0 0
        %4416 = vmatpush1.bf16.msra.mxu0 0
        %4417 = vmatprep.subr.bf16.mxu0 0
        %4418 = vmatpush1.bf16.msra.mxu0 0
        %4419 = vmatprep.subr.bf16.mxu0 0
        %4420 = vmatpush1.bf16.msra.mxu0 0
        %4421 = vmatprep.subr.bf16.mxu0 0
        %4422 = vmatpush1.bf16.msra.mxu0 0
        %4423 = vmatprep.subr.bf16.mxu0 0
        %4424 = vmatpush1.bf16.msra.mxu0 0
        %4425 = vmatprep.subr.bf16.mxu0 0
        %4426 = vmatpush1.bf16.msra.mxu0 0
        %4427 = vmatprep.subr.bf16.mxu0 0
        %4428 = vmatpush1.bf16.msra.mxu0 0
        %4429 = vmatprep.subr.bf16.mxu0 0
        %4430 = vmatpush1.bf16.msra.mxu0 0
        %4431 = vmatprep.subr.bf16.mxu0 0
        %4432 = vmatpush1.bf16.msra.mxu0 0
        %4433 = vmatprep.subr.bf16.mxu0 0
        %4434 = vmatpush1.bf16.msra.mxu0 0
        %4435 = vmatprep.subr.bf16.mxu0 0
        %4436 = vmatpush1.bf16.msra.mxu0 0
        %4437 = vmatprep.subr.bf16.mxu0 0
        %4438 = vmatpush1.bf16.msra.mxu0 0
        %4439 = vmatprep.subr.bf16.mxu0 0
        %4440 = vmatpush1.bf16.msra.mxu0 0
        %4441 = vmatprep.subr.bf16.mxu0 0
        %4442 = vmatpush1.bf16.msra.mxu0 0
        %4443 = vmatprep.mubr.bf16.mxu0 0
        %4444 = vmatmul.mubr.bf16.gmra.mrb[0].mxu0 %v4406
        %v4445 = vpop.f32.mrb[0].mxu0
        %v4446 = vadd.f32 0.0, %v4445
        %v4447 = vpop.f32.mrb[0].mxu0
        %v4448 = vpop.f32.mrb[0].mxu0
        %v4449 = vadd.f32 0.0, %v4448
        %v4450 = vpop.f32.mrb[0].mxu0
        %4451 = vmatprep.mubr.bf16.mxu0 0
        %4452 = vmatmul.mubr.bf16.gmra.mrb[0].mxu0 %v4409
        %v4453 = vpop.f32.mrb[0].mxu0
        %v4454 = vadd.f32 0.0, %v4453
        %v4455 = vpop.f32.mrb[0].mxu0
        %v4456 = vpop.f32.mrb[0].mxu0
        %v4457 = vadd.f32 0.0, %v4456
        %v4458 = vpop.f32.mrb[0].mxu0
        %4459 = vdwg.mxu0
        %v4464 = vunpack.c.l.b16 %v3519
        %v4465 = vunpack.c.l.b16 %v3520
        %v4466 = vunpack.c.l.b16 %v3521
        %v4467 = vunpack.c.l.b16 %v3522
        %v4468 = vpack.c.b16 %v4465, %v4464
        %v4469 = vpack.c.b16 %v4467, %v4466
        %v4473 = vsel %vm2127, %v4121, 0
        %v4476 = vsel %vm2127, %v4122, 0
        %4478 = vmatprep.subr.bf16.mxu0 0
        %4479 = vmatpush1.bf16.msra.mxu0 %v4468
        %4480 = vmatprep.subr.bf16.mxu0 0
        %4481 = vmatpush1.bf16.msra.mxu0 %v4469
        %4482 = vmatprep.subr.bf16.mxu0 0
        %4483 = vmatpush1.bf16.msra.mxu0 0
        %4484 = vmatprep.subr.bf16.mxu0 0
        %4485 = vmatpush1.bf16.msra.mxu0 0
        %4486 = vmatprep.subr.bf16.mxu0 0
        %4487 = vmatpush1.bf16.msra.mxu0 0
        %4488 = vmatprep.subr.bf16.mxu0 0
        %4489 = vmatpush1.bf16.msra.mxu0 0
        %4490 = vmatprep.subr.bf16.mxu0 0
        %4491 = vmatpush1.bf16.msra.mxu0 0
        %4492 = vmatprep.subr.bf16.mxu0 0
        %4493 = vmatpush1.bf16.msra.mxu0 0
        %4494 = vmatprep.subr.bf16.mxu0 0
        %4495 = vmatpush1.bf16.msra.mxu0 0
        %4496 = vmatprep.subr.bf16.mxu0 0
        %4497 = vmatpush1.bf16.msra.mxu0 0
        %4498 = vmatprep.subr.bf16.mxu0 0
        %4499 = vmatpush1.bf16.msra.mxu0 0
        %4500 = vmatprep.subr.bf16.mxu0 0
        %4501 = vmatpush1.bf16.msra.mxu0 0
        %4502 = vmatprep.subr.bf16.mxu0 0
        %4503 = vmatpush1.bf16.msra.mxu0 0
        %4504 = vmatprep.subr.bf16.mxu0 0
        %4505 = vmatpush1.bf16.msra.mxu0 0
        %4506 = vmatprep.subr.bf16.mxu0 0
        %4507 = vmatpush1.bf16.msra.mxu0 0
        %4508 = vmatprep.subr.bf16.mxu0 0
        %4509 = vmatpush1.bf16.msra.mxu0 0
        %4510 = vmatprep.mubr.bf16.mxu0 0
        %4511 = vmatmul.mubr.bf16.gmra.mrb[0].mxu0 %v4473
        %v4512 = vpop.f32.mrb[0].mxu0
        %v4513 = vadd.f32 %v4446, %v4512
        %v4514 = vpop.f32.mrb[0].mxu0
        %v4515 = vpop.f32.mrb[0].mxu0
        %v4516 = vadd.f32 %v4449, %v4515
        %v4517 = vpop.f32.mrb[0].mxu0
        %4518 = vmatprep.mubr.bf16.mxu0 0
        %4519 = vmatmul.mubr.bf16.gmra.mrb[0].mxu0 %v4476
        %v4520 = vpop.f32.mrb[0].mxu0
        %v4521 = vadd.f32 %v4454, %v4520
        %v4522 = vpop.f32.mrb[0].mxu0
        %v4523 = vpop.f32.mrb[0].mxu0
        %v4524 = vadd.f32 %v4457, %v4523
        %v4525 = vpop.f32.mrb[0].mxu0
        %4526 = vdwg.mxu0
        %4527 = vrot.lane.b32.xlu0 %v3877, 64
        %v4528 = vpop.permute.xlu0 %4527
        %4529 = vrot.lane.b32.xlu0 %v3879, 64
        %v4530 = vpop.permute.xlu0 %4529
        %4531 = vrot.lane.b32.xlu0 %v3880, 64
        %v4532 = vpop.permute.xlu0 %4531
        %v4534 = vsel %vm2127, %v4528, 0
        %v4537 = vsel %vm2127, %v4530, 0
        %v4540 = vsel %vm2127, %v4532, 0
        %4542 = vmatprep.subr.bf16.mxu0 0
        %4543 = vmatpush1.bf16.xpose.msra.mxu0 %v4537
        %4544 = vmatprep.subr.bf16.mxu0 0
        %4545 = vmatpush1.bf16.xpose.msra.mxu0 %v4540
        %4546 = vmatprep.subr.bf16.mxu0 0
        %4547 = vmatpush1.bf16.xpose.msra.mxu0 0
        %4548 = vmatprep.subr.bf16.mxu0 0
        %4549 = vmatpush1.bf16.xpose.msra.mxu0 0
        %4550 = vmatprep.subr.bf16.mxu0 0
        %4551 = vmatpush1.bf16.xpose.msra.mxu0 0
        %4552 = vmatprep.subr.bf16.mxu0 0
        %4553 = vmatpush1.bf16.xpose.msra.mxu0 0
        %4554 = vmatprep.subr.bf16.mxu0 0
        %4555 = vmatpush1.bf16.xpose.msra.mxu0 0
        %4556 = vmatprep.subr.bf16.mxu0 0
        %4557 = vmatpush1.bf16.xpose.msra.mxu0 0
        %4558 = vmatprep.subr.bf16.mxu0 0
        %4559 = vmatpush1.bf16.xpose.msra.mxu0 0
        %4560 = vmatprep.subr.bf16.mxu0 0
        %4561 = vmatpush1.bf16.xpose.msra.mxu0 0
        %4562 = vmatprep.subr.bf16.mxu0 0
        %4563 = vmatpush1.bf16.xpose.msra.mxu0 0
        %4564 = vmatprep.subr.bf16.mxu0 0
        %4565 = vmatpush1.bf16.xpose.msra.mxu0 0
        %4566 = vmatprep.subr.bf16.mxu0 0
        %4567 = vmatpush1.bf16.xpose.msra.mxu0 0
        %4568 = vmatprep.subr.bf16.mxu0 0
        %4569 = vmatpush1.bf16.xpose.msra.mxu0 0
        %4570 = vmatprep.subr.bf16.mxu0 0
        %4571 = vmatpush1.bf16.xpose.msra.mxu0 0
        %4572 = vmatprep.subr.bf16.mxu0 0
        %4573 = vmatpush1.bf16.xpose.msra.mxu0 0
        %4574 = vmatprep.mubr.bf16.mxu0 0
        %4575 = vmatmul.mubr.bf16.gmra.mrb[0].mxu0 %v4534
        %v4576 = vpop.f32.mrb[0].mxu0
        %v4577 = vadd.f32 0.0, %v4576
        %v4578 = vpop.f32.mrb[0].mxu0
        %v4579 = vpop.f32.mrb[0].mxu0
        %v4580 = vadd.f32 0.0, %v4579
        %v4581 = vpop.f32.mrb[0].mxu0
        %4582 = vdwg.mxu0
        %4583 = vrot.lane.b32.xlu0 %v3878, 64
        %v4584 = vpop.permute.xlu0 %4583
        %4585 = vrot.lane.b32.xlu0 %v3881, 64
        %v4586 = vpop.permute.xlu0 %4585
        %4587 = vrot.lane.b32.xlu0 %v3882, 64
        %v4588 = vpop.permute.xlu0 %4587
        %v4590 = vsel %vm2127, %v4584, 0
        %v4593 = vsel %vm2127, %v4586, 0
        %v4596 = vsel %vm2127, %v4588, 0
        %4598 = vmatprep.subr.bf16.mxu0 0
        %4599 = vmatpush1.bf16.xpose.msra.mxu0 %v4593
        %4600 = vmatprep.subr.bf16.mxu0 0
        %4601 = vmatpush1.bf16.xpose.msra.mxu0 %v4596
        %4602 = vmatprep.subr.bf16.mxu0 0
        %4603 = vmatpush1.bf16.xpose.msra.mxu0 0
        %4604 = vmatprep.subr.bf16.mxu0 0
        %4605 = vmatpush1.bf16.xpose.msra.mxu0 0
        %4606 = vmatprep.subr.bf16.mxu0 0
        %4607 = vmatpush1.bf16.xpose.msra.mxu0 0
        %4608 = vmatprep.subr.bf16.mxu0 0
        %4609 = vmatpush1.bf16.xpose.msra.mxu0 0
        %4610 = vmatprep.subr.bf16.mxu0 0
        %4611 = vmatpush1.bf16.xpose.msra.mxu0 0
        %4612 = vmatprep.subr.bf16.mxu0 0
        %4613 = vmatpush1.bf16.xpose.msra.mxu0 0
        %4614 = vmatprep.subr.bf16.mxu0 0
        %4615 = vmatpush1.bf16.xpose.msra.mxu0 0
        %4616 = vmatprep.subr.bf16.mxu0 0
        %4617 = vmatpush1.bf16.xpose.msra.mxu0 0
        %4618 = vmatprep.subr.bf16.mxu0 0
        %4619 = vmatpush1.bf16.xpose.msra.mxu0 0
        %4620 = vmatprep.subr.bf16.mxu0 0
        %4621 = vmatpush1.bf16.xpose.msra.mxu0 0
        %4622 = vmatprep.subr.bf16.mxu0 0
        %4623 = vmatpush1.bf16.xpose.msra.mxu0 0
        %4624 = vmatprep.subr.bf16.mxu0 0
        %4625 = vmatpush1.bf16.xpose.msra.mxu0 0
        %4626 = vmatprep.subr.bf16.mxu0 0
        %4627 = vmatpush1.bf16.xpose.msra.mxu0 0
        %4628 = vmatprep.subr.bf16.mxu0 0
        %4629 = vmatpush1.bf16.xpose.msra.mxu0 0
        %4630 = vmatprep.mubr.bf16.mxu0 0
        %4631 = vmatmul.mubr.bf16.gmra.mrb[0].mxu0 %v4590
        %v4632 = vpop.f32.mrb[0].mxu0
        %v4633 = vadd.f32 0.0, %v4632
        %v4634 = vpop.f32.mrb[0].mxu0
        %v4635 = vpop.f32.mrb[0].mxu0
        %v4636 = vadd.f32 0.0, %v4635
        %v4637 = vpop.f32.mrb[0].mxu0
        %4638 = vdwg.mxu0
        %v4639 = vsel %vm2127, %v4577, -inf
        %4640 = vmax.xlane.f32.xlu0 %v4639
        %v4641 = vpop.xlane.xlu0 %4640
        %v4642 = vsel %vm2127, %v4580, -inf
        %4643 = vmax.xlane.f32.xlu0 %v4642
        %v4644 = vpop.xlane.xlu0 %4643
        %v4645 = vsel %vm2127, %v4633, -inf
        %4646 = vmax.xlane.f32.xlu0 %v4645
        %v4647 = vpop.xlane.xlu0 %4646
        %v4648 = vsel %vm2127, %v4636, -inf
        %4649 = vmax.xlane.f32.xlu0 %v4648
        %v4650 = vpop.xlane.xlu0 %4649
        %v4651 = vsub.f32 %v4577, %v4641
        %v4652 = vsub.f32 %v4580, %v4644
        %v4653 = vsub.f32 %v4633, %v4647
        %v4654 = vsub.f32 %v4636, %v4650
        %v4655 = vmul.f32 %v4651, 1.442695
        %v4656 = vpow.pop %v4655
        %v4657 = vmul.f32 %v4652, 1.442695
        %v4658 = vpow.pop %v4657
        %v4659 = vmul.f32 %v4653, 1.442695
        %v4660 = vpow.pop %v4659
        %v4661 = vmul.f32 %v4654, 1.442695
        %v4662 = vpow.pop %v4661
        %v4663 = vsel %vm2127, %v4656, 0.0
        %4664 = vadd.xlane.f32.xlu0 %v4663
        %v4665 = vpop.xlane.xlu0 %4664
        %v4666 = vsel %vm2127, %v4658, 0.0
        %4667 = vadd.xlane.f32.xlu0 %v4666
        %v4668 = vpop.xlane.xlu0 %4667
        %v4669 = vsel %vm2127, %v4660, 0.0
        %4670 = vadd.xlane.f32.xlu0 %v4669
        %v4671 = vpop.xlane.xlu0 %4670
        %v4672 = vsel %vm2127, %v4662, 0.0
        %4673 = vadd.xlane.f32.xlu0 %v4672
        %v4674 = vpop.xlane.xlu0 %4673
        %v4675 = vrcp.pop %v4665
        %v4676 = vrcp.pop %v4668
        %v4677 = vrcp.pop %v4671
        %v4678 = vrcp.pop %v4674
        %v4679 = vmul.f32 %v4656, %v4675
        %v4680 = vmul.f32 %v4658, %v4676
        %v4681 = vmul.f32 %v4660, %v4677
        %v4682 = vmul.f32 %v4662, %v4678
        %v4683 = vpack.c.bf16 %v4680, %v4679
        %v4684 = vpack.c.bf16 %v4682, %v4681
        %4685 = vrot.lane.b32.xlu0 %v3883, 64
        %v4686 = vpop.permute.xlu0 %4685
        %4687 = vrot.lane.b32.xlu0 %v3884, 64
        %v4688 = vpop.permute.xlu0 %4687
        %v4692 = vsel %vm2127, %v4683, 0
        %4694 = vmatprep.subr.bf16.mxu0 0
        %4695 = vmatpush1.bf16.msra.mxu0 %v4686
        %4696 = vmatprep.subr.bf16.mxu0 0
        %4697 = vmatpush1.bf16.msra.mxu0 %v4688
        %4698 = vmatprep.subr.bf16.mxu0 0
        %4699 = vmatpush1.bf16.msra.mxu0 0
        %4700 = vmatprep.subr.bf16.mxu0 0
        %4701 = vmatpush1.bf16.msra.mxu0 0
        %4702 = vmatprep.subr.bf16.mxu0 0
        %4703 = vmatpush1.bf16.msra.mxu0 0
        %4704 = vmatprep.subr.bf16.mxu0 0
        %4705 = vmatpush1.bf16.msra.mxu0 0
        %4706 = vmatprep.subr.bf16.mxu0 0
        %4707 = vmatpush1.bf16.msra.mxu0 0
        %4708 = vmatprep.subr.bf16.mxu0 0
        %4709 = vmatpush1.bf16.msra.mxu0 0
        %4710 = vmatprep.subr.bf16.mxu0 0
        %4711 = vmatpush1.bf16.msra.mxu0 0
        %4712 = vmatprep.subr.bf16.mxu0 0
        %4713 = vmatpush1.bf16.msra.mxu0 0
        %4714 = vmatprep.subr.bf16.mxu0 0
        %4715 = vmatpush1.bf16.msra.mxu0 0
        %4716 = vmatprep.subr.bf16.mxu0 0
        %4717 = vmatpush1.bf16.msra.mxu0 0
        %4718 = vmatprep.subr.bf16.mxu0 0
        %4719 = vmatpush1.bf16.msra.mxu0 0
        %4720 = vmatprep.subr.bf16.mxu0 0
        %4721 = vmatpush1.bf16.msra.mxu0 0
        %4722 = vmatprep.subr.bf16.mxu0 0
        %4723 = vmatpush1.bf16.msra.mxu0 0
        %4724 = vmatprep.subr.bf16.mxu0 0
        %4725 = vmatpush1.bf16.msra.mxu0 0
        %4726 = vmatprep.mubr.bf16.mxu0 0
        %4727 = vmatmul.mubr.bf16.gmra.mrb[0].mxu0 %v4692
        %v4728 = vpop.f32.mrb[0].mxu0
        %v4729 = vadd.f32 0.0, %v4728
        %v4730 = vpop.f32.mrb[0].mxu0
        %v4731 = vpop.f32.mrb[0].mxu0
        %v4732 = vadd.f32 0.0, %v4731
        %v4733 = vpop.f32.mrb[0].mxu0
        %4734 = vdwg.mxu0
        %4735 = vrot.lane.b32.xlu0 %v3885, 64
        %v4736 = vpop.permute.xlu0 %4735
        %4737 = vrot.lane.b32.xlu0 %v3886, 64
        %v4738 = vpop.permute.xlu0 %4737
        %v4742 = vsel %vm2127, %v4684, 0
        %4744 = vmatprep.subr.bf16.mxu0 0
        %4745 = vmatpush1.bf16.msra.mxu0 %v4736
        %4746 = vmatprep.subr.bf16.mxu0 0
        %4747 = vmatpush1.bf16.msra.mxu0 %v4738
        %4748 = vmatprep.subr.bf16.mxu0 0
        %4749 = vmatpush1.bf16.msra.mxu0 0
        %4750 = vmatprep.subr.bf16.mxu0 0
        %4751 = vmatpush1.bf16.msra.mxu0 0
        %4752 = vmatprep.subr.bf16.mxu0 0
        %4753 = vmatpush1.bf16.msra.mxu0 0
        %4754 = vmatprep.subr.bf16.mxu0 0
        %4755 = vmatpush1.bf16.msra.mxu0 0
        %4756 = vmatprep.subr.bf16.mxu0 0
        %4757 = vmatpush1.bf16.msra.mxu0 0
        %4758 = vmatprep.subr.bf16.mxu0 0
        %4759 = vmatpush1.bf16.msra.mxu0 0
        %4760 = vmatprep.subr.bf16.mxu0 0
        %4761 = vmatpush1.bf16.msra.mxu0 0
        %4762 = vmatprep.subr.bf16.mxu0 0
        %4763 = vmatpush1.bf16.msra.mxu0 0
        %4764 = vmatprep.subr.bf16.mxu0 0
        %4765 = vmatpush1.bf16.msra.mxu0 0
        %4766 = vmatprep.subr.bf16.mxu0 0
        %4767 = vmatpush1.bf16.msra.mxu0 0
        %4768 = vmatprep.subr.bf16.mxu0 0
        %4769 = vmatpush1.bf16.msra.mxu0 0
        %4770 = vmatprep.subr.bf16.mxu0 0
        %4771 = vmatpush1.bf16.msra.mxu0 0
        %4772 = vmatprep.subr.bf16.mxu0 0
        %4773 = vmatpush1.bf16.msra.mxu0 0
        %4774 = vmatprep.subr.bf16.mxu0 0
        %4775 = vmatpush1.bf16.msra.mxu0 0
        %4776 = vmatprep.mubr.bf16.mxu0 0
        %4777 = vmatmul.mubr.bf16.gmra.mrb[0].mxu0 %v4742
        %v4778 = vpop.f32.mrb[0].mxu0
        %v4779 = vadd.f32 0.0, %v4778
        %v4780 = vpop.f32.mrb[0].mxu0
        %v4781 = vpop.f32.mrb[0].mxu0
        %v4782 = vadd.f32 0.0, %v4781
        %v4783 = vpop.f32.mrb[0].mxu0
        %4784 = vdwg.mxu0
        %v4785 = vpack.c.bf16 %v4732, %v4729
        %v4786 = vpack.c.bf16 %v4782, %v4779
        %v4791 = vunpack.c.l.b16 %v3527
        %v4792 = vunpack.c.l.b16 %v3528
        %v4793 = vunpack.c.l.b16 %v3529
        %v4794 = vunpack.c.l.b16 %v3530
        %v4795 = vpack.c.b16 %v4792, %v4791
        %v4796 = vpack.c.b16 %v4794, %v4793
        %v4800 = vsel %vm2127, %v4785, 0
        %v4803 = vsel %vm2127, %v4786, 0
        %4805 = vmatprep.subr.bf16.mxu0 0
        %4806 = vmatpush1.bf16.msra.mxu0 %v4795
        %4807 = vmatprep.subr.bf16.mxu0 0
        %4808 = vmatpush1.bf16.msra.mxu0 %v4796
        %4809 = vmatprep.subr.bf16.mxu0 0
        %4810 = vmatpush1.bf16.msra.mxu0 0
        %4811 = vmatprep.subr.bf16.mxu0 0
        %4812 = vmatpush1.bf16.msra.mxu0 0
        %4813 = vmatprep.subr.bf16.mxu0 0
        %4814 = vmatpush1.bf16.msra.mxu0 0
        %4815 = vmatprep.subr.bf16.mxu0 0
        %4816 = vmatpush1.bf16.msra.mxu0 0
        %4817 = vmatprep.subr.bf16.mxu0 0
        %4818 = vmatpush1.bf16.msra.mxu0 0
        %4819 = vmatprep.subr.bf16.mxu0 0
        %4820 = vmatpush1.bf16.msra.mxu0 0
        %4821 = vmatprep.subr.bf16.mxu0 0
        %4822 = vmatpush1.bf16.msra.mxu0 0
        %4823 = vmatprep.subr.bf16.mxu0 0
        %4824 = vmatpush1.bf16.msra.mxu0 0
        %4825 = vmatprep.subr.bf16.mxu0 0
        %4826 = vmatpush1.bf16.msra.mxu0 0
        %4827 = vmatprep.subr.bf16.mxu0 0
        %4828 = vmatpush1.bf16.msra.mxu0 0
        %4829 = vmatprep.subr.bf16.mxu0 0
        %4830 = vmatpush1.bf16.msra.mxu0 0
        %4831 = vmatprep.subr.bf16.mxu0 0
        %4832 = vmatpush1.bf16.msra.mxu0 0
        %4833 = vmatprep.subr.bf16.mxu0 0
        %4834 = vmatpush1.bf16.msra.mxu0 0
        %4835 = vmatprep.subr.bf16.mxu0 0
        %4836 = vmatpush1.bf16.msra.mxu0 0
        %4837 = vmatprep.mubr.bf16.mxu0 0
        %4838 = vmatmul.mubr.bf16.gmra.mrb[0].mxu0 %v4800
        %v4839 = vpop.f32.mrb[0].mxu0
        %v4840 = vadd.f32 0.0, %v4839
        %v4841 = vpop.f32.mrb[0].mxu0
        %v4842 = vpop.f32.mrb[0].mxu0
        %v4843 = vadd.f32 0.0, %v4842
        %v4844 = vpop.f32.mrb[0].mxu0
        %4845 = vmatprep.mubr.bf16.mxu0 0
        %4846 = vmatmul.mubr.bf16.gmra.mrb[0].mxu0 %v4803
        %v4847 = vpop.f32.mrb[0].mxu0
        %v4848 = vadd.f32 0.0, %v4847
        %v4849 = vpop.f32.mrb[0].mxu0
        %v4850 = vpop.f32.mrb[0].mxu0
        %v4851 = vadd.f32 0.0, %v4850
        %v4852 = vpop.f32.mrb[0].mxu0
        %4853 = vdwg.mxu0
        %v4854 = vadd.f32 %v4513, %v4840
        %v4855 = vadd.f32 %v4516, %v4843
        %v4856 = vadd.f32 %v4521, %v4848
        %v4857 = vadd.f32 %v4524, %v4851
        %4858 = vrot.lane.b32.xlu0 %v3877, 32
        %v4859 = vpop.permute.xlu0 %4858
        %4860 = vrot.lane.b32.xlu0 %v3879, 32
        %v4861 = vpop.permute.xlu0 %4860
        %4862 = vrot.lane.b32.xlu0 %v3880, 32
        %v4863 = vpop.permute.xlu0 %4862
        %v4865 = vsel %vm2127, %v4859, 0
        %v4868 = vsel %vm2127, %v4861, 0
        %v4871 = vsel %vm2127, %v4863, 0
        %4873 = vmatprep.subr.bf16.mxu0 0
        %4874 = vmatpush1.bf16.xpose.msra.mxu0 %v4868
        %4875 = vmatprep.subr.bf16.mxu0 0
        %4876 = vmatpush1.bf16.xpose.msra.mxu0 %v4871
        %4877 = vmatprep.subr.bf16.mxu0 0
        %4878 = vmatpush1.bf16.xpose.msra.mxu0 0
        %4879 = vmatprep.subr.bf16.mxu0 0
        %4880 = vmatpush1.bf16.xpose.msra.mxu0 0
        %4881 = vmatprep.subr.bf16.mxu0 0
        %4882 = vmatpush1.bf16.xpose.msra.mxu0 0
        %4883 = vmatprep.subr.bf16.mxu0 0
        %4884 = vmatpush1.bf16.xpose.msra.mxu0 0
        %4885 = vmatprep.subr.bf16.mxu0 0
        %4886 = vmatpush1.bf16.xpose.msra.mxu0 0
        %4887 = vmatprep.subr.bf16.mxu0 0
        %4888 = vmatpush1.bf16.xpose.msra.mxu0 0
        %4889 = vmatprep.subr.bf16.mxu0 0
        %4890 = vmatpush1.bf16.xpose.msra.mxu0 0
        %4891 = vmatprep.subr.bf16.mxu0 0
        %4892 = vmatpush1.bf16.xpose.msra.mxu0 0
        %4893 = vmatprep.subr.bf16.mxu0 0
        %4894 = vmatpush1.bf16.xpose.msra.mxu0 0
        %4895 = vmatprep.subr.bf16.mxu0 0
        %4896 = vmatpush1.bf16.xpose.msra.mxu0 0
        %4897 = vmatprep.subr.bf16.mxu0 0
        %4898 = vmatpush1.bf16.xpose.msra.mxu0 0
        %4899 = vmatprep.subr.bf16.mxu0 0
        %4900 = vmatpush1.bf16.xpose.msra.mxu0 0
        %4901 = vmatprep.subr.bf16.mxu0 0
        %4902 = vmatpush1.bf16.xpose.msra.mxu0 0
        %4903 = vmatprep.subr.bf16.mxu0 0
        %4904 = vmatpush1.bf16.xpose.msra.mxu0 0
        %4905 = vmatprep.mubr.bf16.mxu0 0
        %4906 = vmatmul.mubr.bf16.gmra.mrb[0].mxu0 %v4865
        %v4907 = vpop.f32.mrb[0].mxu0
        %v4908 = vadd.f32 0.0, %v4907
        %v4909 = vpop.f32.mrb[0].mxu0
        %v4910 = vpop.f32.mrb[0].mxu0
        %v4911 = vadd.f32 0.0, %v4910
        %v4912 = vpop.f32.mrb[0].mxu0
        %4913 = vdwg.mxu0
        %4914 = vrot.lane.b32.xlu0 %v3878, 32
        %v4915 = vpop.permute.xlu0 %4914
        %4916 = vrot.lane.b32.xlu0 %v3881, 32
        %v4917 = vpop.permute.xlu0 %4916
        %4918 = vrot.lane.b32.xlu0 %v3882, 32
        %v4919 = vpop.permute.xlu0 %4918
        %v4921 = vsel %vm2127, %v4915, 0
        %v4924 = vsel %vm2127, %v4917, 0
        %v4927 = vsel %vm2127, %v4919, 0
        %4929 = vmatprep.subr.bf16.mxu0 0
        %4930 = vmatpush1.bf16.xpose.msra.mxu0 %v4924
        %4931 = vmatprep.subr.bf16.mxu0 0
        %4932 = vmatpush1.bf16.xpose.msra.mxu0 %v4927
        %4933 = vmatprep.subr.bf16.mxu0 0
        %4934 = vmatpush1.bf16.xpose.msra.mxu0 0
        %4935 = vmatprep.subr.bf16.mxu0 0
        %4936 = vmatpush1.bf16.xpose.msra.mxu0 0
        %4937 = vmatprep.subr.bf16.mxu0 0
        %4938 = vmatpush1.bf16.xpose.msra.mxu0 0
        %4939 = vmatprep.subr.bf16.mxu0 0
        %4940 = vmatpush1.bf16.xpose.msra.mxu0 0
        %4941 = vmatprep.subr.bf16.mxu0 0
        %4942 = vmatpush1.bf16.xpose.msra.mxu0 0
        %4943 = vmatprep.subr.bf16.mxu0 0
        %4944 = vmatpush1.bf16.xpose.msra.mxu0 0
        %4945 = vmatprep.subr.bf16.mxu0 0
        %4946 = vmatpush1.bf16.xpose.msra.mxu0 0
        %4947 = vmatprep.subr.bf16.mxu0 0
        %4948 = vmatpush1.bf16.xpose.msra.mxu0 0
        %4949 = vmatprep.subr.bf16.mxu0 0
        %4950 = vmatpush1.bf16.xpose.msra.mxu0 0
        %4951 = vmatprep.subr.bf16.mxu0 0
        %4952 = vmatpush1.bf16.xpose.msra.mxu0 0
        %4953 = vmatprep.subr.bf16.mxu0 0
        %4954 = vmatpush1.bf16.xpose.msra.mxu0 0
        %4955 = vmatprep.subr.bf16.mxu0 0
        %4956 = vmatpush1.bf16.xpose.msra.mxu0 0
        %4957 = vmatprep.subr.bf16.mxu0 0
        %4958 = vmatpush1.bf16.xpose.msra.mxu0 0
        %4959 = vmatprep.subr.bf16.mxu0 0
        %4960 = vmatpush1.bf16.xpose.msra.mxu0 0
        %4961 = vmatprep.mubr.bf16.mxu0 0
        %4962 = vmatmul.mubr.bf16.gmra.mrb[0].mxu0 %v4921
        %v4963 = vpop.f32.mrb[0].mxu0
        %v4964 = vadd.f32 0.0, %v4963
        %v4965 = vpop.f32.mrb[0].mxu0
        %v4966 = vpop.f32.mrb[0].mxu0
        %v4967 = vadd.f32 0.0, %v4966
        %v4968 = vpop.f32.mrb[0].mxu0
        %4969 = vdwg.mxu0
        %v4970 = vsel %vm2127, %v4908, -inf
        %4971 = vmax.xlane.f32.xlu0 %v4970
        %v4972 = vpop.xlane.xlu0 %4971
        %v4973 = vsel %vm2127, %v4911, -inf
        %4974 = vmax.xlane.f32.xlu0 %v4973
        %v4975 = vpop.xlane.xlu0 %4974
        %v4976 = vsel %vm2127, %v4964, -inf
        %4977 = vmax.xlane.f32.xlu0 %v4976
        %v4978 = vpop.xlane.xlu0 %4977
        %v4979 = vsel %vm2127, %v4967, -inf
        %4980 = vmax.xlane.f32.xlu0 %v4979
        %v4981 = vpop.xlane.xlu0 %4980
        %v4982 = vsub.f32 %v4908, %v4972
        %v4983 = vsub.f32 %v4911, %v4975
        %v4984 = vsub.f32 %v4964, %v4978
        %v4985 = vsub.f32 %v4967, %v4981
        %v4986 = vmul.f32 %v4982, 1.442695
        %v4987 = vpow.pop %v4986
        %v4988 = vmul.f32 %v4983, 1.442695
        %v4989 = vpow.pop %v4988
        %v4990 = vmul.f32 %v4984, 1.442695
        %v4991 = vpow.pop %v4990
        %v4992 = vmul.f32 %v4985, 1.442695
        %v4993 = vpow.pop %v4992
        %v4994 = vsel %vm2127, %v4987, 0.0
        %4995 = vadd.xlane.f32.xlu0 %v4994
        %v4996 = vpop.xlane.xlu0 %4995
        %v4997 = vsel %vm2127, %v4989, 0.0
        %4998 = vadd.xlane.f32.xlu0 %v4997
        %v4999 = vpop.xlane.xlu0 %4998
        %v5000 = vsel %vm2127, %v4991, 0.0
        %5001 = vadd.xlane.f32.xlu0 %v5000
        %v5002 = vpop.xlane.xlu0 %5001
        %v5003 = vsel %vm2127, %v4993, 0.0
        %5004 = vadd.xlane.f32.xlu0 %v5003
        %v5005 = vpop.xlane.xlu0 %5004
        %v5006 = vrcp.pop %v4996
        %v5007 = vrcp.pop %v4999
        %v5008 = vrcp.pop %v5002
        %v5009 = vrcp.pop %v5005
        %v5010 = vmul.f32 %v4987, %v5006
        %v5011 = vmul.f32 %v4989, %v5007
        %v5012 = vmul.f32 %v4991, %v5008
        %v5013 = vmul.f32 %v4993, %v5009
        %v5014 = vpack.c.bf16 %v5011, %v5010
        %v5015 = vpack.c.bf16 %v5013, %v5012
        %5016 = vrot.lane.b32.xlu0 %v3883, 32
        %v5017 = vpop.permute.xlu0 %5016
        %5018 = vrot.lane.b32.xlu0 %v3884, 32
        %v5019 = vpop.permute.xlu0 %5018
        %v5023 = vsel %vm2127, %v5014, 0
        %5025 = vmatprep.subr.bf16.mxu0 0
        %5026 = vmatpush1.bf16.msra.mxu0 %v5017
        %5027 = vmatprep.subr.bf16.mxu0 0
        %5028 = vmatpush1.bf16.msra.mxu0 %v5019
        %5029 = vmatprep.subr.bf16.mxu0 0
        %5030 = vmatpush1.bf16.msra.mxu0 0
        %5031 = vmatprep.subr.bf16.mxu0 0
        %5032 = vmatpush1.bf16.msra.mxu0 0
        %5033 = vmatprep.subr.bf16.mxu0 0
        %5034 = vmatpush1.bf16.msra.mxu0 0
        %5035 = vmatprep.subr.bf16.mxu0 0
        %5036 = vmatpush1.bf16.msra.mxu0 0
        %5037 = vmatprep.subr.bf16.mxu0 0
        %5038 = vmatpush1.bf16.msra.mxu0 0
        %5039 = vmatprep.subr.bf16.mxu0 0
        %5040 = vmatpush1.bf16.msra.mxu0 0
        %5041 = vmatprep.subr.bf16.mxu0 0
        %5042 = vmatpush1.bf16.msra.mxu0 0
        %5043 = vmatprep.subr.bf16.mxu0 0
        %5044 = vmatpush1.bf16.msra.mxu0 0
        %5045 = vmatprep.subr.bf16.mxu0 0
        %5046 = vmatpush1.bf16.msra.mxu0 0
        %5047 = vmatprep.subr.bf16.mxu0 0
        %5048 = vmatpush1.bf16.msra.mxu0 0
        %5049 = vmatprep.subr.bf16.mxu0 0
        %5050 = vmatpush1.bf16.msra.mxu0 0
        %5051 = vmatprep.subr.bf16.mxu0 0
        %5052 = vmatpush1.bf16.msra.mxu0 0
        %5053 = vmatprep.subr.bf16.mxu0 0
        %5054 = vmatpush1.bf16.msra.mxu0 0
        %5055 = vmatprep.subr.bf16.mxu0 0
        %5056 = vmatpush1.bf16.msra.mxu0 0
        %5057 = vmatprep.mubr.bf16.mxu0 0
        %5058 = vmatmul.mubr.bf16.gmra.mrb[0].mxu0 %v5023
        %v5059 = vpop.f32.mrb[0].mxu0
        %v5060 = vadd.f32 0.0, %v5059
        %v5061 = vpop.f32.mrb[0].mxu0
        %v5062 = vpop.f32.mrb[0].mxu0
        %v5063 = vadd.f32 0.0, %v5062
        %v5064 = vpop.f32.mrb[0].mxu0
        %5065 = vdwg.mxu0
        %5066 = vrot.lane.b32.xlu0 %v3885, 32
        %v5067 = vpop.permute.xlu0 %5066
        %5068 = vrot.lane.b32.xlu0 %v3886, 32
        %v5069 = vpop.permute.xlu0 %5068
        %v5073 = vsel %vm2127, %v5015, 0
        %5075 = vmatprep.subr.bf16.mxu0 0
        %5076 = vmatpush1.bf16.msra.mxu0 %v5067
        %5077 = vmatprep.subr.bf16.mxu0 0
        %5078 = vmatpush1.bf16.msra.mxu0 %v5069
        %5079 = vmatprep.subr.bf16.mxu0 0
        %5080 = vmatpush1.bf16.msra.mxu0 0
        %5081 = vmatprep.subr.bf16.mxu0 0
        %5082 = vmatpush1.bf16.msra.mxu0 0
        %5083 = vmatprep.subr.bf16.mxu0 0
        %5084 = vmatpush1.bf16.msra.mxu0 0
        %5085 = vmatprep.subr.bf16.mxu0 0
        %5086 = vmatpush1.bf16.msra.mxu0 0
        %5087 = vmatprep.subr.bf16.mxu0 0
        %5088 = vmatpush1.bf16.msra.mxu0 0
        %5089 = vmatprep.subr.bf16.mxu0 0
        %5090 = vmatpush1.bf16.msra.mxu0 0
        %5091 = vmatprep.subr.bf16.mxu0 0
        %5092 = vmatpush1.bf16.msra.mxu0 0
        %5093 = vmatprep.subr.bf16.mxu0 0
        %5094 = vmatpush1.bf16.msra.mxu0 0
        %5095 = vmatprep.subr.bf16.mxu0 0
        %5096 = vmatpush1.bf16.msra.mxu0 0
        %5097 = vmatprep.subr.bf16.mxu0 0
        %5098 = vmatpush1.bf16.msra.mxu0 0
        %5099 = vmatprep.subr.bf16.mxu0 0
        %5100 = vmatpush1.bf16.msra.mxu0 0
        %5101 = vmatprep.subr.bf16.mxu0 0
        %5102 = vmatpush1.bf16.msra.mxu0 0
        %5103 = vmatprep.subr.bf16.mxu0 0
        %5104 = vmatpush1.bf16.msra.mxu0 0
        %5105 = vmatprep.subr.bf16.mxu0 0
        %5106 = vmatpush1.bf16.msra.mxu0 0
        %5107 = vmatprep.mubr.bf16.mxu0 0
        %5108 = vmatmul.mubr.bf16.gmra.mrb[0].mxu0 %v5073
        %v5109 = vpop.f32.mrb[0].mxu0
        %v5110 = vadd.f32 0.0, %v5109
        %v5111 = vpop.f32.mrb[0].mxu0
        %v5112 = vpop.f32.mrb[0].mxu0
        %v5113 = vadd.f32 0.0, %v5112
        %v5114 = vpop.f32.mrb[0].mxu0
        %5115 = vdwg.mxu0
        %v5116 = vpack.c.bf16 %v5063, %v5060
        %v5117 = vpack.c.bf16 %v5113, %v5110
        %v5122 = vunpack.c.l.b16 %v3531
        %v5123 = vunpack.c.l.b16 %v3532
        %v5124 = vunpack.c.l.b16 %v3533
        %v5125 = vunpack.c.l.b16 %v3534
        %v5126 = vpack.c.b16 %v5123, %v5122
        %v5127 = vpack.c.b16 %v5125, %v5124
        %v5131 = vsel %vm2127, %v5116, 0
        %v5134 = vsel %vm2127, %v5117, 0
        %5136 = vmatprep.subr.bf16.mxu0 0
        %5137 = vmatpush1.bf16.msra.mxu0 %v5126
        %5138 = vmatprep.subr.bf16.mxu0 0
        %5139 = vmatpush1.bf16.msra.mxu0 %v5127
        %5140 = vmatprep.subr.bf16.mxu0 0
        %5141 = vmatpush1.bf16.msra.mxu0 0
        %5142 = vmatprep.subr.bf16.mxu0 0
        %5143 = vmatpush1.bf16.msra.mxu0 0
        %5144 = vmatprep.subr.bf16.mxu0 0
        %5145 = vmatpush1.bf16.msra.mxu0 0
        %5146 = vmatprep.subr.bf16.mxu0 0
        %5147 = vmatpush1.bf16.msra.mxu0 0
        %5148 = vmatprep.subr.bf16.mxu0 0
        %5149 = vmatpush1.bf16.msra.mxu0 0
        %5150 = vmatprep.subr.bf16.mxu0 0
        %5151 = vmatpush1.bf16.msra.mxu0 0
        %5152 = vmatprep.subr.bf16.mxu0 0
        %5153 = vmatpush1.bf16.msra.mxu0 0
        %5154 = vmatprep.subr.bf16.mxu0 0
        %5155 = vmatpush1.bf16.msra.mxu0 0
        %5156 = vmatprep.subr.bf16.mxu0 0
        %5157 = vmatpush1.bf16.msra.mxu0 0
        %5158 = vmatprep.subr.bf16.mxu0 0
        %5159 = vmatpush1.bf16.msra.mxu0 0
        %5160 = vmatprep.subr.bf16.mxu0 0
        %5161 = vmatpush1.bf16.msra.mxu0 0
        %5162 = vmatprep.subr.bf16.mxu0 0
        %5163 = vmatpush1.bf16.msra.mxu0 0
        %5164 = vmatprep.subr.bf16.mxu0 0
        %5165 = vmatpush1.bf16.msra.mxu0 0
        %5166 = vmatprep.subr.bf16.mxu0 0
        %5167 = vmatpush1.bf16.msra.mxu0 0
        %5168 = vmatprep.mubr.bf16.mxu0 0
        %5169 = vmatmul.mubr.bf16.gmra.mrb[0].mxu0 %v5131
        %v5170 = vpop.f32.mrb[0].mxu0
        %v5171 = vadd.f32 0.0, %v5170
        %v5172 = vpop.f32.mrb[0].mxu0
        %v5173 = vpop.f32.mrb[0].mxu0
        %v5174 = vadd.f32 0.0, %v5173
        %v5175 = vpop.f32.mrb[0].mxu0
        %5176 = vmatprep.mubr.bf16.mxu0 0
        %5177 = vmatmul.mubr.bf16.gmra.mrb[0].mxu0 %v5134
        %v5178 = vpop.f32.mrb[0].mxu0
        %v5179 = vadd.f32 0.0, %v5178
        %v5180 = vpop.f32.mrb[0].mxu0
        %v5181 = vpop.f32.mrb[0].mxu0
        %v5182 = vadd.f32 0.0, %v5181
        %v5183 = vpop.f32.mrb[0].mxu0
        %5184 = vdwg.mxu0
        %v5185 = vadd.f32 %v4854, %v5171
        %v5186 = vadd.f32 %v4855, %v5174
        %v5187 = vadd.f32 %v4856, %v5179
        %v5188 = vadd.f32 %v4857, %v5182
        %v5190 = vlaneseq
        %v5191 = vshrl.u32 %v5190, 7
        %v5192 = vsub.s32 0, %v5191
        %v5193 = vrot.slane %v3535, %v5192
        %v5195 = vadd.f32 %v5185, %v5193
        %v5196 = vadd.f32 %v5186, %v5193
        %v5197 = vadd.f32 %v5187, %v5193
        %v5198 = vadd.f32 %v5188, %v5193
        %v5199 = vadd.f32 %v3450, %v5195
        %v5200 = vadd.f32 %v3451, %v5196
        %v5201 = vadd.f32 %v3452, %v5197
        %v5202 = vadd.f32 %v3453, %v5198
        %v5203 = vld [vmem:[%s1656] sm:$0x1]
        %v5204 = vld [vmem:[%s1659] sm:$0x1]
        %5205 = vadd.xlane.f32.xlu0 %v5199
        %v5206 = vpop.xlane.xlu0 %5205
        %5207 = vadd.xlane.f32.xlu0 %v5200
        %v5208 = vpop.xlane.xlu0 %5207
        %5209 = vadd.xlane.f32.xlu0 %v5201
        %v5210 = vpop.xlane.xlu0 %5209
        %5211 = vadd.xlane.f32.xlu0 %v5202
        %v5212 = vpop.xlane.xlu0 %5211
        %v5213 = vmul.f32 %v5206, %v3397
        %v5214 = vmul.f32 %v5208, %v3397
        %v5215 = vmul.f32 %v5210, %v3397
        %v5216 = vmul.f32 %v5212, %v3397
        %v5217 = vsub.f32 %v5199, %v5213
        %v5218 = vsub.f32 %v5200, %v5214
        %v5219 = vsub.f32 %v5201, %v5215
        %v5220 = vsub.f32 %v5202, %v5216
        %v5221 = vmul.f32 %v5217, %v5217
        %v5222 = vmul.f32 %v5218, %v5218
        %v5223 = vmul.f32 %v5219, %v5219
        %v5224 = vmul.f32 %v5220, %v5220
        %5225 = vadd.xlane.f32.xlu0 %v5221
        %v5226 = vpop.xlane.xlu0 %5225
        %5227 = vadd.xlane.f32.xlu0 %v5222
        %v5228 = vpop.xlane.xlu0 %5227
        %5229 = vadd.xlane.f32.xlu0 %v5223
        %v5230 = vpop.xlane.xlu0 %5229
        %5231 = vadd.xlane.f32.xlu0 %v5224
        %v5232 = vpop.xlane.xlu0 %5231
        %v5233 = vmul.f32 %v5226, %v3397
        %v5234 = vmul.f32 %v5228, %v3397
        %v5235 = vmul.f32 %v5230, %v3397
        %v5236 = vmul.f32 %v5232, %v3397
        %v5237 = vadd.f32 %v5233, 1e-05
        %v5238 = vadd.f32 %v5234, 1e-05
        %v5239 = vadd.f32 %v5235, 1e-05
        %v5240 = vadd.f32 %v5236, 1e-05
        %v5241 = vrsqrt.pop %v5237
        %v5242 = vrsqrt.pop %v5238
        %v5243 = vrsqrt.pop %v5239
        %v5244 = vrsqrt.pop %v5240
        %v5245 = vmul.f32 %v5217, %v5241
        %v5246 = vmul.f32 %v5218, %v5242
        %v5247 = vmul.f32 %v5219, %v5243
        %v5248 = vmul.f32 %v5220, %v5244
        %v5250 = vlaneseq
        %v5251 = vshrl.u32 %v5250, 7
        %v5252 = vsub.s32 0, %v5251
        %v5253 = vrot.slane %v5203, %v5252
        %v5255 = vmul.f32 %v5245, %v5253
        %v5256 = vmul.f32 %v5246, %v5253
        %v5257 = vmul.f32 %v5247, %v5253
        %v5258 = vmul.f32 %v5248, %v5253
        %v5260 = vlaneseq
        %v5261 = vshrl.u32 %v5260, 7
        %v5262 = vsub.s32 0, %v5261
        %v5263 = vrot.slane %v5204, %v5262
        %v5265 = vadd.f32 %v5255, %v5263
        %v5266 = vadd.f32 %v5256, %v5263
        %v5267 = vadd.f32 %v5257, %v5263
        %v5268 = vadd.f32 %v5258, %v5263
        %v5269 = vpack.c.bf16 %v5266, %v5265
        %v5270 = vpack.c.bf16 %v5268, %v5267
        %v5271 = vld [vmem:[%s1434] sm:$0xff]
        %v5272 = vld [vmem:[%s1434 + $0x8] sm:$0xff]
        %v5273 = vld [vmem:[%s1434 + $0x10] sm:$0xff]
        %v5274 = vld [vmem:[%s1434 + $0x18] sm:$0xff]
        %v5275 = vld [vmem:[%s1434 + $0x20] sm:$0xff]
        %v5276 = vld [vmem:[%s1434 + $0x28] sm:$0xff]
        %v5277 = vld [vmem:[%s1434 + $0x30] sm:$0xff]
        %v5278 = vld [vmem:[%s1434 + $0x38] sm:$0xff]
        %v5279 = vld [vmem:[%s1434 + $0x40] sm:$0xff]
        %v5280 = vld [vmem:[%s1434 + $0x48] sm:$0xff]
        %v5281 = vld [vmem:[%s1434 + $0x50] sm:$0xff]
        %v5282 = vld [vmem:[%s1434 + $0x58] sm:$0xff]
        %v5283 = vld [vmem:[%s1434 + $0x60] sm:$0xff]
        %v5284 = vld [vmem:[%s1434 + $0x68] sm:$0xff]
        %v5285 = vld [vmem:[%s1434 + $0x70] sm:$0xff]
        %v5286 = vld [vmem:[%s1434 + $0x78] sm:$0xff]
        %v5287 = vld [vmem:[%s1644] sm:$0x3]
        %v5289 = vlaneseq
        %v5290 = vshrl.u32 %v5289, 7
        %v5291 = vsub.s32 0, %v5290
        %v5292 = vrot.slane %v5287, %v5291
        %v5293 = vlaneseq
        %v5294 = vshrl.u32 %v5293, 7
        %v5295 = vsub.s32 1, %v5294
        %v5296 = vrot.slane %v5287, %v5295
        %v5315 = vunpack.c.l.b16 %v5271
        %v5316 = vunpack.c.h.b16 %v5271
        %v5317 = vunpack.c.l.b16 %v5272
        %v5318 = vunpack.c.h.b16 %v5272
        %v5319 = vunpack.c.l.b16 %v5273
        %v5320 = vunpack.c.h.b16 %v5273
        %v5321 = vunpack.c.l.b16 %v5274
        %v5322 = vunpack.c.h.b16 %v5274
        %v5323 = vunpack.c.l.b16 %v5275
        %v5324 = vunpack.c.h.b16 %v5275
        %v5325 = vunpack.c.l.b16 %v5276
        %v5326 = vunpack.c.h.b16 %v5276
        %v5327 = vunpack.c.l.b16 %v5277
        %v5328 = vunpack.c.h.b16 %v5277
        %v5329 = vunpack.c.l.b16 %v5278
        %v5330 = vunpack.c.h.b16 %v5278
        %v5331 = vunpack.c.l.b16 %v5279
        %v5332 = vunpack.c.h.b16 %v5279
        %v5333 = vunpack.c.l.b16 %v5280
        %v5334 = vunpack.c.h.b16 %v5280
        %v5335 = vunpack.c.l.b16 %v5281
        %v5336 = vunpack.c.h.b16 %v5281
        %v5337 = vunpack.c.l.b16 %v5282
        %v5338 = vunpack.c.h.b16 %v5282
        %v5339 = vunpack.c.l.b16 %v5283
        %v5340 = vunpack.c.h.b16 %v5283
        %v5341 = vunpack.c.l.b16 %v5284
        %v5342 = vunpack.c.h.b16 %v5284
        %v5343 = vunpack.c.l.b16 %v5285
        %v5344 = vunpack.c.h.b16 %v5285
        %v5345 = vunpack.c.l.b16 %v5286
        %v5346 = vunpack.c.h.b16 %v5286
        %v5347 = vpack.c.b16 %v5317, %v5315
        %v5348 = vpack.c.b16 %v5318, %v5316
        %v5349 = vpack.c.b16 %v5321, %v5319
        %v5350 = vpack.c.b16 %v5322, %v5320
        %v5351 = vpack.c.b16 %v5325, %v5323
        %v5352 = vpack.c.b16 %v5326, %v5324
        %v5353 = vpack.c.b16 %v5329, %v5327
        %v5354 = vpack.c.b16 %v5330, %v5328
        %v5355 = vpack.c.b16 %v5333, %v5331
        %v5356 = vpack.c.b16 %v5334, %v5332
        %v5357 = vpack.c.b16 %v5337, %v5335
        %v5358 = vpack.c.b16 %v5338, %v5336
        %v5359 = vpack.c.b16 %v5341, %v5339
        %v5360 = vpack.c.b16 %v5342, %v5340
        %v5361 = vpack.c.b16 %v5345, %v5343
        %v5362 = vpack.c.b16 %v5346, %v5344
        %5379 = vmatprep.subr.bf16.mxu0 %v5348
        %5380 = vmatpush1.bf16.msra.mxu0 %v5347
        %5381 = vmatprep.subr.bf16.mxu0 %v5350
        %5382 = vmatpush1.bf16.msra.mxu0 %v5349
        %5383 = vmatprep.subr.bf16.mxu0 %v5352
        %5384 = vmatpush1.bf16.msra.mxu0 %v5351
        %5385 = vmatprep.subr.bf16.mxu0 %v5354
        %5386 = vmatpush1.bf16.msra.mxu0 %v5353
        %5387 = vmatprep.subr.bf16.mxu0 %v5356
        %5388 = vmatpush1.bf16.msra.mxu0 %v5355
        %5389 = vmatprep.subr.bf16.mxu0 %v5358
        %5390 = vmatpush1.bf16.msra.mxu0 %v5357
        %5391 = vmatprep.subr.bf16.mxu0 %v5360
        %5392 = vmatpush1.bf16.msra.mxu0 %v5359
        %5393 = vmatprep.subr.bf16.mxu0 %v5362
        %5394 = vmatpush1.bf16.msra.mxu0 %v5361
        %5395 = vmatprep.subr.bf16.mxu0 0
        %5396 = vmatpush1.bf16.msra.mxu0 0
        %5397 = vmatprep.subr.bf16.mxu0 0
        %5398 = vmatpush1.bf16.msra.mxu0 0
        %5399 = vmatprep.subr.bf16.mxu0 0
        %5400 = vmatpush1.bf16.msra.mxu0 0
        %5401 = vmatprep.subr.bf16.mxu0 0
        %5402 = vmatpush1.bf16.msra.mxu0 0
        %5403 = vmatprep.subr.bf16.mxu0 0
        %5404 = vmatpush1.bf16.msra.mxu0 0
        %5405 = vmatprep.subr.bf16.mxu0 0
        %5406 = vmatpush1.bf16.msra.mxu0 0
        %5407 = vmatprep.subr.bf16.mxu0 0
        %5408 = vmatpush1.bf16.msra.mxu0 0
        %5409 = vmatprep.subr.bf16.mxu0 0
        %5410 = vmatpush1.bf16.msra.mxu0 0
        %5411 = vmatprep.mubr.bf16.mxu0 0
        %5412 = vmatmul.mubr.bf16.gmra.mrb[0].mxu0 %v5269
        %v5413 = vpop.f32.mrb[0].mxu0
        %v5414 = vadd.f32 %v5292, %v5413
        %v5415 = vpop.f32.mrb[0].mxu0
        %v5416 = vadd.f32 %v5296, %v5415
        %v5417 = vpop.f32.mrb[0].mxu0
        %v5418 = vadd.f32 %v5292, %v5417
        %v5419 = vpop.f32.mrb[0].mxu0
        %v5420 = vadd.f32 %v5296, %v5419
        %5421 = vmatprep.mubr.bf16.mxu0 0
        %5422 = vmatmul.mubr.bf16.gmra.mrb[0].mxu0 %v5270
        %v5423 = vpop.f32.mrb[0].mxu0
        %v5424 = vadd.f32 %v5292, %v5423
        %v5425 = vpop.f32.mrb[0].mxu0
        %v5426 = vadd.f32 %v5296, %v5425
        %v5427 = vpop.f32.mrb[0].mxu0
        %v5428 = vadd.f32 %v5292, %v5427
        %v5429 = vpop.f32.mrb[0].mxu0
        %v5430 = vadd.f32 %v5296, %v5429
        %5431 = vdwg.mxu0
        %v5432 = vmax.f32 %v5414, 0.0
        %v5433 = vmax.f32 %v5416, 0.0
        %v5434 = vmax.f32 %v5418, 0.0
        %v5435 = vmax.f32 %v5420, 0.0
        %v5436 = vmax.f32 %v5424, 0.0
        %v5437 = vmax.f32 %v5426, 0.0
        %v5438 = vmax.f32 %v5428, 0.0
        %v5439 = vmax.f32 %v5430, 0.0
        %v5440 = vpack.c.bf16 %v5434, %v5432
        %v5441 = vpack.c.bf16 %v5435, %v5433
        %v5442 = vpack.c.bf16 %v5438, %v5436
        %v5443 = vpack.c.bf16 %v5439, %v5437
        %v5444 = vld [vmem:[%s1443] sm:$0xf]
        %v5445 = vld [vmem:[%s1443 + $0x4] sm:$0xf]
        %v5446 = vld [vmem:[%s1443 + $0x8] sm:$0xf]
        %v5447 = vld [vmem:[%s1443 + $0xc] sm:$0xf]
        %v5448 = vld [vmem:[%s1443 + $0x10] sm:$0xf]
        %v5449 = vld [vmem:[%s1443 + $0x14] sm:$0xf]
        %v5450 = vld [vmem:[%s1443 + $0x18] sm:$0xf]
        %v5451 = vld [vmem:[%s1443 + $0x1c] sm:$0xf]
        %v5452 = vld [vmem:[%s1443 + $0x20] sm:$0xf]
        %v5453 = vld [vmem:[%s1443 + $0x24] sm:$0xf]
        %v5454 = vld [vmem:[%s1443 + $0x28] sm:$0xf]
        %v5455 = vld [vmem:[%s1443 + $0x2c] sm:$0xf]
        %v5456 = vld [vmem:[%s1443 + $0x30] sm:$0xf]
        %v5457 = vld [vmem:[%s1443 + $0x34] sm:$0xf]
        %v5458 = vld [vmem:[%s1443 + $0x38] sm:$0xf]
        %v5459 = vld [vmem:[%s1443 + $0x3c] sm:$0xf]
        %v5460 = vld [vmem:[%s1443 + $0x40] sm:$0xf]
        %v5461 = vld [vmem:[%s1443 + $0x44] sm:$0xf]
        %v5462 = vld [vmem:[%s1443 + $0x48] sm:$0xf]
        %v5463 = vld [vmem:[%s1443 + $0x4c] sm:$0xf]
        %v5464 = vld [vmem:[%s1443 + $0x50] sm:$0xf]
        %v5465 = vld [vmem:[%s1443 + $0x54] sm:$0xf]
        %v5466 = vld [vmem:[%s1443 + $0x58] sm:$0xf]
        %v5467 = vld [vmem:[%s1443 + $0x5c] sm:$0xf]
        %v5468 = vld [vmem:[%s1443 + $0x60] sm:$0xf]
        %v5469 = vld [vmem:[%s1443 + $0x64] sm:$0xf]
        %v5470 = vld [vmem:[%s1443 + $0x68] sm:$0xf]
        %v5471 = vld [vmem:[%s1443 + $0x6c] sm:$0xf]
        %v5472 = vld [vmem:[%s1443 + $0x70] sm:$0xf]
        %v5473 = vld [vmem:[%s1443 + $0x74] sm:$0xf]
        %v5474 = vld [vmem:[%s1443 + $0x78] sm:$0xf]
        %v5475 = vld [vmem:[%s1443 + $0x7c] sm:$0xf]
        %v5476 = vld [vmem:[%s1647] sm:$0x1]
        %v5478 = vlaneseq
        %v5479 = vshrl.u32 %v5478, 7
        %v5480 = vsub.s32 0, %v5479
        %v5481 = vrot.slane %v5476, %v5480
        %v5515 = vunpack.c.l.b16 %v5444
        %v5516 = vunpack.c.l.b16 %v5445
        %v5517 = vunpack.c.l.b16 %v5446
        %v5518 = vunpack.c.l.b16 %v5447
        %v5519 = vunpack.c.l.b16 %v5448
        %v5520 = vunpack.c.l.b16 %v5449
        %v5521 = vunpack.c.l.b16 %v5450
        %v5522 = vunpack.c.l.b16 %v5451
        %v5523 = vunpack.c.l.b16 %v5452
        %v5524 = vunpack.c.l.b16 %v5453
        %v5525 = vunpack.c.l.b16 %v5454
        %v5526 = vunpack.c.l.b16 %v5455
        %v5527 = vunpack.c.l.b16 %v5456
        %v5528 = vunpack.c.l.b16 %v5457
        %v5529 = vunpack.c.l.b16 %v5458
        %v5530 = vunpack.c.l.b16 %v5459
        %v5531 = vunpack.c.l.b16 %v5460
        %v5532 = vunpack.c.l.b16 %v5461
        %v5533 = vunpack.c.l.b16 %v5462
        %v5534 = vunpack.c.l.b16 %v5463
        %v5535 = vunpack.c.l.b16 %v5464
        %v5536 = vunpack.c.l.b16 %v5465
        %v5537 = vunpack.c.l.b16 %v5466
        %v5538 = vunpack.c.l.b16 %v5467
        %v5539 = vunpack.c.l.b16 %v5468
        %v5540 = vunpack.c.l.b16 %v5469
        %v5541 = vunpack.c.l.b16 %v5470
        %v5542 = vunpack.c.l.b16 %v5471
        %v5543 = vunpack.c.l.b16 %v5472
        %v5544 = vunpack.c.l.b16 %v5473
        %v5545 = vunpack.c.l.b16 %v5474
        %v5546 = vunpack.c.l.b16 %v5475
        %v5547 = vpack.c.b16 %v5516, %v5515
        %v5548 = vpack.c.b16 %v5518, %v5517
        %v5549 = vpack.c.b16 %v5520, %v5519
        %v5550 = vpack.c.b16 %v5522, %v5521
        %v5551 = vpack.c.b16 %v5524, %v5523
        %v5552 = vpack.c.b16 %v5526, %v5525
        %v5553 = vpack.c.b16 %v5528, %v5527
        %v5554 = vpack.c.b16 %v5530, %v5529
        %v5555 = vpack.c.b16 %v5532, %v5531
        %v5556 = vpack.c.b16 %v5534, %v5533
        %v5557 = vpack.c.b16 %v5536, %v5535
        %v5558 = vpack.c.b16 %v5538, %v5537
        %v5559 = vpack.c.b16 %v5540, %v5539
        %v5560 = vpack.c.b16 %v5542, %v5541
        %v5561 = vpack.c.b16 %v5544, %v5543
        %v5562 = vpack.c.b16 %v5546, %v5545
        %5579 = vmatprep.subr.bf16.mxu0 0
        %5580 = vmatpush1.bf16.msra.mxu0 %v5547
        %5581 = vmatprep.subr.bf16.mxu0 0
        %5582 = vmatpush1.bf16.msra.mxu0 %v5548
        %5583 = vmatprep.subr.bf16.mxu0 0
        %5584 = vmatpush1.bf16.msra.mxu0 %v5549
        %5585 = vmatprep.subr.bf16.mxu0 0
        %5586 = vmatpush1.bf16.msra.mxu0 %v5550
        %5587 = vmatprep.subr.bf16.mxu0 0
        %5588 = vmatpush1.bf16.msra.mxu0 %v5551
        %5589 = vmatprep.subr.bf16.mxu0 0
        %5590 = vmatpush1.bf16.msra.mxu0 %v5552
        %5591 = vmatprep.subr.bf16.mxu0 0
        %5592 = vmatpush1.bf16.msra.mxu0 %v5553
        %5593 = vmatprep.subr.bf16.mxu0 0
        %5594 = vmatpush1.bf16.msra.mxu0 %v5554
        %5595 = vmatprep.subr.bf16.mxu0 0
        %5596 = vmatpush1.bf16.msra.mxu0 %v5555
        %5597 = vmatprep.subr.bf16.mxu0 0
        %5598 = vmatpush1.bf16.msra.mxu0 %v5556
        %5599 = vmatprep.subr.bf16.mxu0 0
        %5600 = vmatpush1.bf16.msra.mxu0 %v5557
        %5601 = vmatprep.subr.bf16.mxu0 0
        %5602 = vmatpush1.bf16.msra.mxu0 %v5558
        %5603 = vmatprep.subr.bf16.mxu0 0
        %5604 = vmatpush1.bf16.msra.mxu0 %v5559
        %5605 = vmatprep.subr.bf16.mxu0 0
        %5606 = vmatpush1.bf16.msra.mxu0 %v5560
        %5607 = vmatprep.subr.bf16.mxu0 0
        %5608 = vmatpush1.bf16.msra.mxu0 %v5561
        %5609 = vmatprep.subr.bf16.mxu0 0
        %5610 = vmatpush1.bf16.msra.mxu0 %v5562
        %5611 = vmatprep.mubr.bf16.mxu0 %v5441
        %5612 = vmatmul.mubr.bf16.gmra.mrb[0].mxu0 %v5440
        %v5613 = vpop.f32.mrb[0].mxu0
        %v5614 = vadd.f32 %v5481, %v5613
        %v5615 = vpop.f32.mrb[0].mxu0
        %v5616 = vpop.f32.mrb[0].mxu0
        %v5617 = vadd.f32 %v5481, %v5616
        %v5618 = vpop.f32.mrb[0].mxu0
        %5619 = vmatprep.mubr.bf16.mxu0 %v5443
        %5620 = vmatmul.mubr.bf16.gmra.mrb[0].mxu0 %v5442
        %v5621 = vpop.f32.mrb[0].mxu0
        %v5622 = vadd.f32 %v5481, %v5621
        %v5623 = vpop.f32.mrb[0].mxu0
        %v5624 = vpop.f32.mrb[0].mxu0
        %v5625 = vadd.f32 %v5481, %v5624
        %v5626 = vpop.f32.mrb[0].mxu0
        %5627 = vdwg.mxu0
        %v5628 = vadd.f32 %v5265, %v5614
        %v5629 = vadd.f32 %v5266, %v5617
        %v5630 = vadd.f32 %v5267, %v5622
        %v5631 = vadd.f32 %v5268, %v5625
        %v5632 = vld [vmem:[%s1662] sm:$0x1]
        %v5633 = vld [vmem:[%s1665] sm:$0x1]
        %5634 = vadd.xlane.f32.xlu0 %v5628
        %v5635 = vpop.xlane.xlu0 %5634
        %5636 = vadd.xlane.f32.xlu0 %v5629
        %v5637 = vpop.xlane.xlu0 %5636
        %5638 = vadd.xlane.f32.xlu0 %v5630
        %v5639 = vpop.xlane.xlu0 %5638
        %5640 = vadd.xlane.f32.xlu0 %v5631
        %v5641 = vpop.xlane.xlu0 %5640
        %v5642 = vmul.f32 %v5635, %v3397
        %v5643 = vmul.f32 %v5637, %v3397
        %v5644 = vmul.f32 %v5639, %v3397
        %v5645 = vmul.f32 %v5641, %v3397
        %v5646 = vsub.f32 %v5628, %v5642
        %v5647 = vsub.f32 %v5629, %v5643
        %v5648 = vsub.f32 %v5630, %v5644
        %v5649 = vsub.f32 %v5631, %v5645
        %v5650 = vmul.f32 %v5646, %v5646
        %v5651 = vmul.f32 %v5647, %v5647
        %v5652 = vmul.f32 %v5648, %v5648
        %v5653 = vmul.f32 %v5649, %v5649
        %5654 = vadd.xlane.f32.xlu0 %v5650
        %v5655 = vpop.xlane.xlu0 %5654
        %5656 = vadd.xlane.f32.xlu0 %v5651
        %v5657 = vpop.xlane.xlu0 %5656
        %5658 = vadd.xlane.f32.xlu0 %v5652
        %v5659 = vpop.xlane.xlu0 %5658
        %5660 = vadd.xlane.f32.xlu0 %v5653
        %v5661 = vpop.xlane.xlu0 %5660
        %v5662 = vmul.f32 %v5655, %v3397
        %v5663 = vmul.f32 %v5657, %v3397
        %v5664 = vmul.f32 %v5659, %v3397
        %v5665 = vmul.f32 %v5661, %v3397
        %v5666 = vadd.f32 %v5662, 1e-05
        %v5667 = vadd.f32 %v5663, 1e-05
        %v5668 = vadd.f32 %v5664, 1e-05
        %v5669 = vadd.f32 %v5665, 1e-05
        %v5670 = vrsqrt.pop %v5666
        %v5671 = vrsqrt.pop %v5667
        %v5672 = vrsqrt.pop %v5668
        %v5673 = vrsqrt.pop %v5669
        %v5674 = vmul.f32 %v5646, %v5670
        %v5675 = vmul.f32 %v5647, %v5671
        %v5676 = vmul.f32 %v5648, %v5672
        %v5677 = vmul.f32 %v5649, %v5673
        %v5679 = vlaneseq
        %v5680 = vshrl.u32 %v5679, 7
        %v5681 = vsub.s32 0, %v5680
        %v5682 = vrot.slane %v5632, %v5681
        %v5684 = vmul.f32 %v5674, %v5682
        %v5685 = vmul.f32 %v5675, %v5682
        %v5686 = vmul.f32 %v5676, %v5682
        %v5687 = vmul.f32 %v5677, %v5682
        %v5689 = vlaneseq
        %v5690 = vshrl.u32 %v5689, 7
        %v5691 = vsub.s32 0, %v5690
        %v5692 = vrot.slane %v5633, %v5691
        %v5694 = vadd.f32 %v5684, %v5692
        %v5695 = vadd.f32 %v5685, %v5692
        %v5696 = vadd.f32 %v5686, %v5692
        %v5697 = vadd.f32 %v5687, %v5692
        %5698 = vst [vmem:[#allocation2] sm:$0xff] %v5694
        %5699 = vst [vmem:[#allocation2 + $0x8] sm:$0xff] %v5695
        %5700 = vst [vmem:[#allocation2 + $0x10] sm:$0xff] %v5696
        %5701 = vst [vmem:[#allocation2 + $0x18] sm:$0xff] %v5697
        %p5702 = scmp.eq.s32.totalorder %s85, 1
        // Predicated region
        $region209: #{tpu_custom_call.1} parent=147 // pred_check
          %p5703 = pneg %p5702
        $region210: #{tpu_custom_call.1} parent=147 // pred_check_branch
          %5705 = sbr.rel (%p5703) target = $region212
        $region211: #{tpu_custom_call.1} parent=147 // pred_region
          %v5706 = vld [vmem:[%s61] sm:$0x1]
          %v5707 = vld [vmem:[%s63] sm:$0x1]
          %5708 = vadd.xlane.f32.xlu0 %v5694
          %v5709 = vpop.xlane.xlu0 %5708
          %5710 = vadd.xlane.f32.xlu0 %v5695
          %v5711 = vpop.xlane.xlu0 %5710
          %5712 = vadd.xlane.f32.xlu0 %v5696
          %v5713 = vpop.xlane.xlu0 %5712
          %5714 = vadd.xlane.f32.xlu0 %v5697
          %v5715 = vpop.xlane.xlu0 %5714
          %v5716 = vmul.f32 %v5709, %v3397
          %v5717 = vmul.f32 %v5711, %v3397
          %v5718 = vmul.f32 %v5713, %v3397
          %v5719 = vmul.f32 %v5715, %v3397
          %v5720 = vsub.f32 %v5694, %v5716
          %v5721 = vsub.f32 %v5695, %v5717
          %v5722 = vsub.f32 %v5696, %v5718
          %v5723 = vsub.f32 %v5697, %v5719
          %v5724 = vmul.f32 %v5720, %v5720
          %v5725 = vmul.f32 %v5721, %v5721
          %v5726 = vmul.f32 %v5722, %v5722
          %v5727 = vmul.f32 %v5723, %v5723
          %5728 = vadd.xlane.f32.xlu0 %v5724
          %v5729 = vpop.xlane.xlu0 %5728
          %5730 = vadd.xlane.f32.xlu0 %v5725
          %v5731 = vpop.xlane.xlu0 %5730
          %5732 = vadd.xlane.f32.xlu0 %v5726
          %v5733 = vpop.xlane.xlu0 %5732
          %5734 = vadd.xlane.f32.xlu0 %v5727
          %v5735 = vpop.xlane.xlu0 %5734
          %v5736 = vmul.f32 %v5729, %v3397
          %v5737 = vmul.f32 %v5731, %v3397
          %v5738 = vmul.f32 %v5733, %v3397
          %v5739 = vmul.f32 %v5735, %v3397
          %v5740 = vadd.f32 %v5736, 1e-05
          %v5741 = vadd.f32 %v5737, 1e-05
          %v5742 = vadd.f32 %v5738, 1e-05
          %v5743 = vadd.f32 %v5739, 1e-05
          %v5744 = vrsqrt.pop %v5740
          %v5745 = vrsqrt.pop %v5741
          %v5746 = vrsqrt.pop %v5742
          %v5747 = vrsqrt.pop %v5743
          %v5748 = vmul.f32 %v5720, %v5744
          %v5749 = vmul.f32 %v5721, %v5745
          %v5750 = vmul.f32 %v5722, %v5746
          %v5751 = vmul.f32 %v5723, %v5747
          %v5753 = vlaneseq
          %v5754 = vshrl.u32 %v5753, 7
          %v5755 = vsub.s32 0, %v5754
          %v5756 = vrot.slane %v5706, %v5755
          %v5758 = vmul.f32 %v5748, %v5756
          %v5759 = vmul.f32 %v5749, %v5756
          %v5760 = vmul.f32 %v5750, %v5756
          %v5761 = vmul.f32 %v5751, %v5756
          %v5763 = vlaneseq
          %v5764 = vshrl.u32 %v5763, 7
          %v5765 = vsub.s32 0, %v5764
          %v5766 = vrot.slane %v5707, %v5765
          %v5768 = vadd.f32 %v5758, %v5766
          %v5769 = vadd.f32 %v5759, %v5766
          %v5770 = vadd.f32 %v5760, %v5766
          %v5771 = vadd.f32 %v5761, %v5766
          %5772 = vst [vmem:[#allocation23] sm:$0xff] %v5768
          %5773 = vst [vmem:[#allocation23 + $0x8] sm:$0xff] %v5769
          %5774 = vst [vmem:[#allocation23 + $0x10] sm:$0xff] %v5770
          %5775 = vst [vmem:[#allocation23 + $0x18] sm:$0xff] %v5771
        $region212: #{tpu_custom_call.1} parent=147 // pred_fallthru
          _
        // Predicated region
        $region213: #{tpu_custom_call.1} parent=147 // pred_check
          %p5776 = pneg %p932
        $region214: #{tpu_custom_call.1} parent=147 // pred_check_branch
          %5778 = sbr.rel (%p5776) target = $region216
        $region215: #{tpu_custom_call.1} parent=147 // pred_region
          %s5779 = smul.u32 2, %s84
          %s5781 = ssub.s32 512, 512
          %5782 = vsyncadd [#allocation7], %s5781
          %s5783 = smul.addr %s5779, 2
          %s5784 = smul.addr %s5783, 128
          %s5785 = scalar_lea.hbm %s65, %s5784
          %s5786 = sshll.u32 [#allocation23], 4
          %s5787 = int_to_ptr.vmem [resolvable:$true] %s5786
          %5792 = dma.vmem_to_hbm [thread:$0]  %s5787, 512, %s5785, [#allocation7], 128, 128, 8
        $region216: #{tpu_custom_call.1} parent=147 // pred_fallthru
          _
        // Predicated region
        $region217: #{tpu_custom_call.1} parent=147 // pred_check
          %p5793 = pneg %p932
        $region218: #{tpu_custom_call.1} parent=147 // pred_check_branch
          %5795 = sbr.rel (%p5793) target = $region220
        $region219: #{tpu_custom_call.1} parent=147 // pred_region
          %5796 = dma.done [#allocation7], 512
        $region220: #{tpu_custom_call.1} parent=147 // pred_fallthru
          _
      $region148: #{tpu_custom_call.1} parent=5 // pred_fallthru
        _
      %p5797 = scmp.le.s32.totalorder 2, %s75
      // Predicated region
      $region221: #{tpu_custom_call.1} parent=5 // pred_check
        %p5798 = pneg %p5797
      $region222: #{tpu_custom_call.1} parent=5 // pred_check_branch
        %5800 = sbr.rel (%p5798) target = $region224
      $region223: #{tpu_custom_call.1} parent=5 // pred_region
        %s5801 = ssub.s32 %s75, 2
      $region224: #{tpu_custom_call.1} parent=5 // pred_fallthru
        _
    $region6: #{tpu_custom_call.1} parent=1 // loop_footer
      %s79 = sadd.s32 1, %s75
    $region7: #{tpu_custom_call.1} parent=1 // loop_footer_branch
      %74 = sbr.rel target = $region3
    $region8: #{tpu_custom_call.1} parent=1 // loop_exit
      _
    %5802 = vsyncpa [#allocation6], 1
    %s5803 = scalar_lea.sflag [#allocation6], 1
    %5804 = vsyncpa %s5803, 1
    %5805 = vsyncpa [#allocation9], 1
    %5806 = vsyncpa [#allocation12], 1
    %5807 = vsyncpa [#allocation7], 1
    %s5808 = scalar_lea.sflag [#allocation7], 1
    %5809 = vsyncpa %s5808, 1

</llo_original>
